<compile_context>
chip_gen: v6e
topology: v6e:2x2x1
jax: 0.10.0
libtpu: 0.0.40
codegen_flags: <defaults>
</compile_context>

<pallas_src>
import functools

import jax
import jax.numpy as jnp
from jax.experimental import pallas as pl
from jax.experimental.pallas import tpu as pltpu


# ----------------------------------------------------------------------------
# In-kernel building blocks
# ----------------------------------------------------------------------------
def _softmax_last(e):
    m = jnp.max(e, axis=-1, keepdims=True)
    p = jnp.exp(e - m)
    s = jnp.sum(p, axis=-1, keepdims=True)
    # approx reciprocal runs on the (otherwise idle) EUP slot instead of a VPU divide
    return p * pl.reciprocal(s, approx=True)


def _attn_block(qb, kb, vb):
    """One batch of independent row attentions. qb/kb/vb: (Nb, L, C) bf16."""
    e = jnp.einsum('bic,bjc->bij', qb, kb, preferred_element_type=jnp.float32)
    a = _softmax_last(e)
    return jnp.einsum('bij,bjc->bic', a.astype(jnp.bfloat16), vb,
                      preferred_element_type=jnp.float32)


def _attn_batched(qb, kb, vb, row_chunk):
    """Chunk the independent leading (row) axis so f32 score tensors stay small.

    The key axis per attention instance is the full L (no online softmax needed);
    chunking the leading axis is exact.  At small shapes this is a single chunk.
    """
    nb = qb.shape[0]
    if nb <= row_chunk:
        return _attn_block(qb, kb, vb)
    outs = []
    for s in range(0, nb, row_chunk):
        e = min(s + row_chunk, nb)
        outs.append(_attn_block(qb[s:e], kb[s:e], vb[s:e]))
    return jnp.concatenate(outs, axis=0)


def _axial_attention(x, w_qkv, gamma, cq, cv, row_chunk):
    """Dual axial attention with a fused 1x1 q|k|v projection.

    x: (bB, H, W, Cin) f32.  w_qkv: (Cin, 2*cq+cv) bf16 (pre-transposed, fused).
    Returns (fea (bB,H,W,cv) f32, fea_h (bB,H,cq) f32, fea_w (bB,W,cq) f32).
    """
    bB, H, W, Cin = x.shape
    xb = x.astype(jnp.bfloat16)

    # --- fused qkv projection on the (H, W) layout: one wide bf16 MXU matmul.
    qkv = jnp.dot(xb.reshape(bB * H * W, Cin), w_qkv,
                  preferred_element_type=jnp.float32)
    q = qkv[:, :cq]
    k = qkv[:, cq:2 * cq]
    v = qkv[:, 2 * cq:2 * cq + cv]

    # --- attention along W (independent per (image, row)): batch axis leading,
    # contraction on lanes -> MXU-native batched matmuls.
    qb = q.reshape(bB * H, W, cq).astype(jnp.bfloat16)
    kb = k.reshape(bB * H, W, cq).astype(jnp.bfloat16)
    vb = v.reshape(bB * H, W, cv).astype(jnp.bfloat16)
    out_w = _attn_batched(qb, kb, vb, row_chunk).reshape(bB, H, W, cv)

    # --- attention along H: transpose the INPUT once and re-run the (cheap) fused
    # projection on the transposed copy instead of transposing q, k AND v.
    xt = jnp.transpose(x, (0, 2, 1, 3)).astype(jnp.bfloat16)     # (bB, W, H, Cin)
    qkv_t = jnp.dot(xt.reshape(bB * W * H, Cin), w_qkv,
                    preferred_element_type=jnp.float32)
    qt = qkv_t[:, :cq].reshape(bB * W, H, cq).astype(jnp.bfloat16)
    kt = qkv_t[:, cq:2 * cq].reshape(bB * W, H, cq).astype(jnp.bfloat16)
    vt = qkv_t[:, 2 * cq:2 * cq + cv].reshape(bB * W, H, cv).astype(jnp.bfloat16)
    out_ht = _attn_batched(qt, kt, vt, row_chunk).reshape(bB, W, H, cv)
    out_h = jnp.transpose(out_ht, (0, 2, 1, 3))                   # (bB, H, W, cv)

    fea = gamma * (out_h + out_w) + x          # f32 residual (requires cv == Cin)

    # dual "token" features (H-profile of q / W-profile of k), lane-dense C last.
    q4 = q.reshape(bB, H, W, cq)
    k4 = k.reshape(bB, H, W, cq)
    fea_h = jnp.mean(q4, axis=2)               # (bB, H, cq)
    fea_w = jnp.mean(k4, axis=1)               # (bB, W, cq)
    return fea, fea_h, fea_w


def _conv1d_sigmoid(fea_blc, w_kcn, b_1n):
    """Conv1d(C -> NC, k=K, stride=1, valid) + Sigmoid on (bB, L, C) features.

    w_kcn: (K, C, NC) bf16 pre-transposed conv weight, b_1n: (1, NC) f32.
    Returns (bB, Lout, NC) f32 (lane-dense store; PyTorch layout restored in wrapper).
    """
    bB, L, C = fea_blc.shape
    K, _, NC = w_kcn.shape
    Lout = L - K + 1
    xb = fea_blc.astype(jnp.bfloat16)
    acc = jnp.zeros((bB, Lout, NC), jnp.float32) + b_1n
    for t in range(K):                         # K = 3: unrolled shifted bf16 matmuls
        acc = acc + jnp.einsum('blc,cn->bln', xb[:, t:t + Lout, :], w_kcn[t],
                               preferred_element_type=jnp.float32)
    return 1.0 / (1.0 + jnp.exp(-acc))


# ----------------------------------------------------------------------------
# Fused kernel: crtt -> ccatt -> both conv1d+sigmoid heads, per batch chunk.
# ----------------------------------------------------------------------------
def _dhw_fused_kernel(x_ref, qkv_ref, convw_ref, convb_ref,
                      fea_ref, hp1_ref, wp1_ref, hp2_ref, wp2_ref,
                      *, gamma, cq, cv, row_chunk):
    x0 = x_ref[...]                                               # (bB, H, W, Cin) f32

    w_qkv1 = qkv_ref[0]                                           # (Cin, 2cq+cv) bf16
    w_qkv2 = qkv_ref[1]
    hw_w = convw_ref[0]                                           # (K, cq, NC) bf16
    ww_w = convw_ref[1]
    hw_b = convb_ref[0]                                           # (1, NC) f32
    ww_b = convb_ref[1]

    # crtt then ccatt; intermediate fea stays resident (no HBM round-trip).
    fea1, fh1, fw1 = _axial_attention(x0, w_qkv1, gamma, cq, cv, row_chunk)
    fea2, fh2, fw2 = _axial_attention(fea1, w_qkv2, gamma, cq, cv, row_chunk)

    fea_ref[...] = fea2

    # hw_fea_get fused epilogue:  fea_hp = h_conv1(fea_w),  fea_wp = w_conv1(fea_h)
    hp1_ref[...] = _conv1d_sigmoid(fw1, hw_w, hw_b)
    wp1_ref[...] = _conv1d_sigmoid(fh1, ww_w, ww_b)
    hp2_ref[...] = _conv1d_sigmoid(fw2, hw_w, hw_b)
    wp2_ref[...] = _conv1d_sigmoid(fh2, ww_w, ww_b)


# ----------------------------------------------------------------------------
# Wrapper: PyTorch-layout params -> kernel-layout operands, one pallas_call.
# ----------------------------------------------------------------------------
def _prep_qkv_weights(p):
    # PyTorch 1x1 conv / linear weights are (Cout, Cin); pre-transpose to (Cin, Cout),
    # fuse q|k|v along the output dim, and cast to bf16 (one wide MXU matmul per layer).
    wq = jnp.asarray(p['wq']).T
    wk = jnp.asarray(p['wk']).T
    wv = jnp.asarray(p['wv']).T
    fused = jnp.concatenate([wq, wk, wv], axis=1).astype(jnp.bfloat16)
    return fused, wq.shape[1], wv.shape[1]


def _prep_conv_weights(p):
    # PyTorch Conv1d weight (NC, C, K) -> (K, C, NC) bf16; bias (NC,) -> (1, NC) f32.
    w = jnp.transpose(jnp.asarray(p['w']), (2, 1, 0)).astype(jnp.bfloat16)
    b = jnp.asarray(p['b']).reshape(1, -1).astype(jnp.float32)
    return w, b


def _pick_batch_chunk(batch, hw):
    # Largest divisor of B keeping per-step matmul rows (bB*H*W) <= 4096; if that
    # collapses the grid to a single step, fall back to a smaller divisor that still
    # keeps >=256 rows (so v7x megacore / pipelining gets >=2 steps when possible).
    divs = [d for d in range(1, batch + 1) if batch % d == 0]
    ok = [d for d in divs if d * hw <= 4096] or [1]
    b_chunk = max(ok)
    if batch // b_chunk < 2:
        smaller = [d for d in ok if d < b_chunk and d * hw >= 256]
        if smaller:
            b_chunk = max(smaller)
    return b_chunk


def dhwttention_forward(x_nchw, params, gamma=0.5):
    # NOTE: gamma is baked in at trace time (runtime-varying gamma would recompile).
    x = jnp.transpose(x_nchw, (0, 2, 3, 1)).astype(jnp.float32)   # NCHW -> NHWC
    B, H, W, Cin = x.shape
    assert H >= 3 and W >= 3, "conv1d heads (k=3, valid) require H, W >= 3"

    qkv1, cq, cv = _prep_qkv_weights(params['crtt'])
    qkv2, cq2, cv2 = _prep_qkv_weights(params['ccatt'])
    assert (cq, cv) == (cq2, cv2), "both attention layers must share q/k/v dims"
    assert cv == Cin, "residual path requires out_dim == in_dim"
    qkv_w = jnp.stack([qkv1, qkv2])                      # (2, Cin, 2cq+cv) bf16
    ctot = qkv_w.shape[-1]

    hw_w, hw_b = _prep_conv_weights(params['h_conv1'])
    ww_w, ww_b = _prep_conv_weights(params['w_conv1'])
    conv_w = jnp.stack([hw_w, ww_w])                     # (2, K, cq, NC) bf16
    conv_b = jnp.stack([hw_b, ww_b])                     # (2, 1, NC)    f32
    K, Cc, NC = conv_w.shape[1], conv_w.shape[2], conv_w.shape[3]
    assert Cc == cq, "conv1d head input channels must equal mid_dim // 2"
    Lh = H - K + 1           # length of w_conv1(fea_h) output
    Lw = W - K + 1           # length of h_conv1(fea_w) output

    bB = _pick_batch_chunk(B, H * W)
    grid = (B // bB,)

    # Chunk the attention's independent-row axis so each f32 score block is ~4 MiB.
    Lmax = max(H, W)
    row_chunk = max(8, ((4 << 20) // max(1, Lmax * Lmax * 4)) // 8 * 8)

    # Explicit VMEM budget (default scoped limit is only 16/32 MiB on v5e/v6e/v7x).
    rows = bB * H * W
    est = (2 * 2 * rows * Cin * 4                          # x in + fea out, dbl-buffered
           + 2 * rows * ctot * 4                           # fused qkv (both layouts), f32
           + 4 * rows * cv * 4                             # out_w / out_h / fea copies
           + 3 * min(row_chunk, bB * Lmax) * Lmax * Lmax * 4   # score / prob chunks
           + 4 * rows * Cin * 2)                           # bf16 copies of x / x_t
    try:
        vmem_cap = pltpu.get_tpu_info().vmem_capacity_bytes
    except Exception:
        vmem_cap = 64 << 20
    vmem_limit = int(min(max(3 * est, 32 << 20), int(0.85 * vmem_cap)))

    kernel = functools.partial(_dhw_fused_kernel, gamma=gamma, cq=cq, cv=cv,
                               row_chunk=row_chunk)
    out_shape = (
        jax.ShapeDtypeStruct((B, H, W, Cin), jnp.float32),   # fea (NHWC)
        jax.ShapeDtypeStruct((B, Lw, NC), jnp.float32),      # fea_hp (layer 1)
        jax.ShapeDtypeStruct((B, Lh, NC), jnp.float32),      # fea_wp (layer 1)
        jax.ShapeDtypeStruct((B, Lw, NC), jnp.float32),      # fea_hp (layer 2)
        jax.ShapeDtypeStruct((B, Lh, NC), jnp.float32),      # fea_wp (layer 2)
    )

    fea, hp1, wp1, hp2, wp2 = pl.pallas_call(
        kernel,
        out_shape=out_shape,
        grid_spec=pltpu.PrefetchScalarGridSpec(
            num_scalar_prefetch=0,
            grid=grid,
            in_specs=[
                pl.BlockSpec((bB, H, W, Cin), lambda b: (b, 0, 0, 0)),   # x chunk
                pl.BlockSpec((2, Cin, ctot), lambda b: (0, 0, 0)),       # fused qkv w
                pl.BlockSpec((2, K, Cc, NC), lambda b: (0, 0, 0, 0)),    # conv weights
                pl.BlockSpec((2, 1, NC), lambda b: (0, 0, 0)),           # conv biases
            ],
            out_specs=[
                pl.BlockSpec((bB, H, W, Cin), lambda b: (b, 0, 0, 0)),
                pl.BlockSpec((bB, Lw, NC), lambda b: (b, 0, 0)),
                pl.BlockSpec((bB, Lh, NC), lambda b: (b, 0, 0)),
                pl.BlockSpec((bB, Lw, NC), lambda b: (b, 0, 0)),
                pl.BlockSpec((bB, Lh, NC), lambda b: (b, 0, 0)),
            ],
        ),
        compiler_params=pltpu.CompilerParams(
            dimension_semantics=("parallel",),
            vmem_limit_bytes=vmem_limit,
        ),
    )(x, qkv_w, conv_w, conv_b)

    fea_nchw = jnp.transpose(fea, (0, 3, 1, 2))                   # back to NCHW
    # Conv heads stored lane-dense (Lout, NC) in-kernel; restore PyTorch (NC, Lout)
    # with a free wrapper-side transpose.
    hw_list = [(jnp.transpose(hp1, (0, 2, 1)), jnp.transpose(wp1, (0, 2, 1))),
               (jnp.transpose(hp2, (0, 2, 1)), jnp.transpose(wp2, (0, 2, 1)))]
    return fea_nchw, hw_list


# ----------------------------------------------------------------------------
# Deterministic synthetic parameters (PyTorch layouts)
# ----------------------------------------------------------------------------
def init_params(key, in_dim, mid_dim, out_dim, num_classes):
    ks = jax.random.split(key, 10)
    cq = mid_dim // 2

    def proj(k, o, i):
        return jax.random.normal(k, (o, i), jnp.float32) * (1.0 / jnp.sqrt(i))

    return dict(
        crtt=dict(wq=proj(ks[0], cq, in_dim),
                  wk=proj(ks[1], cq, in_dim),
                  wv=proj(ks[2], out_dim, in_dim)),
        ccatt=dict(wq=proj(ks[3], cq, in_dim),
                   wk=proj(ks[4], cq, in_dim),
                   wv=proj(ks[5], out_dim, in_dim)),
        h_conv1=dict(w=jax.random.normal(ks[6], (num_classes, cq, 3), jnp.float32) * 0.1,
                     b=jax.random.normal(ks[7], (num_classes,), jnp.float32) * 0.01),
        w_conv1=dict(w=jax.random.normal(ks[8], (num_classes, cq, 3), jnp.float32) * 0.1,
                     b=jax.random.normal(ks[9], (num_classes,), jnp.float32) * 0.01),
    )


if __name__ == "__main__":
    # Small shapes consistent with the module: in_dim=mid_dim=out_dim, square map.
    B, in_dim, H, W = 2, 32, 8, 8
    mid_dim, out_dim, num_classes = 32, 32, 5

    key = jax.random.PRNGKey(0)
    kx, kp = jax.random.split(key)
    x = jax.random.normal(kx, (B, in_dim, H, W), jnp.float32)
    params = init_params(kp, in_dim, mid_dim, out_dim, num_classes)

    fea, hw_list = dhwttention_forward(x, params)
    fea = jax.block_until_ready(fea)
    for hp, wp in hw_list:
        jax.block_until_ready(hp)
        jax.block_until_ready(wp)

    assert fea.shape == (B, out_dim, H, W)
    assert bool(jnp.all(jnp.isfinite(fea)))
    assert all(hp.shape == (B, num_classes, W - 2) and wp.shape == (B, num_classes, H - 2)
               for hp, wp in hw_list)
    assert all(bool(jnp.all((hp >= 0) & (hp <= 1))) and bool(jnp.all((wp >= 0) & (wp <= 1)))
               for hp, wp in hw_list)
    print("KERNEL_OK")
</pallas_src>

<mosaic_0001>
module attributes {stable_mosaic.version = 11 : i64} {
  func.func @_dhw_fused_kernel(%arg0: i32, %arg1: memref<2x8x8x32xf32, #tpu.memory_space<vmem>>, %arg2: memref<2x32x64xbf16, #tpu.memory_space<vmem>>, %arg3: memref<2x3x16x5xbf16, #tpu.memory_space<vmem>>, %arg4: memref<2x1x5xf32, #tpu.memory_space<vmem>>, %arg5: memref<2x8x8x32xf32, #tpu.memory_space<vmem>>, %arg6: memref<2x6x5xf32, #tpu.memory_space<vmem>>, %arg7: memref<2x6x5xf32, #tpu.memory_space<vmem>>, %arg8: memref<2x6x5xf32, #tpu.memory_space<vmem>>, %arg9: memref<2x6x5xf32, #tpu.memory_space<vmem>>) attributes {dimension_semantics = [#tpu.dimension_semantics<parallel>], iteration_bounds = array<i64: 1>, scalar_prefetch = 0 : i64, scratch_operands = 0 : i64, tpu.core_type = #tpu.core_type<tc>, window_params = [{transform_indices = @transform_0, window_bounds = array<i64: 2, 8, 8, 32>}, {pipeline_mode = #tpu.pipeline_mode<synchronous>, transform_indices = @transform_1, window_bounds = array<i64: 2, 32, 64>}, {pipeline_mode = #tpu.pipeline_mode<synchronous>, transform_indices = @transform_2, window_bounds = array<i64: 2, 3, 16, 5>}, {pipeline_mode = #tpu.pipeline_mode<synchronous>, transform_indices = @transform_3, window_bounds = array<i64: 2, 1, 5>}, {transform_indices = @transform_4, window_bounds = array<i64: 2, 8, 8, 32>}, {transform_indices = @transform_5, window_bounds = array<i64: 2, 6, 5>}, {transform_indices = @transform_6, window_bounds = array<i64: 2, 6, 5>}, {transform_indices = @transform_7, window_bounds = array<i64: 2, 6, 5>}, {transform_indices = @transform_8, window_bounds = array<i64: 2, 6, 5>}]} {
    %c0 = arith.constant 0 : index
    %c0_0 = arith.constant 0 : index
    %c0_1 = arith.constant 0 : index
    %c0_2 = arith.constant 0 : index
    %0 = vector.load %arg1[%c0, %c0_0, %c0_1, %c0_2] : memref<2x8x8x32xf32, #tpu.memory_space<vmem>>, vector<2x8x8x32xf32>
    %c0_3 = arith.constant 0 : index
    %c0_4 = arith.constant 0 : index
    %c0_5 = arith.constant 0 : index
    %1 = vector.load %arg2[%c0_3, %c0_4, %c0_5] : memref<2x32x64xbf16, #tpu.memory_space<vmem>>, vector<1x32x64xbf16>
    %2 = vector.shape_cast %1 : vector<1x32x64xbf16> to vector<32x64xbf16>
    %c1 = arith.constant 1 : index
    %c0_6 = arith.constant 0 : index
    %c0_7 = arith.constant 0 : index
    %3 = vector.load %arg2[%c1, %c0_6, %c0_7] : memref<2x32x64xbf16, #tpu.memory_space<vmem>>, vector<1x32x64xbf16>
    %4 = vector.shape_cast %3 : vector<1x32x64xbf16> to vector<32x64xbf16>
    %c0_8 = arith.constant 0 : index
    %c0_9 = arith.constant 0 : index
    %c0_10 = arith.constant 0 : index
    %c0_11 = arith.constant 0 : index
    %5 = vector.load %arg3[%c0_8, %c0_9, %c0_10, %c0_11] : memref<2x3x16x5xbf16, #tpu.memory_space<vmem>>, vector<1x3x16x5xbf16>
    %6 = vector.shape_cast %5 : vector<1x3x16x5xbf16> to vector<3x16x5xbf16>
    %c1_12 = arith.constant 1 : index
    %c0_13 = arith.constant 0 : index
    %c0_14 = arith.constant 0 : index
    %c0_15 = arith.constant 0 : index
    %7 = vector.load %arg3[%c1_12, %c0_13, %c0_14, %c0_15] : memref<2x3x16x5xbf16, #tpu.memory_space<vmem>>, vector<1x3x16x5xbf16>
    %8 = vector.shape_cast %7 : vector<1x3x16x5xbf16> to vector<3x16x5xbf16>
    %c0_16 = arith.constant 0 : index
    %c0_17 = arith.constant 0 : index
    %c0_18 = arith.constant 0 : index
    %9 = vector.load %arg4[%c0_16, %c0_17, %c0_18] : memref<2x1x5xf32, #tpu.memory_space<vmem>>, vector<1x1x5xf32>
    %10 = vector.shape_cast %9 : vector<1x1x5xf32> to vector<1x5xf32>
    %c1_19 = arith.constant 1 : index
    %c0_20 = arith.constant 0 : index
    %c0_21 = arith.constant 0 : index
    %11 = vector.load %arg4[%c1_19, %c0_20, %c0_21] : memref<2x1x5xf32, #tpu.memory_space<vmem>>, vector<1x1x5xf32>
    %12 = vector.shape_cast %11 : vector<1x1x5xf32> to vector<1x5xf32>
    %13 = arith.truncf %0 : vector<2x8x8x32xf32> to vector<2x8x8x32xbf16>
    %14 = vector.shape_cast %13 : vector<2x8x8x32xbf16> to vector<128x32xbf16>
    %cst = arith.constant dense<0.000000e+00> : vector<128x64xf32>
    %15 = tpu.matmul %14, %2, %cst {dimension_numbers = #tpu.dot_dimension_numbers<[1], [0], [0], [1], [0, 0, 1, 1], [], []>} : vector<128x32xbf16>, vector<32x64xbf16>, vector<128x64xf32> -> vector<128x64xf32>
    %16 = vector.extract_strided_slice %15 {offsets = [0, 0], sizes = [128, 16], strides = [1, 1]} : vector<128x64xf32> to vector<128x16xf32>
    %17 = vector.extract_strided_slice %15 {offsets = [0, 16], sizes = [128, 16], strides = [1, 1]} : vector<128x64xf32> to vector<128x16xf32>
    %18 = vector.extract_strided_slice %15 {offsets = [0, 32], sizes = [128, 32], strides = [1, 1]} : vector<128x64xf32> to vector<128x32xf32>
    %19 = vector.shape_cast %16 : vector<128x16xf32> to vector<16x8x16xf32>
    %20 = arith.truncf %19 : vector<16x8x16xf32> to vector<16x8x16xbf16>
    %21 = vector.shape_cast %17 : vector<128x16xf32> to vector<16x8x16xf32>
    %22 = arith.truncf %21 : vector<16x8x16xf32> to vector<16x8x16xbf16>
    %23 = vector.shape_cast %18 : vector<128x32xf32> to vector<16x8x32xf32>
    %24 = arith.truncf %23 : vector<16x8x32xf32> to vector<16x8x32xbf16>
    "tpu.trace_start"() <{level = 10 : i32, message = "bic,bjc->bij"}> : () -> ()
    %cst_22 = arith.constant dense<0.000000e+00> : vector<16x8x8xf32>
    %25 = tpu.matmul %20, %22, %cst_22 {dimension_numbers = #tpu.dot_dimension_numbers<[2], [2], [1], [1], [0, 0, 0, 1, 1, 1], [0], [0]>} : vector<16x8x16xbf16>, vector<16x8x16xbf16>, vector<16x8x8xf32> -> vector<16x8x8xf32>
    "tpu.trace_stop"() : () -> ()
    %cst_23 = arith.constant dense<0xFF800000> : vector<16x8xf32>
    %26 = vector.multi_reduction <maximumf>, %25, %cst_23 [2] : vector<16x8x8xf32> to vector<16x8xf32>
    %27 = vector.shape_cast %26 : vector<16x8xf32> to vector<16x8x1xf32>
    %28 = vector.broadcast %27 : vector<16x8x1xf32> to vector<16x8x8xf32>
    %29 = arith.subf %25, %28 : vector<16x8x8xf32>
    %30 = math.exp %29 : vector<16x8x8xf32>
    %cst_24 = arith.constant dense<0.000000e+00> : vector<16x8xf32>
    %31 = vector.multi_reduction <add>, %30, %cst_24 [2] : vector<16x8x8xf32> to vector<16x8xf32>
    %32 = vector.shape_cast %31 : vector<16x8xf32> to vector<16x8x1xf32>
    %33 = tpu.reciprocal %32 {approx = true} : vector<16x8x1xf32> -> vector<16x8x1xf32>
    %34 = vector.broadcast %33 : vector<16x8x1xf32> to vector<16x8x8xf32>
    %35 = arith.mulf %30, %34 : vector<16x8x8xf32>
    %36 = arith.truncf %35 : vector<16x8x8xf32> to vector<16x8x8xbf16>
    "tpu.trace_start"() <{level = 10 : i32, message = "bij,bjc->bic"}> : () -> ()
    %cst_25 = arith.constant dense<0.000000e+00> : vector<16x8x32xf32>
    %37 = tpu.matmul %36, %24, %cst_25 {dimension_numbers = #tpu.dot_dimension_numbers<[2], [1], [1], [2], [0, 0, 0, 1, 1, 2], [0], [0]>} : vector<16x8x8xbf16>, vector<16x8x32xbf16>, vector<16x8x32xf32> -> vector<16x8x32xf32>
    "tpu.trace_stop"() : () -> ()
    %38 = vector.shape_cast %37 : vector<16x8x32xf32> to vector<2x8x8x32xf32>
    %39 = tpu.transpose %0, [0, 2, 1, 3] : vector<2x8x8x32xf32> -> vector<2x8x8x32xf32>
    %40 = arith.truncf %39 : vector<2x8x8x32xf32> to vector<2x8x8x32xbf16>
    %41 = vector.shape_cast %40 : vector<2x8x8x32xbf16> to vector<128x32xbf16>
    %cst_26 = arith.constant dense<0.000000e+00> : vector<128x64xf32>
    %42 = tpu.matmul %41, %2, %cst_26 {dimension_numbers = #tpu.dot_dimension_numbers<[1], [0], [0], [1], [0, 0, 1, 1], [], []>} : vector<128x32xbf16>, vector<32x64xbf16>, vector<128x64xf32> -> vector<128x64xf32>
    %43 = vector.extract_strided_slice %42 {offsets = [0, 0], sizes = [128, 16], strides = [1, 1]} : vector<128x64xf32> to vector<128x16xf32>
    %44 = vector.shape_cast %43 : vector<128x16xf32> to vector<16x8x16xf32>
    %45 = arith.truncf %44 : vector<16x8x16xf32> to vector<16x8x16xbf16>
    %46 = vector.extract_strided_slice %42 {offsets = [0, 16], sizes = [128, 16], strides = [1, 1]} : vector<128x64xf32> to vector<128x16xf32>
    %47 = vector.shape_cast %46 : vector<128x16xf32> to vector<16x8x16xf32>
    %48 = arith.truncf %47 : vector<16x8x16xf32> to vector<16x8x16xbf16>
    %49 = vector.extract_strided_slice %42 {offsets = [0, 32], sizes = [128, 32], strides = [1, 1]} : vector<128x64xf32> to vector<128x32xf32>
    %50 = vector.shape_cast %49 : vector<128x32xf32> to vector<16x8x32xf32>
    %51 = arith.truncf %50 : vector<16x8x32xf32> to vector<16x8x32xbf16>
    "tpu.trace_start"() <{level = 10 : i32, message = "bic,bjc->bij"}> : () -> ()
    %cst_27 = arith.constant dense<0.000000e+00> : vector<16x8x8xf32>
    %52 = tpu.matmul %45, %48, %cst_27 {dimension_numbers = #tpu.dot_dimension_numbers<[2], [2], [1], [1], [0, 0, 0, 1, 1, 1], [0], [0]>} : vector<16x8x16xbf16>, vector<16x8x16xbf16>, vector<16x8x8xf32> -> vector<16x8x8xf32>
    "tpu.trace_stop"() : () -> ()
    %cst_28 = arith.constant dense<0xFF800000> : vector<16x8xf32>
    %53 = vector.multi_reduction <maximumf>, %52, %cst_28 [2] : vector<16x8x8xf32> to vector<16x8xf32>
    %54 = vector.shape_cast %53 : vector<16x8xf32> to vector<16x8x1xf32>
    %55 = vector.broadcast %54 : vector<16x8x1xf32> to vector<16x8x8xf32>
    %56 = arith.subf %52, %55 : vector<16x8x8xf32>
    %57 = math.exp %56 : vector<16x8x8xf32>
    %cst_29 = arith.constant dense<0.000000e+00> : vector<16x8xf32>
    %58 = vector.multi_reduction <add>, %57, %cst_29 [2] : vector<16x8x8xf32> to vector<16x8xf32>
    %59 = vector.shape_cast %58 : vector<16x8xf32> to vector<16x8x1xf32>
    %60 = tpu.reciprocal %59 {approx = true} : vector<16x8x1xf32> -> vector<16x8x1xf32>
    %61 = vector.broadcast %60 : vector<16x8x1xf32> to vector<16x8x8xf32>
    %62 = arith.mulf %57, %61 : vector<16x8x8xf32>
    %63 = arith.truncf %62 : vector<16x8x8xf32> to vector<16x8x8xbf16>
    "tpu.trace_start"() <{level = 10 : i32, message = "bij,bjc->bic"}> : () -> ()
    %cst_30 = arith.constant dense<0.000000e+00> : vector<16x8x32xf32>
    %64 = tpu.matmul %63, %51, %cst_30 {dimension_numbers = #tpu.dot_dimension_numbers<[2], [1], [1], [2], [0, 0, 0, 1, 1, 2], [0], [0]>} : vector<16x8x8xbf16>, vector<16x8x32xbf16>, vector<16x8x32xf32> -> vector<16x8x32xf32>
    "tpu.trace_stop"() : () -> ()
    %65 = vector.shape_cast %64 : vector<16x8x32xf32> to vector<2x8x8x32xf32>
    %66 = tpu.transpose %65, [0, 2, 1, 3] : vector<2x8x8x32xf32> -> vector<2x8x8x32xf32>
    %67 = arith.addf %66, %38 : vector<2x8x8x32xf32>
    %cst_31 = arith.constant 5.000000e-01 : f32
    %68 = vector.broadcast %cst_31 : f32 to vector<2x8x8x32xf32>
    %69 = arith.mulf %68, %67 : vector<2x8x8x32xf32>
    %70 = arith.addf %69, %0 : vector<2x8x8x32xf32>
    %71 = vector.shape_cast %16 : vector<128x16xf32> to vector<2x8x8x16xf32>
    %72 = vector.shape_cast %17 : vector<128x16xf32> to vector<2x8x8x16xf32>
    %cst_32 = arith.constant dense<0.000000e+00> : vector<2x8x16xf32>
    %73 = vector.multi_reduction <add>, %71, %cst_32 [2] : vector<2x8x8x16xf32> to vector<2x8x16xf32>
    %cst_33 = arith.constant 8.000000e+00 : f32
    %74 = vector.broadcast %cst_33 : f32 to vector<2x8x16xf32>
    %75 = arith.divf %73, %74 : vector<2x8x16xf32>
    %cst_34 = arith.constant dense<0.000000e+00> : vector<2x8x16xf32>
    %76 = vector.multi_reduction <add>, %72, %cst_34 [1] : vector<2x8x8x16xf32> to vector<2x8x16xf32>
    %cst_35 = arith.constant 8.000000e+00 : f32
    %77 = vector.broadcast %cst_35 : f32 to vector<2x8x16xf32>
    %78 = arith.divf %76, %77 : vector<2x8x16xf32>
    %79 = arith.truncf %70 : vector<2x8x8x32xf32> to vector<2x8x8x32xbf16>
    %80 = vector.shape_cast %79 : vector<2x8x8x32xbf16> to vector<128x32xbf16>
    %cst_36 = arith.constant dense<0.000000e+00> : vector<128x64xf32>
    %81 = tpu.matmul %80, %4, %cst_36 {dimension_numbers = #tpu.dot_dimension_numbers<[1], [0], [0], [1], [0, 0, 1, 1], [], []>} : vector<128x32xbf16>, vector<32x64xbf16>, vector<128x64xf32> -> vector<128x64xf32>
    %82 = vector.extract_strided_slice %81 {offsets = [0, 0], sizes = [128, 16], strides = [1, 1]} : vector<128x64xf32> to vector<128x16xf32>
    %83 = vector.extract_strided_slice %81 {offsets = [0, 16], sizes = [128, 16], strides = [1, 1]} : vector<128x64xf32> to vector<128x16xf32>
    %84 = vector.extract_strided_slice %81 {offsets = [0, 32], sizes = [128, 32], strides = [1, 1]} : vector<128x64xf32> to vector<128x32xf32>
    %85 = vector.shape_cast %82 : vector<128x16xf32> to vector<16x8x16xf32>
    %86 = arith.truncf %85 : vector<16x8x16xf32> to vector<16x8x16xbf16>
    %87 = vector.shape_cast %83 : vector<128x16xf32> to vector<16x8x16xf32>
    %88 = arith.truncf %87 : vector<16x8x16xf32> to vector<16x8x16xbf16>
    %89 = vector.shape_cast %84 : vector<128x32xf32> to vector<16x8x32xf32>
    %90 = arith.truncf %89 : vector<16x8x32xf32> to vector<16x8x32xbf16>
    "tpu.trace_start"() <{level = 10 : i32, message = "bic,bjc->bij"}> : () -> ()
    %cst_37 = arith.constant dense<0.000000e+00> : vector<16x8x8xf32>
    %91 = tpu.matmul %86, %88, %cst_37 {dimension_numbers = #tpu.dot_dimension_numbers<[2], [2], [1], [1], [0, 0, 0, 1, 1, 1], [0], [0]>} : vector<16x8x16xbf16>, vector<16x8x16xbf16>, vector<16x8x8xf32> -> vector<16x8x8xf32>
    "tpu.trace_stop"() : () -> ()
    %cst_38 = arith.constant dense<0xFF800000> : vector<16x8xf32>
    %92 = vector.multi_reduction <maximumf>, %91, %cst_38 [2] : vector<16x8x8xf32> to vector<16x8xf32>
    %93 = vector.shape_cast %92 : vector<16x8xf32> to vector<16x8x1xf32>
    %94 = vector.broadcast %93 : vector<16x8x1xf32> to vector<16x8x8xf32>
    %95 = arith.subf %91, %94 : vector<16x8x8xf32>
    %96 = math.exp %95 : vector<16x8x8xf32>
    %cst_39 = arith.constant dense<0.000000e+00> : vector<16x8xf32>
    %97 = vector.multi_reduction <add>, %96, %cst_39 [2] : vector<16x8x8xf32> to vector<16x8xf32>
    %98 = vector.shape_cast %97 : vector<16x8xf32> to vector<16x8x1xf32>
    %99 = tpu.reciprocal %98 {approx = true} : vector<16x8x1xf32> -> vector<16x8x1xf32>
    %100 = vector.broadcast %99 : vector<16x8x1xf32> to vector<16x8x8xf32>
    %101 = arith.mulf %96, %100 : vector<16x8x8xf32>
    %102 = arith.truncf %101 : vector<16x8x8xf32> to vector<16x8x8xbf16>
    "tpu.trace_start"() <{level = 10 : i32, message = "bij,bjc->bic"}> : () -> ()
    %cst_40 = arith.constant dense<0.000000e+00> : vector<16x8x32xf32>
    %103 = tpu.matmul %102, %90, %cst_40 {dimension_numbers = #tpu.dot_dimension_numbers<[2], [1], [1], [2], [0, 0, 0, 1, 1, 2], [0], [0]>} : vector<16x8x8xbf16>, vector<16x8x32xbf16>, vector<16x8x32xf32> -> vector<16x8x32xf32>
    "tpu.trace_stop"() : () -> ()
    %104 = vector.shape_cast %103 : vector<16x8x32xf32> to vector<2x8x8x32xf32>
    %105 = tpu.transpose %70, [0, 2, 1, 3] : vector<2x8x8x32xf32> -> vector<2x8x8x32xf32>
    %106 = arith.truncf %105 : vector<2x8x8x32xf32> to vector<2x8x8x32xbf16>
    %107 = vector.shape_cast %106 : vector<2x8x8x32xbf16> to vector<128x32xbf16>
    %cst_41 = arith.constant dense<0.000000e+00> : vector<128x64xf32>
    %108 = tpu.matmul %107, %4, %cst_41 {dimension_numbers = #tpu.dot_dimension_numbers<[1], [0], [0], [1], [0, 0, 1, 1], [], []>} : vector<128x32xbf16>, vector<32x64xbf16>, vector<128x64xf32> -> vector<128x64xf32>
    %109 = vector.extract_strided_slice %108 {offsets = [0, 0], sizes = [128, 16], strides = [1, 1]} : vector<128x64xf32> to vector<128x16xf32>
    %110 = vector.shape_cast %109 : vector<128x16xf32> to vector<16x8x16xf32>
    %111 = arith.truncf %110 : vector<16x8x16xf32> to vector<16x8x16xbf16>
    %112 = vector.extract_strided_slice %108 {offsets = [0, 16], sizes = [128, 16], strides = [1, 1]} : vector<128x64xf32> to vector<128x16xf32>
    %113 = vector.shape_cast %112 : vector<128x16xf32> to vector<16x8x16xf32>
    %114 = arith.truncf %113 : vector<16x8x16xf32> to vector<16x8x16xbf16>
    %115 = vector.extract_strided_slice %108 {offsets = [0, 32], sizes = [128, 32], strides = [1, 1]} : vector<128x64xf32> to vector<128x32xf32>
    %116 = vector.shape_cast %115 : vector<128x32xf32> to vector<16x8x32xf32>
    %117 = arith.truncf %116 : vector<16x8x32xf32> to vector<16x8x32xbf16>
    "tpu.trace_start"() <{level = 10 : i32, message = "bic,bjc->bij"}> : () -> ()
    %cst_42 = arith.constant dense<0.000000e+00> : vector<16x8x8xf32>
    %118 = tpu.matmul %111, %114, %cst_42 {dimension_numbers = #tpu.dot_dimension_numbers<[2], [2], [1], [1], [0, 0, 0, 1, 1, 1], [0], [0]>} : vector<16x8x16xbf16>, vector<16x8x16xbf16>, vector<16x8x8xf32> -> vector<16x8x8xf32>
    "tpu.trace_stop"() : () -> ()
    %cst_43 = arith.constant dense<0xFF800000> : vector<16x8xf32>
    %119 = vector.multi_reduction <maximumf>, %118, %cst_43 [2] : vector<16x8x8xf32> to vector<16x8xf32>
    %120 = vector.shape_cast %119 : vector<16x8xf32> to vector<16x8x1xf32>
    %121 = vector.broadcast %120 : vector<16x8x1xf32> to vector<16x8x8xf32>
    %122 = arith.subf %118, %121 : vector<16x8x8xf32>
    %123 = math.exp %122 : vector<16x8x8xf32>
    %cst_44 = arith.constant dense<0.000000e+00> : vector<16x8xf32>
    %124 = vector.multi_reduction <add>, %123, %cst_44 [2] : vector<16x8x8xf32> to vector<16x8xf32>
    %125 = vector.shape_cast %124 : vector<16x8xf32> to vector<16x8x1xf32>
    %126 = tpu.reciprocal %125 {approx = true} : vector<16x8x1xf32> -> vector<16x8x1xf32>
    %127 = vector.broadcast %126 : vector<16x8x1xf32> to vector<16x8x8xf32>
    %128 = arith.mulf %123, %127 : vector<16x8x8xf32>
    %129 = arith.truncf %128 : vector<16x8x8xf32> to vector<16x8x8xbf16>
    "tpu.trace_start"() <{level = 10 : i32, message = "bij,bjc->bic"}> : () -> ()
    %cst_45 = arith.constant dense<0.000000e+00> : vector<16x8x32xf32>
    %130 = tpu.matmul %129, %117, %cst_45 {dimension_numbers = #tpu.dot_dimension_numbers<[2], [1], [1], [2], [0, 0, 0, 1, 1, 2], [0], [0]>} : vector<16x8x8xbf16>, vector<16x8x32xbf16>, vector<16x8x32xf32> -> vector<16x8x32xf32>
    "tpu.trace_stop"() : () -> ()
    %131 = vector.shape_cast %130 : vector<16x8x32xf32> to vector<2x8x8x32xf32>
    %132 = tpu.transpose %131, [0, 2, 1, 3] : vector<2x8x8x32xf32> -> vector<2x8x8x32xf32>
    %133 = arith.addf %132, %104 : vector<2x8x8x32xf32>
    %cst_46 = arith.constant 5.000000e-01 : f32
    %134 = vector.broadcast %cst_46 : f32 to vector<2x8x8x32xf32>
    %135 = arith.mulf %134, %133 : vector<2x8x8x32xf32>
    %136 = arith.addf %135, %70 : vector<2x8x8x32xf32>
    %137 = vector.shape_cast %82 : vector<128x16xf32> to vector<2x8x8x16xf32>
    %138 = vector.shape_cast %83 : vector<128x16xf32> to vector<2x8x8x16xf32>
    %cst_47 = arith.constant dense<0.000000e+00> : vector<2x8x16xf32>
    %139 = vector.multi_reduction <add>, %137, %cst_47 [2] : vector<2x8x8x16xf32> to vector<2x8x16xf32>
    %cst_48 = arith.constant 8.000000e+00 : f32
    %140 = vector.broadcast %cst_48 : f32 to vector<2x8x16xf32>
    %141 = arith.divf %139, %140 : vector<2x8x16xf32>
    %cst_49 = arith.constant dense<0.000000e+00> : vector<2x8x16xf32>
    %142 = vector.multi_reduction <add>, %138, %cst_49 [1] : vector<2x8x8x16xf32> to vector<2x8x16xf32>
    %cst_50 = arith.constant 8.000000e+00 : f32
    %143 = vector.broadcast %cst_50 : f32 to vector<2x8x16xf32>
    %144 = arith.divf %142, %143 : vector<2x8x16xf32>
    %c0_51 = arith.constant 0 : index
    %c0_52 = arith.constant 0 : index
    %c0_53 = arith.constant 0 : index
    %c0_54 = arith.constant 0 : index
    %145 = vector.load %arg5[%c0_51, %c0_52, %c0_53, %c0_54] : memref<2x8x8x32xf32, #tpu.memory_space<vmem>>, vector<2x8x8x32xf32>
    tpu.vector_store %arg5[%c0_51, %c0_52, %c0_53, %c0_54], %136 {strides = array<i32>} : memref<2x8x8x32xf32, #tpu.memory_space<vmem>>, vector<2x8x8x32xf32>,
    %146 = arith.truncf %78 : vector<2x8x16xf32> to vector<2x8x16xbf16>
    %cst_55 = arith.constant 0.000000e+00 : f32
    %147 = vector.broadcast %cst_55 : f32 to vector<2x6x5xf32>
    %148 = vector.shape_cast %10 : vector<1x5xf32> to vector<1x1x5xf32>
    %149 = vector.broadcast %148 : vector<1x1x5xf32> to vector<2x6x5xf32>
    %150 = arith.addf %147, %149 : vector<2x6x5xf32>
    %151 = vector.extract_strided_slice %146 {offsets = [0, 0, 0], sizes = [2, 6, 16], strides = [1, 1, 1]} : vector<2x8x16xbf16> to vector<2x6x16xbf16>
    %152 = vector.extract_strided_slice %6 {offsets = [0, 0, 0], sizes = [1, 16, 5], strides = [1, 1, 1]} : vector<3x16x5xbf16> to vector<1x16x5xbf16>
    %153 = vector.shape_cast %152 : vector<1x16x5xbf16> to vector<16x5xbf16>
    "tpu.trace_start"() <{level = 10 : i32, message = "blc,cn->bln"}> : () -> ()
    %cst_56 = arith.constant dense<0.000000e+00> : vector<2x6x5xf32>
    %154 = tpu.matmul %151, %153, %cst_56 {dimension_numbers = #tpu.dot_dimension_numbers<[2], [0], [0, 1], [1], [0, 0, 0, 1, 1, 1], [], []>} : vector<2x6x16xbf16>, vector<16x5xbf16>, vector<2x6x5xf32> -> vector<2x6x5xf32>
    "tpu.trace_stop"() : () -> ()
    %155 = arith.addf %150, %154 : vector<2x6x5xf32>
    %156 = vector.extract_strided_slice %146 {offsets = [0, 1, 0], sizes = [2, 6, 16], strides = [1, 1, 1]} : vector<2x8x16xbf16> to vector<2x6x16xbf16>
    %157 = vector.extract_strided_slice %6 {offsets = [1, 0, 0], sizes = [1, 16, 5], strides = [1, 1, 1]} : vector<3x16x5xbf16> to vector<1x16x5xbf16>
    %158 = vector.shape_cast %157 : vector<1x16x5xbf16> to vector<16x5xbf16>
    "tpu.trace_start"() <{level = 10 : i32, message = "blc,cn->bln"}> : () -> ()
    %cst_57 = arith.constant dense<0.000000e+00> : vector<2x6x5xf32>
    %159 = tpu.matmul %156, %158, %cst_57 {dimension_numbers = #tpu.dot_dimension_numbers<[2], [0], [0, 1], [1], [0, 0, 0, 1, 1, 1], [], []>} : vector<2x6x16xbf16>, vector<16x5xbf16>, vector<2x6x5xf32> -> vector<2x6x5xf32>
    "tpu.trace_stop"() : () -> ()
    %160 = arith.addf %155, %159 : vector<2x6x5xf32>
    %161 = vector.extract_strided_slice %146 {offsets = [0, 2, 0], sizes = [2, 6, 16], strides = [1, 1, 1]} : vector<2x8x16xbf16> to vector<2x6x16xbf16>
    %162 = vector.extract_strided_slice %6 {offsets = [2, 0, 0], sizes = [1, 16, 5], strides = [1, 1, 1]} : vector<3x16x5xbf16> to vector<1x16x5xbf16>
    %163 = vector.shape_cast %162 : vector<1x16x5xbf16> to vector<16x5xbf16>
    "tpu.trace_start"() <{level = 10 : i32, message = "blc,cn->bln"}> : () -> ()
    %cst_58 = arith.constant dense<0.000000e+00> : vector<2x6x5xf32>
    %164 = tpu.matmul %161, %163, %cst_58 {dimension_numbers = #tpu.dot_dimension_numbers<[2], [0], [0, 1], [1], [0, 0, 0, 1, 1, 1], [], []>} : vector<2x6x16xbf16>, vector<16x5xbf16>, vector<2x6x5xf32> -> vector<2x6x5xf32>
    "tpu.trace_stop"() : () -> ()
    %165 = arith.addf %160, %164 : vector<2x6x5xf32>
    %cst_59 = arith.constant 0.000000e+00 : f32
    %166 = vector.broadcast %cst_59 : f32 to vector<2x6x5xf32>
    %167 = arith.subf %166, %165 : vector<2x6x5xf32>
    %168 = math.exp %167 : vector<2x6x5xf32>
    %cst_60 = arith.constant 1.000000e+00 : f32
    %169 = vector.broadcast %cst_60 : f32 to vector<2x6x5xf32>
    %170 = arith.addf %169, %168 : vector<2x6x5xf32>
    %cst_61 = arith.constant 1.000000e+00 : f32
    %171 = vector.broadcast %cst_61 : f32 to vector<2x6x5xf32>
    %172 = arith.divf %171, %170 : vector<2x6x5xf32>
    %c0_62 = arith.constant 0 : index
    %c0_63 = arith.constant 0 : index
    %c0_64 = arith.constant 0 : index
    %173 = vector.load %arg6[%c0_62, %c0_63, %c0_64] : memref<2x6x5xf32, #tpu.memory_space<vmem>>, vector<2x6x5xf32>
    tpu.vector_store %arg6[%c0_62, %c0_63, %c0_64], %172 {strides = array<i32>} : memref<2x6x5xf32, #tpu.memory_space<vmem>>, vector<2x6x5xf32>,
    %174 = arith.truncf %75 : vector<2x8x16xf32> to vector<2x8x16xbf16>
    %cst_65 = arith.constant 0.000000e+00 : f32
    %175 = vector.broadcast %cst_65 : f32 to vector<2x6x5xf32>
    %176 = vector.shape_cast %12 : vector<1x5xf32> to vector<1x1x5xf32>
    %177 = vector.broadcast %176 : vector<1x1x5xf32> to vector<2x6x5xf32>
    %178 = arith.addf %175, %177 : vector<2x6x5xf32>
    %179 = vector.extract_strided_slice %174 {offsets = [0, 0, 0], sizes = [2, 6, 16], strides = [1, 1, 1]} : vector<2x8x16xbf16> to vector<2x6x16xbf16>
    %180 = vector.extract_strided_slice %8 {offsets = [0, 0, 0], sizes = [1, 16, 5], strides = [1, 1, 1]} : vector<3x16x5xbf16> to vector<1x16x5xbf16>
    %181 = vector.shape_cast %180 : vector<1x16x5xbf16> to vector<16x5xbf16>
    "tpu.trace_start"() <{level = 10 : i32, message = "blc,cn->bln"}> : () -> ()
    %cst_66 = arith.constant dense<0.000000e+00> : vector<2x6x5xf32>
    %182 = tpu.matmul %179, %181, %cst_66 {dimension_numbers = #tpu.dot_dimension_numbers<[2], [0], [0, 1], [1], [0, 0, 0, 1, 1, 1], [], []>} : vector<2x6x16xbf16>, vector<16x5xbf16>, vector<2x6x5xf32> -> vector<2x6x5xf32>
    "tpu.trace_stop"() : () -> ()
    %183 = arith.addf %178, %182 : vector<2x6x5xf32>
    %184 = vector.extract_strided_slice %174 {offsets = [0, 1, 0], sizes = [2, 6, 16], strides = [1, 1, 1]} : vector<2x8x16xbf16> to vector<2x6x16xbf16>
    %185 = vector.extract_strided_slice %8 {offsets = [1, 0, 0], sizes = [1, 16, 5], strides = [1, 1, 1]} : vector<3x16x5xbf16> to vector<1x16x5xbf16>
    %186 = vector.shape_cast %185 : vector<1x16x5xbf16> to vector<16x5xbf16>
    "tpu.trace_start"() <{level = 10 : i32, message = "blc,cn->bln"}> : () -> ()
    %cst_67 = arith.constant dense<0.000000e+00> : vector<2x6x5xf32>
    %187 = tpu.matmul %184, %186, %cst_67 {dimension_numbers = #tpu.dot_dimension_numbers<[2], [0], [0, 1], [1], [0, 0, 0, 1, 1, 1], [], []>} : vector<2x6x16xbf16>, vector<16x5xbf16>, vector<2x6x5xf32> -> vector<2x6x5xf32>
    "tpu.trace_stop"() : () -> ()
    %188 = arith.addf %183, %187 : vector<2x6x5xf32>
    %189 = vector.extract_strided_slice %174 {offsets = [0, 2, 0], sizes = [2, 6, 16], strides = [1, 1, 1]} : vector<2x8x16xbf16> to vector<2x6x16xbf16>
    %190 = vector.extract_strided_slice %8 {offsets = [2, 0, 0], sizes = [1, 16, 5], strides = [1, 1, 1]} : vector<3x16x5xbf16> to vector<1x16x5xbf16>
    %191 = vector.shape_cast %190 : vector<1x16x5xbf16> to vector<16x5xbf16>
    "tpu.trace_start"() <{level = 10 : i32, message = "blc,cn->bln"}> : () -> ()
    %cst_68 = arith.constant dense<0.000000e+00> : vector<2x6x5xf32>
    %192 = tpu.matmul %189, %191, %cst_68 {dimension_numbers = #tpu.dot_dimension_numbers<[2], [0], [0, 1], [1], [0, 0, 0, 1, 1, 1], [], []>} : vector<2x6x16xbf16>, vector<16x5xbf16>, vector<2x6x5xf32> -> vector<2x6x5xf32>
    "tpu.trace_stop"() : () -> ()
    %193 = arith.addf %188, %192 : vector<2x6x5xf32>
    %cst_69 = arith.constant 0.000000e+00 : f32
    %194 = vector.broadcast %cst_69 : f32 to vector<2x6x5xf32>
    %195 = arith.subf %194, %193 : vector<2x6x5xf32>
    %196 = math.exp %195 : vector<2x6x5xf32>
    %cst_70 = arith.constant 1.000000e+00 : f32
    %197 = vector.broadcast %cst_70 : f32 to vector<2x6x5xf32>
    %198 = arith.addf %197, %196 : vector<2x6x5xf32>
    %cst_71 = arith.constant 1.000000e+00 : f32
    %199 = vector.broadcast %cst_71 : f32 to vector<2x6x5xf32>
    %200 = arith.divf %199, %198 : vector<2x6x5xf32>
    %c0_72 = arith.constant 0 : index
    %c0_73 = arith.constant 0 : index
    %c0_74 = arith.constant 0 : index
    %201 = vector.load %arg7[%c0_72, %c0_73, %c0_74] : memref<2x6x5xf32, #tpu.memory_space<vmem>>, vector<2x6x5xf32>
    tpu.vector_store %arg7[%c0_72, %c0_73, %c0_74], %200 {strides = array<i32>} : memref<2x6x5xf32, #tpu.memory_space<vmem>>, vector<2x6x5xf32>,
    %202 = arith.truncf %144 : vector<2x8x16xf32> to vector<2x8x16xbf16>
    %cst_75 = arith.constant 0.000000e+00 : f32
    %203 = vector.broadcast %cst_75 : f32 to vector<2x6x5xf32>
    %204 = vector.shape_cast %10 : vector<1x5xf32> to vector<1x1x5xf32>
    %205 = vector.broadcast %204 : vector<1x1x5xf32> to vector<2x6x5xf32>
    %206 = arith.addf %203, %205 : vector<2x6x5xf32>
    %207 = vector.extract_strided_slice %202 {offsets = [0, 0, 0], sizes = [2, 6, 16], strides = [1, 1, 1]} : vector<2x8x16xbf16> to vector<2x6x16xbf16>
    %208 = vector.extract_strided_slice %6 {offsets = [0, 0, 0], sizes = [1, 16, 5], strides = [1, 1, 1]} : vector<3x16x5xbf16> to vector<1x16x5xbf16>
    %209 = vector.shape_cast %208 : vector<1x16x5xbf16> to vector<16x5xbf16>
    "tpu.trace_start"() <{level = 10 : i32, message = "blc,cn->bln"}> : () -> ()
    %cst_76 = arith.constant dense<0.000000e+00> : vector<2x6x5xf32>
    %210 = tpu.matmul %207, %209, %cst_76 {dimension_numbers = #tpu.dot_dimension_numbers<[2], [0], [0, 1], [1], [0, 0, 0, 1, 1, 1], [], []>} : vector<2x6x16xbf16>, vector<16x5xbf16>, vector<2x6x5xf32> -> vector<2x6x5xf32>
    "tpu.trace_stop"() : () -> ()
    %211 = arith.addf %206, %210 : vector<2x6x5xf32>
    %212 = vector.extract_strided_slice %202 {offsets = [0, 1, 0], sizes = [2, 6, 16], strides = [1, 1, 1]} : vector<2x8x16xbf16> to vector<2x6x16xbf16>
    %213 = vector.extract_strided_slice %6 {offsets = [1, 0, 0], sizes = [1, 16, 5], strides = [1, 1, 1]} : vector<3x16x5xbf16> to vector<1x16x5xbf16>
    %214 = vector.shape_cast %213 : vector<1x16x5xbf16> to vector<16x5xbf16>
    "tpu.trace_start"() <{level = 10 : i32, message = "blc,cn->bln"}> : () -> ()
    %cst_77 = arith.constant dense<0.000000e+00> : vector<2x6x5xf32>
    %215 = tpu.matmul %212, %214, %cst_77 {dimension_numbers = #tpu.dot_dimension_numbers<[2], [0], [0, 1], [1], [0, 0, 0, 1, 1, 1], [], []>} : vector<2x6x16xbf16>, vector<16x5xbf16>, vector<2x6x5xf32> -> vector<2x6x5xf32>
    "tpu.trace_stop"() : () -> ()
    %216 = arith.addf %211, %215 : vector<2x6x5xf32>
    %217 = vector.extract_strided_slice %202 {offsets = [0, 2, 0], sizes = [2, 6, 16], strides = [1, 1, 1]} : vector<2x8x16xbf16> to vector<2x6x16xbf16>
    %218 = vector.extract_strided_slice %6 {offsets = [2, 0, 0], sizes = [1, 16, 5], strides = [1, 1, 1]} : vector<3x16x5xbf16> to vector<1x16x5xbf16>
    %219 = vector.shape_cast %218 : vector<1x16x5xbf16> to vector<16x5xbf16>
    "tpu.trace_start"() <{level = 10 : i32, message = "blc,cn->bln"}> : () -> ()
    %cst_78 = arith.constant dense<0.000000e+00> : vector<2x6x5xf32>
    %220 = tpu.matmul %217, %219, %cst_78 {dimension_numbers = #tpu.dot_dimension_numbers<[2], [0], [0, 1], [1], [0, 0, 0, 1, 1, 1], [], []>} : vector<2x6x16xbf16>, vector<16x5xbf16>, vector<2x6x5xf32> -> vector<2x6x5xf32>
    "tpu.trace_stop"() : () -> ()
    %221 = arith.addf %216, %220 : vector<2x6x5xf32>
    %cst_79 = arith.constant 0.000000e+00 : f32
    %222 = vector.broadcast %cst_79 : f32 to vector<2x6x5xf32>
    %223 = arith.subf %222, %221 : vector<2x6x5xf32>
    %224 = math.exp %223 : vector<2x6x5xf32>
    %cst_80 = arith.constant 1.000000e+00 : f32
    %225 = vector.broadcast %cst_80 : f32 to vector<2x6x5xf32>
    %226 = arith.addf %225, %224 : vector<2x6x5xf32>
    %cst_81 = arith.constant 1.000000e+00 : f32
    %227 = vector.broadcast %cst_81 : f32 to vector<2x6x5xf32>
    %228 = arith.divf %227, %226 : vector<2x6x5xf32>
    %c0_82 = arith.constant 0 : index
    %c0_83 = arith.constant 0 : index
    %c0_84 = arith.constant 0 : index
    %229 = vector.load %arg8[%c0_82, %c0_83, %c0_84] : memref<2x6x5xf32, #tpu.memory_space<vmem>>, vector<2x6x5xf32>
    tpu.vector_store %arg8[%c0_82, %c0_83, %c0_84], %228 {strides = array<i32>} : memref<2x6x5xf32, #tpu.memory_space<vmem>>, vector<2x6x5xf32>,
    %230 = arith.truncf %141 : vector<2x8x16xf32> to vector<2x8x16xbf16>
    %cst_85 = arith.constant 0.000000e+00 : f32
    %231 = vector.broadcast %cst_85 : f32 to vector<2x6x5xf32>
    %232 = vector.shape_cast %12 : vector<1x5xf32> to vector<1x1x5xf32>
    %233 = vector.broadcast %232 : vector<1x1x5xf32> to vector<2x6x5xf32>
    %234 = arith.addf %231, %233 : vector<2x6x5xf32>
    %235 = vector.extract_strided_slice %230 {offsets = [0, 0, 0], sizes = [2, 6, 16], strides = [1, 1, 1]} : vector<2x8x16xbf16> to vector<2x6x16xbf16>
    %236 = vector.extract_strided_slice %8 {offsets = [0, 0, 0], sizes = [1, 16, 5], strides = [1, 1, 1]} : vector<3x16x5xbf16> to vector<1x16x5xbf16>
    %237 = vector.shape_cast %236 : vector<1x16x5xbf16> to vector<16x5xbf16>
    "tpu.trace_start"() <{level = 10 : i32, message = "blc,cn->bln"}> : () -> ()
    %cst_86 = arith.constant dense<0.000000e+00> : vector<2x6x5xf32>
    %238 = tpu.matmul %235, %237, %cst_86 {dimension_numbers = #tpu.dot_dimension_numbers<[2], [0], [0, 1], [1], [0, 0, 0, 1, 1, 1], [], []>} : vector<2x6x16xbf16>, vector<16x5xbf16>, vector<2x6x5xf32> -> vector<2x6x5xf32>
    "tpu.trace_stop"() : () -> ()
    %239 = arith.addf %234, %238 : vector<2x6x5xf32>
    %240 = vector.extract_strided_slice %230 {offsets = [0, 1, 0], sizes = [2, 6, 16], strides = [1, 1, 1]} : vector<2x8x16xbf16> to vector<2x6x16xbf16>
    %241 = vector.extract_strided_slice %8 {offsets = [1, 0, 0], sizes = [1, 16, 5], strides = [1, 1, 1]} : vector<3x16x5xbf16> to vector<1x16x5xbf16>
    %242 = vector.shape_cast %241 : vector<1x16x5xbf16> to vector<16x5xbf16>
    "tpu.trace_start"() <{level = 10 : i32, message = "blc,cn->bln"}> : () -> ()
    %cst_87 = arith.constant dense<0.000000e+00> : vector<2x6x5xf32>
    %243 = tpu.matmul %240, %242, %cst_87 {dimension_numbers = #tpu.dot_dimension_numbers<[2], [0], [0, 1], [1], [0, 0, 0, 1, 1, 1], [], []>} : vector<2x6x16xbf16>, vector<16x5xbf16>, vector<2x6x5xf32> -> vector<2x6x5xf32>
    "tpu.trace_stop"() : () -> ()
    %244 = arith.addf %239, %243 : vector<2x6x5xf32>
    %245 = vector.extract_strided_slice %230 {offsets = [0, 2, 0], sizes = [2, 6, 16], strides = [1, 1, 1]} : vector<2x8x16xbf16> to vector<2x6x16xbf16>
    %246 = vector.extract_strided_slice %8 {offsets = [2, 0, 0], sizes = [1, 16, 5], strides = [1, 1, 1]} : vector<3x16x5xbf16> to vector<1x16x5xbf16>
    %247 = vector.shape_cast %246 : vector<1x16x5xbf16> to vector<16x5xbf16>
    "tpu.trace_start"() <{level = 10 : i32, message = "blc,cn->bln"}> : () -> ()
    %cst_88 = arith.constant dense<0.000000e+00> : vector<2x6x5xf32>
    %248 = tpu.matmul %245, %247, %cst_88 {dimension_numbers = #tpu.dot_dimension_numbers<[2], [0], [0, 1], [1], [0, 0, 0, 1, 1, 1], [], []>} : vector<2x6x16xbf16>, vector<16x5xbf16>, vector<2x6x5xf32> -> vector<2x6x5xf32>
    "tpu.trace_stop"() : () -> ()
    %249 = arith.addf %244, %248 : vector<2x6x5xf32>
    %cst_89 = arith.constant 0.000000e+00 : f32
    %250 = vector.broadcast %cst_89 : f32 to vector<2x6x5xf32>
    %251 = arith.subf %250, %249 : vector<2x6x5xf32>
    %252 = math.exp %251 : vector<2x6x5xf32>
    %cst_90 = arith.constant 1.000000e+00 : f32
    %253 = vector.broadcast %cst_90 : f32 to vector<2x6x5xf32>
    %254 = arith.addf %253, %252 : vector<2x6x5xf32>
    %cst_91 = arith.constant 1.000000e+00 : f32
    %255 = vector.broadcast %cst_91 : f32 to vector<2x6x5xf32>
    %256 = arith.divf %255, %254 : vector<2x6x5xf32>
    %c0_92 = arith.constant 0 : index
    %c0_93 = arith.constant 0 : index
    %c0_94 = arith.constant 0 : index
    %257 = vector.load %arg9[%c0_92, %c0_93, %c0_94] : memref<2x6x5xf32, #tpu.memory_space<vmem>>, vector<2x6x5xf32>
    tpu.vector_store %arg9[%c0_92, %c0_93, %c0_94], %256 {strides = array<i32>} : memref<2x6x5xf32, #tpu.memory_space<vmem>>, vector<2x6x5xf32>,
    return
  }
  func.func @transform_0(%arg0: i32) -> (i32, i32, i32, i32) {
    %c0_i32 = arith.constant 0 : i32
    %c0_i32_0 = arith.constant 0 : i32
    %c0_i32_1 = arith.constant 0 : i32
    %c0_i32_2 = arith.constant 0 : i32
    return %arg0, %c0_i32, %c0_i32_0, %c0_i32_1 : i32, i32, i32, i32
  }
  func.func @transform_1(%arg0: i32) -> (i32, i32, i32) {
    %c0_i32 = arith.constant 0 : i32
    %c0_i32_0 = arith.constant 0 : i32
    %c0_i32_1 = arith.constant 0 : i32
    %c0_i32_2 = arith.constant 0 : i32
    return %c0_i32, %c0_i32_0, %c0_i32_1 : i32, i32, i32
  }
  func.func @transform_2(%arg0: i32) -> (i32, i32, i32, i32) {
    %c0_i32 = arith.constant 0 : i32
    %c0_i32_0 = arith.constant 0 : i32
    %c0_i32_1 = arith.constant 0 : i32
    %c0_i32_2 = arith.constant 0 : i32
    %c0_i32_3 = arith.constant 0 : i32
    return %c0_i32, %c0_i32_0, %c0_i32_1, %c0_i32_2 : i32, i32, i32, i32
  }
  func.func @transform_3(%arg0: i32) -> (i32, i32, i32) {
    %c0_i32 = arith.constant 0 : i32
    %c0_i32_0 = arith.constant 0 : i32
    %c0_i32_1 = arith.constant 0 : i32
    %c0_i32_2 = arith.constant 0 : i32
    return %c0_i32, %c0_i32_0, %c0_i32_1 : i32, i32, i32
  }
  func.func @transform_4(%arg0: i32) -> (i32, i32, i32, i32) {
    %c0_i32 = arith.constant 0 : i32
    %c0_i32_0 = arith.constant 0 : i32
    %c0_i32_1 = arith.constant 0 : i32
    %c0_i32_2 = arith.constant 0 : i32
    return %arg0, %c0_i32, %c0_i32_0, %c0_i32_1 : i32, i32, i32, i32
  }
  func.func @transform_5(%arg0: i32) -> (i32, i32, i32) {
    %c0_i32 = arith.constant 0 : i32
    %c0_i32_0 = arith.constant 0 : i32
    %c0_i32_1 = arith.constant 0 : i32
    return %arg0, %c0_i32, %c0_i32_0 : i32, i32, i32
  }
  func.func @transform_6(%arg0: i32) -> (i32, i32, i32) {
    %c0_i32 = arith.constant 0 : i32
    %c0_i32_0 = arith.constant 0 : i32
    %c0_i32_1 = arith.constant 0 : i32
    return %arg0, %c0_i32, %c0_i32_0 : i32, i32, i32
  }
  func.func @transform_7(%arg0: i32) -> (i32, i32, i32) {
    %c0_i32 = arith.constant 0 : i32
    %c0_i32_0 = arith.constant 0 : i32
    %c0_i32_1 = arith.constant 0 : i32
    return %arg0, %c0_i32, %c0_i32_0 : i32, i32, i32
  }
  func.func @transform_8(%arg0: i32) -> (i32, i32, i32) {
    %c0_i32 = arith.constant 0 : i32
    %c0_i32_0 = arith.constant 0 : i32
    %c0_i32_1 = arith.constant 0 : i32
    return %arg0, %c0_i32, %c0_i32_0 : i32, i32, i32
  }
}

</mosaic_0001>

<llo_original>
// kernel: tpu_custom_call.1
$region0: #{tpu_custom_call.1}
  #allocation0 [shape = 'u32[]', space=smem, size = 0x4, offset = 0x4, fixed_abs, tag = 'smem constant byte address 0x4 - core index']
  #allocation1 [shape = 'u32[144,128]{1,0:T(1,128)}', space=vmem, size = 0x12000, scoped, tag = 'internal scratch']
  %s0 = inlined_call_operand.hbm [shape: f32[2,8,8,32], index: 0, kind: input, shape index: {}]
  %s1 = inlined_call_operand.vmem [shape: bf16[2,32,64], index: 1, kind: input, shape index: {}]
  %s2 = inlined_call_operand.vmem [shape: bf16[2,3,16,5], index: 2, kind: input, shape index: {}]
  %s3 = inlined_call_operand.vmem [shape: f32[2,1,5], index: 3, kind: input, shape index: {}]
  %s4 = inlined_call_operand.hbm [shape: f32[2,8,8,32], index: 4, kind: output, shape index: {0}]
  %s5 = inlined_call_operand.vmem [shape: f32[2,6,5], index: 5, kind: output, shape index: {1}]
  %s6 = inlined_call_operand.vmem [shape: f32[2,6,5], index: 6, kind: output, shape index: {2}]
  %s7 = inlined_call_operand.vmem [shape: f32[2,6,5], index: 7, kind: output, shape index: {3}]
  %s8 = inlined_call_operand.vmem [shape: f32[2,6,5], index: 8, kind: output, shape index: {4}]
  %9 = xla_tuple %s4, %s5, %s6, %s7, %s8
  %s10 = sld [smem:[#allocation0]]
  $region62: #{tpu_custom_call.1} parent=0
    _
  %s12 = ssub.s32 1, %s10
  %s13 = scalar_select 0, %s12, %s10
  $region1: #{tpu_custom_call.1} parent=0
    #allocation2 [shape = 'u8[65536]{0}', space=vmem, size = 0x10000, scoped, tag = 'input window, operand 0, single buffered']
    #allocation3 [shape = 's32[1]{0}', space=sflag, size = 0x4, scoped, tag = 'scoped memory for tpu_custom_call.1']
    #allocation4 [shape = 's32[1]{0}', space=sflag, size = 0x4, scoped, tag = 'scoped memory for tpu_custom_call.1']
    #allocation5 [shape = 'u8[65536]{0}', space=vmem, size = 0x10000, scoped, tag = 'output window, operand 0, single buffered']
    %14 = vsyncpa [#allocation3], 0
    %15 = vsyncpa [#allocation4], 0
    // Predicated region
    $region2: #{tpu_custom_call.1} parent=1 // pred_check
      _
    $region3: #{tpu_custom_call.1} parent=1 // pred_check_branch
      %17 = sbr.rel (0) target = $region5
    $region4: #{tpu_custom_call.1} parent=1 // pred_region
      %s19 = ssub.s32 2048, 2048
      %20 = vsyncadd [#allocation3], %s19
      %s21 = sshll.u32 [#allocation2], 4
      %s22 = int_to_ptr.vmem [resolvable:$true] %s21
      %27 = dma.hbm_to_vmem [thread:$0]  %s0, 2048, %s22, [#allocation3], 128, 128, 8
    $region5: #{tpu_custom_call.1} parent=1 // pred_fallthru
      _
    // Predicated region
    $region6: #{tpu_custom_call.1} parent=1 // pred_check
      _
    $region7: #{tpu_custom_call.1} parent=1 // pred_check_branch
      %29 = sbr.rel (0) target = $region9
    $region8: #{tpu_custom_call.1} parent=1 // pred_region
      _
    $region9: #{tpu_custom_call.1} parent=1 // pred_fallthru
      _
    // Predicated region
    $region10: #{tpu_custom_call.1} parent=1 // pred_check
      _
    $region11: #{tpu_custom_call.1} parent=1 // pred_check_branch
      %31 = sbr.rel (0) target = $region13
    $region12: #{tpu_custom_call.1} parent=1 // pred_region
      _
    $region13: #{tpu_custom_call.1} parent=1 // pred_fallthru
      _
    // Predicated region
    $region14: #{tpu_custom_call.1} parent=1 // pred_check
      _
    $region15: #{tpu_custom_call.1} parent=1 // pred_check_branch
      %33 = sbr.rel (0) target = $region17
    $region16: #{tpu_custom_call.1} parent=1 // pred_region
      _
    $region17: #{tpu_custom_call.1} parent=1 // pred_fallthru
      _
    // Predicated region
    $region18: #{tpu_custom_call.1} parent=1 // pred_check
      _
    $region19: #{tpu_custom_call.1} parent=1 // pred_check_branch
      %35 = sbr.rel (0) target = $region21
    $region20: #{tpu_custom_call.1} parent=1 // pred_region
      %36 = dma.done [#allocation3], 2048
    $region21: #{tpu_custom_call.1} parent=1 // pred_fallthru
      _
    %v38 = vld [vmem:[#allocation2] sm:$0xff]
    %v39 = vld [vmem:[#allocation2 + $0x8] sm:$0xff]
    %v40 = vld [vmem:[#allocation2 + $0x10] sm:$0xff]
    %v41 = vld [vmem:[#allocation2 + $0x18] sm:$0xff]
    %v42 = vld [vmem:[#allocation2 + $0x20] sm:$0xff]
    %v43 = vld [vmem:[#allocation2 + $0x28] sm:$0xff]
    %v44 = vld [vmem:[#allocation2 + $0x30] sm:$0xff]
    %v45 = vld [vmem:[#allocation2 + $0x38] sm:$0xff]
    %v46 = vld [vmem:[#allocation2 + $0x40] sm:$0xff]
    %v47 = vld [vmem:[#allocation2 + $0x48] sm:$0xff]
    %v48 = vld [vmem:[#allocation2 + $0x50] sm:$0xff]
    %v49 = vld [vmem:[#allocation2 + $0x58] sm:$0xff]
    %v50 = vld [vmem:[#allocation2 + $0x60] sm:$0xff]
    %v51 = vld [vmem:[#allocation2 + $0x68] sm:$0xff]
    %v52 = vld [vmem:[#allocation2 + $0x70] sm:$0xff]
    %v53 = vld [vmem:[#allocation2 + $0x78] sm:$0xff]
    %v54 = vld [vmem:[%s1] sm:$0xf]
    %v55 = vld [vmem:[%s1 + $0x4] sm:$0xf]
    %v56 = vld [vmem:[%s1 + $0x8] sm:$0xf]
    %v57 = vld [vmem:[%s1 + $0xc] sm:$0xf]
    %s58 = scalar_lea.vmem %s1, 16
    %v59 = vld [vmem:[%s58] sm:$0xf]
    %v60 = vld [vmem:[%s58 + $0x4] sm:$0xf]
    %v61 = vld [vmem:[%s58 + $0x8] sm:$0xf]
    %v62 = vld [vmem:[%s58 + $0xc] sm:$0xf]
    %v63 = vld [vmem:[%s2] sm:$0xf]
    %v64 = vld [vmem:[%s2 + $0x4] sm:$0xf]
    %v65 = vld [vmem:[%s2 + $0x8] sm:$0xf]
    %v66 = vld [vmem:[%s2 + $0xc] sm:$0xf]
    %v67 = vld [vmem:[%s2 + $0x10] sm:$0xf]
    %v68 = vld [vmem:[%s2 + $0x14] sm:$0xf]
    %s69 = scalar_lea.vmem %s2, 24
    %v70 = vld [vmem:[%s69] sm:$0xf]
    %v71 = vld [vmem:[%s69 + $0x4] sm:$0xf]
    %v72 = vld [vmem:[%s69 + $0x8] sm:$0xf]
    %v73 = vld [vmem:[%s69 + $0xc] sm:$0xf]
    %v74 = vld [vmem:[%s69 + $0x10] sm:$0xf]
    %v75 = vld [vmem:[%s69 + $0x14] sm:$0xf]
    %v76 = vld [vmem:[%s3] sm:$0x1]
    %s77 = scalar_lea.vmem %s3, 1
    %v78 = vld [vmem:[%s77] sm:$0x1]
    %v79 = vpack.c.bf16 %v38, %v38
    %v80 = vpack.c.bf16 %v39, %v39
    %v81 = vpack.c.bf16 %v40, %v40
    %v82 = vpack.c.bf16 %v41, %v41
    %v83 = vpack.c.bf16 %v42, %v42
    %v84 = vpack.c.bf16 %v43, %v43
    %v85 = vpack.c.bf16 %v44, %v44
    %v86 = vpack.c.bf16 %v45, %v45
    %v87 = vpack.c.bf16 %v46, %v46
    %v88 = vpack.c.bf16 %v47, %v47
    %v89 = vpack.c.bf16 %v48, %v48
    %v90 = vpack.c.bf16 %v49, %v49
    %v91 = vpack.c.bf16 %v50, %v50
    %v92 = vpack.c.bf16 %v51, %v51
    %v93 = vpack.c.bf16 %v52, %v52
    %v94 = vpack.c.bf16 %v53, %v53
    %v111 = vunpack.c.l.b16 %v79
    %v112 = vunpack.c.l.b16 %v80
    %v113 = vunpack.c.l.b16 %v81
    %v114 = vunpack.c.l.b16 %v82
    %v115 = vunpack.c.l.b16 %v83
    %v116 = vunpack.c.l.b16 %v84
    %v117 = vunpack.c.l.b16 %v85
    %v118 = vunpack.c.l.b16 %v86
    %v119 = vunpack.c.l.b16 %v87
    %v120 = vunpack.c.l.b16 %v88
    %v121 = vunpack.c.l.b16 %v89
    %v122 = vunpack.c.l.b16 %v90
    %v123 = vunpack.c.l.b16 %v91
    %v124 = vunpack.c.l.b16 %v92
    %v125 = vunpack.c.l.b16 %v93
    %v126 = vunpack.c.l.b16 %v94
    %v127 = vpack.c.b16 %v112, %v111
    %v128 = vpack.c.b16 %v114, %v113
    %v129 = vpack.c.b16 %v116, %v115
    %v130 = vpack.c.b16 %v118, %v117
    %v131 = vpack.c.b16 %v120, %v119
    %v132 = vpack.c.b16 %v122, %v121
    %v133 = vpack.c.b16 %v124, %v123
    %v134 = vpack.c.b16 %v126, %v125
    %v139 = vunpack.c.l.b16 %v54
    %v140 = vunpack.c.l.b16 %v55
    %v141 = vunpack.c.l.b16 %v56
    %v142 = vunpack.c.l.b16 %v57
    %v143 = vpack.c.b16 %v140, %v139
    %v144 = vpack.c.b16 %v142, %v141
    %vm147 = vcmask 261120
    %v149 = vsel %vm147, %v127, 0
    %v152 = vsel %vm147, %v128, 0
    %v155 = vsel %vm147, %v129, 0
    %v158 = vsel %vm147, %v130, 0
    %v161 = vsel %vm147, %v131, 0
    %v164 = vsel %vm147, %v132, 0
    %v167 = vsel %vm147, %v133, 0
    %v170 = vsel %vm147, %v134, 0
    %172 = vmatprep.subr.bf16.mxu0 0
    %173 = vmatpush1.bf16.msra.mxu0 0
    %174 = vmatprep.subr.bf16.mxu0 0
    %175 = vmatpush1.bf16.msra.mxu0 0
    %176 = vmatprep.subr.bf16.mxu0 0
    %177 = vmatpush1.bf16.msra.mxu0 0
    %178 = vmatprep.subr.bf16.mxu0 0
    %179 = vmatpush1.bf16.msra.mxu0 0
    %180 = vmatprep.subr.bf16.mxu0 0
    %181 = vmatpush1.bf16.msra.mxu0 0
    %182 = vmatprep.subr.bf16.mxu0 0
    %183 = vmatpush1.bf16.msra.mxu0 0
    %184 = vmatprep.subr.bf16.mxu0 0
    %185 = vmatpush1.bf16.msra.mxu0 %v144
    %186 = vmatprep.subr.bf16.mxu0 0
    %187 = vmatpush1.bf16.msra.mxu0 %v143
    %188 = vmatprep.subr.bf16.mxu0 0
    %189 = vmatpush2.bf16.msra.mxu0 0
    %190 = vmatprep.subr.bf16.mxu0 0
    %191 = vmatpush2.bf16.msra.mxu0 0
    %192 = vmatprep.subr.bf16.mxu0 0
    %193 = vmatpush2.bf16.msra.mxu0 0
    %194 = vmatprep.subr.bf16.mxu0 0
    %195 = vmatpush2.bf16.msra.mxu0 0
    %196 = vmatprep.subr.bf16.mxu0 0
    %197 = vmatpush2.bf16.msra.mxu0 0
    %198 = vmatprep.subr.bf16.mxu0 0
    %199 = vmatpush2.bf16.msra.mxu0 0
    %200 = vmatprep.subr.bf16.mxu0 0
    %201 = vmatpush2.bf16.msra.mxu0 0
    %202 = vmatprep.subr.bf16.mxu0 0
    %203 = vmatpush2.bf16.msra.mxu0 0
    %204 = vmatprep.mubr.bf16.mxu0 0
    %205 = vmatmul.mubr.bf16.gmra.mxu0 %v149
    %v206 = vpop.f32.mrf.mxu0
    %v207 = vadd.f32 0.0, %v206
    %v208 = vpop.f32.mrf.mxu0
    %v209 = vpop.f32.mrf.mxu0
    %v210 = vadd.f32 0.0, %v209
    %v211 = vpop.f32.mrf.mxu0
    %212 = vmatprep.mubr.bf16.mxu0 0
    %213 = vmatmul.mubr.bf16.gmra.mxu0 %v152
    %v214 = vpop.f32.mrf.mxu0
    %v215 = vadd.f32 0.0, %v214
    %v216 = vpop.f32.mrf.mxu0
    %v217 = vpop.f32.mrf.mxu0
    %v218 = vadd.f32 0.0, %v217
    %v219 = vpop.f32.mrf.mxu0
    %220 = vmatprep.mubr.bf16.mxu0 0
    %221 = vmatmul.mubr.bf16.gmra.mxu0 %v155
    %v222 = vpop.f32.mrf.mxu0
    %v223 = vadd.f32 0.0, %v222
    %v224 = vpop.f32.mrf.mxu0
    %v225 = vpop.f32.mrf.mxu0
    %v226 = vadd.f32 0.0, %v225
    %v227 = vpop.f32.mrf.mxu0
    %228 = vmatprep.mubr.bf16.mxu0 0
    %229 = vmatmul.mubr.bf16.gmra.mxu0 %v158
    %v230 = vpop.f32.mrf.mxu0
    %v231 = vadd.f32 0.0, %v230
    %v232 = vpop.f32.mrf.mxu0
    %v233 = vpop.f32.mrf.mxu0
    %v234 = vadd.f32 0.0, %v233
    %v235 = vpop.f32.mrf.mxu0
    %236 = vmatprep.mubr.bf16.mxu0 0
    %237 = vmatmul.mubr.bf16.gmra.mxu0 %v161
    %v238 = vpop.f32.mrf.mxu0
    %v239 = vadd.f32 0.0, %v238
    %v240 = vpop.f32.mrf.mxu0
    %v241 = vpop.f32.mrf.mxu0
    %v242 = vadd.f32 0.0, %v241
    %v243 = vpop.f32.mrf.mxu0
    %244 = vmatprep.mubr.bf16.mxu0 0
    %245 = vmatmul.mubr.bf16.gmra.mxu0 %v164
    %v246 = vpop.f32.mrf.mxu0
    %v247 = vadd.f32 0.0, %v246
    %v248 = vpop.f32.mrf.mxu0
    %v249 = vpop.f32.mrf.mxu0
    %v250 = vadd.f32 0.0, %v249
    %v251 = vpop.f32.mrf.mxu0
    %252 = vmatprep.mubr.bf16.mxu0 0
    %253 = vmatmul.mubr.bf16.gmra.mxu0 %v167
    %v254 = vpop.f32.mrf.mxu0
    %v255 = vadd.f32 0.0, %v254
    %v256 = vpop.f32.mrf.mxu0
    %v257 = vpop.f32.mrf.mxu0
    %v258 = vadd.f32 0.0, %v257
    %v259 = vpop.f32.mrf.mxu0
    %260 = vmatprep.mubr.bf16.mxu0 0
    %261 = vmatmul.mubr.bf16.gmra.mxu0 %v170
    %v262 = vpop.f32.mrf.mxu0
    %v263 = vadd.f32 0.0, %v262
    %v264 = vpop.f32.mrf.mxu0
    %v265 = vpop.f32.mrf.mxu0
    %v266 = vadd.f32 0.0, %v265
    %v267 = vpop.f32.mrf.mxu0
    %268 = vdwg.mxu0
    %v269 = vpack.c.bf16 %v207, %v207
    %v270 = vpack.c.bf16 %v210, %v210
    %v271 = vpack.c.bf16 %v215, %v215
    %v272 = vpack.c.bf16 %v218, %v218
    %v273 = vpack.c.bf16 %v223, %v223
    %v274 = vpack.c.bf16 %v226, %v226
    %v275 = vpack.c.bf16 %v231, %v231
    %v276 = vpack.c.bf16 %v234, %v234
    %v277 = vpack.c.bf16 %v239, %v239
    %v278 = vpack.c.bf16 %v242, %v242
    %v279 = vpack.c.bf16 %v247, %v247
    %v280 = vpack.c.bf16 %v250, %v250
    %v281 = vpack.c.bf16 %v255, %v255
    %v282 = vpack.c.bf16 %v258, %v258
    %v283 = vpack.c.bf16 %v263, %v263
    %v284 = vpack.c.bf16 %v266, %v266
    %286 = vrot.lane.b32.xlu0 %v269, 112
    %v287 = vpop.permute.xlu0 %286
    %vm288 = vcmask 130048
    %v290 = vsel %vm288, %v269, 0
    %v293 = vsel %vm288, %v287, 0
    %295 = vmatprep.subr.bf16.mxu0 0
    %296 = vmatpush1.bf16.xpose.msra.mxu0 0
    %297 = vmatprep.subr.bf16.mxu0 0
    %298 = vmatpush1.bf16.xpose.msra.mxu0 0
    %299 = vmatprep.subr.bf16.mxu0 0
    %300 = vmatpush1.bf16.xpose.msra.mxu0 0
    %301 = vmatprep.subr.bf16.mxu0 0
    %302 = vmatpush1.bf16.xpose.msra.mxu0 0
    %303 = vmatprep.subr.bf16.mxu0 0
    %304 = vmatpush1.bf16.xpose.msra.mxu0 0
    %305 = vmatprep.subr.bf16.mxu0 0
    %306 = vmatpush1.bf16.xpose.msra.mxu0 0
    %307 = vmatprep.subr.bf16.mxu0 0
    %308 = vmatpush1.bf16.xpose.msra.mxu0 0
    %309 = vmatprep.subr.bf16.mxu0 0
    %310 = vmatpush1.bf16.xpose.msra.mxu0 %v293
    %311 = vmatprep.subr.bf16.mxu0 0
    %312 = vmatpush2.bf16.xpose.msra.mxu0 0
    %313 = vmatprep.subr.bf16.mxu0 0
    %314 = vmatpush2.bf16.xpose.msra.mxu0 0
    %315 = vmatprep.subr.bf16.mxu0 0
    %316 = vmatpush2.bf16.xpose.msra.mxu0 0
    %317 = vmatprep.subr.bf16.mxu0 0
    %318 = vmatpush2.bf16.xpose.msra.mxu0 0
    %319 = vmatprep.subr.bf16.mxu0 0
    %320 = vmatpush2.bf16.xpose.msra.mxu0 0
    %321 = vmatprep.subr.bf16.mxu0 0
    %322 = vmatpush2.bf16.xpose.msra.mxu0 0
    %323 = vmatprep.subr.bf16.mxu0 0
    %324 = vmatpush2.bf16.xpose.msra.mxu0 0
    %325 = vmatprep.subr.bf16.mxu0 0
    %326 = vmatpush2.bf16.xpose.msra.mxu0 0
    %327 = vmatprep.mubr.bf16.mxu0 0
    %328 = vmatmul.mubr.bf16.gmra.mxu0 %v290
    %v329 = vpop.f32.mrf.mxu0
    %v330 = vadd.f32 0.0, %v329
    %v331 = vpop.f32.mrf.mxu0
    %v332 = vpop.f32.mrf.mxu0
    %v333 = vpop.f32.mrf.mxu0
    %334 = vdwg.mxu0
    %336 = vrot.lane.b32.xlu0 %v270, 112
    %v337 = vpop.permute.xlu0 %336
    %v339 = vsel %vm288, %v270, 0
    %v342 = vsel %vm288, %v337, 0
    %344 = vmatprep.subr.bf16.mxu0 0
    %345 = vmatpush1.bf16.xpose.msra.mxu0 0
    %346 = vmatprep.subr.bf16.mxu0 0
    %347 = vmatpush1.bf16.xpose.msra.mxu0 0
    %348 = vmatprep.subr.bf16.mxu0 0
    %349 = vmatpush1.bf16.xpose.msra.mxu0 0
    %350 = vmatprep.subr.bf16.mxu0 0
    %351 = vmatpush1.bf16.xpose.msra.mxu0 0
    %352 = vmatprep.subr.bf16.mxu0 0
    %353 = vmatpush1.bf16.xpose.msra.mxu0 0
    %354 = vmatprep.subr.bf16.mxu0 0
    %355 = vmatpush1.bf16.xpose.msra.mxu0 0
    %356 = vmatprep.subr.bf16.mxu0 0
    %357 = vmatpush1.bf16.xpose.msra.mxu0 0
    %358 = vmatprep.subr.bf16.mxu0 0
    %359 = vmatpush1.bf16.xpose.msra.mxu0 %v342
    %360 = vmatprep.subr.bf16.mxu0 0
    %361 = vmatpush2.bf16.xpose.msra.mxu0 0
    %362 = vmatprep.subr.bf16.mxu0 0
    %363 = vmatpush2.bf16.xpose.msra.mxu0 0
    %364 = vmatprep.subr.bf16.mxu0 0
    %365 = vmatpush2.bf16.xpose.msra.mxu0 0
    %366 = vmatprep.subr.bf16.mxu0 0
    %367 = vmatpush2.bf16.xpose.msra.mxu0 0
    %368 = vmatprep.subr.bf16.mxu0 0
    %369 = vmatpush2.bf16.xpose.msra.mxu0 0
    %370 = vmatprep.subr.bf16.mxu0 0
    %371 = vmatpush2.bf16.xpose.msra.mxu0 0
    %372 = vmatprep.subr.bf16.mxu0 0
    %373 = vmatpush2.bf16.xpose.msra.mxu0 0
    %374 = vmatprep.subr.bf16.mxu0 0
    %375 = vmatpush2.bf16.xpose.msra.mxu0 0
    %376 = vmatprep.mubr.bf16.mxu0 0
    %377 = vmatmul.mubr.bf16.gmra.mxu0 %v339
    %v378 = vpop.f32.mrf.mxu0
    %v379 = vadd.f32 0.0, %v378
    %v380 = vpop.f32.mrf.mxu0
    %v381 = vpop.f32.mrf.mxu0
    %v382 = vpop.f32.mrf.mxu0
    %383 = vdwg.mxu0
    %385 = vrot.lane.b32.xlu0 %v271, 112
    %v386 = vpop.permute.xlu0 %385
    %v388 = vsel %vm288, %v271, 0
    %v391 = vsel %vm288, %v386, 0
    %393 = vmatprep.subr.bf16.mxu0 0
    %394 = vmatpush1.bf16.xpose.msra.mxu0 0
    %395 = vmatprep.subr.bf16.mxu0 0
    %396 = vmatpush1.bf16.xpose.msra.mxu0 0
    %397 = vmatprep.subr.bf16.mxu0 0
    %398 = vmatpush1.bf16.xpose.msra.mxu0 0
    %399 = vmatprep.subr.bf16.mxu0 0
    %400 = vmatpush1.bf16.xpose.msra.mxu0 0
    %401 = vmatprep.subr.bf16.mxu0 0
    %402 = vmatpush1.bf16.xpose.msra.mxu0 0
    %403 = vmatprep.subr.bf16.mxu0 0
    %404 = vmatpush1.bf16.xpose.msra.mxu0 0
    %405 = vmatprep.subr.bf16.mxu0 0
    %406 = vmatpush1.bf16.xpose.msra.mxu0 0
    %407 = vmatprep.subr.bf16.mxu0 0
    %408 = vmatpush1.bf16.xpose.msra.mxu0 %v391
    %409 = vmatprep.subr.bf16.mxu0 0
    %410 = vmatpush2.bf16.xpose.msra.mxu0 0
    %411 = vmatprep.subr.bf16.mxu0 0
    %412 = vmatpush2.bf16.xpose.msra.mxu0 0
    %413 = vmatprep.subr.bf16.mxu0 0
    %414 = vmatpush2.bf16.xpose.msra.mxu0 0
    %415 = vmatprep.subr.bf16.mxu0 0
    %416 = vmatpush2.bf16.xpose.msra.mxu0 0
    %417 = vmatprep.subr.bf16.mxu0 0
    %418 = vmatpush2.bf16.xpose.msra.mxu0 0
    %419 = vmatprep.subr.bf16.mxu0 0
    %420 = vmatpush2.bf16.xpose.msra.mxu0 0
    %421 = vmatprep.subr.bf16.mxu0 0
    %422 = vmatpush2.bf16.xpose.msra.mxu0 0
    %423 = vmatprep.subr.bf16.mxu0 0
    %424 = vmatpush2.bf16.xpose.msra.mxu0 0
    %425 = vmatprep.mubr.bf16.mxu0 0
    %426 = vmatmul.mubr.bf16.gmra.mxu0 %v388
    %v427 = vpop.f32.mrf.mxu0
    %v428 = vadd.f32 0.0, %v427
    %v429 = vpop.f32.mrf.mxu0
    %v430 = vpop.f32.mrf.mxu0
    %v431 = vpop.f32.mrf.mxu0
    %432 = vdwg.mxu0
    %434 = vrot.lane.b32.xlu0 %v272, 112
    %v435 = vpop.permute.xlu0 %434
    %v437 = vsel %vm288, %v272, 0
    %v440 = vsel %vm288, %v435, 0
    %442 = vmatprep.subr.bf16.mxu0 0
    %443 = vmatpush1.bf16.xpose.msra.mxu0 0
    %444 = vmatprep.subr.bf16.mxu0 0
    %445 = vmatpush1.bf16.xpose.msra.mxu0 0
    %446 = vmatprep.subr.bf16.mxu0 0
    %447 = vmatpush1.bf16.xpose.msra.mxu0 0
    %448 = vmatprep.subr.bf16.mxu0 0
    %449 = vmatpush1.bf16.xpose.msra.mxu0 0
    %450 = vmatprep.subr.bf16.mxu0 0
    %451 = vmatpush1.bf16.xpose.msra.mxu0 0
    %452 = vmatprep.subr.bf16.mxu0 0
    %453 = vmatpush1.bf16.xpose.msra.mxu0 0
    %454 = vmatprep.subr.bf16.mxu0 0
    %455 = vmatpush1.bf16.xpose.msra.mxu0 0
    %456 = vmatprep.subr.bf16.mxu0 0
    %457 = vmatpush1.bf16.xpose.msra.mxu0 %v440
    %458 = vmatprep.subr.bf16.mxu0 0
    %459 = vmatpush2.bf16.xpose.msra.mxu0 0
    %460 = vmatprep.subr.bf16.mxu0 0
    %461 = vmatpush2.bf16.xpose.msra.mxu0 0
    %462 = vmatprep.subr.bf16.mxu0 0
    %463 = vmatpush2.bf16.xpose.msra.mxu0 0
    %464 = vmatprep.subr.bf16.mxu0 0
    %465 = vmatpush2.bf16.xpose.msra.mxu0 0
    %466 = vmatprep.subr.bf16.mxu0 0
    %467 = vmatpush2.bf16.xpose.msra.mxu0 0
    %468 = vmatprep.subr.bf16.mxu0 0
    %469 = vmatpush2.bf16.xpose.msra.mxu0 0
    %470 = vmatprep.subr.bf16.mxu0 0
    %471 = vmatpush2.bf16.xpose.msra.mxu0 0
    %472 = vmatprep.subr.bf16.mxu0 0
    %473 = vmatpush2.bf16.xpose.msra.mxu0 0
    %474 = vmatprep.mubr.bf16.mxu0 0
    %475 = vmatmul.mubr.bf16.gmra.mxu0 %v437
    %v476 = vpop.f32.mrf.mxu0
    %v477 = vadd.f32 0.0, %v476
    %v478 = vpop.f32.mrf.mxu0
    %v479 = vpop.f32.mrf.mxu0
    %v480 = vpop.f32.mrf.mxu0
    %481 = vdwg.mxu0
    %483 = vrot.lane.b32.xlu0 %v273, 112
    %v484 = vpop.permute.xlu0 %483
    %v486 = vsel %vm288, %v273, 0
    %v489 = vsel %vm288, %v484, 0
    %491 = vmatprep.subr.bf16.mxu0 0
    %492 = vmatpush1.bf16.xpose.msra.mxu0 0
    %493 = vmatprep.subr.bf16.mxu0 0
    %494 = vmatpush1.bf16.xpose.msra.mxu0 0
    %495 = vmatprep.subr.bf16.mxu0 0
    %496 = vmatpush1.bf16.xpose.msra.mxu0 0
    %497 = vmatprep.subr.bf16.mxu0 0
    %498 = vmatpush1.bf16.xpose.msra.mxu0 0
    %499 = vmatprep.subr.bf16.mxu0 0
    %500 = vmatpush1.bf16.xpose.msra.mxu0 0
    %501 = vmatprep.subr.bf16.mxu0 0
    %502 = vmatpush1.bf16.xpose.msra.mxu0 0
    %503 = vmatprep.subr.bf16.mxu0 0
    %504 = vmatpush1.bf16.xpose.msra.mxu0 0
    %505 = vmatprep.subr.bf16.mxu0 0
    %506 = vmatpush1.bf16.xpose.msra.mxu0 %v489
    %507 = vmatprep.subr.bf16.mxu0 0
    %508 = vmatpush2.bf16.xpose.msra.mxu0 0
    %509 = vmatprep.subr.bf16.mxu0 0
    %510 = vmatpush2.bf16.xpose.msra.mxu0 0
    %511 = vmatprep.subr.bf16.mxu0 0
    %512 = vmatpush2.bf16.xpose.msra.mxu0 0
    %513 = vmatprep.subr.bf16.mxu0 0
    %514 = vmatpush2.bf16.xpose.msra.mxu0 0
    %515 = vmatprep.subr.bf16.mxu0 0
    %516 = vmatpush2.bf16.xpose.msra.mxu0 0
    %517 = vmatprep.subr.bf16.mxu0 0
    %518 = vmatpush2.bf16.xpose.msra.mxu0 0
    %519 = vmatprep.subr.bf16.mxu0 0
    %520 = vmatpush2.bf16.xpose.msra.mxu0 0
    %521 = vmatprep.subr.bf16.mxu0 0
    %522 = vmatpush2.bf16.xpose.msra.mxu0 0
    %523 = vmatprep.mubr.bf16.mxu0 0
    %524 = vmatmul.mubr.bf16.gmra.mxu0 %v486
    %v525 = vpop.f32.mrf.mxu0
    %v526 = vadd.f32 0.0, %v525
    %v527 = vpop.f32.mrf.mxu0
    %v528 = vpop.f32.mrf.mxu0
    %v529 = vpop.f32.mrf.mxu0
    %530 = vdwg.mxu0
    %532 = vrot.lane.b32.xlu0 %v274, 112
    %v533 = vpop.permute.xlu0 %532
    %v535 = vsel %vm288, %v274, 0
    %v538 = vsel %vm288, %v533, 0
    %540 = vmatprep.subr.bf16.mxu0 0
    %541 = vmatpush1.bf16.xpose.msra.mxu0 0
    %542 = vmatprep.subr.bf16.mxu0 0
    %543 = vmatpush1.bf16.xpose.msra.mxu0 0
    %544 = vmatprep.subr.bf16.mxu0 0
    %545 = vmatpush1.bf16.xpose.msra.mxu0 0
    %546 = vmatprep.subr.bf16.mxu0 0
    %547 = vmatpush1.bf16.xpose.msra.mxu0 0
    %548 = vmatprep.subr.bf16.mxu0 0
    %549 = vmatpush1.bf16.xpose.msra.mxu0 0
    %550 = vmatprep.subr.bf16.mxu0 0
    %551 = vmatpush1.bf16.xpose.msra.mxu0 0
    %552 = vmatprep.subr.bf16.mxu0 0
    %553 = vmatpush1.bf16.xpose.msra.mxu0 0
    %554 = vmatprep.subr.bf16.mxu0 0
    %555 = vmatpush1.bf16.xpose.msra.mxu0 %v538
    %556 = vmatprep.subr.bf16.mxu0 0
    %557 = vmatpush2.bf16.xpose.msra.mxu0 0
    %558 = vmatprep.subr.bf16.mxu0 0
    %559 = vmatpush2.bf16.xpose.msra.mxu0 0
    %560 = vmatprep.subr.bf16.mxu0 0
    %561 = vmatpush2.bf16.xpose.msra.mxu0 0
    %562 = vmatprep.subr.bf16.mxu0 0
    %563 = vmatpush2.bf16.xpose.msra.mxu0 0
    %564 = vmatprep.subr.bf16.mxu0 0
    %565 = vmatpush2.bf16.xpose.msra.mxu0 0
    %566 = vmatprep.subr.bf16.mxu0 0
    %567 = vmatpush2.bf16.xpose.msra.mxu0 0
    %568 = vmatprep.subr.bf16.mxu0 0
    %569 = vmatpush2.bf16.xpose.msra.mxu0 0
    %570 = vmatprep.subr.bf16.mxu0 0
    %571 = vmatpush2.bf16.xpose.msra.mxu0 0
    %572 = vmatprep.mubr.bf16.mxu0 0
    %573 = vmatmul.mubr.bf16.gmra.mxu0 %v535
    %v574 = vpop.f32.mrf.mxu0
    %v575 = vadd.f32 0.0, %v574
    %v576 = vpop.f32.mrf.mxu0
    %v577 = vpop.f32.mrf.mxu0
    %v578 = vpop.f32.mrf.mxu0
    %579 = vdwg.mxu0
    %581 = vrot.lane.b32.xlu0 %v275, 112
    %v582 = vpop.permute.xlu0 %581
    %v584 = vsel %vm288, %v275, 0
    %v587 = vsel %vm288, %v582, 0
    %589 = vmatprep.subr.bf16.mxu0 0
    %590 = vmatpush1.bf16.xpose.msra.mxu0 0
    %591 = vmatprep.subr.bf16.mxu0 0
    %592 = vmatpush1.bf16.xpose.msra.mxu0 0
    %593 = vmatprep.subr.bf16.mxu0 0
    %594 = vmatpush1.bf16.xpose.msra.mxu0 0
    %595 = vmatprep.subr.bf16.mxu0 0
    %596 = vmatpush1.bf16.xpose.msra.mxu0 0
    %597 = vmatprep.subr.bf16.mxu0 0
    %598 = vmatpush1.bf16.xpose.msra.mxu0 0
    %599 = vmatprep.subr.bf16.mxu0 0
    %600 = vmatpush1.bf16.xpose.msra.mxu0 0
    %601 = vmatprep.subr.bf16.mxu0 0
    %602 = vmatpush1.bf16.xpose.msra.mxu0 0
    %603 = vmatprep.subr.bf16.mxu0 0
    %604 = vmatpush1.bf16.xpose.msra.mxu0 %v587
    %605 = vmatprep.subr.bf16.mxu0 0
    %606 = vmatpush2.bf16.xpose.msra.mxu0 0
    %607 = vmatprep.subr.bf16.mxu0 0
    %608 = vmatpush2.bf16.xpose.msra.mxu0 0
    %609 = vmatprep.subr.bf16.mxu0 0
    %610 = vmatpush2.bf16.xpose.msra.mxu0 0
    %611 = vmatprep.subr.bf16.mxu0 0
    %612 = vmatpush2.bf16.xpose.msra.mxu0 0
    %613 = vmatprep.subr.bf16.mxu0 0
    %614 = vmatpush2.bf16.xpose.msra.mxu0 0
    %615 = vmatprep.subr.bf16.mxu0 0
    %616 = vmatpush2.bf16.xpose.msra.mxu0 0
    %617 = vmatprep.subr.bf16.mxu0 0
    %618 = vmatpush2.bf16.xpose.msra.mxu0 0
    %619 = vmatprep.subr.bf16.mxu0 0
    %620 = vmatpush2.bf16.xpose.msra.mxu0 0
    %621 = vmatprep.mubr.bf16.mxu0 0
    %622 = vmatmul.mubr.bf16.gmra.mxu0 %v584
    %v623 = vpop.f32.mrf.mxu0
    %v624 = vadd.f32 0.0, %v623
    %v625 = vpop.f32.mrf.mxu0
    %v626 = vpop.f32.mrf.mxu0
    %v627 = vpop.f32.mrf.mxu0
    %628 = vdwg.mxu0
    %630 = vrot.lane.b32.xlu0 %v276, 112
    %v631 = vpop.permute.xlu0 %630
    %v633 = vsel %vm288, %v276, 0
    %v636 = vsel %vm288, %v631, 0
    %638 = vmatprep.subr.bf16.mxu0 0
    %639 = vmatpush1.bf16.xpose.msra.mxu0 0
    %640 = vmatprep.subr.bf16.mxu0 0
    %641 = vmatpush1.bf16.xpose.msra.mxu0 0
    %642 = vmatprep.subr.bf16.mxu0 0
    %643 = vmatpush1.bf16.xpose.msra.mxu0 0
    %644 = vmatprep.subr.bf16.mxu0 0
    %645 = vmatpush1.bf16.xpose.msra.mxu0 0
    %646 = vmatprep.subr.bf16.mxu0 0
    %647 = vmatpush1.bf16.xpose.msra.mxu0 0
    %648 = vmatprep.subr.bf16.mxu0 0
    %649 = vmatpush1.bf16.xpose.msra.mxu0 0
    %650 = vmatprep.subr.bf16.mxu0 0
    %651 = vmatpush1.bf16.xpose.msra.mxu0 0
    %652 = vmatprep.subr.bf16.mxu0 0
    %653 = vmatpush1.bf16.xpose.msra.mxu0 %v636
    %654 = vmatprep.subr.bf16.mxu0 0
    %655 = vmatpush2.bf16.xpose.msra.mxu0 0
    %656 = vmatprep.subr.bf16.mxu0 0
    %657 = vmatpush2.bf16.xpose.msra.mxu0 0
    %658 = vmatprep.subr.bf16.mxu0 0
    %659 = vmatpush2.bf16.xpose.msra.mxu0 0
    %660 = vmatprep.subr.bf16.mxu0 0
    %661 = vmatpush2.bf16.xpose.msra.mxu0 0
    %662 = vmatprep.subr.bf16.mxu0 0
    %663 = vmatpush2.bf16.xpose.msra.mxu0 0
    %664 = vmatprep.subr.bf16.mxu0 0
    %665 = vmatpush2.bf16.xpose.msra.mxu0 0
    %666 = vmatprep.subr.bf16.mxu0 0
    %667 = vmatpush2.bf16.xpose.msra.mxu0 0
    %668 = vmatprep.subr.bf16.mxu0 0
    %669 = vmatpush2.bf16.xpose.msra.mxu0 0
    %670 = vmatprep.mubr.bf16.mxu0 0
    %671 = vmatmul.mubr.bf16.gmra.mxu0 %v633
    %v672 = vpop.f32.mrf.mxu0
    %v673 = vadd.f32 0.0, %v672
    %v674 = vpop.f32.mrf.mxu0
    %v675 = vpop.f32.mrf.mxu0
    %v676 = vpop.f32.mrf.mxu0
    %677 = vdwg.mxu0
    %679 = vrot.lane.b32.xlu0 %v277, 112
    %v680 = vpop.permute.xlu0 %679
    %v682 = vsel %vm288, %v277, 0
    %v685 = vsel %vm288, %v680, 0
    %687 = vmatprep.subr.bf16.mxu0 0
    %688 = vmatpush1.bf16.xpose.msra.mxu0 0
    %689 = vmatprep.subr.bf16.mxu0 0
    %690 = vmatpush1.bf16.xpose.msra.mxu0 0
    %691 = vmatprep.subr.bf16.mxu0 0
    %692 = vmatpush1.bf16.xpose.msra.mxu0 0
    %693 = vmatprep.subr.bf16.mxu0 0
    %694 = vmatpush1.bf16.xpose.msra.mxu0 0
    %695 = vmatprep.subr.bf16.mxu0 0
    %696 = vmatpush1.bf16.xpose.msra.mxu0 0
    %697 = vmatprep.subr.bf16.mxu0 0
    %698 = vmatpush1.bf16.xpose.msra.mxu0 0
    %699 = vmatprep.subr.bf16.mxu0 0
    %700 = vmatpush1.bf16.xpose.msra.mxu0 0
    %701 = vmatprep.subr.bf16.mxu0 0
    %702 = vmatpush1.bf16.xpose.msra.mxu0 %v685
    %703 = vmatprep.subr.bf16.mxu0 0
    %704 = vmatpush2.bf16.xpose.msra.mxu0 0
    %705 = vmatprep.subr.bf16.mxu0 0
    %706 = vmatpush2.bf16.xpose.msra.mxu0 0
    %707 = vmatprep.subr.bf16.mxu0 0
    %708 = vmatpush2.bf16.xpose.msra.mxu0 0
    %709 = vmatprep.subr.bf16.mxu0 0
    %710 = vmatpush2.bf16.xpose.msra.mxu0 0
    %711 = vmatprep.subr.bf16.mxu0 0
    %712 = vmatpush2.bf16.xpose.msra.mxu0 0
    %713 = vmatprep.subr.bf16.mxu0 0
    %714 = vmatpush2.bf16.xpose.msra.mxu0 0
    %715 = vmatprep.subr.bf16.mxu0 0
    %716 = vmatpush2.bf16.xpose.msra.mxu0 0
    %717 = vmatprep.subr.bf16.mxu0 0
    %718 = vmatpush2.bf16.xpose.msra.mxu0 0
    %719 = vmatprep.mubr.bf16.mxu0 0
    %720 = vmatmul.mubr.bf16.gmra.mxu0 %v682
    %v721 = vpop.f32.mrf.mxu0
    %v722 = vadd.f32 0.0, %v721
    %v723 = vpop.f32.mrf.mxu0
    %v724 = vpop.f32.mrf.mxu0
    %v725 = vpop.f32.mrf.mxu0
    %726 = vdwg.mxu0
    %728 = vrot.lane.b32.xlu0 %v278, 112
    %v729 = vpop.permute.xlu0 %728
    %v731 = vsel %vm288, %v278, 0
    %v734 = vsel %vm288, %v729, 0
    %736 = vmatprep.subr.bf16.mxu0 0
    %737 = vmatpush1.bf16.xpose.msra.mxu0 0
    %738 = vmatprep.subr.bf16.mxu0 0
    %739 = vmatpush1.bf16.xpose.msra.mxu0 0
    %740 = vmatprep.subr.bf16.mxu0 0
    %741 = vmatpush1.bf16.xpose.msra.mxu0 0
    %742 = vmatprep.subr.bf16.mxu0 0
    %743 = vmatpush1.bf16.xpose.msra.mxu0 0
    %744 = vmatprep.subr.bf16.mxu0 0
    %745 = vmatpush1.bf16.xpose.msra.mxu0 0
    %746 = vmatprep.subr.bf16.mxu0 0
    %747 = vmatpush1.bf16.xpose.msra.mxu0 0
    %748 = vmatprep.subr.bf16.mxu0 0
    %749 = vmatpush1.bf16.xpose.msra.mxu0 0
    %750 = vmatprep.subr.bf16.mxu0 0
    %751 = vmatpush1.bf16.xpose.msra.mxu0 %v734
    %752 = vmatprep.subr.bf16.mxu0 0
    %753 = vmatpush2.bf16.xpose.msra.mxu0 0
    %754 = vmatprep.subr.bf16.mxu0 0
    %755 = vmatpush2.bf16.xpose.msra.mxu0 0
    %756 = vmatprep.subr.bf16.mxu0 0
    %757 = vmatpush2.bf16.xpose.msra.mxu0 0
    %758 = vmatprep.subr.bf16.mxu0 0
    %759 = vmatpush2.bf16.xpose.msra.mxu0 0
    %760 = vmatprep.subr.bf16.mxu0 0
    %761 = vmatpush2.bf16.xpose.msra.mxu0 0
    %762 = vmatprep.subr.bf16.mxu0 0
    %763 = vmatpush2.bf16.xpose.msra.mxu0 0
    %764 = vmatprep.subr.bf16.mxu0 0
    %765 = vmatpush2.bf16.xpose.msra.mxu0 0
    %766 = vmatprep.subr.bf16.mxu0 0
    %767 = vmatpush2.bf16.xpose.msra.mxu0 0
    %768 = vmatprep.mubr.bf16.mxu0 0
    %769 = vmatmul.mubr.bf16.gmra.mxu0 %v731
    %v770 = vpop.f32.mrf.mxu0
    %v771 = vadd.f32 0.0, %v770
    %v772 = vpop.f32.mrf.mxu0
    %v773 = vpop.f32.mrf.mxu0
    %v774 = vpop.f32.mrf.mxu0
    %775 = vdwg.mxu0
    %777 = vrot.lane.b32.xlu0 %v279, 112
    %v778 = vpop.permute.xlu0 %777
    %v780 = vsel %vm288, %v279, 0
    %v783 = vsel %vm288, %v778, 0
    %785 = vmatprep.subr.bf16.mxu0 0
    %786 = vmatpush1.bf16.xpose.msra.mxu0 0
    %787 = vmatprep.subr.bf16.mxu0 0
    %788 = vmatpush1.bf16.xpose.msra.mxu0 0
    %789 = vmatprep.subr.bf16.mxu0 0
    %790 = vmatpush1.bf16.xpose.msra.mxu0 0
    %791 = vmatprep.subr.bf16.mxu0 0
    %792 = vmatpush1.bf16.xpose.msra.mxu0 0
    %793 = vmatprep.subr.bf16.mxu0 0
    %794 = vmatpush1.bf16.xpose.msra.mxu0 0
    %795 = vmatprep.subr.bf16.mxu0 0
    %796 = vmatpush1.bf16.xpose.msra.mxu0 0
    %797 = vmatprep.subr.bf16.mxu0 0
    %798 = vmatpush1.bf16.xpose.msra.mxu0 0
    %799 = vmatprep.subr.bf16.mxu0 0
    %800 = vmatpush1.bf16.xpose.msra.mxu0 %v783
    %801 = vmatprep.subr.bf16.mxu0 0
    %802 = vmatpush2.bf16.xpose.msra.mxu0 0
    %803 = vmatprep.subr.bf16.mxu0 0
    %804 = vmatpush2.bf16.xpose.msra.mxu0 0
    %805 = vmatprep.subr.bf16.mxu0 0
    %806 = vmatpush2.bf16.xpose.msra.mxu0 0
    %807 = vmatprep.subr.bf16.mxu0 0
    %808 = vmatpush2.bf16.xpose.msra.mxu0 0
    %809 = vmatprep.subr.bf16.mxu0 0
    %810 = vmatpush2.bf16.xpose.msra.mxu0 0
    %811 = vmatprep.subr.bf16.mxu0 0
    %812 = vmatpush2.bf16.xpose.msra.mxu0 0
    %813 = vmatprep.subr.bf16.mxu0 0
    %814 = vmatpush2.bf16.xpose.msra.mxu0 0
    %815 = vmatprep.subr.bf16.mxu0 0
    %816 = vmatpush2.bf16.xpose.msra.mxu0 0
    %817 = vmatprep.mubr.bf16.mxu0 0
    %818 = vmatmul.mubr.bf16.gmra.mxu0 %v780
    %v819 = vpop.f32.mrf.mxu0
    %v820 = vadd.f32 0.0, %v819
    %v821 = vpop.f32.mrf.mxu0
    %v822 = vpop.f32.mrf.mxu0
    %v823 = vpop.f32.mrf.mxu0
    %824 = vdwg.mxu0
    %826 = vrot.lane.b32.xlu0 %v280, 112
    %v827 = vpop.permute.xlu0 %826
    %v829 = vsel %vm288, %v280, 0
    %v832 = vsel %vm288, %v827, 0
    %834 = vmatprep.subr.bf16.mxu0 0
    %835 = vmatpush1.bf16.xpose.msra.mxu0 0
    %836 = vmatprep.subr.bf16.mxu0 0
    %837 = vmatpush1.bf16.xpose.msra.mxu0 0
    %838 = vmatprep.subr.bf16.mxu0 0
    %839 = vmatpush1.bf16.xpose.msra.mxu0 0
    %840 = vmatprep.subr.bf16.mxu0 0
    %841 = vmatpush1.bf16.xpose.msra.mxu0 0
    %842 = vmatprep.subr.bf16.mxu0 0
    %843 = vmatpush1.bf16.xpose.msra.mxu0 0
    %844 = vmatprep.subr.bf16.mxu0 0
    %845 = vmatpush1.bf16.xpose.msra.mxu0 0
    %846 = vmatprep.subr.bf16.mxu0 0
    %847 = vmatpush1.bf16.xpose.msra.mxu0 0
    %848 = vmatprep.subr.bf16.mxu0 0
    %849 = vmatpush1.bf16.xpose.msra.mxu0 %v832
    %850 = vmatprep.subr.bf16.mxu0 0
    %851 = vmatpush2.bf16.xpose.msra.mxu0 0
    %852 = vmatprep.subr.bf16.mxu0 0
    %853 = vmatpush2.bf16.xpose.msra.mxu0 0
    %854 = vmatprep.subr.bf16.mxu0 0
    %855 = vmatpush2.bf16.xpose.msra.mxu0 0
    %856 = vmatprep.subr.bf16.mxu0 0
    %857 = vmatpush2.bf16.xpose.msra.mxu0 0
    %858 = vmatprep.subr.bf16.mxu0 0
    %859 = vmatpush2.bf16.xpose.msra.mxu0 0
    %860 = vmatprep.subr.bf16.mxu0 0
    %861 = vmatpush2.bf16.xpose.msra.mxu0 0
    %862 = vmatprep.subr.bf16.mxu0 0
    %863 = vmatpush2.bf16.xpose.msra.mxu0 0
    %864 = vmatprep.subr.bf16.mxu0 0
    %865 = vmatpush2.bf16.xpose.msra.mxu0 0
    %866 = vmatprep.mubr.bf16.mxu0 0
    %867 = vmatmul.mubr.bf16.gmra.mxu0 %v829
    %v868 = vpop.f32.mrf.mxu0
    %v869 = vadd.f32 0.0, %v868
    %v870 = vpop.f32.mrf.mxu0
    %v871 = vpop.f32.mrf.mxu0
    %v872 = vpop.f32.mrf.mxu0
    %873 = vdwg.mxu0
    %875 = vrot.lane.b32.xlu0 %v281, 112
    %v876 = vpop.permute.xlu0 %875
    %v878 = vsel %vm288, %v281, 0
    %v881 = vsel %vm288, %v876, 0
    %883 = vmatprep.subr.bf16.mxu0 0
    %884 = vmatpush1.bf16.xpose.msra.mxu0 0
    %885 = vmatprep.subr.bf16.mxu0 0
    %886 = vmatpush1.bf16.xpose.msra.mxu0 0
    %887 = vmatprep.subr.bf16.mxu0 0
    %888 = vmatpush1.bf16.xpose.msra.mxu0 0
    %889 = vmatprep.subr.bf16.mxu0 0
    %890 = vmatpush1.bf16.xpose.msra.mxu0 0
    %891 = vmatprep.subr.bf16.mxu0 0
    %892 = vmatpush1.bf16.xpose.msra.mxu0 0
    %893 = vmatprep.subr.bf16.mxu0 0
    %894 = vmatpush1.bf16.xpose.msra.mxu0 0
    %895 = vmatprep.subr.bf16.mxu0 0
    %896 = vmatpush1.bf16.xpose.msra.mxu0 0
    %897 = vmatprep.subr.bf16.mxu0 0
    %898 = vmatpush1.bf16.xpose.msra.mxu0 %v881
    %899 = vmatprep.subr.bf16.mxu0 0
    %900 = vmatpush2.bf16.xpose.msra.mxu0 0
    %901 = vmatprep.subr.bf16.mxu0 0
    %902 = vmatpush2.bf16.xpose.msra.mxu0 0
    %903 = vmatprep.subr.bf16.mxu0 0
    %904 = vmatpush2.bf16.xpose.msra.mxu0 0
    %905 = vmatprep.subr.bf16.mxu0 0
    %906 = vmatpush2.bf16.xpose.msra.mxu0 0
    %907 = vmatprep.subr.bf16.mxu0 0
    %908 = vmatpush2.bf16.xpose.msra.mxu0 0
    %909 = vmatprep.subr.bf16.mxu0 0
    %910 = vmatpush2.bf16.xpose.msra.mxu0 0
    %911 = vmatprep.subr.bf16.mxu0 0
    %912 = vmatpush2.bf16.xpose.msra.mxu0 0
    %913 = vmatprep.subr.bf16.mxu0 0
    %914 = vmatpush2.bf16.xpose.msra.mxu0 0
    %915 = vmatprep.mubr.bf16.mxu0 0
    %916 = vmatmul.mubr.bf16.gmra.mxu0 %v878
    %v917 = vpop.f32.mrf.mxu0
    %v918 = vadd.f32 0.0, %v917
    %v919 = vpop.f32.mrf.mxu0
    %v920 = vpop.f32.mrf.mxu0
    %v921 = vpop.f32.mrf.mxu0
    %922 = vdwg.mxu0
    %924 = vrot.lane.b32.xlu0 %v282, 112
    %v925 = vpop.permute.xlu0 %924
    %v927 = vsel %vm288, %v282, 0
    %v930 = vsel %vm288, %v925, 0
    %932 = vmatprep.subr.bf16.mxu0 0
    %933 = vmatpush1.bf16.xpose.msra.mxu0 0
    %934 = vmatprep.subr.bf16.mxu0 0
    %935 = vmatpush1.bf16.xpose.msra.mxu0 0
    %936 = vmatprep.subr.bf16.mxu0 0
    %937 = vmatpush1.bf16.xpose.msra.mxu0 0
    %938 = vmatprep.subr.bf16.mxu0 0
    %939 = vmatpush1.bf16.xpose.msra.mxu0 0
    %940 = vmatprep.subr.bf16.mxu0 0
    %941 = vmatpush1.bf16.xpose.msra.mxu0 0
    %942 = vmatprep.subr.bf16.mxu0 0
    %943 = vmatpush1.bf16.xpose.msra.mxu0 0
    %944 = vmatprep.subr.bf16.mxu0 0
    %945 = vmatpush1.bf16.xpose.msra.mxu0 0
    %946 = vmatprep.subr.bf16.mxu0 0
    %947 = vmatpush1.bf16.xpose.msra.mxu0 %v930
    %948 = vmatprep.subr.bf16.mxu0 0
    %949 = vmatpush2.bf16.xpose.msra.mxu0 0
    %950 = vmatprep.subr.bf16.mxu0 0
    %951 = vmatpush2.bf16.xpose.msra.mxu0 0
    %952 = vmatprep.subr.bf16.mxu0 0
    %953 = vmatpush2.bf16.xpose.msra.mxu0 0
    %954 = vmatprep.subr.bf16.mxu0 0
    %955 = vmatpush2.bf16.xpose.msra.mxu0 0
    %956 = vmatprep.subr.bf16.mxu0 0
    %957 = vmatpush2.bf16.xpose.msra.mxu0 0
    %958 = vmatprep.subr.bf16.mxu0 0
    %959 = vmatpush2.bf16.xpose.msra.mxu0 0
    %960 = vmatprep.subr.bf16.mxu0 0
    %961 = vmatpush2.bf16.xpose.msra.mxu0 0
    %962 = vmatprep.subr.bf16.mxu0 0
    %963 = vmatpush2.bf16.xpose.msra.mxu0 0
    %964 = vmatprep.mubr.bf16.mxu0 0
    %965 = vmatmul.mubr.bf16.gmra.mxu0 %v927
    %v966 = vpop.f32.mrf.mxu0
    %v967 = vadd.f32 0.0, %v966
    %v968 = vpop.f32.mrf.mxu0
    %v969 = vpop.f32.mrf.mxu0
    %v970 = vpop.f32.mrf.mxu0
    %971 = vdwg.mxu0
    %973 = vrot.lane.b32.xlu0 %v283, 112
    %v974 = vpop.permute.xlu0 %973
    %v976 = vsel %vm288, %v283, 0
    %v979 = vsel %vm288, %v974, 0
    %981 = vmatprep.subr.bf16.mxu0 0
    %982 = vmatpush1.bf16.xpose.msra.mxu0 0
    %983 = vmatprep.subr.bf16.mxu0 0
    %984 = vmatpush1.bf16.xpose.msra.mxu0 0
    %985 = vmatprep.subr.bf16.mxu0 0
    %986 = vmatpush1.bf16.xpose.msra.mxu0 0
    %987 = vmatprep.subr.bf16.mxu0 0
    %988 = vmatpush1.bf16.xpose.msra.mxu0 0
    %989 = vmatprep.subr.bf16.mxu0 0
    %990 = vmatpush1.bf16.xpose.msra.mxu0 0
    %991 = vmatprep.subr.bf16.mxu0 0
    %992 = vmatpush1.bf16.xpose.msra.mxu0 0
    %993 = vmatprep.subr.bf16.mxu0 0
    %994 = vmatpush1.bf16.xpose.msra.mxu0 0
    %995 = vmatprep.subr.bf16.mxu0 0
    %996 = vmatpush1.bf16.xpose.msra.mxu0 %v979
    %997 = vmatprep.subr.bf16.mxu0 0
    %998 = vmatpush2.bf16.xpose.msra.mxu0 0
    %999 = vmatprep.subr.bf16.mxu0 0
    %1000 = vmatpush2.bf16.xpose.msra.mxu0 0
    %1001 = vmatprep.subr.bf16.mxu0 0
    %1002 = vmatpush2.bf16.xpose.msra.mxu0 0
    %1003 = vmatprep.subr.bf16.mxu0 0
    %1004 = vmatpush2.bf16.xpose.msra.mxu0 0
    %1005 = vmatprep.subr.bf16.mxu0 0
    %1006 = vmatpush2.bf16.xpose.msra.mxu0 0
    %1007 = vmatprep.subr.bf16.mxu0 0
    %1008 = vmatpush2.bf16.xpose.msra.mxu0 0
    %1009 = vmatprep.subr.bf16.mxu0 0
    %1010 = vmatpush2.bf16.xpose.msra.mxu0 0
    %1011 = vmatprep.subr.bf16.mxu0 0
    %1012 = vmatpush2.bf16.xpose.msra.mxu0 0
    %1013 = vmatprep.mubr.bf16.mxu0 0
    %1014 = vmatmul.mubr.bf16.gmra.mxu0 %v976
    %v1015 = vpop.f32.mrf.mxu0
    %v1016 = vadd.f32 0.0, %v1015
    %v1017 = vpop.f32.mrf.mxu0
    %v1018 = vpop.f32.mrf.mxu0
    %v1019 = vpop.f32.mrf.mxu0
    %1020 = vdwg.mxu0
    %1022 = vrot.lane.b32.xlu0 %v284, 112
    %v1023 = vpop.permute.xlu0 %1022
    %v1025 = vsel %vm288, %v284, 0
    %v1028 = vsel %vm288, %v1023, 0
    %1030 = vmatprep.subr.bf16.mxu0 0
    %1031 = vmatpush1.bf16.xpose.msra.mxu0 0
    %1032 = vmatprep.subr.bf16.mxu0 0
    %1033 = vmatpush1.bf16.xpose.msra.mxu0 0
    %1034 = vmatprep.subr.bf16.mxu0 0
    %1035 = vmatpush1.bf16.xpose.msra.mxu0 0
    %1036 = vmatprep.subr.bf16.mxu0 0
    %1037 = vmatpush1.bf16.xpose.msra.mxu0 0
    %1038 = vmatprep.subr.bf16.mxu0 0
    %1039 = vmatpush1.bf16.xpose.msra.mxu0 0
    %1040 = vmatprep.subr.bf16.mxu0 0
    %1041 = vmatpush1.bf16.xpose.msra.mxu0 0
    %1042 = vmatprep.subr.bf16.mxu0 0
    %1043 = vmatpush1.bf16.xpose.msra.mxu0 0
    %1044 = vmatprep.subr.bf16.mxu0 0
    %1045 = vmatpush1.bf16.xpose.msra.mxu0 %v1028
    %1046 = vmatprep.subr.bf16.mxu0 0
    %1047 = vmatpush2.bf16.xpose.msra.mxu0 0
    %1048 = vmatprep.subr.bf16.mxu0 0
    %1049 = vmatpush2.bf16.xpose.msra.mxu0 0
    %1050 = vmatprep.subr.bf16.mxu0 0
    %1051 = vmatpush2.bf16.xpose.msra.mxu0 0
    %1052 = vmatprep.subr.bf16.mxu0 0
    %1053 = vmatpush2.bf16.xpose.msra.mxu0 0
    %1054 = vmatprep.subr.bf16.mxu0 0
    %1055 = vmatpush2.bf16.xpose.msra.mxu0 0
    %1056 = vmatprep.subr.bf16.mxu0 0
    %1057 = vmatpush2.bf16.xpose.msra.mxu0 0
    %1058 = vmatprep.subr.bf16.mxu0 0
    %1059 = vmatpush2.bf16.xpose.msra.mxu0 0
    %1060 = vmatprep.subr.bf16.mxu0 0
    %1061 = vmatpush2.bf16.xpose.msra.mxu0 0
    %1062 = vmatprep.mubr.bf16.mxu0 0
    %1063 = vmatmul.mubr.bf16.gmra.mxu0 %v1025
    %v1064 = vpop.f32.mrf.mxu0
    %v1065 = vadd.f32 0.0, %v1064
    %v1066 = vpop.f32.mrf.mxu0
    %v1067 = vpop.f32.mrf.mxu0
    %v1068 = vpop.f32.mrf.mxu0
    %1069 = vdwg.mxu0
    %vm1070 = vcmask 64512
    %v1071 = vsel %vm1070, %v330, -inf
    %1072 = vmax.xlane.f32.xlu0 %v1071
    %v1073 = vpop.xlane.xlu0 %1072
    %v1074 = vsel %vm1070, %v379, -inf
    %1075 = vmax.xlane.f32.xlu0 %v1074
    %v1076 = vpop.xlane.xlu0 %1075
    %v1077 = vsel %vm1070, %v428, -inf
    %1078 = vmax.xlane.f32.xlu0 %v1077
    %v1079 = vpop.xlane.xlu0 %1078
    %v1080 = vsel %vm1070, %v477, -inf
    %1081 = vmax.xlane.f32.xlu0 %v1080
    %v1082 = vpop.xlane.xlu0 %1081
    %v1083 = vsel %vm1070, %v526, -inf
    %1084 = vmax.xlane.f32.xlu0 %v1083
    %v1085 = vpop.xlane.xlu0 %1084
    %v1086 = vsel %vm1070, %v575, -inf
    %1087 = vmax.xlane.f32.xlu0 %v1086
    %v1088 = vpop.xlane.xlu0 %1087
    %v1089 = vsel %vm1070, %v624, -inf
    %1090 = vmax.xlane.f32.xlu0 %v1089
    %v1091 = vpop.xlane.xlu0 %1090
    %v1092 = vsel %vm1070, %v673, -inf
    %1093 = vmax.xlane.f32.xlu0 %v1092
    %v1094 = vpop.xlane.xlu0 %1093
    %v1095 = vsel %vm1070, %v722, -inf
    %1096 = vmax.xlane.f32.xlu0 %v1095
    %v1097 = vpop.xlane.xlu0 %1096
    %v1098 = vsel %vm1070, %v771, -inf
    %1099 = vmax.xlane.f32.xlu0 %v1098
    %v1100 = vpop.xlane.xlu0 %1099
    %v1101 = vsel %vm1070, %v820, -inf
    %1102 = vmax.xlane.f32.xlu0 %v1101
    %v1103 = vpop.xlane.xlu0 %1102
    %v1104 = vsel %vm1070, %v869, -inf
    %1105 = vmax.xlane.f32.xlu0 %v1104
    %v1106 = vpop.xlane.xlu0 %1105
    %v1107 = vsel %vm1070, %v918, -inf
    %1108 = vmax.xlane.f32.xlu0 %v1107
    %v1109 = vpop.xlane.xlu0 %1108
    %v1110 = vsel %vm1070, %v967, -inf
    %1111 = vmax.xlane.f32.xlu0 %v1110
    %v1112 = vpop.xlane.xlu0 %1111
    %v1113 = vsel %vm1070, %v1016, -inf
    %1114 = vmax.xlane.f32.xlu0 %v1113
    %v1115 = vpop.xlane.xlu0 %1114
    %v1116 = vsel %vm1070, %v1065, -inf
    %1117 = vmax.xlane.f32.xlu0 %v1116
    %v1118 = vpop.xlane.xlu0 %1117
    %v1119 = vsub.f32 %v330, %v1073
    %v1120 = vsub.f32 %v379, %v1076
    %v1121 = vsub.f32 %v428, %v1079
    %v1122 = vsub.f32 %v477, %v1082
    %v1123 = vsub.f32 %v526, %v1085
    %v1124 = vsub.f32 %v575, %v1088
    %v1125 = vsub.f32 %v624, %v1091
    %v1126 = vsub.f32 %v673, %v1094
    %v1127 = vsub.f32 %v722, %v1097
    %v1128 = vsub.f32 %v771, %v1100
    %v1129 = vsub.f32 %v820, %v1103
    %v1130 = vsub.f32 %v869, %v1106
    %v1131 = vsub.f32 %v918, %v1109
    %v1132 = vsub.f32 %v967, %v1112
    %v1133 = vsub.f32 %v1016, %v1115
    %v1134 = vsub.f32 %v1065, %v1118
    %v1135 = vmul.f32 %v1119, 1.442695
    %v1136 = vpow.pop %v1135
    %v1137 = vmul.f32 %v1120, 1.442695
    %v1138 = vpow.pop %v1137
    %v1139 = vmul.f32 %v1121, 1.442695
    %v1140 = vpow.pop %v1139
    %v1141 = vmul.f32 %v1122, 1.442695
    %v1142 = vpow.pop %v1141
    %v1143 = vmul.f32 %v1123, 1.442695
    %v1144 = vpow.pop %v1143
    %v1145 = vmul.f32 %v1124, 1.442695
    %v1146 = vpow.pop %v1145
    %v1147 = vmul.f32 %v1125, 1.442695
    %v1148 = vpow.pop %v1147
    %v1149 = vmul.f32 %v1126, 1.442695
    %v1150 = vpow.pop %v1149
    %v1151 = vmul.f32 %v1127, 1.442695
    %v1152 = vpow.pop %v1151
    %v1153 = vmul.f32 %v1128, 1.442695
    %v1154 = vpow.pop %v1153
    %v1155 = vmul.f32 %v1129, 1.442695
    %v1156 = vpow.pop %v1155
    %v1157 = vmul.f32 %v1130, 1.442695
    %v1158 = vpow.pop %v1157
    %v1159 = vmul.f32 %v1131, 1.442695
    %v1160 = vpow.pop %v1159
    %v1161 = vmul.f32 %v1132, 1.442695
    %v1162 = vpow.pop %v1161
    %v1163 = vmul.f32 %v1133, 1.442695
    %v1164 = vpow.pop %v1163
    %v1165 = vmul.f32 %v1134, 1.442695
    %v1166 = vpow.pop %v1165
    %v1167 = vsel %vm1070, %v1136, 0.0
    %1168 = vadd.xlane.f32.xlu0 %v1167
    %v1169 = vpop.xlane.xlu0 %1168
    %v1170 = vsel %vm1070, %v1138, 0.0
    %1171 = vadd.xlane.f32.xlu0 %v1170
    %v1172 = vpop.xlane.xlu0 %1171
    %v1173 = vsel %vm1070, %v1140, 0.0
    %1174 = vadd.xlane.f32.xlu0 %v1173
    %v1175 = vpop.xlane.xlu0 %1174
    %v1176 = vsel %vm1070, %v1142, 0.0
    %1177 = vadd.xlane.f32.xlu0 %v1176
    %v1178 = vpop.xlane.xlu0 %1177
    %v1179 = vsel %vm1070, %v1144, 0.0
    %1180 = vadd.xlane.f32.xlu0 %v1179
    %v1181 = vpop.xlane.xlu0 %1180
    %v1182 = vsel %vm1070, %v1146, 0.0
    %1183 = vadd.xlane.f32.xlu0 %v1182
    %v1184 = vpop.xlane.xlu0 %1183
    %v1185 = vsel %vm1070, %v1148, 0.0
    %1186 = vadd.xlane.f32.xlu0 %v1185
    %v1187 = vpop.xlane.xlu0 %1186
    %v1188 = vsel %vm1070, %v1150, 0.0
    %1189 = vadd.xlane.f32.xlu0 %v1188
    %v1190 = vpop.xlane.xlu0 %1189
    %v1191 = vsel %vm1070, %v1152, 0.0
    %1192 = vadd.xlane.f32.xlu0 %v1191
    %v1193 = vpop.xlane.xlu0 %1192
    %v1194 = vsel %vm1070, %v1154, 0.0
    %1195 = vadd.xlane.f32.xlu0 %v1194
    %v1196 = vpop.xlane.xlu0 %1195
    %v1197 = vsel %vm1070, %v1156, 0.0
    %1198 = vadd.xlane.f32.xlu0 %v1197
    %v1199 = vpop.xlane.xlu0 %1198
    %v1200 = vsel %vm1070, %v1158, 0.0
    %1201 = vadd.xlane.f32.xlu0 %v1200
    %v1202 = vpop.xlane.xlu0 %1201
    %v1203 = vsel %vm1070, %v1160, 0.0
    %1204 = vadd.xlane.f32.xlu0 %v1203
    %v1205 = vpop.xlane.xlu0 %1204
    %v1206 = vsel %vm1070, %v1162, 0.0
    %1207 = vadd.xlane.f32.xlu0 %v1206
    %v1208 = vpop.xlane.xlu0 %1207
    %v1209 = vsel %vm1070, %v1164, 0.0
    %1210 = vadd.xlane.f32.xlu0 %v1209
    %v1211 = vpop.xlane.xlu0 %1210
    %v1212 = vsel %vm1070, %v1166, 0.0
    %1213 = vadd.xlane.f32.xlu0 %v1212
    %v1214 = vpop.xlane.xlu0 %1213
    %v1215 = vrcp.pop %v1169
    %v1216 = vrcp.pop %v1172
    %v1217 = vrcp.pop %v1175
    %v1218 = vrcp.pop %v1178
    %v1219 = vrcp.pop %v1181
    %v1220 = vrcp.pop %v1184
    %v1221 = vrcp.pop %v1187
    %v1222 = vrcp.pop %v1190
    %v1223 = vrcp.pop %v1193
    %v1224 = vrcp.pop %v1196
    %v1225 = vrcp.pop %v1199
    %v1226 = vrcp.pop %v1202
    %v1227 = vrcp.pop %v1205
    %v1228 = vrcp.pop %v1208
    %v1229 = vrcp.pop %v1211
    %v1230 = vrcp.pop %v1214
    %v1231 = vmul.f32 %v1136, %v1215
    %v1232 = vmul.f32 %v1138, %v1216
    %v1233 = vmul.f32 %v1140, %v1217
    %v1234 = vmul.f32 %v1142, %v1218
    %v1235 = vmul.f32 %v1144, %v1219
    %v1236 = vmul.f32 %v1146, %v1220
    %v1237 = vmul.f32 %v1148, %v1221
    %v1238 = vmul.f32 %v1150, %v1222
    %v1239 = vmul.f32 %v1152, %v1223
    %v1240 = vmul.f32 %v1154, %v1224
    %v1241 = vmul.f32 %v1156, %v1225
    %v1242 = vmul.f32 %v1158, %v1226
    %v1243 = vmul.f32 %v1160, %v1227
    %v1244 = vmul.f32 %v1162, %v1228
    %v1245 = vmul.f32 %v1164, %v1229
    %v1246 = vmul.f32 %v1166, %v1230
    %v1247 = vpack.c.bf16 %v1231, %v1231
    %v1248 = vpack.c.bf16 %v1232, %v1232
    %v1249 = vpack.c.bf16 %v1233, %v1233
    %v1250 = vpack.c.bf16 %v1234, %v1234
    %v1251 = vpack.c.bf16 %v1235, %v1235
    %v1252 = vpack.c.bf16 %v1236, %v1236
    %v1253 = vpack.c.bf16 %v1237, %v1237
    %v1254 = vpack.c.bf16 %v1238, %v1238
    %v1255 = vpack.c.bf16 %v1239, %v1239
    %v1256 = vpack.c.bf16 %v1240, %v1240
    %v1257 = vpack.c.bf16 %v1241, %v1241
    %v1258 = vpack.c.bf16 %v1242, %v1242
    %v1259 = vpack.c.bf16 %v1243, %v1243
    %v1260 = vpack.c.bf16 %v1244, %v1244
    %v1261 = vpack.c.bf16 %v1245, %v1245
    %v1262 = vpack.c.bf16 %v1246, %v1246
    %1263 = vrot.lane.b32.xlu0 %v269, 96
    %v1264 = vpop.permute.xlu0 %1263
    %v1266 = vsel %vm1070, %v1247, 0
    %vm1268 = vcmask 1043456
    %v1270 = vsel %vm1268, %v1264, 0
    %1272 = vmatprep.subr.bf16.mxu0 0
    %1273 = vmatpush1.bf16.msra.mxu0 0
    %1274 = vmatprep.subr.bf16.mxu0 0
    %1275 = vmatpush1.bf16.msra.mxu0 0
    %1276 = vmatprep.subr.bf16.mxu0 0
    %1277 = vmatpush1.bf16.msra.mxu0 0
    %1278 = vmatprep.subr.bf16.mxu0 0
    %1279 = vmatpush1.bf16.msra.mxu0 0
    %1280 = vmatprep.subr.bf16.mxu0 0
    %1281 = vmatpush1.bf16.msra.mxu0 0
    %1282 = vmatprep.subr.bf16.mxu0 0
    %1283 = vmatpush1.bf16.msra.mxu0 0
    %1284 = vmatprep.subr.bf16.mxu0 0
    %1285 = vmatpush1.bf16.msra.mxu0 0
    %1286 = vmatprep.subr.bf16.mxu0 0
    %1287 = vmatpush1.bf16.msra.mxu0 %v1270
    %1288 = vmatprep.subr.bf16.mxu0 0
    %1289 = vmatpush2.bf16.msra.mxu0 0
    %1290 = vmatprep.subr.bf16.mxu0 0
    %1291 = vmatpush2.bf16.msra.mxu0 0
    %1292 = vmatprep.subr.bf16.mxu0 0
    %1293 = vmatpush2.bf16.msra.mxu0 0
    %1294 = vmatprep.subr.bf16.mxu0 0
    %1295 = vmatpush2.bf16.msra.mxu0 0
    %1296 = vmatprep.subr.bf16.mxu0 0
    %1297 = vmatpush2.bf16.msra.mxu0 0
    %1298 = vmatprep.subr.bf16.mxu0 0
    %1299 = vmatpush2.bf16.msra.mxu0 0
    %1300 = vmatprep.subr.bf16.mxu0 0
    %1301 = vmatpush2.bf16.msra.mxu0 0
    %1302 = vmatprep.subr.bf16.mxu0 0
    %1303 = vmatpush2.bf16.msra.mxu0 0
    %1304 = vmatprep.mubr.bf16.mxu0 0
    %1305 = vmatmul.mubr.bf16.gmra.mxu0 %v1266
    %v1306 = vpop.f32.mrf.mxu0
    %v1307 = vadd.f32 0.0, %v1306
    %v1308 = vpop.f32.mrf.mxu0
    %v1309 = vpop.f32.mrf.mxu0
    %v1310 = vpop.f32.mrf.mxu0
    %1311 = vdwg.mxu0
    %1312 = vrot.lane.b32.xlu0 %v270, 96
    %v1313 = vpop.permute.xlu0 %1312
    %v1315 = vsel %vm1070, %v1248, 0
    %v1318 = vsel %vm1268, %v1313, 0
    %1320 = vmatprep.subr.bf16.mxu0 0
    %1321 = vmatpush1.bf16.msra.mxu0 0
    %1322 = vmatprep.subr.bf16.mxu0 0
    %1323 = vmatpush1.bf16.msra.mxu0 0
    %1324 = vmatprep.subr.bf16.mxu0 0
    %1325 = vmatpush1.bf16.msra.mxu0 0
    %1326 = vmatprep.subr.bf16.mxu0 0
    %1327 = vmatpush1.bf16.msra.mxu0 0
    %1328 = vmatprep.subr.bf16.mxu0 0
    %1329 = vmatpush1.bf16.msra.mxu0 0
    %1330 = vmatprep.subr.bf16.mxu0 0
    %1331 = vmatpush1.bf16.msra.mxu0 0
    %1332 = vmatprep.subr.bf16.mxu0 0
    %1333 = vmatpush1.bf16.msra.mxu0 0
    %1334 = vmatprep.subr.bf16.mxu0 0
    %1335 = vmatpush1.bf16.msra.mxu0 %v1318
    %1336 = vmatprep.subr.bf16.mxu0 0
    %1337 = vmatpush2.bf16.msra.mxu0 0
    %1338 = vmatprep.subr.bf16.mxu0 0
    %1339 = vmatpush2.bf16.msra.mxu0 0
    %1340 = vmatprep.subr.bf16.mxu0 0
    %1341 = vmatpush2.bf16.msra.mxu0 0
    %1342 = vmatprep.subr.bf16.mxu0 0
    %1343 = vmatpush2.bf16.msra.mxu0 0
    %1344 = vmatprep.subr.bf16.mxu0 0
    %1345 = vmatpush2.bf16.msra.mxu0 0
    %1346 = vmatprep.subr.bf16.mxu0 0
    %1347 = vmatpush2.bf16.msra.mxu0 0
    %1348 = vmatprep.subr.bf16.mxu0 0
    %1349 = vmatpush2.bf16.msra.mxu0 0
    %1350 = vmatprep.subr.bf16.mxu0 0
    %1351 = vmatpush2.bf16.msra.mxu0 0
    %1352 = vmatprep.mubr.bf16.mxu0 0
    %1353 = vmatmul.mubr.bf16.gmra.mxu0 %v1315
    %v1354 = vpop.f32.mrf.mxu0
    %v1355 = vadd.f32 0.0, %v1354
    %v1356 = vpop.f32.mrf.mxu0
    %v1357 = vpop.f32.mrf.mxu0
    %v1358 = vpop.f32.mrf.mxu0
    %1359 = vdwg.mxu0
    %1360 = vrot.lane.b32.xlu0 %v271, 96
    %v1361 = vpop.permute.xlu0 %1360
    %v1363 = vsel %vm1070, %v1249, 0
    %v1366 = vsel %vm1268, %v1361, 0
    %1368 = vmatprep.subr.bf16.mxu0 0
    %1369 = vmatpush1.bf16.msra.mxu0 0
    %1370 = vmatprep.subr.bf16.mxu0 0
    %1371 = vmatpush1.bf16.msra.mxu0 0
    %1372 = vmatprep.subr.bf16.mxu0 0
    %1373 = vmatpush1.bf16.msra.mxu0 0
    %1374 = vmatprep.subr.bf16.mxu0 0
    %1375 = vmatpush1.bf16.msra.mxu0 0
    %1376 = vmatprep.subr.bf16.mxu0 0
    %1377 = vmatpush1.bf16.msra.mxu0 0
    %1378 = vmatprep.subr.bf16.mxu0 0
    %1379 = vmatpush1.bf16.msra.mxu0 0
    %1380 = vmatprep.subr.bf16.mxu0 0
    %1381 = vmatpush1.bf16.msra.mxu0 0
    %1382 = vmatprep.subr.bf16.mxu0 0
    %1383 = vmatpush1.bf16.msra.mxu0 %v1366
    %1384 = vmatprep.subr.bf16.mxu0 0
    %1385 = vmatpush2.bf16.msra.mxu0 0
    %1386 = vmatprep.subr.bf16.mxu0 0
    %1387 = vmatpush2.bf16.msra.mxu0 0
    %1388 = vmatprep.subr.bf16.mxu0 0
    %1389 = vmatpush2.bf16.msra.mxu0 0
    %1390 = vmatprep.subr.bf16.mxu0 0
    %1391 = vmatpush2.bf16.msra.mxu0 0
    %1392 = vmatprep.subr.bf16.mxu0 0
    %1393 = vmatpush2.bf16.msra.mxu0 0
    %1394 = vmatprep.subr.bf16.mxu0 0
    %1395 = vmatpush2.bf16.msra.mxu0 0
    %1396 = vmatprep.subr.bf16.mxu0 0
    %1397 = vmatpush2.bf16.msra.mxu0 0
    %1398 = vmatprep.subr.bf16.mxu0 0
    %1399 = vmatpush2.bf16.msra.mxu0 0
    %1400 = vmatprep.mubr.bf16.mxu0 0
    %1401 = vmatmul.mubr.bf16.gmra.mxu0 %v1363
    %v1402 = vpop.f32.mrf.mxu0
    %v1403 = vadd.f32 0.0, %v1402
    %v1404 = vpop.f32.mrf.mxu0
    %v1405 = vpop.f32.mrf.mxu0
    %v1406 = vpop.f32.mrf.mxu0
    %1407 = vdwg.mxu0
    %1408 = vrot.lane.b32.xlu0 %v272, 96
    %v1409 = vpop.permute.xlu0 %1408
    %v1411 = vsel %vm1070, %v1250, 0
    %v1414 = vsel %vm1268, %v1409, 0
    %1416 = vmatprep.subr.bf16.mxu0 0
    %1417 = vmatpush1.bf16.msra.mxu0 0
    %1418 = vmatprep.subr.bf16.mxu0 0
    %1419 = vmatpush1.bf16.msra.mxu0 0
    %1420 = vmatprep.subr.bf16.mxu0 0
    %1421 = vmatpush1.bf16.msra.mxu0 0
    %1422 = vmatprep.subr.bf16.mxu0 0
    %1423 = vmatpush1.bf16.msra.mxu0 0
    %1424 = vmatprep.subr.bf16.mxu0 0
    %1425 = vmatpush1.bf16.msra.mxu0 0
    %1426 = vmatprep.subr.bf16.mxu0 0
    %1427 = vmatpush1.bf16.msra.mxu0 0
    %1428 = vmatprep.subr.bf16.mxu0 0
    %1429 = vmatpush1.bf16.msra.mxu0 0
    %1430 = vmatprep.subr.bf16.mxu0 0
    %1431 = vmatpush1.bf16.msra.mxu0 %v1414
    %1432 = vmatprep.subr.bf16.mxu0 0
    %1433 = vmatpush2.bf16.msra.mxu0 0
    %1434 = vmatprep.subr.bf16.mxu0 0
    %1435 = vmatpush2.bf16.msra.mxu0 0
    %1436 = vmatprep.subr.bf16.mxu0 0
    %1437 = vmatpush2.bf16.msra.mxu0 0
    %1438 = vmatprep.subr.bf16.mxu0 0
    %1439 = vmatpush2.bf16.msra.mxu0 0
    %1440 = vmatprep.subr.bf16.mxu0 0
    %1441 = vmatpush2.bf16.msra.mxu0 0
    %1442 = vmatprep.subr.bf16.mxu0 0
    %1443 = vmatpush2.bf16.msra.mxu0 0
    %1444 = vmatprep.subr.bf16.mxu0 0
    %1445 = vmatpush2.bf16.msra.mxu0 0
    %1446 = vmatprep.subr.bf16.mxu0 0
    %1447 = vmatpush2.bf16.msra.mxu0 0
    %1448 = vmatprep.mubr.bf16.mxu0 0
    %1449 = vmatmul.mubr.bf16.gmra.mxu0 %v1411
    %v1450 = vpop.f32.mrf.mxu0
    %v1451 = vadd.f32 0.0, %v1450
    %v1452 = vpop.f32.mrf.mxu0
    %v1453 = vpop.f32.mrf.mxu0
    %v1454 = vpop.f32.mrf.mxu0
    %1455 = vdwg.mxu0
    %1456 = vrot.lane.b32.xlu0 %v273, 96
    %v1457 = vpop.permute.xlu0 %1456
    %v1459 = vsel %vm1070, %v1251, 0
    %v1462 = vsel %vm1268, %v1457, 0
    %1464 = vmatprep.subr.bf16.mxu0 0
    %1465 = vmatpush1.bf16.msra.mxu0 0
    %1466 = vmatprep.subr.bf16.mxu0 0
    %1467 = vmatpush1.bf16.msra.mxu0 0
    %1468 = vmatprep.subr.bf16.mxu0 0
    %1469 = vmatpush1.bf16.msra.mxu0 0
    %1470 = vmatprep.subr.bf16.mxu0 0
    %1471 = vmatpush1.bf16.msra.mxu0 0
    %1472 = vmatprep.subr.bf16.mxu0 0
    %1473 = vmatpush1.bf16.msra.mxu0 0
    %1474 = vmatprep.subr.bf16.mxu0 0
    %1475 = vmatpush1.bf16.msra.mxu0 0
    %1476 = vmatprep.subr.bf16.mxu0 0
    %1477 = vmatpush1.bf16.msra.mxu0 0
    %1478 = vmatprep.subr.bf16.mxu0 0
    %1479 = vmatpush1.bf16.msra.mxu0 %v1462
    %1480 = vmatprep.subr.bf16.mxu0 0
    %1481 = vmatpush2.bf16.msra.mxu0 0
    %1482 = vmatprep.subr.bf16.mxu0 0
    %1483 = vmatpush2.bf16.msra.mxu0 0
    %1484 = vmatprep.subr.bf16.mxu0 0
    %1485 = vmatpush2.bf16.msra.mxu0 0
    %1486 = vmatprep.subr.bf16.mxu0 0
    %1487 = vmatpush2.bf16.msra.mxu0 0
    %1488 = vmatprep.subr.bf16.mxu0 0
    %1489 = vmatpush2.bf16.msra.mxu0 0
    %1490 = vmatprep.subr.bf16.mxu0 0
    %1491 = vmatpush2.bf16.msra.mxu0 0
    %1492 = vmatprep.subr.bf16.mxu0 0
    %1493 = vmatpush2.bf16.msra.mxu0 0
    %1494 = vmatprep.subr.bf16.mxu0 0
    %1495 = vmatpush2.bf16.msra.mxu0 0
    %1496 = vmatprep.mubr.bf16.mxu0 0
    %1497 = vmatmul.mubr.bf16.gmra.mxu0 %v1459
    %v1498 = vpop.f32.mrf.mxu0
    %v1499 = vadd.f32 0.0, %v1498
    %v1500 = vpop.f32.mrf.mxu0
    %v1501 = vpop.f32.mrf.mxu0
    %v1502 = vpop.f32.mrf.mxu0
    %1503 = vdwg.mxu0
    %1504 = vrot.lane.b32.xlu0 %v274, 96
    %v1505 = vpop.permute.xlu0 %1504
    %v1507 = vsel %vm1070, %v1252, 0
    %v1510 = vsel %vm1268, %v1505, 0
    %1512 = vmatprep.subr.bf16.mxu0 0
    %1513 = vmatpush1.bf16.msra.mxu0 0
    %1514 = vmatprep.subr.bf16.mxu0 0
    %1515 = vmatpush1.bf16.msra.mxu0 0
    %1516 = vmatprep.subr.bf16.mxu0 0
    %1517 = vmatpush1.bf16.msra.mxu0 0
    %1518 = vmatprep.subr.bf16.mxu0 0
    %1519 = vmatpush1.bf16.msra.mxu0 0
    %1520 = vmatprep.subr.bf16.mxu0 0
    %1521 = vmatpush1.bf16.msra.mxu0 0
    %1522 = vmatprep.subr.bf16.mxu0 0
    %1523 = vmatpush1.bf16.msra.mxu0 0
    %1524 = vmatprep.subr.bf16.mxu0 0
    %1525 = vmatpush1.bf16.msra.mxu0 0
    %1526 = vmatprep.subr.bf16.mxu0 0
    %1527 = vmatpush1.bf16.msra.mxu0 %v1510
    %1528 = vmatprep.subr.bf16.mxu0 0
    %1529 = vmatpush2.bf16.msra.mxu0 0
    %1530 = vmatprep.subr.bf16.mxu0 0
    %1531 = vmatpush2.bf16.msra.mxu0 0
    %1532 = vmatprep.subr.bf16.mxu0 0
    %1533 = vmatpush2.bf16.msra.mxu0 0
    %1534 = vmatprep.subr.bf16.mxu0 0
    %1535 = vmatpush2.bf16.msra.mxu0 0
    %1536 = vmatprep.subr.bf16.mxu0 0
    %1537 = vmatpush2.bf16.msra.mxu0 0
    %1538 = vmatprep.subr.bf16.mxu0 0
    %1539 = vmatpush2.bf16.msra.mxu0 0
    %1540 = vmatprep.subr.bf16.mxu0 0
    %1541 = vmatpush2.bf16.msra.mxu0 0
    %1542 = vmatprep.subr.bf16.mxu0 0
    %1543 = vmatpush2.bf16.msra.mxu0 0
    %1544 = vmatprep.mubr.bf16.mxu0 0
    %1545 = vmatmul.mubr.bf16.gmra.mxu0 %v1507
    %v1546 = vpop.f32.mrf.mxu0
    %v1547 = vadd.f32 0.0, %v1546
    %v1548 = vpop.f32.mrf.mxu0
    %v1549 = vpop.f32.mrf.mxu0
    %v1550 = vpop.f32.mrf.mxu0
    %1551 = vdwg.mxu0
    %1552 = vrot.lane.b32.xlu0 %v275, 96
    %v1553 = vpop.permute.xlu0 %1552
    %v1555 = vsel %vm1070, %v1253, 0
    %v1558 = vsel %vm1268, %v1553, 0
    %1560 = vmatprep.subr.bf16.mxu0 0
    %1561 = vmatpush1.bf16.msra.mxu0 0
    %1562 = vmatprep.subr.bf16.mxu0 0
    %1563 = vmatpush1.bf16.msra.mxu0 0
    %1564 = vmatprep.subr.bf16.mxu0 0
    %1565 = vmatpush1.bf16.msra.mxu0 0
    %1566 = vmatprep.subr.bf16.mxu0 0
    %1567 = vmatpush1.bf16.msra.mxu0 0
    %1568 = vmatprep.subr.bf16.mxu0 0
    %1569 = vmatpush1.bf16.msra.mxu0 0
    %1570 = vmatprep.subr.bf16.mxu0 0
    %1571 = vmatpush1.bf16.msra.mxu0 0
    %1572 = vmatprep.subr.bf16.mxu0 0
    %1573 = vmatpush1.bf16.msra.mxu0 0
    %1574 = vmatprep.subr.bf16.mxu0 0
    %1575 = vmatpush1.bf16.msra.mxu0 %v1558
    %1576 = vmatprep.subr.bf16.mxu0 0
    %1577 = vmatpush2.bf16.msra.mxu0 0
    %1578 = vmatprep.subr.bf16.mxu0 0
    %1579 = vmatpush2.bf16.msra.mxu0 0
    %1580 = vmatprep.subr.bf16.mxu0 0
    %1581 = vmatpush2.bf16.msra.mxu0 0
    %1582 = vmatprep.subr.bf16.mxu0 0
    %1583 = vmatpush2.bf16.msra.mxu0 0
    %1584 = vmatprep.subr.bf16.mxu0 0
    %1585 = vmatpush2.bf16.msra.mxu0 0
    %1586 = vmatprep.subr.bf16.mxu0 0
    %1587 = vmatpush2.bf16.msra.mxu0 0
    %1588 = vmatprep.subr.bf16.mxu0 0
    %1589 = vmatpush2.bf16.msra.mxu0 0
    %1590 = vmatprep.subr.bf16.mxu0 0
    %1591 = vmatpush2.bf16.msra.mxu0 0
    %1592 = vmatprep.mubr.bf16.mxu0 0
    %1593 = vmatmul.mubr.bf16.gmra.mxu0 %v1555
    %v1594 = vpop.f32.mrf.mxu0
    %v1595 = vadd.f32 0.0, %v1594
    %v1596 = vpop.f32.mrf.mxu0
    %v1597 = vpop.f32.mrf.mxu0
    %v1598 = vpop.f32.mrf.mxu0
    %1599 = vdwg.mxu0
    %1600 = vrot.lane.b32.xlu0 %v276, 96
    %v1601 = vpop.permute.xlu0 %1600
    %v1603 = vsel %vm1070, %v1254, 0
    %v1606 = vsel %vm1268, %v1601, 0
    %1608 = vmatprep.subr.bf16.mxu0 0
    %1609 = vmatpush1.bf16.msra.mxu0 0
    %1610 = vmatprep.subr.bf16.mxu0 0
    %1611 = vmatpush1.bf16.msra.mxu0 0
    %1612 = vmatprep.subr.bf16.mxu0 0
    %1613 = vmatpush1.bf16.msra.mxu0 0
    %1614 = vmatprep.subr.bf16.mxu0 0
    %1615 = vmatpush1.bf16.msra.mxu0 0
    %1616 = vmatprep.subr.bf16.mxu0 0
    %1617 = vmatpush1.bf16.msra.mxu0 0
    %1618 = vmatprep.subr.bf16.mxu0 0
    %1619 = vmatpush1.bf16.msra.mxu0 0
    %1620 = vmatprep.subr.bf16.mxu0 0
    %1621 = vmatpush1.bf16.msra.mxu0 0
    %1622 = vmatprep.subr.bf16.mxu0 0
    %1623 = vmatpush1.bf16.msra.mxu0 %v1606
    %1624 = vmatprep.subr.bf16.mxu0 0
    %1625 = vmatpush2.bf16.msra.mxu0 0
    %1626 = vmatprep.subr.bf16.mxu0 0
    %1627 = vmatpush2.bf16.msra.mxu0 0
    %1628 = vmatprep.subr.bf16.mxu0 0
    %1629 = vmatpush2.bf16.msra.mxu0 0
    %1630 = vmatprep.subr.bf16.mxu0 0
    %1631 = vmatpush2.bf16.msra.mxu0 0
    %1632 = vmatprep.subr.bf16.mxu0 0
    %1633 = vmatpush2.bf16.msra.mxu0 0
    %1634 = vmatprep.subr.bf16.mxu0 0
    %1635 = vmatpush2.bf16.msra.mxu0 0
    %1636 = vmatprep.subr.bf16.mxu0 0
    %1637 = vmatpush2.bf16.msra.mxu0 0
    %1638 = vmatprep.subr.bf16.mxu0 0
    %1639 = vmatpush2.bf16.msra.mxu0 0
    %1640 = vmatprep.mubr.bf16.mxu0 0
    %1641 = vmatmul.mubr.bf16.gmra.mxu0 %v1603
    %v1642 = vpop.f32.mrf.mxu0
    %v1643 = vadd.f32 0.0, %v1642
    %v1644 = vpop.f32.mrf.mxu0
    %v1645 = vpop.f32.mrf.mxu0
    %v1646 = vpop.f32.mrf.mxu0
    %1647 = vdwg.mxu0
    %1648 = vrot.lane.b32.xlu0 %v277, 96
    %v1649 = vpop.permute.xlu0 %1648
    %v1651 = vsel %vm1070, %v1255, 0
    %v1654 = vsel %vm1268, %v1649, 0
    %1656 = vmatprep.subr.bf16.mxu0 0
    %1657 = vmatpush1.bf16.msra.mxu0 0
    %1658 = vmatprep.subr.bf16.mxu0 0
    %1659 = vmatpush1.bf16.msra.mxu0 0
    %1660 = vmatprep.subr.bf16.mxu0 0
    %1661 = vmatpush1.bf16.msra.mxu0 0
    %1662 = vmatprep.subr.bf16.mxu0 0
    %1663 = vmatpush1.bf16.msra.mxu0 0
    %1664 = vmatprep.subr.bf16.mxu0 0
    %1665 = vmatpush1.bf16.msra.mxu0 0
    %1666 = vmatprep.subr.bf16.mxu0 0
    %1667 = vmatpush1.bf16.msra.mxu0 0
    %1668 = vmatprep.subr.bf16.mxu0 0
    %1669 = vmatpush1.bf16.msra.mxu0 0
    %1670 = vmatprep.subr.bf16.mxu0 0
    %1671 = vmatpush1.bf16.msra.mxu0 %v1654
    %1672 = vmatprep.subr.bf16.mxu0 0
    %1673 = vmatpush2.bf16.msra.mxu0 0
    %1674 = vmatprep.subr.bf16.mxu0 0
    %1675 = vmatpush2.bf16.msra.mxu0 0
    %1676 = vmatprep.subr.bf16.mxu0 0
    %1677 = vmatpush2.bf16.msra.mxu0 0
    %1678 = vmatprep.subr.bf16.mxu0 0
    %1679 = vmatpush2.bf16.msra.mxu0 0
    %1680 = vmatprep.subr.bf16.mxu0 0
    %1681 = vmatpush2.bf16.msra.mxu0 0
    %1682 = vmatprep.subr.bf16.mxu0 0
    %1683 = vmatpush2.bf16.msra.mxu0 0
    %1684 = vmatprep.subr.bf16.mxu0 0
    %1685 = vmatpush2.bf16.msra.mxu0 0
    %1686 = vmatprep.subr.bf16.mxu0 0
    %1687 = vmatpush2.bf16.msra.mxu0 0
    %1688 = vmatprep.mubr.bf16.mxu0 0
    %1689 = vmatmul.mubr.bf16.gmra.mxu0 %v1651
    %v1690 = vpop.f32.mrf.mxu0
    %v1691 = vadd.f32 0.0, %v1690
    %v1692 = vpop.f32.mrf.mxu0
    %v1693 = vpop.f32.mrf.mxu0
    %v1694 = vpop.f32.mrf.mxu0
    %1695 = vdwg.mxu0
    %1696 = vrot.lane.b32.xlu0 %v278, 96
    %v1697 = vpop.permute.xlu0 %1696
    %v1699 = vsel %vm1070, %v1256, 0
    %v1702 = vsel %vm1268, %v1697, 0
    %1704 = vmatprep.subr.bf16.mxu0 0
    %1705 = vmatpush1.bf16.msra.mxu0 0
    %1706 = vmatprep.subr.bf16.mxu0 0
    %1707 = vmatpush1.bf16.msra.mxu0 0
    %1708 = vmatprep.subr.bf16.mxu0 0
    %1709 = vmatpush1.bf16.msra.mxu0 0
    %1710 = vmatprep.subr.bf16.mxu0 0
    %1711 = vmatpush1.bf16.msra.mxu0 0
    %1712 = vmatprep.subr.bf16.mxu0 0
    %1713 = vmatpush1.bf16.msra.mxu0 0
    %1714 = vmatprep.subr.bf16.mxu0 0
    %1715 = vmatpush1.bf16.msra.mxu0 0
    %1716 = vmatprep.subr.bf16.mxu0 0
    %1717 = vmatpush1.bf16.msra.mxu0 0
    %1718 = vmatprep.subr.bf16.mxu0 0
    %1719 = vmatpush1.bf16.msra.mxu0 %v1702
    %1720 = vmatprep.subr.bf16.mxu0 0
    %1721 = vmatpush2.bf16.msra.mxu0 0
    %1722 = vmatprep.subr.bf16.mxu0 0
    %1723 = vmatpush2.bf16.msra.mxu0 0
    %1724 = vmatprep.subr.bf16.mxu0 0
    %1725 = vmatpush2.bf16.msra.mxu0 0
    %1726 = vmatprep.subr.bf16.mxu0 0
    %1727 = vmatpush2.bf16.msra.mxu0 0
    %1728 = vmatprep.subr.bf16.mxu0 0
    %1729 = vmatpush2.bf16.msra.mxu0 0
    %1730 = vmatprep.subr.bf16.mxu0 0
    %1731 = vmatpush2.bf16.msra.mxu0 0
    %1732 = vmatprep.subr.bf16.mxu0 0
    %1733 = vmatpush2.bf16.msra.mxu0 0
    %1734 = vmatprep.subr.bf16.mxu0 0
    %1735 = vmatpush2.bf16.msra.mxu0 0
    %1736 = vmatprep.mubr.bf16.mxu0 0
    %1737 = vmatmul.mubr.bf16.gmra.mxu0 %v1699
    %v1738 = vpop.f32.mrf.mxu0
    %v1739 = vadd.f32 0.0, %v1738
    %v1740 = vpop.f32.mrf.mxu0
    %v1741 = vpop.f32.mrf.mxu0
    %v1742 = vpop.f32.mrf.mxu0
    %1743 = vdwg.mxu0
    %1744 = vrot.lane.b32.xlu0 %v279, 96
    %v1745 = vpop.permute.xlu0 %1744
    %v1747 = vsel %vm1070, %v1257, 0
    %v1750 = vsel %vm1268, %v1745, 0
    %1752 = vmatprep.subr.bf16.mxu0 0
    %1753 = vmatpush1.bf16.msra.mxu0 0
    %1754 = vmatprep.subr.bf16.mxu0 0
    %1755 = vmatpush1.bf16.msra.mxu0 0
    %1756 = vmatprep.subr.bf16.mxu0 0
    %1757 = vmatpush1.bf16.msra.mxu0 0
    %1758 = vmatprep.subr.bf16.mxu0 0
    %1759 = vmatpush1.bf16.msra.mxu0 0
    %1760 = vmatprep.subr.bf16.mxu0 0
    %1761 = vmatpush1.bf16.msra.mxu0 0
    %1762 = vmatprep.subr.bf16.mxu0 0
    %1763 = vmatpush1.bf16.msra.mxu0 0
    %1764 = vmatprep.subr.bf16.mxu0 0
    %1765 = vmatpush1.bf16.msra.mxu0 0
    %1766 = vmatprep.subr.bf16.mxu0 0
    %1767 = vmatpush1.bf16.msra.mxu0 %v1750
    %1768 = vmatprep.subr.bf16.mxu0 0
    %1769 = vmatpush2.bf16.msra.mxu0 0
    %1770 = vmatprep.subr.bf16.mxu0 0
    %1771 = vmatpush2.bf16.msra.mxu0 0
    %1772 = vmatprep.subr.bf16.mxu0 0
    %1773 = vmatpush2.bf16.msra.mxu0 0
    %1774 = vmatprep.subr.bf16.mxu0 0
    %1775 = vmatpush2.bf16.msra.mxu0 0
    %1776 = vmatprep.subr.bf16.mxu0 0
    %1777 = vmatpush2.bf16.msra.mxu0 0
    %1778 = vmatprep.subr.bf16.mxu0 0
    %1779 = vmatpush2.bf16.msra.mxu0 0
    %1780 = vmatprep.subr.bf16.mxu0 0
    %1781 = vmatpush2.bf16.msra.mxu0 0
    %1782 = vmatprep.subr.bf16.mxu0 0
    %1783 = vmatpush2.bf16.msra.mxu0 0
    %1784 = vmatprep.mubr.bf16.mxu0 0
    %1785 = vmatmul.mubr.bf16.gmra.mxu0 %v1747
    %v1786 = vpop.f32.mrf.mxu0
    %v1787 = vadd.f32 0.0, %v1786
    %v1788 = vpop.f32.mrf.mxu0
    %v1789 = vpop.f32.mrf.mxu0
    %v1790 = vpop.f32.mrf.mxu0
    %1791 = vdwg.mxu0
    %1792 = vrot.lane.b32.xlu0 %v280, 96
    %v1793 = vpop.permute.xlu0 %1792
    %v1795 = vsel %vm1070, %v1258, 0
    %v1798 = vsel %vm1268, %v1793, 0
    %1800 = vmatprep.subr.bf16.mxu0 0
    %1801 = vmatpush1.bf16.msra.mxu0 0
    %1802 = vmatprep.subr.bf16.mxu0 0
    %1803 = vmatpush1.bf16.msra.mxu0 0
    %1804 = vmatprep.subr.bf16.mxu0 0
    %1805 = vmatpush1.bf16.msra.mxu0 0
    %1806 = vmatprep.subr.bf16.mxu0 0
    %1807 = vmatpush1.bf16.msra.mxu0 0
    %1808 = vmatprep.subr.bf16.mxu0 0
    %1809 = vmatpush1.bf16.msra.mxu0 0
    %1810 = vmatprep.subr.bf16.mxu0 0
    %1811 = vmatpush1.bf16.msra.mxu0 0
    %1812 = vmatprep.subr.bf16.mxu0 0
    %1813 = vmatpush1.bf16.msra.mxu0 0
    %1814 = vmatprep.subr.bf16.mxu0 0
    %1815 = vmatpush1.bf16.msra.mxu0 %v1798
    %1816 = vmatprep.subr.bf16.mxu0 0
    %1817 = vmatpush2.bf16.msra.mxu0 0
    %1818 = vmatprep.subr.bf16.mxu0 0
    %1819 = vmatpush2.bf16.msra.mxu0 0
    %1820 = vmatprep.subr.bf16.mxu0 0
    %1821 = vmatpush2.bf16.msra.mxu0 0
    %1822 = vmatprep.subr.bf16.mxu0 0
    %1823 = vmatpush2.bf16.msra.mxu0 0
    %1824 = vmatprep.subr.bf16.mxu0 0
    %1825 = vmatpush2.bf16.msra.mxu0 0
    %1826 = vmatprep.subr.bf16.mxu0 0
    %1827 = vmatpush2.bf16.msra.mxu0 0
    %1828 = vmatprep.subr.bf16.mxu0 0
    %1829 = vmatpush2.bf16.msra.mxu0 0
    %1830 = vmatprep.subr.bf16.mxu0 0
    %1831 = vmatpush2.bf16.msra.mxu0 0
    %1832 = vmatprep.mubr.bf16.mxu0 0
    %1833 = vmatmul.mubr.bf16.gmra.mxu0 %v1795
    %v1834 = vpop.f32.mrf.mxu0
    %v1835 = vadd.f32 0.0, %v1834
    %v1836 = vpop.f32.mrf.mxu0
    %v1837 = vpop.f32.mrf.mxu0
    %v1838 = vpop.f32.mrf.mxu0
    %1839 = vdwg.mxu0
    %1840 = vrot.lane.b32.xlu0 %v281, 96
    %v1841 = vpop.permute.xlu0 %1840
    %v1843 = vsel %vm1070, %v1259, 0
    %v1846 = vsel %vm1268, %v1841, 0
    %1848 = vmatprep.subr.bf16.mxu0 0
    %1849 = vmatpush1.bf16.msra.mxu0 0
    %1850 = vmatprep.subr.bf16.mxu0 0
    %1851 = vmatpush1.bf16.msra.mxu0 0
    %1852 = vmatprep.subr.bf16.mxu0 0
    %1853 = vmatpush1.bf16.msra.mxu0 0
    %1854 = vmatprep.subr.bf16.mxu0 0
    %1855 = vmatpush1.bf16.msra.mxu0 0
    %1856 = vmatprep.subr.bf16.mxu0 0
    %1857 = vmatpush1.bf16.msra.mxu0 0
    %1858 = vmatprep.subr.bf16.mxu0 0
    %1859 = vmatpush1.bf16.msra.mxu0 0
    %1860 = vmatprep.subr.bf16.mxu0 0
    %1861 = vmatpush1.bf16.msra.mxu0 0
    %1862 = vmatprep.subr.bf16.mxu0 0
    %1863 = vmatpush1.bf16.msra.mxu0 %v1846
    %1864 = vmatprep.subr.bf16.mxu0 0
    %1865 = vmatpush2.bf16.msra.mxu0 0
    %1866 = vmatprep.subr.bf16.mxu0 0
    %1867 = vmatpush2.bf16.msra.mxu0 0
    %1868 = vmatprep.subr.bf16.mxu0 0
    %1869 = vmatpush2.bf16.msra.mxu0 0
    %1870 = vmatprep.subr.bf16.mxu0 0
    %1871 = vmatpush2.bf16.msra.mxu0 0
    %1872 = vmatprep.subr.bf16.mxu0 0
    %1873 = vmatpush2.bf16.msra.mxu0 0
    %1874 = vmatprep.subr.bf16.mxu0 0
    %1875 = vmatpush2.bf16.msra.mxu0 0
    %1876 = vmatprep.subr.bf16.mxu0 0
    %1877 = vmatpush2.bf16.msra.mxu0 0
    %1878 = vmatprep.subr.bf16.mxu0 0
    %1879 = vmatpush2.bf16.msra.mxu0 0
    %1880 = vmatprep.mubr.bf16.mxu0 0
    %1881 = vmatmul.mubr.bf16.gmra.mxu0 %v1843
    %v1882 = vpop.f32.mrf.mxu0
    %v1883 = vadd.f32 0.0, %v1882
    %v1884 = vpop.f32.mrf.mxu0
    %v1885 = vpop.f32.mrf.mxu0
    %v1886 = vpop.f32.mrf.mxu0
    %1887 = vdwg.mxu0
    %1888 = vrot.lane.b32.xlu0 %v282, 96
    %v1889 = vpop.permute.xlu0 %1888
    %v1891 = vsel %vm1070, %v1260, 0
    %v1894 = vsel %vm1268, %v1889, 0
    %1896 = vmatprep.subr.bf16.mxu0 0
    %1897 = vmatpush1.bf16.msra.mxu0 0
    %1898 = vmatprep.subr.bf16.mxu0 0
    %1899 = vmatpush1.bf16.msra.mxu0 0
    %1900 = vmatprep.subr.bf16.mxu0 0
    %1901 = vmatpush1.bf16.msra.mxu0 0
    %1902 = vmatprep.subr.bf16.mxu0 0
    %1903 = vmatpush1.bf16.msra.mxu0 0
    %1904 = vmatprep.subr.bf16.mxu0 0
    %1905 = vmatpush1.bf16.msra.mxu0 0
    %1906 = vmatprep.subr.bf16.mxu0 0
    %1907 = vmatpush1.bf16.msra.mxu0 0
    %1908 = vmatprep.subr.bf16.mxu0 0
    %1909 = vmatpush1.bf16.msra.mxu0 0
    %1910 = vmatprep.subr.bf16.mxu0 0
    %1911 = vmatpush1.bf16.msra.mxu0 %v1894
    %1912 = vmatprep.subr.bf16.mxu0 0
    %1913 = vmatpush2.bf16.msra.mxu0 0
    %1914 = vmatprep.subr.bf16.mxu0 0
    %1915 = vmatpush2.bf16.msra.mxu0 0
    %1916 = vmatprep.subr.bf16.mxu0 0
    %1917 = vmatpush2.bf16.msra.mxu0 0
    %1918 = vmatprep.subr.bf16.mxu0 0
    %1919 = vmatpush2.bf16.msra.mxu0 0
    %1920 = vmatprep.subr.bf16.mxu0 0
    %1921 = vmatpush2.bf16.msra.mxu0 0
    %1922 = vmatprep.subr.bf16.mxu0 0
    %1923 = vmatpush2.bf16.msra.mxu0 0
    %1924 = vmatprep.subr.bf16.mxu0 0
    %1925 = vmatpush2.bf16.msra.mxu0 0
    %1926 = vmatprep.subr.bf16.mxu0 0
    %1927 = vmatpush2.bf16.msra.mxu0 0
    %1928 = vmatprep.mubr.bf16.mxu0 0
    %1929 = vmatmul.mubr.bf16.gmra.mxu0 %v1891
    %v1930 = vpop.f32.mrf.mxu0
    %v1931 = vadd.f32 0.0, %v1930
    %v1932 = vpop.f32.mrf.mxu0
    %v1933 = vpop.f32.mrf.mxu0
    %v1934 = vpop.f32.mrf.mxu0
    %1935 = vdwg.mxu0
    %1936 = vrot.lane.b32.xlu0 %v283, 96
    %v1937 = vpop.permute.xlu0 %1936
    %v1939 = vsel %vm1070, %v1261, 0
    %v1942 = vsel %vm1268, %v1937, 0
    %1944 = vmatprep.subr.bf16.mxu0 0
    %1945 = vmatpush1.bf16.msra.mxu0 0
    %1946 = vmatprep.subr.bf16.mxu0 0
    %1947 = vmatpush1.bf16.msra.mxu0 0
    %1948 = vmatprep.subr.bf16.mxu0 0
    %1949 = vmatpush1.bf16.msra.mxu0 0
    %1950 = vmatprep.subr.bf16.mxu0 0
    %1951 = vmatpush1.bf16.msra.mxu0 0
    %1952 = vmatprep.subr.bf16.mxu0 0
    %1953 = vmatpush1.bf16.msra.mxu0 0
    %1954 = vmatprep.subr.bf16.mxu0 0
    %1955 = vmatpush1.bf16.msra.mxu0 0
    %1956 = vmatprep.subr.bf16.mxu0 0
    %1957 = vmatpush1.bf16.msra.mxu0 0
    %1958 = vmatprep.subr.bf16.mxu0 0
    %1959 = vmatpush1.bf16.msra.mxu0 %v1942
    %1960 = vmatprep.subr.bf16.mxu0 0
    %1961 = vmatpush2.bf16.msra.mxu0 0
    %1962 = vmatprep.subr.bf16.mxu0 0
    %1963 = vmatpush2.bf16.msra.mxu0 0
    %1964 = vmatprep.subr.bf16.mxu0 0
    %1965 = vmatpush2.bf16.msra.mxu0 0
    %1966 = vmatprep.subr.bf16.mxu0 0
    %1967 = vmatpush2.bf16.msra.mxu0 0
    %1968 = vmatprep.subr.bf16.mxu0 0
    %1969 = vmatpush2.bf16.msra.mxu0 0
    %1970 = vmatprep.subr.bf16.mxu0 0
    %1971 = vmatpush2.bf16.msra.mxu0 0
    %1972 = vmatprep.subr.bf16.mxu0 0
    %1973 = vmatpush2.bf16.msra.mxu0 0
    %1974 = vmatprep.subr.bf16.mxu0 0
    %1975 = vmatpush2.bf16.msra.mxu0 0
    %1976 = vmatprep.mubr.bf16.mxu0 0
    %1977 = vmatmul.mubr.bf16.gmra.mxu0 %v1939
    %v1978 = vpop.f32.mrf.mxu0
    %v1979 = vadd.f32 0.0, %v1978
    %v1980 = vpop.f32.mrf.mxu0
    %v1981 = vpop.f32.mrf.mxu0
    %v1982 = vpop.f32.mrf.mxu0
    %1983 = vdwg.mxu0
    %1984 = vrot.lane.b32.xlu0 %v284, 96
    %v1985 = vpop.permute.xlu0 %1984
    %v1987 = vsel %vm1070, %v1262, 0
    %v1990 = vsel %vm1268, %v1985, 0
    %1992 = vmatprep.subr.bf16.mxu0 0
    %1993 = vmatpush1.bf16.msra.mxu0 0
    %1994 = vmatprep.subr.bf16.mxu0 0
    %1995 = vmatpush1.bf16.msra.mxu0 0
    %1996 = vmatprep.subr.bf16.mxu0 0
    %1997 = vmatpush1.bf16.msra.mxu0 0
    %1998 = vmatprep.subr.bf16.mxu0 0
    %1999 = vmatpush1.bf16.msra.mxu0 0
    %2000 = vmatprep.subr.bf16.mxu0 0
    %2001 = vmatpush1.bf16.msra.mxu0 0
    %2002 = vmatprep.subr.bf16.mxu0 0
    %2003 = vmatpush1.bf16.msra.mxu0 0
    %2004 = vmatprep.subr.bf16.mxu0 0
    %2005 = vmatpush1.bf16.msra.mxu0 0
    %2006 = vmatprep.subr.bf16.mxu0 0
    %2007 = vmatpush1.bf16.msra.mxu0 %v1990
    %2008 = vmatprep.subr.bf16.mxu0 0
    %2009 = vmatpush2.bf16.msra.mxu0 0
    %2010 = vmatprep.subr.bf16.mxu0 0
    %2011 = vmatpush2.bf16.msra.mxu0 0
    %2012 = vmatprep.subr.bf16.mxu0 0
    %2013 = vmatpush2.bf16.msra.mxu0 0
    %2014 = vmatprep.subr.bf16.mxu0 0
    %2015 = vmatpush2.bf16.msra.mxu0 0
    %2016 = vmatprep.subr.bf16.mxu0 0
    %2017 = vmatpush2.bf16.msra.mxu0 0
    %2018 = vmatprep.subr.bf16.mxu0 0
    %2019 = vmatpush2.bf16.msra.mxu0 0
    %2020 = vmatprep.subr.bf16.mxu0 0
    %2021 = vmatpush2.bf16.msra.mxu0 0
    %2022 = vmatprep.subr.bf16.mxu0 0
    %2023 = vmatpush2.bf16.msra.mxu0 0
    %2024 = vmatprep.mubr.bf16.mxu0 0
    %2025 = vmatmul.mubr.bf16.gmra.mxu0 %v1987
    %v2026 = vpop.f32.mrf.mxu0
    %v2027 = vadd.f32 0.0, %v2026
    %v2028 = vpop.f32.mrf.mxu0
    %v2029 = vpop.f32.mrf.mxu0
    %v2030 = vpop.f32.mrf.mxu0
    %2031 = vdwg.mxu0
    %v2032 = vcombine.low %v38, %v40
    %v2033 = vcombine.high %v38, %v40
    %v2035 = vunpack.c.l.s4 1983009808
    %v2036 = vunpack.c.0.s8 %v2035
    %v2037 = vlaneseq
    %v2038 = vshrl.u32 %v2037, 7
    %v2039 = vsub.s32 %v2036, %v2038
    %v2040 = vrot.slane %v2032, %v2039
    %v2042 = vunpack.c.l.s4 1983009808
    %v2043 = vunpack.c.0.s8 %v2042
    %v2044 = vlaneseq
    %v2045 = vshrl.u32 %v2044, 7
    %v2046 = vsub.s32 %v2043, %v2045
    %v2047 = vrot.slane %v2033, %v2046
    %v2048 = vcombine.low %v39, %v41
    %v2049 = vcombine.high %v39, %v41
    %v2051 = vunpack.c.l.s4 1983009808
    %v2052 = vunpack.c.0.s8 %v2051
    %v2053 = vlaneseq
    %v2054 = vshrl.u32 %v2053, 7
    %v2055 = vsub.s32 %v2052, %v2054
    %v2056 = vrot.slane %v2048, %v2055
    %v2058 = vunpack.c.l.s4 1983009808
    %v2059 = vunpack.c.0.s8 %v2058
    %v2060 = vlaneseq
    %v2061 = vshrl.u32 %v2060, 7
    %v2062 = vsub.s32 %v2059, %v2061
    %v2063 = vrot.slane %v2049, %v2062
    %v2064 = vcombine.low %v42, %v44
    %v2065 = vcombine.high %v42, %v44
    %v2067 = vunpack.c.l.s4 1983009808
    %v2068 = vunpack.c.0.s8 %v2067
    %v2069 = vlaneseq
    %v2070 = vshrl.u32 %v2069, 7
    %v2071 = vsub.s32 %v2068, %v2070
    %v2072 = vrot.slane %v2064, %v2071
    %v2074 = vunpack.c.l.s4 1983009808
    %v2075 = vunpack.c.0.s8 %v2074
    %v2076 = vlaneseq
    %v2077 = vshrl.u32 %v2076, 7
    %v2078 = vsub.s32 %v2075, %v2077
    %v2079 = vrot.slane %v2065, %v2078
    %v2080 = vcombine.low %v43, %v45
    %v2081 = vcombine.high %v43, %v45
    %v2083 = vunpack.c.l.s4 1983009808
    %v2084 = vunpack.c.0.s8 %v2083
    %v2085 = vlaneseq
    %v2086 = vshrl.u32 %v2085, 7
    %v2087 = vsub.s32 %v2084, %v2086
    %v2088 = vrot.slane %v2080, %v2087
    %v2090 = vunpack.c.l.s4 1983009808
    %v2091 = vunpack.c.0.s8 %v2090
    %v2092 = vlaneseq
    %v2093 = vshrl.u32 %v2092, 7
    %v2094 = vsub.s32 %v2091, %v2093
    %v2095 = vrot.slane %v2081, %v2094
    %v2096 = vcombine.low %v2040, %v2056
    %v2097 = vcombine.high %v2040, %v2056
    %v2099 = vunpack.c.l.s4 1934713408
    %v2100 = vunpack.c.0.s8 %v2099
    %v2101 = vlaneseq
    %v2102 = vshrl.u32 %v2101, 7
    %v2103 = vsub.s32 %v2100, %v2102
    %v2104 = vrot.slane %v2096, %v2103
    %v2106 = vunpack.c.l.s4 1934713408
    %v2107 = vunpack.c.0.s8 %v2106
    %v2108 = vlaneseq
    %v2109 = vshrl.u32 %v2108, 7
    %v2110 = vsub.s32 %v2107, %v2109
    %v2111 = vrot.slane %v2097, %v2110
    %v2112 = vcombine.low %v2047, %v2063
    %v2113 = vcombine.high %v2047, %v2063
    %v2115 = vunpack.c.l.s4 1934713408
    %v2116 = vunpack.c.0.s8 %v2115
    %v2117 = vlaneseq
    %v2118 = vshrl.u32 %v2117, 7
    %v2119 = vsub.s32 %v2116, %v2118
    %v2120 = vrot.slane %v2112, %v2119
    %v2122 = vunpack.c.l.s4 1934713408
    %v2123 = vunpack.c.0.s8 %v2122
    %v2124 = vlaneseq
    %v2125 = vshrl.u32 %v2124, 7
    %v2126 = vsub.s32 %v2123, %v2125
    %v2127 = vrot.slane %v2113, %v2126
    %v2128 = vcombine.low %v2072, %v2088
    %v2129 = vcombine.high %v2072, %v2088
    %v2131 = vunpack.c.l.s4 1934713408
    %v2132 = vunpack.c.0.s8 %v2131
    %v2133 = vlaneseq
    %v2134 = vshrl.u32 %v2133, 7
    %v2135 = vsub.s32 %v2132, %v2134
    %v2136 = vrot.slane %v2128, %v2135
    %v2138 = vunpack.c.l.s4 1934713408
    %v2139 = vunpack.c.0.s8 %v2138
    %v2140 = vlaneseq
    %v2141 = vshrl.u32 %v2140, 7
    %v2142 = vsub.s32 %v2139, %v2141
    %v2143 = vrot.slane %v2129, %v2142
    %v2144 = vcombine.low %v2079, %v2095
    %v2145 = vcombine.high %v2079, %v2095
    %v2147 = vunpack.c.l.s4 1934713408
    %v2148 = vunpack.c.0.s8 %v2147
    %v2149 = vlaneseq
    %v2150 = vshrl.u32 %v2149, 7
    %v2151 = vsub.s32 %v2148, %v2150
    %v2152 = vrot.slane %v2144, %v2151
    %v2154 = vunpack.c.l.s4 1934713408
    %v2155 = vunpack.c.0.s8 %v2154
    %v2156 = vlaneseq
    %v2157 = vshrl.u32 %v2156, 7
    %v2158 = vsub.s32 %v2155, %v2157
    %v2159 = vrot.slane %v2145, %v2158
    %v2160 = vcombine.low %v2104, %v2136
    %v2161 = vcombine.high %v2104, %v2136
    %v2162 = vcombine.low %v2111, %v2143
    %v2163 = vcombine.high %v2111, %v2143
    %v2164 = vcombine.low %v2120, %v2152
    %v2165 = vcombine.high %v2120, %v2152
    %v2166 = vcombine.low %v2127, %v2159
    %v2167 = vcombine.high %v2127, %v2159
    %v2168 = vcombine.low %v46, %v48
    %v2169 = vcombine.high %v46, %v48
    %v2171 = vunpack.c.l.s4 1983009808
    %v2172 = vunpack.c.0.s8 %v2171
    %v2173 = vlaneseq
    %v2174 = vshrl.u32 %v2173, 7
    %v2175 = vsub.s32 %v2172, %v2174
    %v2176 = vrot.slane %v2168, %v2175
    %v2178 = vunpack.c.l.s4 1983009808
    %v2179 = vunpack.c.0.s8 %v2178
    %v2180 = vlaneseq
    %v2181 = vshrl.u32 %v2180, 7
    %v2182 = vsub.s32 %v2179, %v2181
    %v2183 = vrot.slane %v2169, %v2182
    %v2184 = vcombine.low %v47, %v49
    %v2185 = vcombine.high %v47, %v49
    %v2187 = vunpack.c.l.s4 1983009808
    %v2188 = vunpack.c.0.s8 %v2187
    %v2189 = vlaneseq
    %v2190 = vshrl.u32 %v2189, 7
    %v2191 = vsub.s32 %v2188, %v2190
    %v2192 = vrot.slane %v2184, %v2191
    %v2194 = vunpack.c.l.s4 1983009808
    %v2195 = vunpack.c.0.s8 %v2194
    %v2196 = vlaneseq
    %v2197 = vshrl.u32 %v2196, 7
    %v2198 = vsub.s32 %v2195, %v2197
    %v2199 = vrot.slane %v2185, %v2198
    %v2200 = vcombine.low %v50, %v52
    %v2201 = vcombine.high %v50, %v52
    %v2203 = vunpack.c.l.s4 1983009808
    %v2204 = vunpack.c.0.s8 %v2203
    %v2205 = vlaneseq
    %v2206 = vshrl.u32 %v2205, 7
    %v2207 = vsub.s32 %v2204, %v2206
    %v2208 = vrot.slane %v2200, %v2207
    %v2210 = vunpack.c.l.s4 1983009808
    %v2211 = vunpack.c.0.s8 %v2210
    %v2212 = vlaneseq
    %v2213 = vshrl.u32 %v2212, 7
    %v2214 = vsub.s32 %v2211, %v2213
    %v2215 = vrot.slane %v2201, %v2214
    %v2216 = vcombine.low %v51, %v53
    %v2217 = vcombine.high %v51, %v53
    %v2219 = vunpack.c.l.s4 1983009808
    %v2220 = vunpack.c.0.s8 %v2219
    %v2221 = vlaneseq
    %v2222 = vshrl.u32 %v2221, 7
    %v2223 = vsub.s32 %v2220, %v2222
    %v2224 = vrot.slane %v2216, %v2223
    %v2226 = vunpack.c.l.s4 1983009808
    %v2227 = vunpack.c.0.s8 %v2226
    %v2228 = vlaneseq
    %v2229 = vshrl.u32 %v2228, 7
    %v2230 = vsub.s32 %v2227, %v2229
    %v2231 = vrot.slane %v2217, %v2230
    %v2232 = vcombine.low %v2176, %v2192
    %v2233 = vcombine.high %v2176, %v2192
    %v2235 = vunpack.c.l.s4 1934713408
    %v2236 = vunpack.c.0.s8 %v2235
    %v2237 = vlaneseq
    %v2238 = vshrl.u32 %v2237, 7
    %v2239 = vsub.s32 %v2236, %v2238
    %v2240 = vrot.slane %v2232, %v2239
    %v2242 = vunpack.c.l.s4 1934713408
    %v2243 = vunpack.c.0.s8 %v2242
    %v2244 = vlaneseq
    %v2245 = vshrl.u32 %v2244, 7
    %v2246 = vsub.s32 %v2243, %v2245
    %v2247 = vrot.slane %v2233, %v2246
    %v2248 = vcombine.low %v2183, %v2199
    %v2249 = vcombine.high %v2183, %v2199
    %v2251 = vunpack.c.l.s4 1934713408
    %v2252 = vunpack.c.0.s8 %v2251
    %v2253 = vlaneseq
    %v2254 = vshrl.u32 %v2253, 7
    %v2255 = vsub.s32 %v2252, %v2254
    %v2256 = vrot.slane %v2248, %v2255
    %v2258 = vunpack.c.l.s4 1934713408
    %v2259 = vunpack.c.0.s8 %v2258
    %v2260 = vlaneseq
    %v2261 = vshrl.u32 %v2260, 7
    %v2262 = vsub.s32 %v2259, %v2261
    %v2263 = vrot.slane %v2249, %v2262
    %v2264 = vcombine.low %v2208, %v2224
    %v2265 = vcombine.high %v2208, %v2224
    %v2267 = vunpack.c.l.s4 1934713408
    %v2268 = vunpack.c.0.s8 %v2267
    %v2269 = vlaneseq
    %v2270 = vshrl.u32 %v2269, 7
    %v2271 = vsub.s32 %v2268, %v2270
    %v2272 = vrot.slane %v2264, %v2271
    %v2274 = vunpack.c.l.s4 1934713408
    %v2275 = vunpack.c.0.s8 %v2274
    %v2276 = vlaneseq
    %v2277 = vshrl.u32 %v2276, 7
    %v2278 = vsub.s32 %v2275, %v2277
    %v2279 = vrot.slane %v2265, %v2278
    %v2280 = vcombine.low %v2215, %v2231
    %v2281 = vcombine.high %v2215, %v2231
    %v2283 = vunpack.c.l.s4 1934713408
    %v2284 = vunpack.c.0.s8 %v2283
    %v2285 = vlaneseq
    %v2286 = vshrl.u32 %v2285, 7
    %v2287 = vsub.s32 %v2284, %v2286
    %v2288 = vrot.slane %v2280, %v2287
    %v2290 = vunpack.c.l.s4 1934713408
    %v2291 = vunpack.c.0.s8 %v2290
    %v2292 = vlaneseq
    %v2293 = vshrl.u32 %v2292, 7
    %v2294 = vsub.s32 %v2291, %v2293
    %v2295 = vrot.slane %v2281, %v2294
    %v2296 = vcombine.low %v2240, %v2272
    %v2297 = vcombine.high %v2240, %v2272
    %v2298 = vcombine.low %v2247, %v2279
    %v2299 = vcombine.high %v2247, %v2279
    %v2300 = vcombine.low %v2256, %v2288
    %v2301 = vcombine.high %v2256, %v2288
    %v2302 = vcombine.low %v2263, %v2295
    %v2303 = vcombine.high %v2263, %v2295
    %v2304 = vpack.c.bf16 %v2160, %v2160
    %v2305 = vpack.c.bf16 %v2161, %v2161
    %v2306 = vpack.c.bf16 %v2162, %v2162
    %v2307 = vpack.c.bf16 %v2163, %v2163
    %v2308 = vpack.c.bf16 %v2164, %v2164
    %v2309 = vpack.c.bf16 %v2165, %v2165
    %v2310 = vpack.c.bf16 %v2166, %v2166
    %v2311 = vpack.c.bf16 %v2167, %v2167
    %v2312 = vpack.c.bf16 %v2296, %v2296
    %v2313 = vpack.c.bf16 %v2297, %v2297
    %v2314 = vpack.c.bf16 %v2298, %v2298
    %v2315 = vpack.c.bf16 %v2299, %v2299
    %v2316 = vpack.c.bf16 %v2300, %v2300
    %v2317 = vpack.c.bf16 %v2301, %v2301
    %v2318 = vpack.c.bf16 %v2302, %v2302
    %v2319 = vpack.c.bf16 %v2303, %v2303
    %v2336 = vunpack.c.l.b16 %v2304
    %v2337 = vunpack.c.l.b16 %v2305
    %v2338 = vunpack.c.l.b16 %v2306
    %v2339 = vunpack.c.l.b16 %v2307
    %v2340 = vunpack.c.l.b16 %v2308
    %v2341 = vunpack.c.l.b16 %v2309
    %v2342 = vunpack.c.l.b16 %v2310
    %v2343 = vunpack.c.l.b16 %v2311
    %v2344 = vunpack.c.l.b16 %v2312
    %v2345 = vunpack.c.l.b16 %v2313
    %v2346 = vunpack.c.l.b16 %v2314
    %v2347 = vunpack.c.l.b16 %v2315
    %v2348 = vunpack.c.l.b16 %v2316
    %v2349 = vunpack.c.l.b16 %v2317
    %v2350 = vunpack.c.l.b16 %v2318
    %v2351 = vunpack.c.l.b16 %v2319
    %v2352 = vpack.c.b16 %v2337, %v2336
    %v2353 = vpack.c.b16 %v2339, %v2338
    %v2354 = vpack.c.b16 %v2341, %v2340
    %v2355 = vpack.c.b16 %v2343, %v2342
    %v2356 = vpack.c.b16 %v2345, %v2344
    %v2357 = vpack.c.b16 %v2347, %v2346
    %v2358 = vpack.c.b16 %v2349, %v2348
    %v2359 = vpack.c.b16 %v2351, %v2350
    %v2361 = vsel %vm147, %v2352, 0
    %v2364 = vsel %vm147, %v2353, 0
    %v2367 = vsel %vm147, %v2354, 0
    %v2370 = vsel %vm147, %v2355, 0
    %v2373 = vsel %vm147, %v2356, 0
    %v2376 = vsel %vm147, %v2357, 0
    %v2379 = vsel %vm147, %v2358, 0
    %v2382 = vsel %vm147, %v2359, 0
    %2384 = vmatprep.subr.bf16.mxu0 0
    %2385 = vmatpush1.bf16.msra.mxu0 0
    %2386 = vmatprep.subr.bf16.mxu0 0
    %2387 = vmatpush1.bf16.msra.mxu0 0
    %2388 = vmatprep.subr.bf16.mxu0 0
    %2389 = vmatpush1.bf16.msra.mxu0 0
    %2390 = vmatprep.subr.bf16.mxu0 0
    %2391 = vmatpush1.bf16.msra.mxu0 0
    %2392 = vmatprep.subr.bf16.mxu0 0
    %2393 = vmatpush1.bf16.msra.mxu0 0
    %2394 = vmatprep.subr.bf16.mxu0 0
    %2395 = vmatpush1.bf16.msra.mxu0 0
    %2396 = vmatprep.subr.bf16.mxu0 0
    %2397 = vmatpush1.bf16.msra.mxu0 %v144
    %2398 = vmatprep.subr.bf16.mxu0 0
    %2399 = vmatpush1.bf16.msra.mxu0 %v143
    %2400 = vmatprep.subr.bf16.mxu0 0
    %2401 = vmatpush2.bf16.msra.mxu0 0
    %2402 = vmatprep.subr.bf16.mxu0 0
    %2403 = vmatpush2.bf16.msra.mxu0 0
    %2404 = vmatprep.subr.bf16.mxu0 0
    %2405 = vmatpush2.bf16.msra.mxu0 0
    %2406 = vmatprep.subr.bf16.mxu0 0
    %2407 = vmatpush2.bf16.msra.mxu0 0
    %2408 = vmatprep.subr.bf16.mxu0 0
    %2409 = vmatpush2.bf16.msra.mxu0 0
    %2410 = vmatprep.subr.bf16.mxu0 0
    %2411 = vmatpush2.bf16.msra.mxu0 0
    %2412 = vmatprep.subr.bf16.mxu0 0
    %2413 = vmatpush2.bf16.msra.mxu0 0
    %2414 = vmatprep.subr.bf16.mxu0 0
    %2415 = vmatpush2.bf16.msra.mxu0 0
    %2416 = vmatprep.mubr.bf16.mxu0 0
    %2417 = vmatmul.mubr.bf16.gmra.mxu0 %v2361
    %v2418 = vpop.f32.mrf.mxu0
    %v2419 = vadd.f32 0.0, %v2418
    %v2420 = vpop.f32.mrf.mxu0
    %v2421 = vpop.f32.mrf.mxu0
    %v2422 = vadd.f32 0.0, %v2421
    %v2423 = vpop.f32.mrf.mxu0
    %2424 = vmatprep.mubr.bf16.mxu0 0
    %2425 = vmatmul.mubr.bf16.gmra.mxu0 %v2364
    %v2426 = vpop.f32.mrf.mxu0
    %v2427 = vadd.f32 0.0, %v2426
    %v2428 = vpop.f32.mrf.mxu0
    %v2429 = vpop.f32.mrf.mxu0
    %v2430 = vadd.f32 0.0, %v2429
    %v2431 = vpop.f32.mrf.mxu0
    %2432 = vmatprep.mubr.bf16.mxu0 0
    %2433 = vmatmul.mubr.bf16.gmra.mxu0 %v2367
    %v2434 = vpop.f32.mrf.mxu0
    %v2435 = vadd.f32 0.0, %v2434
    %v2436 = vpop.f32.mrf.mxu0
    %v2437 = vpop.f32.mrf.mxu0
    %v2438 = vadd.f32 0.0, %v2437
    %v2439 = vpop.f32.mrf.mxu0
    %2440 = vmatprep.mubr.bf16.mxu0 0
    %2441 = vmatmul.mubr.bf16.gmra.mxu0 %v2370
    %v2442 = vpop.f32.mrf.mxu0
    %v2443 = vadd.f32 0.0, %v2442
    %v2444 = vpop.f32.mrf.mxu0
    %v2445 = vpop.f32.mrf.mxu0
    %v2446 = vadd.f32 0.0, %v2445
    %v2447 = vpop.f32.mrf.mxu0
    %2448 = vmatprep.mubr.bf16.mxu0 0
    %2449 = vmatmul.mubr.bf16.gmra.mxu0 %v2373
    %v2450 = vpop.f32.mrf.mxu0
    %v2451 = vadd.f32 0.0, %v2450
    %v2452 = vpop.f32.mrf.mxu0
    %v2453 = vpop.f32.mrf.mxu0
    %v2454 = vadd.f32 0.0, %v2453
    %v2455 = vpop.f32.mrf.mxu0
    %2456 = vmatprep.mubr.bf16.mxu0 0
    %2457 = vmatmul.mubr.bf16.gmra.mxu0 %v2376
    %v2458 = vpop.f32.mrf.mxu0
    %v2459 = vadd.f32 0.0, %v2458
    %v2460 = vpop.f32.mrf.mxu0
    %v2461 = vpop.f32.mrf.mxu0
    %v2462 = vadd.f32 0.0, %v2461
    %v2463 = vpop.f32.mrf.mxu0
    %2464 = vmatprep.mubr.bf16.mxu0 0
    %2465 = vmatmul.mubr.bf16.gmra.mxu0 %v2379
    %v2466 = vpop.f32.mrf.mxu0
    %v2467 = vadd.f32 0.0, %v2466
    %v2468 = vpop.f32.mrf.mxu0
    %v2469 = vpop.f32.mrf.mxu0
    %v2470 = vadd.f32 0.0, %v2469
    %v2471 = vpop.f32.mrf.mxu0
    %2472 = vmatprep.mubr.bf16.mxu0 0
    %2473 = vmatmul.mubr.bf16.gmra.mxu0 %v2382
    %v2474 = vpop.f32.mrf.mxu0
    %v2475 = vadd.f32 0.0, %v2474
    %v2476 = vpop.f32.mrf.mxu0
    %v2477 = vpop.f32.mrf.mxu0
    %v2478 = vadd.f32 0.0, %v2477
    %v2479 = vpop.f32.mrf.mxu0
    %2480 = vdwg.mxu0
    %v2481 = vpack.c.bf16 %v2419, %v2419
    %v2482 = vpack.c.bf16 %v2422, %v2422
    %v2483 = vpack.c.bf16 %v2427, %v2427
    %v2484 = vpack.c.bf16 %v2430, %v2430
    %v2485 = vpack.c.bf16 %v2435, %v2435
    %v2486 = vpack.c.bf16 %v2438, %v2438
    %v2487 = vpack.c.bf16 %v2443, %v2443
    %v2488 = vpack.c.bf16 %v2446, %v2446
    %v2489 = vpack.c.bf16 %v2451, %v2451
    %v2490 = vpack.c.bf16 %v2454, %v2454
    %v2491 = vpack.c.bf16 %v2459, %v2459
    %v2492 = vpack.c.bf16 %v2462, %v2462
    %v2493 = vpack.c.bf16 %v2467, %v2467
    %v2494 = vpack.c.bf16 %v2470, %v2470
    %v2495 = vpack.c.bf16 %v2475, %v2475
    %v2496 = vpack.c.bf16 %v2478, %v2478
    %2498 = vrot.lane.b32.xlu0 %v2481, 112
    %v2499 = vpop.permute.xlu0 %2498
    %v2501 = vsel %vm288, %v2481, 0
    %v2504 = vsel %vm288, %v2499, 0
    %2506 = vmatprep.subr.bf16.mxu0 0
    %2507 = vmatpush1.bf16.xpose.msra.mxu0 0
    %2508 = vmatprep.subr.bf16.mxu0 0
    %2509 = vmatpush1.bf16.xpose.msra.mxu0 0
    %2510 = vmatprep.subr.bf16.mxu0 0
    %2511 = vmatpush1.bf16.xpose.msra.mxu0 0
    %2512 = vmatprep.subr.bf16.mxu0 0
    %2513 = vmatpush1.bf16.xpose.msra.mxu0 0
    %2514 = vmatprep.subr.bf16.mxu0 0
    %2515 = vmatpush1.bf16.xpose.msra.mxu0 0
    %2516 = vmatprep.subr.bf16.mxu0 0
    %2517 = vmatpush1.bf16.xpose.msra.mxu0 0
    %2518 = vmatprep.subr.bf16.mxu0 0
    %2519 = vmatpush1.bf16.xpose.msra.mxu0 0
    %2520 = vmatprep.subr.bf16.mxu0 0
    %2521 = vmatpush1.bf16.xpose.msra.mxu0 %v2504
    %2522 = vmatprep.subr.bf16.mxu0 0
    %2523 = vmatpush2.bf16.xpose.msra.mxu0 0
    %2524 = vmatprep.subr.bf16.mxu0 0
    %2525 = vmatpush2.bf16.xpose.msra.mxu0 0
    %2526 = vmatprep.subr.bf16.mxu0 0
    %2527 = vmatpush2.bf16.xpose.msra.mxu0 0
    %2528 = vmatprep.subr.bf16.mxu0 0
    %2529 = vmatpush2.bf16.xpose.msra.mxu0 0
    %2530 = vmatprep.subr.bf16.mxu0 0
    %2531 = vmatpush2.bf16.xpose.msra.mxu0 0
    %2532 = vmatprep.subr.bf16.mxu0 0
    %2533 = vmatpush2.bf16.xpose.msra.mxu0 0
    %2534 = vmatprep.subr.bf16.mxu0 0
    %2535 = vmatpush2.bf16.xpose.msra.mxu0 0
    %2536 = vmatprep.subr.bf16.mxu0 0
    %2537 = vmatpush2.bf16.xpose.msra.mxu0 0
    %2538 = vmatprep.mubr.bf16.mxu0 0
    %2539 = vmatmul.mubr.bf16.gmra.mxu0 %v2501
    %v2540 = vpop.f32.mrf.mxu0
    %v2541 = vadd.f32 0.0, %v2540
    %v2542 = vpop.f32.mrf.mxu0
    %v2543 = vpop.f32.mrf.mxu0
    %v2544 = vpop.f32.mrf.mxu0
    %2545 = vdwg.mxu0
    %2547 = vrot.lane.b32.xlu0 %v2482, 112
    %v2548 = vpop.permute.xlu0 %2547
    %v2550 = vsel %vm288, %v2482, 0
    %v2553 = vsel %vm288, %v2548, 0
    %2555 = vmatprep.subr.bf16.mxu0 0
    %2556 = vmatpush1.bf16.xpose.msra.mxu0 0
    %2557 = vmatprep.subr.bf16.mxu0 0
    %2558 = vmatpush1.bf16.xpose.msra.mxu0 0
    %2559 = vmatprep.subr.bf16.mxu0 0
    %2560 = vmatpush1.bf16.xpose.msra.mxu0 0
    %2561 = vmatprep.subr.bf16.mxu0 0
    %2562 = vmatpush1.bf16.xpose.msra.mxu0 0
    %2563 = vmatprep.subr.bf16.mxu0 0
    %2564 = vmatpush1.bf16.xpose.msra.mxu0 0
    %2565 = vmatprep.subr.bf16.mxu0 0
    %2566 = vmatpush1.bf16.xpose.msra.mxu0 0
    %2567 = vmatprep.subr.bf16.mxu0 0
    %2568 = vmatpush1.bf16.xpose.msra.mxu0 0
    %2569 = vmatprep.subr.bf16.mxu0 0
    %2570 = vmatpush1.bf16.xpose.msra.mxu0 %v2553
    %2571 = vmatprep.subr.bf16.mxu0 0
    %2572 = vmatpush2.bf16.xpose.msra.mxu0 0
    %2573 = vmatprep.subr.bf16.mxu0 0
    %2574 = vmatpush2.bf16.xpose.msra.mxu0 0
    %2575 = vmatprep.subr.bf16.mxu0 0
    %2576 = vmatpush2.bf16.xpose.msra.mxu0 0
    %2577 = vmatprep.subr.bf16.mxu0 0
    %2578 = vmatpush2.bf16.xpose.msra.mxu0 0
    %2579 = vmatprep.subr.bf16.mxu0 0
    %2580 = vmatpush2.bf16.xpose.msra.mxu0 0
    %2581 = vmatprep.subr.bf16.mxu0 0
    %2582 = vmatpush2.bf16.xpose.msra.mxu0 0
    %2583 = vmatprep.subr.bf16.mxu0 0
    %2584 = vmatpush2.bf16.xpose.msra.mxu0 0
    %2585 = vmatprep.subr.bf16.mxu0 0
    %2586 = vmatpush2.bf16.xpose.msra.mxu0 0
    %2587 = vmatprep.mubr.bf16.mxu0 0
    %2588 = vmatmul.mubr.bf16.gmra.mxu0 %v2550
    %v2589 = vpop.f32.mrf.mxu0
    %v2590 = vadd.f32 0.0, %v2589
    %v2591 = vpop.f32.mrf.mxu0
    %v2592 = vpop.f32.mrf.mxu0
    %v2593 = vpop.f32.mrf.mxu0
    %2594 = vdwg.mxu0
    %2596 = vrot.lane.b32.xlu0 %v2483, 112
    %v2597 = vpop.permute.xlu0 %2596
    %v2599 = vsel %vm288, %v2483, 0
    %v2602 = vsel %vm288, %v2597, 0
    %2604 = vmatprep.subr.bf16.mxu0 0
    %2605 = vmatpush1.bf16.xpose.msra.mxu0 0
    %2606 = vmatprep.subr.bf16.mxu0 0
    %2607 = vmatpush1.bf16.xpose.msra.mxu0 0
    %2608 = vmatprep.subr.bf16.mxu0 0
    %2609 = vmatpush1.bf16.xpose.msra.mxu0 0
    %2610 = vmatprep.subr.bf16.mxu0 0
    %2611 = vmatpush1.bf16.xpose.msra.mxu0 0
    %2612 = vmatprep.subr.bf16.mxu0 0
    %2613 = vmatpush1.bf16.xpose.msra.mxu0 0
    %2614 = vmatprep.subr.bf16.mxu0 0
    %2615 = vmatpush1.bf16.xpose.msra.mxu0 0
    %2616 = vmatprep.subr.bf16.mxu0 0
    %2617 = vmatpush1.bf16.xpose.msra.mxu0 0
    %2618 = vmatprep.subr.bf16.mxu0 0
    %2619 = vmatpush1.bf16.xpose.msra.mxu0 %v2602
    %2620 = vmatprep.subr.bf16.mxu0 0
    %2621 = vmatpush2.bf16.xpose.msra.mxu0 0
    %2622 = vmatprep.subr.bf16.mxu0 0
    %2623 = vmatpush2.bf16.xpose.msra.mxu0 0
    %2624 = vmatprep.subr.bf16.mxu0 0
    %2625 = vmatpush2.bf16.xpose.msra.mxu0 0
    %2626 = vmatprep.subr.bf16.mxu0 0
    %2627 = vmatpush2.bf16.xpose.msra.mxu0 0
    %2628 = vmatprep.subr.bf16.mxu0 0
    %2629 = vmatpush2.bf16.xpose.msra.mxu0 0
    %2630 = vmatprep.subr.bf16.mxu0 0
    %2631 = vmatpush2.bf16.xpose.msra.mxu0 0
    %2632 = vmatprep.subr.bf16.mxu0 0
    %2633 = vmatpush2.bf16.xpose.msra.mxu0 0
    %2634 = vmatprep.subr.bf16.mxu0 0
    %2635 = vmatpush2.bf16.xpose.msra.mxu0 0
    %2636 = vmatprep.mubr.bf16.mxu0 0
    %2637 = vmatmul.mubr.bf16.gmra.mxu0 %v2599
    %v2638 = vpop.f32.mrf.mxu0
    %v2639 = vadd.f32 0.0, %v2638
    %v2640 = vpop.f32.mrf.mxu0
    %v2641 = vpop.f32.mrf.mxu0
    %v2642 = vpop.f32.mrf.mxu0
    %2643 = vdwg.mxu0
    %2645 = vrot.lane.b32.xlu0 %v2484, 112
    %v2646 = vpop.permute.xlu0 %2645
    %v2648 = vsel %vm288, %v2484, 0
    %v2651 = vsel %vm288, %v2646, 0
    %2653 = vmatprep.subr.bf16.mxu0 0
    %2654 = vmatpush1.bf16.xpose.msra.mxu0 0
    %2655 = vmatprep.subr.bf16.mxu0 0
    %2656 = vmatpush1.bf16.xpose.msra.mxu0 0
    %2657 = vmatprep.subr.bf16.mxu0 0
    %2658 = vmatpush1.bf16.xpose.msra.mxu0 0
    %2659 = vmatprep.subr.bf16.mxu0 0
    %2660 = vmatpush1.bf16.xpose.msra.mxu0 0
    %2661 = vmatprep.subr.bf16.mxu0 0
    %2662 = vmatpush1.bf16.xpose.msra.mxu0 0
    %2663 = vmatprep.subr.bf16.mxu0 0
    %2664 = vmatpush1.bf16.xpose.msra.mxu0 0
    %2665 = vmatprep.subr.bf16.mxu0 0
    %2666 = vmatpush1.bf16.xpose.msra.mxu0 0
    %2667 = vmatprep.subr.bf16.mxu0 0
    %2668 = vmatpush1.bf16.xpose.msra.mxu0 %v2651
    %2669 = vmatprep.subr.bf16.mxu0 0
    %2670 = vmatpush2.bf16.xpose.msra.mxu0 0
    %2671 = vmatprep.subr.bf16.mxu0 0
    %2672 = vmatpush2.bf16.xpose.msra.mxu0 0
    %2673 = vmatprep.subr.bf16.mxu0 0
    %2674 = vmatpush2.bf16.xpose.msra.mxu0 0
    %2675 = vmatprep.subr.bf16.mxu0 0
    %2676 = vmatpush2.bf16.xpose.msra.mxu0 0
    %2677 = vmatprep.subr.bf16.mxu0 0
    %2678 = vmatpush2.bf16.xpose.msra.mxu0 0
    %2679 = vmatprep.subr.bf16.mxu0 0
    %2680 = vmatpush2.bf16.xpose.msra.mxu0 0
    %2681 = vmatprep.subr.bf16.mxu0 0
    %2682 = vmatpush2.bf16.xpose.msra.mxu0 0
    %2683 = vmatprep.subr.bf16.mxu0 0
    %2684 = vmatpush2.bf16.xpose.msra.mxu0 0
    %2685 = vmatprep.mubr.bf16.mxu0 0
    %2686 = vmatmul.mubr.bf16.gmra.mxu0 %v2648
    %v2687 = vpop.f32.mrf.mxu0
    %v2688 = vadd.f32 0.0, %v2687
    %v2689 = vpop.f32.mrf.mxu0
    %v2690 = vpop.f32.mrf.mxu0
    %v2691 = vpop.f32.mrf.mxu0
    %2692 = vdwg.mxu0
    %2694 = vrot.lane.b32.xlu0 %v2485, 112
    %v2695 = vpop.permute.xlu0 %2694
    %v2697 = vsel %vm288, %v2485, 0
    %v2700 = vsel %vm288, %v2695, 0
    %2702 = vmatprep.subr.bf16.mxu0 0
    %2703 = vmatpush1.bf16.xpose.msra.mxu0 0
    %2704 = vmatprep.subr.bf16.mxu0 0
    %2705 = vmatpush1.bf16.xpose.msra.mxu0 0
    %2706 = vmatprep.subr.bf16.mxu0 0
    %2707 = vmatpush1.bf16.xpose.msra.mxu0 0
    %2708 = vmatprep.subr.bf16.mxu0 0
    %2709 = vmatpush1.bf16.xpose.msra.mxu0 0
    %2710 = vmatprep.subr.bf16.mxu0 0
    %2711 = vmatpush1.bf16.xpose.msra.mxu0 0
    %2712 = vmatprep.subr.bf16.mxu0 0
    %2713 = vmatpush1.bf16.xpose.msra.mxu0 0
    %2714 = vmatprep.subr.bf16.mxu0 0
    %2715 = vmatpush1.bf16.xpose.msra.mxu0 0
    %2716 = vmatprep.subr.bf16.mxu0 0
    %2717 = vmatpush1.bf16.xpose.msra.mxu0 %v2700
    %2718 = vmatprep.subr.bf16.mxu0 0
    %2719 = vmatpush2.bf16.xpose.msra.mxu0 0
    %2720 = vmatprep.subr.bf16.mxu0 0
    %2721 = vmatpush2.bf16.xpose.msra.mxu0 0
    %2722 = vmatprep.subr.bf16.mxu0 0
    %2723 = vmatpush2.bf16.xpose.msra.mxu0 0
    %2724 = vmatprep.subr.bf16.mxu0 0
    %2725 = vmatpush2.bf16.xpose.msra.mxu0 0
    %2726 = vmatprep.subr.bf16.mxu0 0
    %2727 = vmatpush2.bf16.xpose.msra.mxu0 0
    %2728 = vmatprep.subr.bf16.mxu0 0
    %2729 = vmatpush2.bf16.xpose.msra.mxu0 0
    %2730 = vmatprep.subr.bf16.mxu0 0
    %2731 = vmatpush2.bf16.xpose.msra.mxu0 0
    %2732 = vmatprep.subr.bf16.mxu0 0
    %2733 = vmatpush2.bf16.xpose.msra.mxu0 0
    %2734 = vmatprep.mubr.bf16.mxu0 0
    %2735 = vmatmul.mubr.bf16.gmra.mxu0 %v2697
    %v2736 = vpop.f32.mrf.mxu0
    %v2737 = vadd.f32 0.0, %v2736
    %v2738 = vpop.f32.mrf.mxu0
    %v2739 = vpop.f32.mrf.mxu0
    %v2740 = vpop.f32.mrf.mxu0
    %2741 = vdwg.mxu0
    %2743 = vrot.lane.b32.xlu0 %v2486, 112
    %v2744 = vpop.permute.xlu0 %2743
    %v2746 = vsel %vm288, %v2486, 0
    %v2749 = vsel %vm288, %v2744, 0
    %2751 = vmatprep.subr.bf16.mxu0 0
    %2752 = vmatpush1.bf16.xpose.msra.mxu0 0
    %2753 = vmatprep.subr.bf16.mxu0 0
    %2754 = vmatpush1.bf16.xpose.msra.mxu0 0
    %2755 = vmatprep.subr.bf16.mxu0 0
    %2756 = vmatpush1.bf16.xpose.msra.mxu0 0
    %2757 = vmatprep.subr.bf16.mxu0 0
    %2758 = vmatpush1.bf16.xpose.msra.mxu0 0
    %2759 = vmatprep.subr.bf16.mxu0 0
    %2760 = vmatpush1.bf16.xpose.msra.mxu0 0
    %2761 = vmatprep.subr.bf16.mxu0 0
    %2762 = vmatpush1.bf16.xpose.msra.mxu0 0
    %2763 = vmatprep.subr.bf16.mxu0 0
    %2764 = vmatpush1.bf16.xpose.msra.mxu0 0
    %2765 = vmatprep.subr.bf16.mxu0 0
    %2766 = vmatpush1.bf16.xpose.msra.mxu0 %v2749
    %2767 = vmatprep.subr.bf16.mxu0 0
    %2768 = vmatpush2.bf16.xpose.msra.mxu0 0
    %2769 = vmatprep.subr.bf16.mxu0 0
    %2770 = vmatpush2.bf16.xpose.msra.mxu0 0
    %2771 = vmatprep.subr.bf16.mxu0 0
    %2772 = vmatpush2.bf16.xpose.msra.mxu0 0
    %2773 = vmatprep.subr.bf16.mxu0 0
    %2774 = vmatpush2.bf16.xpose.msra.mxu0 0
    %2775 = vmatprep.subr.bf16.mxu0 0
    %2776 = vmatpush2.bf16.xpose.msra.mxu0 0
    %2777 = vmatprep.subr.bf16.mxu0 0
    %2778 = vmatpush2.bf16.xpose.msra.mxu0 0
    %2779 = vmatprep.subr.bf16.mxu0 0
    %2780 = vmatpush2.bf16.xpose.msra.mxu0 0
    %2781 = vmatprep.subr.bf16.mxu0 0
    %2782 = vmatpush2.bf16.xpose.msra.mxu0 0
    %2783 = vmatprep.mubr.bf16.mxu0 0
    %2784 = vmatmul.mubr.bf16.gmra.mxu0 %v2746
    %v2785 = vpop.f32.mrf.mxu0
    %v2786 = vadd.f32 0.0, %v2785
    %v2787 = vpop.f32.mrf.mxu0
    %v2788 = vpop.f32.mrf.mxu0
    %v2789 = vpop.f32.mrf.mxu0
    %2790 = vdwg.mxu0
    %2792 = vrot.lane.b32.xlu0 %v2487, 112
    %v2793 = vpop.permute.xlu0 %2792
    %v2795 = vsel %vm288, %v2487, 0
    %v2798 = vsel %vm288, %v2793, 0
    %2800 = vmatprep.subr.bf16.mxu0 0
    %2801 = vmatpush1.bf16.xpose.msra.mxu0 0
    %2802 = vmatprep.subr.bf16.mxu0 0
    %2803 = vmatpush1.bf16.xpose.msra.mxu0 0
    %2804 = vmatprep.subr.bf16.mxu0 0
    %2805 = vmatpush1.bf16.xpose.msra.mxu0 0
    %2806 = vmatprep.subr.bf16.mxu0 0
    %2807 = vmatpush1.bf16.xpose.msra.mxu0 0
    %2808 = vmatprep.subr.bf16.mxu0 0
    %2809 = vmatpush1.bf16.xpose.msra.mxu0 0
    %2810 = vmatprep.subr.bf16.mxu0 0
    %2811 = vmatpush1.bf16.xpose.msra.mxu0 0
    %2812 = vmatprep.subr.bf16.mxu0 0
    %2813 = vmatpush1.bf16.xpose.msra.mxu0 0
    %2814 = vmatprep.subr.bf16.mxu0 0
    %2815 = vmatpush1.bf16.xpose.msra.mxu0 %v2798
    %2816 = vmatprep.subr.bf16.mxu0 0
    %2817 = vmatpush2.bf16.xpose.msra.mxu0 0
    %2818 = vmatprep.subr.bf16.mxu0 0
    %2819 = vmatpush2.bf16.xpose.msra.mxu0 0
    %2820 = vmatprep.subr.bf16.mxu0 0
    %2821 = vmatpush2.bf16.xpose.msra.mxu0 0
    %2822 = vmatprep.subr.bf16.mxu0 0
    %2823 = vmatpush2.bf16.xpose.msra.mxu0 0
    %2824 = vmatprep.subr.bf16.mxu0 0
    %2825 = vmatpush2.bf16.xpose.msra.mxu0 0
    %2826 = vmatprep.subr.bf16.mxu0 0
    %2827 = vmatpush2.bf16.xpose.msra.mxu0 0
    %2828 = vmatprep.subr.bf16.mxu0 0
    %2829 = vmatpush2.bf16.xpose.msra.mxu0 0
    %2830 = vmatprep.subr.bf16.mxu0 0
    %2831 = vmatpush2.bf16.xpose.msra.mxu0 0
    %2832 = vmatprep.mubr.bf16.mxu0 0
    %2833 = vmatmul.mubr.bf16.gmra.mxu0 %v2795
    %v2834 = vpop.f32.mrf.mxu0
    %v2835 = vadd.f32 0.0, %v2834
    %v2836 = vpop.f32.mrf.mxu0
    %v2837 = vpop.f32.mrf.mxu0
    %v2838 = vpop.f32.mrf.mxu0
    %2839 = vdwg.mxu0
    %2841 = vrot.lane.b32.xlu0 %v2488, 112
    %v2842 = vpop.permute.xlu0 %2841
    %v2844 = vsel %vm288, %v2488, 0
    %v2847 = vsel %vm288, %v2842, 0
    %2849 = vmatprep.subr.bf16.mxu0 0
    %2850 = vmatpush1.bf16.xpose.msra.mxu0 0
    %2851 = vmatprep.subr.bf16.mxu0 0
    %2852 = vmatpush1.bf16.xpose.msra.mxu0 0
    %2853 = vmatprep.subr.bf16.mxu0 0
    %2854 = vmatpush1.bf16.xpose.msra.mxu0 0
    %2855 = vmatprep.subr.bf16.mxu0 0
    %2856 = vmatpush1.bf16.xpose.msra.mxu0 0
    %2857 = vmatprep.subr.bf16.mxu0 0
    %2858 = vmatpush1.bf16.xpose.msra.mxu0 0
    %2859 = vmatprep.subr.bf16.mxu0 0
    %2860 = vmatpush1.bf16.xpose.msra.mxu0 0
    %2861 = vmatprep.subr.bf16.mxu0 0
    %2862 = vmatpush1.bf16.xpose.msra.mxu0 0
    %2863 = vmatprep.subr.bf16.mxu0 0
    %2864 = vmatpush1.bf16.xpose.msra.mxu0 %v2847
    %2865 = vmatprep.subr.bf16.mxu0 0
    %2866 = vmatpush2.bf16.xpose.msra.mxu0 0
    %2867 = vmatprep.subr.bf16.mxu0 0
    %2868 = vmatpush2.bf16.xpose.msra.mxu0 0
    %2869 = vmatprep.subr.bf16.mxu0 0
    %2870 = vmatpush2.bf16.xpose.msra.mxu0 0
    %2871 = vmatprep.subr.bf16.mxu0 0
    %2872 = vmatpush2.bf16.xpose.msra.mxu0 0
    %2873 = vmatprep.subr.bf16.mxu0 0
    %2874 = vmatpush2.bf16.xpose.msra.mxu0 0
    %2875 = vmatprep.subr.bf16.mxu0 0
    %2876 = vmatpush2.bf16.xpose.msra.mxu0 0
    %2877 = vmatprep.subr.bf16.mxu0 0
    %2878 = vmatpush2.bf16.xpose.msra.mxu0 0
    %2879 = vmatprep.subr.bf16.mxu0 0
    %2880 = vmatpush2.bf16.xpose.msra.mxu0 0
    %2881 = vmatprep.mubr.bf16.mxu0 0
    %2882 = vmatmul.mubr.bf16.gmra.mxu0 %v2844
    %v2883 = vpop.f32.mrf.mxu0
    %v2884 = vadd.f32 0.0, %v2883
    %v2885 = vpop.f32.mrf.mxu0
    %v2886 = vpop.f32.mrf.mxu0
    %v2887 = vpop.f32.mrf.mxu0
    %2888 = vdwg.mxu0
    %2890 = vrot.lane.b32.xlu0 %v2489, 112
    %v2891 = vpop.permute.xlu0 %2890
    %v2893 = vsel %vm288, %v2489, 0
    %v2896 = vsel %vm288, %v2891, 0
    %2898 = vmatprep.subr.bf16.mxu0 0
    %2899 = vmatpush1.bf16.xpose.msra.mxu0 0
    %2900 = vmatprep.subr.bf16.mxu0 0
    %2901 = vmatpush1.bf16.xpose.msra.mxu0 0
    %2902 = vmatprep.subr.bf16.mxu0 0
    %2903 = vmatpush1.bf16.xpose.msra.mxu0 0
    %2904 = vmatprep.subr.bf16.mxu0 0
    %2905 = vmatpush1.bf16.xpose.msra.mxu0 0
    %2906 = vmatprep.subr.bf16.mxu0 0
    %2907 = vmatpush1.bf16.xpose.msra.mxu0 0
    %2908 = vmatprep.subr.bf16.mxu0 0
    %2909 = vmatpush1.bf16.xpose.msra.mxu0 0
    %2910 = vmatprep.subr.bf16.mxu0 0
    %2911 = vmatpush1.bf16.xpose.msra.mxu0 0
    %2912 = vmatprep.subr.bf16.mxu0 0
    %2913 = vmatpush1.bf16.xpose.msra.mxu0 %v2896
    %2914 = vmatprep.subr.bf16.mxu0 0
    %2915 = vmatpush2.bf16.xpose.msra.mxu0 0
    %2916 = vmatprep.subr.bf16.mxu0 0
    %2917 = vmatpush2.bf16.xpose.msra.mxu0 0
    %2918 = vmatprep.subr.bf16.mxu0 0
    %2919 = vmatpush2.bf16.xpose.msra.mxu0 0
    %2920 = vmatprep.subr.bf16.mxu0 0
    %2921 = vmatpush2.bf16.xpose.msra.mxu0 0
    %2922 = vmatprep.subr.bf16.mxu0 0
    %2923 = vmatpush2.bf16.xpose.msra.mxu0 0
    %2924 = vmatprep.subr.bf16.mxu0 0
    %2925 = vmatpush2.bf16.xpose.msra.mxu0 0
    %2926 = vmatprep.subr.bf16.mxu0 0
    %2927 = vmatpush2.bf16.xpose.msra.mxu0 0
    %2928 = vmatprep.subr.bf16.mxu0 0
    %2929 = vmatpush2.bf16.xpose.msra.mxu0 0
    %2930 = vmatprep.mubr.bf16.mxu0 0
    %2931 = vmatmul.mubr.bf16.gmra.mxu0 %v2893
    %v2932 = vpop.f32.mrf.mxu0
    %v2933 = vadd.f32 0.0, %v2932
    %v2934 = vpop.f32.mrf.mxu0
    %v2935 = vpop.f32.mrf.mxu0
    %v2936 = vpop.f32.mrf.mxu0
    %2937 = vdwg.mxu0
    %2939 = vrot.lane.b32.xlu0 %v2490, 112
    %v2940 = vpop.permute.xlu0 %2939
    %v2942 = vsel %vm288, %v2490, 0
    %v2945 = vsel %vm288, %v2940, 0
    %2947 = vmatprep.subr.bf16.mxu0 0
    %2948 = vmatpush1.bf16.xpose.msra.mxu0 0
    %2949 = vmatprep.subr.bf16.mxu0 0
    %2950 = vmatpush1.bf16.xpose.msra.mxu0 0
    %2951 = vmatprep.subr.bf16.mxu0 0
    %2952 = vmatpush1.bf16.xpose.msra.mxu0 0
    %2953 = vmatprep.subr.bf16.mxu0 0
    %2954 = vmatpush1.bf16.xpose.msra.mxu0 0
    %2955 = vmatprep.subr.bf16.mxu0 0
    %2956 = vmatpush1.bf16.xpose.msra.mxu0 0
    %2957 = vmatprep.subr.bf16.mxu0 0
    %2958 = vmatpush1.bf16.xpose.msra.mxu0 0
    %2959 = vmatprep.subr.bf16.mxu0 0
    %2960 = vmatpush1.bf16.xpose.msra.mxu0 0
    %2961 = vmatprep.subr.bf16.mxu0 0
    %2962 = vmatpush1.bf16.xpose.msra.mxu0 %v2945
    %2963 = vmatprep.subr.bf16.mxu0 0
    %2964 = vmatpush2.bf16.xpose.msra.mxu0 0
    %2965 = vmatprep.subr.bf16.mxu0 0
    %2966 = vmatpush2.bf16.xpose.msra.mxu0 0
    %2967 = vmatprep.subr.bf16.mxu0 0
    %2968 = vmatpush2.bf16.xpose.msra.mxu0 0
    %2969 = vmatprep.subr.bf16.mxu0 0
    %2970 = vmatpush2.bf16.xpose.msra.mxu0 0
    %2971 = vmatprep.subr.bf16.mxu0 0
    %2972 = vmatpush2.bf16.xpose.msra.mxu0 0
    %2973 = vmatprep.subr.bf16.mxu0 0
    %2974 = vmatpush2.bf16.xpose.msra.mxu0 0
    %2975 = vmatprep.subr.bf16.mxu0 0
    %2976 = vmatpush2.bf16.xpose.msra.mxu0 0
    %2977 = vmatprep.subr.bf16.mxu0 0
    %2978 = vmatpush2.bf16.xpose.msra.mxu0 0
    %2979 = vmatprep.mubr.bf16.mxu0 0
    %2980 = vmatmul.mubr.bf16.gmra.mxu0 %v2942
    %v2981 = vpop.f32.mrf.mxu0
    %v2982 = vadd.f32 0.0, %v2981
    %v2983 = vpop.f32.mrf.mxu0
    %v2984 = vpop.f32.mrf.mxu0
    %v2985 = vpop.f32.mrf.mxu0
    %2986 = vdwg.mxu0
    %2988 = vrot.lane.b32.xlu0 %v2491, 112
    %v2989 = vpop.permute.xlu0 %2988
    %v2991 = vsel %vm288, %v2491, 0
    %v2994 = vsel %vm288, %v2989, 0
    %2996 = vmatprep.subr.bf16.mxu0 0
    %2997 = vmatpush1.bf16.xpose.msra.mxu0 0
    %2998 = vmatprep.subr.bf16.mxu0 0
    %2999 = vmatpush1.bf16.xpose.msra.mxu0 0
    %3000 = vmatprep.subr.bf16.mxu0 0
    %3001 = vmatpush1.bf16.xpose.msra.mxu0 0
    %3002 = vmatprep.subr.bf16.mxu0 0
    %3003 = vmatpush1.bf16.xpose.msra.mxu0 0
    %3004 = vmatprep.subr.bf16.mxu0 0
    %3005 = vmatpush1.bf16.xpose.msra.mxu0 0
    %3006 = vmatprep.subr.bf16.mxu0 0
    %3007 = vmatpush1.bf16.xpose.msra.mxu0 0
    %3008 = vmatprep.subr.bf16.mxu0 0
    %3009 = vmatpush1.bf16.xpose.msra.mxu0 0
    %3010 = vmatprep.subr.bf16.mxu0 0
    %3011 = vmatpush1.bf16.xpose.msra.mxu0 %v2994
    %3012 = vmatprep.subr.bf16.mxu0 0
    %3013 = vmatpush2.bf16.xpose.msra.mxu0 0
    %3014 = vmatprep.subr.bf16.mxu0 0
    %3015 = vmatpush2.bf16.xpose.msra.mxu0 0
    %3016 = vmatprep.subr.bf16.mxu0 0
    %3017 = vmatpush2.bf16.xpose.msra.mxu0 0
    %3018 = vmatprep.subr.bf16.mxu0 0
    %3019 = vmatpush2.bf16.xpose.msra.mxu0 0
    %3020 = vmatprep.subr.bf16.mxu0 0
    %3021 = vmatpush2.bf16.xpose.msra.mxu0 0
    %3022 = vmatprep.subr.bf16.mxu0 0
    %3023 = vmatpush2.bf16.xpose.msra.mxu0 0
    %3024 = vmatprep.subr.bf16.mxu0 0
    %3025 = vmatpush2.bf16.xpose.msra.mxu0 0
    %3026 = vmatprep.subr.bf16.mxu0 0
    %3027 = vmatpush2.bf16.xpose.msra.mxu0 0
    %3028 = vmatprep.mubr.bf16.mxu0 0
    %3029 = vmatmul.mubr.bf16.gmra.mxu0 %v2991
    %v3030 = vpop.f32.mrf.mxu0
    %v3031 = vadd.f32 0.0, %v3030
    %v3032 = vpop.f32.mrf.mxu0
    %v3033 = vpop.f32.mrf.mxu0
    %v3034 = vpop.f32.mrf.mxu0
    %3035 = vdwg.mxu0
    %3037 = vrot.lane.b32.xlu0 %v2492, 112
    %v3038 = vpop.permute.xlu0 %3037
    %v3040 = vsel %vm288, %v2492, 0
    %v3043 = vsel %vm288, %v3038, 0
    %3045 = vmatprep.subr.bf16.mxu0 0
    %3046 = vmatpush1.bf16.xpose.msra.mxu0 0
    %3047 = vmatprep.subr.bf16.mxu0 0
    %3048 = vmatpush1.bf16.xpose.msra.mxu0 0
    %3049 = vmatprep.subr.bf16.mxu0 0
    %3050 = vmatpush1.bf16.xpose.msra.mxu0 0
    %3051 = vmatprep.subr.bf16.mxu0 0
    %3052 = vmatpush1.bf16.xpose.msra.mxu0 0
    %3053 = vmatprep.subr.bf16.mxu0 0
    %3054 = vmatpush1.bf16.xpose.msra.mxu0 0
    %3055 = vmatprep.subr.bf16.mxu0 0
    %3056 = vmatpush1.bf16.xpose.msra.mxu0 0
    %3057 = vmatprep.subr.bf16.mxu0 0
    %3058 = vmatpush1.bf16.xpose.msra.mxu0 0
    %3059 = vmatprep.subr.bf16.mxu0 0
    %3060 = vmatpush1.bf16.xpose.msra.mxu0 %v3043
    %3061 = vmatprep.subr.bf16.mxu0 0
    %3062 = vmatpush2.bf16.xpose.msra.mxu0 0
    %3063 = vmatprep.subr.bf16.mxu0 0
    %3064 = vmatpush2.bf16.xpose.msra.mxu0 0
    %3065 = vmatprep.subr.bf16.mxu0 0
    %3066 = vmatpush2.bf16.xpose.msra.mxu0 0
    %3067 = vmatprep.subr.bf16.mxu0 0
    %3068 = vmatpush2.bf16.xpose.msra.mxu0 0
    %3069 = vmatprep.subr.bf16.mxu0 0
    %3070 = vmatpush2.bf16.xpose.msra.mxu0 0
    %3071 = vmatprep.subr.bf16.mxu0 0
    %3072 = vmatpush2.bf16.xpose.msra.mxu0 0
    %3073 = vmatprep.subr.bf16.mxu0 0
    %3074 = vmatpush2.bf16.xpose.msra.mxu0 0
    %3075 = vmatprep.subr.bf16.mxu0 0
    %3076 = vmatpush2.bf16.xpose.msra.mxu0 0
    %3077 = vmatprep.mubr.bf16.mxu0 0
    %3078 = vmatmul.mubr.bf16.gmra.mxu0 %v3040
    %v3079 = vpop.f32.mrf.mxu0
    %v3080 = vadd.f32 0.0, %v3079
    %v3081 = vpop.f32.mrf.mxu0
    %v3082 = vpop.f32.mrf.mxu0
    %v3083 = vpop.f32.mrf.mxu0
    %3084 = vdwg.mxu0
    %3086 = vrot.lane.b32.xlu0 %v2493, 112
    %v3087 = vpop.permute.xlu0 %3086
    %v3089 = vsel %vm288, %v2493, 0
    %v3092 = vsel %vm288, %v3087, 0
    %3094 = vmatprep.subr.bf16.mxu0 0
    %3095 = vmatpush1.bf16.xpose.msra.mxu0 0
    %3096 = vmatprep.subr.bf16.mxu0 0
    %3097 = vmatpush1.bf16.xpose.msra.mxu0 0
    %3098 = vmatprep.subr.bf16.mxu0 0
    %3099 = vmatpush1.bf16.xpose.msra.mxu0 0
    %3100 = vmatprep.subr.bf16.mxu0 0
    %3101 = vmatpush1.bf16.xpose.msra.mxu0 0
    %3102 = vmatprep.subr.bf16.mxu0 0
    %3103 = vmatpush1.bf16.xpose.msra.mxu0 0
    %3104 = vmatprep.subr.bf16.mxu0 0
    %3105 = vmatpush1.bf16.xpose.msra.mxu0 0
    %3106 = vmatprep.subr.bf16.mxu0 0
    %3107 = vmatpush1.bf16.xpose.msra.mxu0 0
    %3108 = vmatprep.subr.bf16.mxu0 0
    %3109 = vmatpush1.bf16.xpose.msra.mxu0 %v3092
    %3110 = vmatprep.subr.bf16.mxu0 0
    %3111 = vmatpush2.bf16.xpose.msra.mxu0 0
    %3112 = vmatprep.subr.bf16.mxu0 0
    %3113 = vmatpush2.bf16.xpose.msra.mxu0 0
    %3114 = vmatprep.subr.bf16.mxu0 0
    %3115 = vmatpush2.bf16.xpose.msra.mxu0 0
    %3116 = vmatprep.subr.bf16.mxu0 0
    %3117 = vmatpush2.bf16.xpose.msra.mxu0 0
    %3118 = vmatprep.subr.bf16.mxu0 0
    %3119 = vmatpush2.bf16.xpose.msra.mxu0 0
    %3120 = vmatprep.subr.bf16.mxu0 0
    %3121 = vmatpush2.bf16.xpose.msra.mxu0 0
    %3122 = vmatprep.subr.bf16.mxu0 0
    %3123 = vmatpush2.bf16.xpose.msra.mxu0 0
    %3124 = vmatprep.subr.bf16.mxu0 0
    %3125 = vmatpush2.bf16.xpose.msra.mxu0 0
    %3126 = vmatprep.mubr.bf16.mxu0 0
    %3127 = vmatmul.mubr.bf16.gmra.mxu0 %v3089
    %v3128 = vpop.f32.mrf.mxu0
    %v3129 = vadd.f32 0.0, %v3128
    %v3130 = vpop.f32.mrf.mxu0
    %v3131 = vpop.f32.mrf.mxu0
    %v3132 = vpop.f32.mrf.mxu0
    %3133 = vdwg.mxu0
    %3135 = vrot.lane.b32.xlu0 %v2494, 112
    %v3136 = vpop.permute.xlu0 %3135
    %v3138 = vsel %vm288, %v2494, 0
    %v3141 = vsel %vm288, %v3136, 0
    %3143 = vmatprep.subr.bf16.mxu0 0
    %3144 = vmatpush1.bf16.xpose.msra.mxu0 0
    %3145 = vmatprep.subr.bf16.mxu0 0
    %3146 = vmatpush1.bf16.xpose.msra.mxu0 0
    %3147 = vmatprep.subr.bf16.mxu0 0
    %3148 = vmatpush1.bf16.xpose.msra.mxu0 0
    %3149 = vmatprep.subr.bf16.mxu0 0
    %3150 = vmatpush1.bf16.xpose.msra.mxu0 0
    %3151 = vmatprep.subr.bf16.mxu0 0
    %3152 = vmatpush1.bf16.xpose.msra.mxu0 0
    %3153 = vmatprep.subr.bf16.mxu0 0
    %3154 = vmatpush1.bf16.xpose.msra.mxu0 0
    %3155 = vmatprep.subr.bf16.mxu0 0
    %3156 = vmatpush1.bf16.xpose.msra.mxu0 0
    %3157 = vmatprep.subr.bf16.mxu0 0
    %3158 = vmatpush1.bf16.xpose.msra.mxu0 %v3141
    %3159 = vmatprep.subr.bf16.mxu0 0
    %3160 = vmatpush2.bf16.xpose.msra.mxu0 0
    %3161 = vmatprep.subr.bf16.mxu0 0
    %3162 = vmatpush2.bf16.xpose.msra.mxu0 0
    %3163 = vmatprep.subr.bf16.mxu0 0
    %3164 = vmatpush2.bf16.xpose.msra.mxu0 0
    %3165 = vmatprep.subr.bf16.mxu0 0
    %3166 = vmatpush2.bf16.xpose.msra.mxu0 0
    %3167 = vmatprep.subr.bf16.mxu0 0
    %3168 = vmatpush2.bf16.xpose.msra.mxu0 0
    %3169 = vmatprep.subr.bf16.mxu0 0
    %3170 = vmatpush2.bf16.xpose.msra.mxu0 0
    %3171 = vmatprep.subr.bf16.mxu0 0
    %3172 = vmatpush2.bf16.xpose.msra.mxu0 0
    %3173 = vmatprep.subr.bf16.mxu0 0
    %3174 = vmatpush2.bf16.xpose.msra.mxu0 0
    %3175 = vmatprep.mubr.bf16.mxu0 0
    %3176 = vmatmul.mubr.bf16.gmra.mxu0 %v3138
    %v3177 = vpop.f32.mrf.mxu0
    %v3178 = vadd.f32 0.0, %v3177
    %v3179 = vpop.f32.mrf.mxu0
    %v3180 = vpop.f32.mrf.mxu0
    %v3181 = vpop.f32.mrf.mxu0
    %3182 = vdwg.mxu0
    %3184 = vrot.lane.b32.xlu0 %v2495, 112
    %v3185 = vpop.permute.xlu0 %3184
    %v3187 = vsel %vm288, %v2495, 0
    %v3190 = vsel %vm288, %v3185, 0
    %3192 = vmatprep.subr.bf16.mxu0 0
    %3193 = vmatpush1.bf16.xpose.msra.mxu0 0
    %3194 = vmatprep.subr.bf16.mxu0 0
    %3195 = vmatpush1.bf16.xpose.msra.mxu0 0
    %3196 = vmatprep.subr.bf16.mxu0 0
    %3197 = vmatpush1.bf16.xpose.msra.mxu0 0
    %3198 = vmatprep.subr.bf16.mxu0 0
    %3199 = vmatpush1.bf16.xpose.msra.mxu0 0
    %3200 = vmatprep.subr.bf16.mxu0 0
    %3201 = vmatpush1.bf16.xpose.msra.mxu0 0
    %3202 = vmatprep.subr.bf16.mxu0 0
    %3203 = vmatpush1.bf16.xpose.msra.mxu0 0
    %3204 = vmatprep.subr.bf16.mxu0 0
    %3205 = vmatpush1.bf16.xpose.msra.mxu0 0
    %3206 = vmatprep.subr.bf16.mxu0 0
    %3207 = vmatpush1.bf16.xpose.msra.mxu0 %v3190
    %3208 = vmatprep.subr.bf16.mxu0 0
    %3209 = vmatpush2.bf16.xpose.msra.mxu0 0
    %3210 = vmatprep.subr.bf16.mxu0 0
    %3211 = vmatpush2.bf16.xpose.msra.mxu0 0
    %3212 = vmatprep.subr.bf16.mxu0 0
    %3213 = vmatpush2.bf16.xpose.msra.mxu0 0
    %3214 = vmatprep.subr.bf16.mxu0 0
    %3215 = vmatpush2.bf16.xpose.msra.mxu0 0
    %3216 = vmatprep.subr.bf16.mxu0 0
    %3217 = vmatpush2.bf16.xpose.msra.mxu0 0
    %3218 = vmatprep.subr.bf16.mxu0 0
    %3219 = vmatpush2.bf16.xpose.msra.mxu0 0
    %3220 = vmatprep.subr.bf16.mxu0 0
    %3221 = vmatpush2.bf16.xpose.msra.mxu0 0
    %3222 = vmatprep.subr.bf16.mxu0 0
    %3223 = vmatpush2.bf16.xpose.msra.mxu0 0
    %3224 = vmatprep.mubr.bf16.mxu0 0
    %3225 = vmatmul.mubr.bf16.gmra.mxu0 %v3187
    %v3226 = vpop.f32.mrf.mxu0
    %v3227 = vadd.f32 0.0, %v3226
    %v3228 = vpop.f32.mrf.mxu0
    %v3229 = vpop.f32.mrf.mxu0
    %v3230 = vpop.f32.mrf.mxu0
    %3231 = vdwg.mxu0
    %3233 = vrot.lane.b32.xlu0 %v2496, 112
    %v3234 = vpop.permute.xlu0 %3233
    %v3236 = vsel %vm288, %v2496, 0
    %v3239 = vsel %vm288, %v3234, 0
    %3241 = vmatprep.subr.bf16.mxu0 0
    %3242 = vmatpush1.bf16.xpose.msra.mxu0 0
    %3243 = vmatprep.subr.bf16.mxu0 0
    %3244 = vmatpush1.bf16.xpose.msra.mxu0 0
    %3245 = vmatprep.subr.bf16.mxu0 0
    %3246 = vmatpush1.bf16.xpose.msra.mxu0 0
    %3247 = vmatprep.subr.bf16.mxu0 0
    %3248 = vmatpush1.bf16.xpose.msra.mxu0 0
    %3249 = vmatprep.subr.bf16.mxu0 0
    %3250 = vmatpush1.bf16.xpose.msra.mxu0 0
    %3251 = vmatprep.subr.bf16.mxu0 0
    %3252 = vmatpush1.bf16.xpose.msra.mxu0 0
    %3253 = vmatprep.subr.bf16.mxu0 0
    %3254 = vmatpush1.bf16.xpose.msra.mxu0 0
    %3255 = vmatprep.subr.bf16.mxu0 0
    %3256 = vmatpush1.bf16.xpose.msra.mxu0 %v3239
    %3257 = vmatprep.subr.bf16.mxu0 0
    %3258 = vmatpush2.bf16.xpose.msra.mxu0 0
    %3259 = vmatprep.subr.bf16.mxu0 0
    %3260 = vmatpush2.bf16.xpose.msra.mxu0 0
    %3261 = vmatprep.subr.bf16.mxu0 0
    %3262 = vmatpush2.bf16.xpose.msra.mxu0 0
    %3263 = vmatprep.subr.bf16.mxu0 0
    %3264 = vmatpush2.bf16.xpose.msra.mxu0 0
    %3265 = vmatprep.subr.bf16.mxu0 0
    %3266 = vmatpush2.bf16.xpose.msra.mxu0 0
    %3267 = vmatprep.subr.bf16.mxu0 0
    %3268 = vmatpush2.bf16.xpose.msra.mxu0 0
    %3269 = vmatprep.subr.bf16.mxu0 0
    %3270 = vmatpush2.bf16.xpose.msra.mxu0 0
    %3271 = vmatprep.subr.bf16.mxu0 0
    %3272 = vmatpush2.bf16.xpose.msra.mxu0 0
    %3273 = vmatprep.mubr.bf16.mxu0 0
    %3274 = vmatmul.mubr.bf16.gmra.mxu0 %v3236
    %v3275 = vpop.f32.mrf.mxu0
    %v3276 = vadd.f32 0.0, %v3275
    %v3277 = vpop.f32.mrf.mxu0
    %v3278 = vpop.f32.mrf.mxu0
    %v3279 = vpop.f32.mrf.mxu0
    %3280 = vdwg.mxu0
    %v3281 = vsel %vm1070, %v2541, -inf
    %3282 = vmax.xlane.f32.xlu0 %v3281
    %v3283 = vpop.xlane.xlu0 %3282
    %v3284 = vsel %vm1070, %v2590, -inf
    %3285 = vmax.xlane.f32.xlu0 %v3284
    %v3286 = vpop.xlane.xlu0 %3285
    %v3287 = vsel %vm1070, %v2639, -inf
    %3288 = vmax.xlane.f32.xlu0 %v3287
    %v3289 = vpop.xlane.xlu0 %3288
    %v3290 = vsel %vm1070, %v2688, -inf
    %3291 = vmax.xlane.f32.xlu0 %v3290
    %v3292 = vpop.xlane.xlu0 %3291
    %v3293 = vsel %vm1070, %v2737, -inf
    %3294 = vmax.xlane.f32.xlu0 %v3293
    %v3295 = vpop.xlane.xlu0 %3294
    %v3296 = vsel %vm1070, %v2786, -inf
    %3297 = vmax.xlane.f32.xlu0 %v3296
    %v3298 = vpop.xlane.xlu0 %3297
    %v3299 = vsel %vm1070, %v2835, -inf
    %3300 = vmax.xlane.f32.xlu0 %v3299
    %v3301 = vpop.xlane.xlu0 %3300
    %v3302 = vsel %vm1070, %v2884, -inf
    %3303 = vmax.xlane.f32.xlu0 %v3302
    %v3304 = vpop.xlane.xlu0 %3303
    %v3305 = vsel %vm1070, %v2933, -inf
    %3306 = vmax.xlane.f32.xlu0 %v3305
    %v3307 = vpop.xlane.xlu0 %3306
    %v3308 = vsel %vm1070, %v2982, -inf
    %3309 = vmax.xlane.f32.xlu0 %v3308
    %v3310 = vpop.xlane.xlu0 %3309
    %v3311 = vsel %vm1070, %v3031, -inf
    %3312 = vmax.xlane.f32.xlu0 %v3311
    %v3313 = vpop.xlane.xlu0 %3312
    %v3314 = vsel %vm1070, %v3080, -inf
    %3315 = vmax.xlane.f32.xlu0 %v3314
    %v3316 = vpop.xlane.xlu0 %3315
    %v3317 = vsel %vm1070, %v3129, -inf
    %3318 = vmax.xlane.f32.xlu0 %v3317
    %v3319 = vpop.xlane.xlu0 %3318
    %v3320 = vsel %vm1070, %v3178, -inf
    %3321 = vmax.xlane.f32.xlu0 %v3320
    %v3322 = vpop.xlane.xlu0 %3321
    %v3323 = vsel %vm1070, %v3227, -inf
    %3324 = vmax.xlane.f32.xlu0 %v3323
    %v3325 = vpop.xlane.xlu0 %3324
    %v3326 = vsel %vm1070, %v3276, -inf
    %3327 = vmax.xlane.f32.xlu0 %v3326
    %v3328 = vpop.xlane.xlu0 %3327
    %v3329 = vsub.f32 %v2541, %v3283
    %v3330 = vsub.f32 %v2590, %v3286
    %v3331 = vsub.f32 %v2639, %v3289
    %v3332 = vsub.f32 %v2688, %v3292
    %v3333 = vsub.f32 %v2737, %v3295
    %v3334 = vsub.f32 %v2786, %v3298
    %v3335 = vsub.f32 %v2835, %v3301
    %v3336 = vsub.f32 %v2884, %v3304
    %v3337 = vsub.f32 %v2933, %v3307
    %v3338 = vsub.f32 %v2982, %v3310
    %v3339 = vsub.f32 %v3031, %v3313
    %v3340 = vsub.f32 %v3080, %v3316
    %v3341 = vsub.f32 %v3129, %v3319
    %v3342 = vsub.f32 %v3178, %v3322
    %v3343 = vsub.f32 %v3227, %v3325
    %v3344 = vsub.f32 %v3276, %v3328
    %v3345 = vmul.f32 %v3329, 1.442695
    %v3346 = vpow.pop %v3345
    %v3347 = vmul.f32 %v3330, 1.442695
    %v3348 = vpow.pop %v3347
    %v3349 = vmul.f32 %v3331, 1.442695
    %v3350 = vpow.pop %v3349
    %v3351 = vmul.f32 %v3332, 1.442695
    %v3352 = vpow.pop %v3351
    %v3353 = vmul.f32 %v3333, 1.442695
    %v3354 = vpow.pop %v3353
    %v3355 = vmul.f32 %v3334, 1.442695
    %v3356 = vpow.pop %v3355
    %v3357 = vmul.f32 %v3335, 1.442695
    %v3358 = vpow.pop %v3357
    %v3359 = vmul.f32 %v3336, 1.442695
    %v3360 = vpow.pop %v3359
    %v3361 = vmul.f32 %v3337, 1.442695
    %v3362 = vpow.pop %v3361
    %v3363 = vmul.f32 %v3338, 1.442695
    %v3364 = vpow.pop %v3363
    %v3365 = vmul.f32 %v3339, 1.442695
    %v3366 = vpow.pop %v3365
    %v3367 = vmul.f32 %v3340, 1.442695
    %v3368 = vpow.pop %v3367
    %v3369 = vmul.f32 %v3341, 1.442695
    %v3370 = vpow.pop %v3369
    %v3371 = vmul.f32 %v3342, 1.442695
    %v3372 = vpow.pop %v3371
    %v3373 = vmul.f32 %v3343, 1.442695
    %v3374 = vpow.pop %v3373
    %v3375 = vmul.f32 %v3344, 1.442695
    %v3376 = vpow.pop %v3375
    %v3377 = vsel %vm1070, %v3346, 0.0
    %3378 = vadd.xlane.f32.xlu0 %v3377
    %v3379 = vpop.xlane.xlu0 %3378
    %v3380 = vsel %vm1070, %v3348, 0.0
    %3381 = vadd.xlane.f32.xlu0 %v3380
    %v3382 = vpop.xlane.xlu0 %3381
    %v3383 = vsel %vm1070, %v3350, 0.0
    %3384 = vadd.xlane.f32.xlu0 %v3383
    %v3385 = vpop.xlane.xlu0 %3384
    %v3386 = vsel %vm1070, %v3352, 0.0
    %3387 = vadd.xlane.f32.xlu0 %v3386
    %v3388 = vpop.xlane.xlu0 %3387
    %v3389 = vsel %vm1070, %v3354, 0.0
    %3390 = vadd.xlane.f32.xlu0 %v3389
    %v3391 = vpop.xlane.xlu0 %3390
    %v3392 = vsel %vm1070, %v3356, 0.0
    %3393 = vadd.xlane.f32.xlu0 %v3392
    %v3394 = vpop.xlane.xlu0 %3393
    %v3395 = vsel %vm1070, %v3358, 0.0
    %3396 = vadd.xlane.f32.xlu0 %v3395
    %v3397 = vpop.xlane.xlu0 %3396
    %v3398 = vsel %vm1070, %v3360, 0.0
    %3399 = vadd.xlane.f32.xlu0 %v3398
    %v3400 = vpop.xlane.xlu0 %3399
    %v3401 = vsel %vm1070, %v3362, 0.0
    %3402 = vadd.xlane.f32.xlu0 %v3401
    %v3403 = vpop.xlane.xlu0 %3402
    %v3404 = vsel %vm1070, %v3364, 0.0
    %3405 = vadd.xlane.f32.xlu0 %v3404
    %v3406 = vpop.xlane.xlu0 %3405
    %v3407 = vsel %vm1070, %v3366, 0.0
    %3408 = vadd.xlane.f32.xlu0 %v3407
    %v3409 = vpop.xlane.xlu0 %3408
    %v3410 = vsel %vm1070, %v3368, 0.0
    %3411 = vadd.xlane.f32.xlu0 %v3410
    %v3412 = vpop.xlane.xlu0 %3411
    %v3413 = vsel %vm1070, %v3370, 0.0
    %3414 = vadd.xlane.f32.xlu0 %v3413
    %v3415 = vpop.xlane.xlu0 %3414
    %v3416 = vsel %vm1070, %v3372, 0.0
    %3417 = vadd.xlane.f32.xlu0 %v3416
    %v3418 = vpop.xlane.xlu0 %3417
    %v3419 = vsel %vm1070, %v3374, 0.0
    %3420 = vadd.xlane.f32.xlu0 %v3419
    %v3421 = vpop.xlane.xlu0 %3420
    %v3422 = vsel %vm1070, %v3376, 0.0
    %3423 = vadd.xlane.f32.xlu0 %v3422
    %v3424 = vpop.xlane.xlu0 %3423
    %v3425 = vrcp.pop %v3379
    %v3426 = vrcp.pop %v3382
    %v3427 = vrcp.pop %v3385
    %v3428 = vrcp.pop %v3388
    %v3429 = vrcp.pop %v3391
    %v3430 = vrcp.pop %v3394
    %v3431 = vrcp.pop %v3397
    %v3432 = vrcp.pop %v3400
    %v3433 = vrcp.pop %v3403
    %v3434 = vrcp.pop %v3406
    %v3435 = vrcp.pop %v3409
    %v3436 = vrcp.pop %v3412
    %v3437 = vrcp.pop %v3415
    %v3438 = vrcp.pop %v3418
    %v3439 = vrcp.pop %v3421
    %v3440 = vrcp.pop %v3424
    %v3441 = vmul.f32 %v3346, %v3425
    %v3442 = vmul.f32 %v3348, %v3426
    %v3443 = vmul.f32 %v3350, %v3427
    %v3444 = vmul.f32 %v3352, %v3428
    %v3445 = vmul.f32 %v3354, %v3429
    %v3446 = vmul.f32 %v3356, %v3430
    %v3447 = vmul.f32 %v3358, %v3431
    %v3448 = vmul.f32 %v3360, %v3432
    %v3449 = vmul.f32 %v3362, %v3433
    %v3450 = vmul.f32 %v3364, %v3434
    %v3451 = vmul.f32 %v3366, %v3435
    %v3452 = vmul.f32 %v3368, %v3436
    %v3453 = vmul.f32 %v3370, %v3437
    %v3454 = vmul.f32 %v3372, %v3438
    %v3455 = vmul.f32 %v3374, %v3439
    %v3456 = vmul.f32 %v3376, %v3440
    %v3457 = vpack.c.bf16 %v3441, %v3441
    %v3458 = vpack.c.bf16 %v3442, %v3442
    %v3459 = vpack.c.bf16 %v3443, %v3443
    %v3460 = vpack.c.bf16 %v3444, %v3444
    %v3461 = vpack.c.bf16 %v3445, %v3445
    %v3462 = vpack.c.bf16 %v3446, %v3446
    %v3463 = vpack.c.bf16 %v3447, %v3447
    %v3464 = vpack.c.bf16 %v3448, %v3448
    %v3465 = vpack.c.bf16 %v3449, %v3449
    %v3466 = vpack.c.bf16 %v3450, %v3450
    %v3467 = vpack.c.bf16 %v3451, %v3451
    %v3468 = vpack.c.bf16 %v3452, %v3452
    %v3469 = vpack.c.bf16 %v3453, %v3453
    %v3470 = vpack.c.bf16 %v3454, %v3454
    %v3471 = vpack.c.bf16 %v3455, %v3455
    %v3472 = vpack.c.bf16 %v3456, %v3456
    %3473 = vrot.lane.b32.xlu0 %v2481, 96
    %v3474 = vpop.permute.xlu0 %3473
    %v3476 = vsel %vm1070, %v3457, 0
    %v3479 = vsel %vm1268, %v3474, 0
    %3481 = vmatprep.subr.bf16.mxu0 0
    %3482 = vmatpush1.bf16.msra.mxu0 0
    %3483 = vmatprep.subr.bf16.mxu0 0
    %3484 = vmatpush1.bf16.msra.mxu0 0
    %3485 = vmatprep.subr.bf16.mxu0 0
    %3486 = vmatpush1.bf16.msra.mxu0 0
    %3487 = vmatprep.subr.bf16.mxu0 0
    %3488 = vmatpush1.bf16.msra.mxu0 0
    %3489 = vmatprep.subr.bf16.mxu0 0
    %3490 = vmatpush1.bf16.msra.mxu0 0
    %3491 = vmatprep.subr.bf16.mxu0 0
    %3492 = vmatpush1.bf16.msra.mxu0 0
    %3493 = vmatprep.subr.bf16.mxu0 0
    %3494 = vmatpush1.bf16.msra.mxu0 0
    %3495 = vmatprep.subr.bf16.mxu0 0
    %3496 = vmatpush1.bf16.msra.mxu0 %v3479
    %3497 = vmatprep.subr.bf16.mxu0 0
    %3498 = vmatpush2.bf16.msra.mxu0 0
    %3499 = vmatprep.subr.bf16.mxu0 0
    %3500 = vmatpush2.bf16.msra.mxu0 0
    %3501 = vmatprep.subr.bf16.mxu0 0
    %3502 = vmatpush2.bf16.msra.mxu0 0
    %3503 = vmatprep.subr.bf16.mxu0 0
    %3504 = vmatpush2.bf16.msra.mxu0 0
    %3505 = vmatprep.subr.bf16.mxu0 0
    %3506 = vmatpush2.bf16.msra.mxu0 0
    %3507 = vmatprep.subr.bf16.mxu0 0
    %3508 = vmatpush2.bf16.msra.mxu0 0
    %3509 = vmatprep.subr.bf16.mxu0 0
    %3510 = vmatpush2.bf16.msra.mxu0 0
    %3511 = vmatprep.subr.bf16.mxu0 0
    %3512 = vmatpush2.bf16.msra.mxu0 0
    %3513 = vmatprep.mubr.bf16.mxu0 0
    %3514 = vmatmul.mubr.bf16.gmra.mxu0 %v3476
    %v3515 = vpop.f32.mrf.mxu0
    %v3516 = vadd.f32 0.0, %v3515
    %v3517 = vpop.f32.mrf.mxu0
    %v3518 = vpop.f32.mrf.mxu0
    %v3519 = vpop.f32.mrf.mxu0
    %3520 = vdwg.mxu0
    %3521 = vrot.lane.b32.xlu0 %v2482, 96
    %v3522 = vpop.permute.xlu0 %3521
    %v3524 = vsel %vm1070, %v3458, 0
    %v3527 = vsel %vm1268, %v3522, 0
    %3529 = vmatprep.subr.bf16.mxu0 0
    %3530 = vmatpush1.bf16.msra.mxu0 0
    %3531 = vmatprep.subr.bf16.mxu0 0
    %3532 = vmatpush1.bf16.msra.mxu0 0
    %3533 = vmatprep.subr.bf16.mxu0 0
    %3534 = vmatpush1.bf16.msra.mxu0 0
    %3535 = vmatprep.subr.bf16.mxu0 0
    %3536 = vmatpush1.bf16.msra.mxu0 0
    %3537 = vmatprep.subr.bf16.mxu0 0
    %3538 = vmatpush1.bf16.msra.mxu0 0
    %3539 = vmatprep.subr.bf16.mxu0 0
    %3540 = vmatpush1.bf16.msra.mxu0 0
    %3541 = vmatprep.subr.bf16.mxu0 0
    %3542 = vmatpush1.bf16.msra.mxu0 0
    %3543 = vmatprep.subr.bf16.mxu0 0
    %3544 = vmatpush1.bf16.msra.mxu0 %v3527
    %3545 = vmatprep.subr.bf16.mxu0 0
    %3546 = vmatpush2.bf16.msra.mxu0 0
    %3547 = vmatprep.subr.bf16.mxu0 0
    %3548 = vmatpush2.bf16.msra.mxu0 0
    %3549 = vmatprep.subr.bf16.mxu0 0
    %3550 = vmatpush2.bf16.msra.mxu0 0
    %3551 = vmatprep.subr.bf16.mxu0 0
    %3552 = vmatpush2.bf16.msra.mxu0 0
    %3553 = vmatprep.subr.bf16.mxu0 0
    %3554 = vmatpush2.bf16.msra.mxu0 0
    %3555 = vmatprep.subr.bf16.mxu0 0
    %3556 = vmatpush2.bf16.msra.mxu0 0
    %3557 = vmatprep.subr.bf16.mxu0 0
    %3558 = vmatpush2.bf16.msra.mxu0 0
    %3559 = vmatprep.subr.bf16.mxu0 0
    %3560 = vmatpush2.bf16.msra.mxu0 0
    %3561 = vmatprep.mubr.bf16.mxu0 0
    %3562 = vmatmul.mubr.bf16.gmra.mxu0 %v3524
    %v3563 = vpop.f32.mrf.mxu0
    %v3564 = vadd.f32 0.0, %v3563
    %v3565 = vpop.f32.mrf.mxu0
    %v3566 = vpop.f32.mrf.mxu0
    %v3567 = vpop.f32.mrf.mxu0
    %3568 = vdwg.mxu0
    %3569 = vrot.lane.b32.xlu0 %v2483, 96
    %v3570 = vpop.permute.xlu0 %3569
    %v3572 = vsel %vm1070, %v3459, 0
    %v3575 = vsel %vm1268, %v3570, 0
    %3577 = vmatprep.subr.bf16.mxu0 0
    %3578 = vmatpush1.bf16.msra.mxu0 0
    %3579 = vmatprep.subr.bf16.mxu0 0
    %3580 = vmatpush1.bf16.msra.mxu0 0
    %3581 = vmatprep.subr.bf16.mxu0 0
    %3582 = vmatpush1.bf16.msra.mxu0 0
    %3583 = vmatprep.subr.bf16.mxu0 0
    %3584 = vmatpush1.bf16.msra.mxu0 0
    %3585 = vmatprep.subr.bf16.mxu0 0
    %3586 = vmatpush1.bf16.msra.mxu0 0
    %3587 = vmatprep.subr.bf16.mxu0 0
    %3588 = vmatpush1.bf16.msra.mxu0 0
    %3589 = vmatprep.subr.bf16.mxu0 0
    %3590 = vmatpush1.bf16.msra.mxu0 0
    %3591 = vmatprep.subr.bf16.mxu0 0
    %3592 = vmatpush1.bf16.msra.mxu0 %v3575
    %3593 = vmatprep.subr.bf16.mxu0 0
    %3594 = vmatpush2.bf16.msra.mxu0 0
    %3595 = vmatprep.subr.bf16.mxu0 0
    %3596 = vmatpush2.bf16.msra.mxu0 0
    %3597 = vmatprep.subr.bf16.mxu0 0
    %3598 = vmatpush2.bf16.msra.mxu0 0
    %3599 = vmatprep.subr.bf16.mxu0 0
    %3600 = vmatpush2.bf16.msra.mxu0 0
    %3601 = vmatprep.subr.bf16.mxu0 0
    %3602 = vmatpush2.bf16.msra.mxu0 0
    %3603 = vmatprep.subr.bf16.mxu0 0
    %3604 = vmatpush2.bf16.msra.mxu0 0
    %3605 = vmatprep.subr.bf16.mxu0 0
    %3606 = vmatpush2.bf16.msra.mxu0 0
    %3607 = vmatprep.subr.bf16.mxu0 0
    %3608 = vmatpush2.bf16.msra.mxu0 0
    %3609 = vmatprep.mubr.bf16.mxu0 0
    %3610 = vmatmul.mubr.bf16.gmra.mxu0 %v3572
    %v3611 = vpop.f32.mrf.mxu0
    %v3612 = vadd.f32 0.0, %v3611
    %v3613 = vpop.f32.mrf.mxu0
    %v3614 = vpop.f32.mrf.mxu0
    %v3615 = vpop.f32.mrf.mxu0
    %3616 = vdwg.mxu0
    %3617 = vrot.lane.b32.xlu0 %v2484, 96
    %v3618 = vpop.permute.xlu0 %3617
    %v3620 = vsel %vm1070, %v3460, 0
    %v3623 = vsel %vm1268, %v3618, 0
    %3625 = vmatprep.subr.bf16.mxu0 0
    %3626 = vmatpush1.bf16.msra.mxu0 0
    %3627 = vmatprep.subr.bf16.mxu0 0
    %3628 = vmatpush1.bf16.msra.mxu0 0
    %3629 = vmatprep.subr.bf16.mxu0 0
    %3630 = vmatpush1.bf16.msra.mxu0 0
    %3631 = vmatprep.subr.bf16.mxu0 0
    %3632 = vmatpush1.bf16.msra.mxu0 0
    %3633 = vmatprep.subr.bf16.mxu0 0
    %3634 = vmatpush1.bf16.msra.mxu0 0
    %3635 = vmatprep.subr.bf16.mxu0 0
    %3636 = vmatpush1.bf16.msra.mxu0 0
    %3637 = vmatprep.subr.bf16.mxu0 0
    %3638 = vmatpush1.bf16.msra.mxu0 0
    %3639 = vmatprep.subr.bf16.mxu0 0
    %3640 = vmatpush1.bf16.msra.mxu0 %v3623
    %3641 = vmatprep.subr.bf16.mxu0 0
    %3642 = vmatpush2.bf16.msra.mxu0 0
    %3643 = vmatprep.subr.bf16.mxu0 0
    %3644 = vmatpush2.bf16.msra.mxu0 0
    %3645 = vmatprep.subr.bf16.mxu0 0
    %3646 = vmatpush2.bf16.msra.mxu0 0
    %3647 = vmatprep.subr.bf16.mxu0 0
    %3648 = vmatpush2.bf16.msra.mxu0 0
    %3649 = vmatprep.subr.bf16.mxu0 0
    %3650 = vmatpush2.bf16.msra.mxu0 0
    %3651 = vmatprep.subr.bf16.mxu0 0
    %3652 = vmatpush2.bf16.msra.mxu0 0
    %3653 = vmatprep.subr.bf16.mxu0 0
    %3654 = vmatpush2.bf16.msra.mxu0 0
    %3655 = vmatprep.subr.bf16.mxu0 0
    %3656 = vmatpush2.bf16.msra.mxu0 0
    %3657 = vmatprep.mubr.bf16.mxu0 0
    %3658 = vmatmul.mubr.bf16.gmra.mxu0 %v3620
    %v3659 = vpop.f32.mrf.mxu0
    %v3660 = vadd.f32 0.0, %v3659
    %v3661 = vpop.f32.mrf.mxu0
    %v3662 = vpop.f32.mrf.mxu0
    %v3663 = vpop.f32.mrf.mxu0
    %3664 = vdwg.mxu0
    %3665 = vrot.lane.b32.xlu0 %v2485, 96
    %v3666 = vpop.permute.xlu0 %3665
    %v3668 = vsel %vm1070, %v3461, 0
    %v3671 = vsel %vm1268, %v3666, 0
    %3673 = vmatprep.subr.bf16.mxu0 0
    %3674 = vmatpush1.bf16.msra.mxu0 0
    %3675 = vmatprep.subr.bf16.mxu0 0
    %3676 = vmatpush1.bf16.msra.mxu0 0
    %3677 = vmatprep.subr.bf16.mxu0 0
    %3678 = vmatpush1.bf16.msra.mxu0 0
    %3679 = vmatprep.subr.bf16.mxu0 0
    %3680 = vmatpush1.bf16.msra.mxu0 0
    %3681 = vmatprep.subr.bf16.mxu0 0
    %3682 = vmatpush1.bf16.msra.mxu0 0
    %3683 = vmatprep.subr.bf16.mxu0 0
    %3684 = vmatpush1.bf16.msra.mxu0 0
    %3685 = vmatprep.subr.bf16.mxu0 0
    %3686 = vmatpush1.bf16.msra.mxu0 0
    %3687 = vmatprep.subr.bf16.mxu0 0
    %3688 = vmatpush1.bf16.msra.mxu0 %v3671
    %3689 = vmatprep.subr.bf16.mxu0 0
    %3690 = vmatpush2.bf16.msra.mxu0 0
    %3691 = vmatprep.subr.bf16.mxu0 0
    %3692 = vmatpush2.bf16.msra.mxu0 0
    %3693 = vmatprep.subr.bf16.mxu0 0
    %3694 = vmatpush2.bf16.msra.mxu0 0
    %3695 = vmatprep.subr.bf16.mxu0 0
    %3696 = vmatpush2.bf16.msra.mxu0 0
    %3697 = vmatprep.subr.bf16.mxu0 0
    %3698 = vmatpush2.bf16.msra.mxu0 0
    %3699 = vmatprep.subr.bf16.mxu0 0
    %3700 = vmatpush2.bf16.msra.mxu0 0
    %3701 = vmatprep.subr.bf16.mxu0 0
    %3702 = vmatpush2.bf16.msra.mxu0 0
    %3703 = vmatprep.subr.bf16.mxu0 0
    %3704 = vmatpush2.bf16.msra.mxu0 0
    %3705 = vmatprep.mubr.bf16.mxu0 0
    %3706 = vmatmul.mubr.bf16.gmra.mxu0 %v3668
    %v3707 = vpop.f32.mrf.mxu0
    %v3708 = vadd.f32 0.0, %v3707
    %v3709 = vpop.f32.mrf.mxu0
    %v3710 = vpop.f32.mrf.mxu0
    %v3711 = vpop.f32.mrf.mxu0
    %3712 = vdwg.mxu0
    %3713 = vrot.lane.b32.xlu0 %v2486, 96
    %v3714 = vpop.permute.xlu0 %3713
    %v3716 = vsel %vm1070, %v3462, 0
    %v3719 = vsel %vm1268, %v3714, 0
    %3721 = vmatprep.subr.bf16.mxu0 0
    %3722 = vmatpush1.bf16.msra.mxu0 0
    %3723 = vmatprep.subr.bf16.mxu0 0
    %3724 = vmatpush1.bf16.msra.mxu0 0
    %3725 = vmatprep.subr.bf16.mxu0 0
    %3726 = vmatpush1.bf16.msra.mxu0 0
    %3727 = vmatprep.subr.bf16.mxu0 0
    %3728 = vmatpush1.bf16.msra.mxu0 0
    %3729 = vmatprep.subr.bf16.mxu0 0
    %3730 = vmatpush1.bf16.msra.mxu0 0
    %3731 = vmatprep.subr.bf16.mxu0 0
    %3732 = vmatpush1.bf16.msra.mxu0 0
    %3733 = vmatprep.subr.bf16.mxu0 0
    %3734 = vmatpush1.bf16.msra.mxu0 0
    %3735 = vmatprep.subr.bf16.mxu0 0
    %3736 = vmatpush1.bf16.msra.mxu0 %v3719
    %3737 = vmatprep.subr.bf16.mxu0 0
    %3738 = vmatpush2.bf16.msra.mxu0 0
    %3739 = vmatprep.subr.bf16.mxu0 0
    %3740 = vmatpush2.bf16.msra.mxu0 0
    %3741 = vmatprep.subr.bf16.mxu0 0
    %3742 = vmatpush2.bf16.msra.mxu0 0
    %3743 = vmatprep.subr.bf16.mxu0 0
    %3744 = vmatpush2.bf16.msra.mxu0 0
    %3745 = vmatprep.subr.bf16.mxu0 0
    %3746 = vmatpush2.bf16.msra.mxu0 0
    %3747 = vmatprep.subr.bf16.mxu0 0
    %3748 = vmatpush2.bf16.msra.mxu0 0
    %3749 = vmatprep.subr.bf16.mxu0 0
    %3750 = vmatpush2.bf16.msra.mxu0 0
    %3751 = vmatprep.subr.bf16.mxu0 0
    %3752 = vmatpush2.bf16.msra.mxu0 0
    %3753 = vmatprep.mubr.bf16.mxu0 0
    %3754 = vmatmul.mubr.bf16.gmra.mxu0 %v3716
    %v3755 = vpop.f32.mrf.mxu0
    %v3756 = vadd.f32 0.0, %v3755
    %v3757 = vpop.f32.mrf.mxu0
    %v3758 = vpop.f32.mrf.mxu0
    %v3759 = vpop.f32.mrf.mxu0
    %3760 = vdwg.mxu0
    %3761 = vrot.lane.b32.xlu0 %v2487, 96
    %v3762 = vpop.permute.xlu0 %3761
    %v3764 = vsel %vm1070, %v3463, 0
    %v3767 = vsel %vm1268, %v3762, 0
    %3769 = vmatprep.subr.bf16.mxu0 0
    %3770 = vmatpush1.bf16.msra.mxu0 0
    %3771 = vmatprep.subr.bf16.mxu0 0
    %3772 = vmatpush1.bf16.msra.mxu0 0
    %3773 = vmatprep.subr.bf16.mxu0 0
    %3774 = vmatpush1.bf16.msra.mxu0 0
    %3775 = vmatprep.subr.bf16.mxu0 0
    %3776 = vmatpush1.bf16.msra.mxu0 0
    %3777 = vmatprep.subr.bf16.mxu0 0
    %3778 = vmatpush1.bf16.msra.mxu0 0
    %3779 = vmatprep.subr.bf16.mxu0 0
    %3780 = vmatpush1.bf16.msra.mxu0 0
    %3781 = vmatprep.subr.bf16.mxu0 0
    %3782 = vmatpush1.bf16.msra.mxu0 0
    %3783 = vmatprep.subr.bf16.mxu0 0
    %3784 = vmatpush1.bf16.msra.mxu0 %v3767
    %3785 = vmatprep.subr.bf16.mxu0 0
    %3786 = vmatpush2.bf16.msra.mxu0 0
    %3787 = vmatprep.subr.bf16.mxu0 0
    %3788 = vmatpush2.bf16.msra.mxu0 0
    %3789 = vmatprep.subr.bf16.mxu0 0
    %3790 = vmatpush2.bf16.msra.mxu0 0
    %3791 = vmatprep.subr.bf16.mxu0 0
    %3792 = vmatpush2.bf16.msra.mxu0 0
    %3793 = vmatprep.subr.bf16.mxu0 0
    %3794 = vmatpush2.bf16.msra.mxu0 0
    %3795 = vmatprep.subr.bf16.mxu0 0
    %3796 = vmatpush2.bf16.msra.mxu0 0
    %3797 = vmatprep.subr.bf16.mxu0 0
    %3798 = vmatpush2.bf16.msra.mxu0 0
    %3799 = vmatprep.subr.bf16.mxu0 0
    %3800 = vmatpush2.bf16.msra.mxu0 0
    %3801 = vmatprep.mubr.bf16.mxu0 0
    %3802 = vmatmul.mubr.bf16.gmra.mxu0 %v3764
    %v3803 = vpop.f32.mrf.mxu0
    %v3804 = vadd.f32 0.0, %v3803
    %v3805 = vpop.f32.mrf.mxu0
    %v3806 = vpop.f32.mrf.mxu0
    %v3807 = vpop.f32.mrf.mxu0
    %3808 = vdwg.mxu0
    %3809 = vrot.lane.b32.xlu0 %v2488, 96
    %v3810 = vpop.permute.xlu0 %3809
    %v3812 = vsel %vm1070, %v3464, 0
    %v3815 = vsel %vm1268, %v3810, 0
    %3817 = vmatprep.subr.bf16.mxu0 0
    %3818 = vmatpush1.bf16.msra.mxu0 0
    %3819 = vmatprep.subr.bf16.mxu0 0
    %3820 = vmatpush1.bf16.msra.mxu0 0
    %3821 = vmatprep.subr.bf16.mxu0 0
    %3822 = vmatpush1.bf16.msra.mxu0 0
    %3823 = vmatprep.subr.bf16.mxu0 0
    %3824 = vmatpush1.bf16.msra.mxu0 0
    %3825 = vmatprep.subr.bf16.mxu0 0
    %3826 = vmatpush1.bf16.msra.mxu0 0
    %3827 = vmatprep.subr.bf16.mxu0 0
    %3828 = vmatpush1.bf16.msra.mxu0 0
    %3829 = vmatprep.subr.bf16.mxu0 0
    %3830 = vmatpush1.bf16.msra.mxu0 0
    %3831 = vmatprep.subr.bf16.mxu0 0
    %3832 = vmatpush1.bf16.msra.mxu0 %v3815
    %3833 = vmatprep.subr.bf16.mxu0 0
    %3834 = vmatpush2.bf16.msra.mxu0 0
    %3835 = vmatprep.subr.bf16.mxu0 0
    %3836 = vmatpush2.bf16.msra.mxu0 0
    %3837 = vmatprep.subr.bf16.mxu0 0
    %3838 = vmatpush2.bf16.msra.mxu0 0
    %3839 = vmatprep.subr.bf16.mxu0 0
    %3840 = vmatpush2.bf16.msra.mxu0 0
    %3841 = vmatprep.subr.bf16.mxu0 0
    %3842 = vmatpush2.bf16.msra.mxu0 0
    %3843 = vmatprep.subr.bf16.mxu0 0
    %3844 = vmatpush2.bf16.msra.mxu0 0
    %3845 = vmatprep.subr.bf16.mxu0 0
    %3846 = vmatpush2.bf16.msra.mxu0 0
    %3847 = vmatprep.subr.bf16.mxu0 0
    %3848 = vmatpush2.bf16.msra.mxu0 0
    %3849 = vmatprep.mubr.bf16.mxu0 0
    %3850 = vmatmul.mubr.bf16.gmra.mxu0 %v3812
    %v3851 = vpop.f32.mrf.mxu0
    %v3852 = vadd.f32 0.0, %v3851
    %v3853 = vpop.f32.mrf.mxu0
    %v3854 = vpop.f32.mrf.mxu0
    %v3855 = vpop.f32.mrf.mxu0
    %3856 = vdwg.mxu0
    %3857 = vrot.lane.b32.xlu0 %v2489, 96
    %v3858 = vpop.permute.xlu0 %3857
    %v3860 = vsel %vm1070, %v3465, 0
    %v3863 = vsel %vm1268, %v3858, 0
    %3865 = vmatprep.subr.bf16.mxu0 0
    %3866 = vmatpush1.bf16.msra.mxu0 0
    %3867 = vmatprep.subr.bf16.mxu0 0
    %3868 = vmatpush1.bf16.msra.mxu0 0
    %3869 = vmatprep.subr.bf16.mxu0 0
    %3870 = vmatpush1.bf16.msra.mxu0 0
    %3871 = vmatprep.subr.bf16.mxu0 0
    %3872 = vmatpush1.bf16.msra.mxu0 0
    %3873 = vmatprep.subr.bf16.mxu0 0
    %3874 = vmatpush1.bf16.msra.mxu0 0
    %3875 = vmatprep.subr.bf16.mxu0 0
    %3876 = vmatpush1.bf16.msra.mxu0 0
    %3877 = vmatprep.subr.bf16.mxu0 0
    %3878 = vmatpush1.bf16.msra.mxu0 0
    %3879 = vmatprep.subr.bf16.mxu0 0
    %3880 = vmatpush1.bf16.msra.mxu0 %v3863
    %3881 = vmatprep.subr.bf16.mxu0 0
    %3882 = vmatpush2.bf16.msra.mxu0 0
    %3883 = vmatprep.subr.bf16.mxu0 0
    %3884 = vmatpush2.bf16.msra.mxu0 0
    %3885 = vmatprep.subr.bf16.mxu0 0
    %3886 = vmatpush2.bf16.msra.mxu0 0
    %3887 = vmatprep.subr.bf16.mxu0 0
    %3888 = vmatpush2.bf16.msra.mxu0 0
    %3889 = vmatprep.subr.bf16.mxu0 0
    %3890 = vmatpush2.bf16.msra.mxu0 0
    %3891 = vmatprep.subr.bf16.mxu0 0
    %3892 = vmatpush2.bf16.msra.mxu0 0
    %3893 = vmatprep.subr.bf16.mxu0 0
    %3894 = vmatpush2.bf16.msra.mxu0 0
    %3895 = vmatprep.subr.bf16.mxu0 0
    %3896 = vmatpush2.bf16.msra.mxu0 0
    %3897 = vmatprep.mubr.bf16.mxu0 0
    %3898 = vmatmul.mubr.bf16.gmra.mxu0 %v3860
    %v3899 = vpop.f32.mrf.mxu0
    %v3900 = vadd.f32 0.0, %v3899
    %v3901 = vpop.f32.mrf.mxu0
    %v3902 = vpop.f32.mrf.mxu0
    %v3903 = vpop.f32.mrf.mxu0
    %3904 = vdwg.mxu0
    %3905 = vrot.lane.b32.xlu0 %v2490, 96
    %v3906 = vpop.permute.xlu0 %3905
    %v3908 = vsel %vm1070, %v3466, 0
    %v3911 = vsel %vm1268, %v3906, 0
    %3913 = vmatprep.subr.bf16.mxu0 0
    %3914 = vmatpush1.bf16.msra.mxu0 0
    %3915 = vmatprep.subr.bf16.mxu0 0
    %3916 = vmatpush1.bf16.msra.mxu0 0
    %3917 = vmatprep.subr.bf16.mxu0 0
    %3918 = vmatpush1.bf16.msra.mxu0 0
    %3919 = vmatprep.subr.bf16.mxu0 0
    %3920 = vmatpush1.bf16.msra.mxu0 0
    %3921 = vmatprep.subr.bf16.mxu0 0
    %3922 = vmatpush1.bf16.msra.mxu0 0
    %3923 = vmatprep.subr.bf16.mxu0 0
    %3924 = vmatpush1.bf16.msra.mxu0 0
    %3925 = vmatprep.subr.bf16.mxu0 0
    %3926 = vmatpush1.bf16.msra.mxu0 0
    %3927 = vmatprep.subr.bf16.mxu0 0
    %3928 = vmatpush1.bf16.msra.mxu0 %v3911
    %3929 = vmatprep.subr.bf16.mxu0 0
    %3930 = vmatpush2.bf16.msra.mxu0 0
    %3931 = vmatprep.subr.bf16.mxu0 0
    %3932 = vmatpush2.bf16.msra.mxu0 0
    %3933 = vmatprep.subr.bf16.mxu0 0
    %3934 = vmatpush2.bf16.msra.mxu0 0
    %3935 = vmatprep.subr.bf16.mxu0 0
    %3936 = vmatpush2.bf16.msra.mxu0 0
    %3937 = vmatprep.subr.bf16.mxu0 0
    %3938 = vmatpush2.bf16.msra.mxu0 0
    %3939 = vmatprep.subr.bf16.mxu0 0
    %3940 = vmatpush2.bf16.msra.mxu0 0
    %3941 = vmatprep.subr.bf16.mxu0 0
    %3942 = vmatpush2.bf16.msra.mxu0 0
    %3943 = vmatprep.subr.bf16.mxu0 0
    %3944 = vmatpush2.bf16.msra.mxu0 0
    %3945 = vmatprep.mubr.bf16.mxu0 0
    %3946 = vmatmul.mubr.bf16.gmra.mxu0 %v3908
    %v3947 = vpop.f32.mrf.mxu0
    %v3948 = vadd.f32 0.0, %v3947
    %v3949 = vpop.f32.mrf.mxu0
    %v3950 = vpop.f32.mrf.mxu0
    %v3951 = vpop.f32.mrf.mxu0
    %3952 = vdwg.mxu0
    %3953 = vrot.lane.b32.xlu0 %v2491, 96
    %v3954 = vpop.permute.xlu0 %3953
    %v3956 = vsel %vm1070, %v3467, 0
    %v3959 = vsel %vm1268, %v3954, 0
    %3961 = vmatprep.subr.bf16.mxu0 0
    %3962 = vmatpush1.bf16.msra.mxu0 0
    %3963 = vmatprep.subr.bf16.mxu0 0
    %3964 = vmatpush1.bf16.msra.mxu0 0
    %3965 = vmatprep.subr.bf16.mxu0 0
    %3966 = vmatpush1.bf16.msra.mxu0 0
    %3967 = vmatprep.subr.bf16.mxu0 0
    %3968 = vmatpush1.bf16.msra.mxu0 0
    %3969 = vmatprep.subr.bf16.mxu0 0
    %3970 = vmatpush1.bf16.msra.mxu0 0
    %3971 = vmatprep.subr.bf16.mxu0 0
    %3972 = vmatpush1.bf16.msra.mxu0 0
    %3973 = vmatprep.subr.bf16.mxu0 0
    %3974 = vmatpush1.bf16.msra.mxu0 0
    %3975 = vmatprep.subr.bf16.mxu0 0
    %3976 = vmatpush1.bf16.msra.mxu0 %v3959
    %3977 = vmatprep.subr.bf16.mxu0 0
    %3978 = vmatpush2.bf16.msra.mxu0 0
    %3979 = vmatprep.subr.bf16.mxu0 0
    %3980 = vmatpush2.bf16.msra.mxu0 0
    %3981 = vmatprep.subr.bf16.mxu0 0
    %3982 = vmatpush2.bf16.msra.mxu0 0
    %3983 = vmatprep.subr.bf16.mxu0 0
    %3984 = vmatpush2.bf16.msra.mxu0 0
    %3985 = vmatprep.subr.bf16.mxu0 0
    %3986 = vmatpush2.bf16.msra.mxu0 0
    %3987 = vmatprep.subr.bf16.mxu0 0
    %3988 = vmatpush2.bf16.msra.mxu0 0
    %3989 = vmatprep.subr.bf16.mxu0 0
    %3990 = vmatpush2.bf16.msra.mxu0 0
    %3991 = vmatprep.subr.bf16.mxu0 0
    %3992 = vmatpush2.bf16.msra.mxu0 0
    %3993 = vmatprep.mubr.bf16.mxu0 0
    %3994 = vmatmul.mubr.bf16.gmra.mxu0 %v3956
    %v3995 = vpop.f32.mrf.mxu0
    %v3996 = vadd.f32 0.0, %v3995
    %v3997 = vpop.f32.mrf.mxu0
    %v3998 = vpop.f32.mrf.mxu0
    %v3999 = vpop.f32.mrf.mxu0
    %4000 = vdwg.mxu0
    %4001 = vrot.lane.b32.xlu0 %v2492, 96
    %v4002 = vpop.permute.xlu0 %4001
    %v4004 = vsel %vm1070, %v3468, 0
    %v4007 = vsel %vm1268, %v4002, 0
    %4009 = vmatprep.subr.bf16.mxu0 0
    %4010 = vmatpush1.bf16.msra.mxu0 0
    %4011 = vmatprep.subr.bf16.mxu0 0
    %4012 = vmatpush1.bf16.msra.mxu0 0
    %4013 = vmatprep.subr.bf16.mxu0 0
    %4014 = vmatpush1.bf16.msra.mxu0 0
    %4015 = vmatprep.subr.bf16.mxu0 0
    %4016 = vmatpush1.bf16.msra.mxu0 0
    %4017 = vmatprep.subr.bf16.mxu0 0
    %4018 = vmatpush1.bf16.msra.mxu0 0
    %4019 = vmatprep.subr.bf16.mxu0 0
    %4020 = vmatpush1.bf16.msra.mxu0 0
    %4021 = vmatprep.subr.bf16.mxu0 0
    %4022 = vmatpush1.bf16.msra.mxu0 0
    %4023 = vmatprep.subr.bf16.mxu0 0
    %4024 = vmatpush1.bf16.msra.mxu0 %v4007
    %4025 = vmatprep.subr.bf16.mxu0 0
    %4026 = vmatpush2.bf16.msra.mxu0 0
    %4027 = vmatprep.subr.bf16.mxu0 0
    %4028 = vmatpush2.bf16.msra.mxu0 0
    %4029 = vmatprep.subr.bf16.mxu0 0
    %4030 = vmatpush2.bf16.msra.mxu0 0
    %4031 = vmatprep.subr.bf16.mxu0 0
    %4032 = vmatpush2.bf16.msra.mxu0 0
    %4033 = vmatprep.subr.bf16.mxu0 0
    %4034 = vmatpush2.bf16.msra.mxu0 0
    %4035 = vmatprep.subr.bf16.mxu0 0
    %4036 = vmatpush2.bf16.msra.mxu0 0
    %4037 = vmatprep.subr.bf16.mxu0 0
    %4038 = vmatpush2.bf16.msra.mxu0 0
    %4039 = vmatprep.subr.bf16.mxu0 0
    %4040 = vmatpush2.bf16.msra.mxu0 0
    %4041 = vmatprep.mubr.bf16.mxu0 0
    %4042 = vmatmul.mubr.bf16.gmra.mxu0 %v4004
    %v4043 = vpop.f32.mrf.mxu0
    %v4044 = vadd.f32 0.0, %v4043
    %v4045 = vpop.f32.mrf.mxu0
    %v4046 = vpop.f32.mrf.mxu0
    %v4047 = vpop.f32.mrf.mxu0
    %4048 = vdwg.mxu0
    %4049 = vrot.lane.b32.xlu0 %v2493, 96
    %v4050 = vpop.permute.xlu0 %4049
    %v4052 = vsel %vm1070, %v3469, 0
    %v4055 = vsel %vm1268, %v4050, 0
    %4057 = vmatprep.subr.bf16.mxu0 0
    %4058 = vmatpush1.bf16.msra.mxu0 0
    %4059 = vmatprep.subr.bf16.mxu0 0
    %4060 = vmatpush1.bf16.msra.mxu0 0
    %4061 = vmatprep.subr.bf16.mxu0 0
    %4062 = vmatpush1.bf16.msra.mxu0 0
    %4063 = vmatprep.subr.bf16.mxu0 0
    %4064 = vmatpush1.bf16.msra.mxu0 0
    %4065 = vmatprep.subr.bf16.mxu0 0
    %4066 = vmatpush1.bf16.msra.mxu0 0
    %4067 = vmatprep.subr.bf16.mxu0 0
    %4068 = vmatpush1.bf16.msra.mxu0 0
    %4069 = vmatprep.subr.bf16.mxu0 0
    %4070 = vmatpush1.bf16.msra.mxu0 0
    %4071 = vmatprep.subr.bf16.mxu0 0
    %4072 = vmatpush1.bf16.msra.mxu0 %v4055
    %4073 = vmatprep.subr.bf16.mxu0 0
    %4074 = vmatpush2.bf16.msra.mxu0 0
    %4075 = vmatprep.subr.bf16.mxu0 0
    %4076 = vmatpush2.bf16.msra.mxu0 0
    %4077 = vmatprep.subr.bf16.mxu0 0
    %4078 = vmatpush2.bf16.msra.mxu0 0
    %4079 = vmatprep.subr.bf16.mxu0 0
    %4080 = vmatpush2.bf16.msra.mxu0 0
    %4081 = vmatprep.subr.bf16.mxu0 0
    %4082 = vmatpush2.bf16.msra.mxu0 0
    %4083 = vmatprep.subr.bf16.mxu0 0
    %4084 = vmatpush2.bf16.msra.mxu0 0
    %4085 = vmatprep.subr.bf16.mxu0 0
    %4086 = vmatpush2.bf16.msra.mxu0 0
    %4087 = vmatprep.subr.bf16.mxu0 0
    %4088 = vmatpush2.bf16.msra.mxu0 0
    %4089 = vmatprep.mubr.bf16.mxu0 0
    %4090 = vmatmul.mubr.bf16.gmra.mxu0 %v4052
    %v4091 = vpop.f32.mrf.mxu0
    %v4092 = vadd.f32 0.0, %v4091
    %v4093 = vpop.f32.mrf.mxu0
    %v4094 = vpop.f32.mrf.mxu0
    %v4095 = vpop.f32.mrf.mxu0
    %4096 = vdwg.mxu0
    %4097 = vrot.lane.b32.xlu0 %v2494, 96
    %v4098 = vpop.permute.xlu0 %4097
    %v4100 = vsel %vm1070, %v3470, 0
    %v4103 = vsel %vm1268, %v4098, 0
    %4105 = vmatprep.subr.bf16.mxu0 0
    %4106 = vmatpush1.bf16.msra.mxu0 0
    %4107 = vmatprep.subr.bf16.mxu0 0
    %4108 = vmatpush1.bf16.msra.mxu0 0
    %4109 = vmatprep.subr.bf16.mxu0 0
    %4110 = vmatpush1.bf16.msra.mxu0 0
    %4111 = vmatprep.subr.bf16.mxu0 0
    %4112 = vmatpush1.bf16.msra.mxu0 0
    %4113 = vmatprep.subr.bf16.mxu0 0
    %4114 = vmatpush1.bf16.msra.mxu0 0
    %4115 = vmatprep.subr.bf16.mxu0 0
    %4116 = vmatpush1.bf16.msra.mxu0 0
    %4117 = vmatprep.subr.bf16.mxu0 0
    %4118 = vmatpush1.bf16.msra.mxu0 0
    %4119 = vmatprep.subr.bf16.mxu0 0
    %4120 = vmatpush1.bf16.msra.mxu0 %v4103
    %4121 = vmatprep.subr.bf16.mxu0 0
    %4122 = vmatpush2.bf16.msra.mxu0 0
    %4123 = vmatprep.subr.bf16.mxu0 0
    %4124 = vmatpush2.bf16.msra.mxu0 0
    %4125 = vmatprep.subr.bf16.mxu0 0
    %4126 = vmatpush2.bf16.msra.mxu0 0
    %4127 = vmatprep.subr.bf16.mxu0 0
    %4128 = vmatpush2.bf16.msra.mxu0 0
    %4129 = vmatprep.subr.bf16.mxu0 0
    %4130 = vmatpush2.bf16.msra.mxu0 0
    %4131 = vmatprep.subr.bf16.mxu0 0
    %4132 = vmatpush2.bf16.msra.mxu0 0
    %4133 = vmatprep.subr.bf16.mxu0 0
    %4134 = vmatpush2.bf16.msra.mxu0 0
    %4135 = vmatprep.subr.bf16.mxu0 0
    %4136 = vmatpush2.bf16.msra.mxu0 0
    %4137 = vmatprep.mubr.bf16.mxu0 0
    %4138 = vmatmul.mubr.bf16.gmra.mxu0 %v4100
    %v4139 = vpop.f32.mrf.mxu0
    %v4140 = vadd.f32 0.0, %v4139
    %v4141 = vpop.f32.mrf.mxu0
    %v4142 = vpop.f32.mrf.mxu0
    %v4143 = vpop.f32.mrf.mxu0
    %4144 = vdwg.mxu0
    %4145 = vrot.lane.b32.xlu0 %v2495, 96
    %v4146 = vpop.permute.xlu0 %4145
    %v4148 = vsel %vm1070, %v3471, 0
    %v4151 = vsel %vm1268, %v4146, 0
    %4153 = vmatprep.subr.bf16.mxu0 0
    %4154 = vmatpush1.bf16.msra.mxu0 0
    %4155 = vmatprep.subr.bf16.mxu0 0
    %4156 = vmatpush1.bf16.msra.mxu0 0
    %4157 = vmatprep.subr.bf16.mxu0 0
    %4158 = vmatpush1.bf16.msra.mxu0 0
    %4159 = vmatprep.subr.bf16.mxu0 0
    %4160 = vmatpush1.bf16.msra.mxu0 0
    %4161 = vmatprep.subr.bf16.mxu0 0
    %4162 = vmatpush1.bf16.msra.mxu0 0
    %4163 = vmatprep.subr.bf16.mxu0 0
    %4164 = vmatpush1.bf16.msra.mxu0 0
    %4165 = vmatprep.subr.bf16.mxu0 0
    %4166 = vmatpush1.bf16.msra.mxu0 0
    %4167 = vmatprep.subr.bf16.mxu0 0
    %4168 = vmatpush1.bf16.msra.mxu0 %v4151
    %4169 = vmatprep.subr.bf16.mxu0 0
    %4170 = vmatpush2.bf16.msra.mxu0 0
    %4171 = vmatprep.subr.bf16.mxu0 0
    %4172 = vmatpush2.bf16.msra.mxu0 0
    %4173 = vmatprep.subr.bf16.mxu0 0
    %4174 = vmatpush2.bf16.msra.mxu0 0
    %4175 = vmatprep.subr.bf16.mxu0 0
    %4176 = vmatpush2.bf16.msra.mxu0 0
    %4177 = vmatprep.subr.bf16.mxu0 0
    %4178 = vmatpush2.bf16.msra.mxu0 0
    %4179 = vmatprep.subr.bf16.mxu0 0
    %4180 = vmatpush2.bf16.msra.mxu0 0
    %4181 = vmatprep.subr.bf16.mxu0 0
    %4182 = vmatpush2.bf16.msra.mxu0 0
    %4183 = vmatprep.subr.bf16.mxu0 0
    %4184 = vmatpush2.bf16.msra.mxu0 0
    %4185 = vmatprep.mubr.bf16.mxu0 0
    %4186 = vmatmul.mubr.bf16.gmra.mxu0 %v4148
    %v4187 = vpop.f32.mrf.mxu0
    %v4188 = vadd.f32 0.0, %v4187
    %v4189 = vpop.f32.mrf.mxu0
    %v4190 = vpop.f32.mrf.mxu0
    %v4191 = vpop.f32.mrf.mxu0
    %4192 = vdwg.mxu0
    %4193 = vrot.lane.b32.xlu0 %v2496, 96
    %v4194 = vpop.permute.xlu0 %4193
    %v4196 = vsel %vm1070, %v3472, 0
    %v4199 = vsel %vm1268, %v4194, 0
    %4201 = vmatprep.subr.bf16.mxu0 0
    %4202 = vmatpush1.bf16.msra.mxu0 0
    %4203 = vmatprep.subr.bf16.mxu0 0
    %4204 = vmatpush1.bf16.msra.mxu0 0
    %4205 = vmatprep.subr.bf16.mxu0 0
    %4206 = vmatpush1.bf16.msra.mxu0 0
    %4207 = vmatprep.subr.bf16.mxu0 0
    %4208 = vmatpush1.bf16.msra.mxu0 0
    %4209 = vmatprep.subr.bf16.mxu0 0
    %4210 = vmatpush1.bf16.msra.mxu0 0
    %4211 = vmatprep.subr.bf16.mxu0 0
    %4212 = vmatpush1.bf16.msra.mxu0 0
    %4213 = vmatprep.subr.bf16.mxu0 0
    %4214 = vmatpush1.bf16.msra.mxu0 0
    %4215 = vmatprep.subr.bf16.mxu0 0
    %4216 = vmatpush1.bf16.msra.mxu0 %v4199
    %4217 = vmatprep.subr.bf16.mxu0 0
    %4218 = vmatpush2.bf16.msra.mxu0 0
    %4219 = vmatprep.subr.bf16.mxu0 0
    %4220 = vmatpush2.bf16.msra.mxu0 0
    %4221 = vmatprep.subr.bf16.mxu0 0
    %4222 = vmatpush2.bf16.msra.mxu0 0
    %4223 = vmatprep.subr.bf16.mxu0 0
    %4224 = vmatpush2.bf16.msra.mxu0 0
    %4225 = vmatprep.subr.bf16.mxu0 0
    %4226 = vmatpush2.bf16.msra.mxu0 0
    %4227 = vmatprep.subr.bf16.mxu0 0
    %4228 = vmatpush2.bf16.msra.mxu0 0
    %4229 = vmatprep.subr.bf16.mxu0 0
    %4230 = vmatpush2.bf16.msra.mxu0 0
    %4231 = vmatprep.subr.bf16.mxu0 0
    %4232 = vmatpush2.bf16.msra.mxu0 0
    %4233 = vmatprep.mubr.bf16.mxu0 0
    %4234 = vmatmul.mubr.bf16.gmra.mxu0 %v4196
    %v4235 = vpop.f32.mrf.mxu0
    %v4236 = vadd.f32 0.0, %v4235
    %v4237 = vpop.f32.mrf.mxu0
    %v4238 = vpop.f32.mrf.mxu0
    %v4239 = vpop.f32.mrf.mxu0
    %4240 = vdwg.mxu0
    %v4241 = vcombine.low %v3516, %v3612
    %v4242 = vcombine.high %v3516, %v3612
    %v4244 = vunpack.c.l.s4 1983009808
    %v4245 = vunpack.c.0.s8 %v4244
    %v4246 = vlaneseq
    %v4247 = vshrl.u32 %v4246, 7
    %v4248 = vsub.s32 %v4245, %v4247
    %v4249 = vrot.slane %v4241, %v4248
    %v4251 = vunpack.c.l.s4 1983009808
    %v4252 = vunpack.c.0.s8 %v4251
    %v4253 = vlaneseq
    %v4254 = vshrl.u32 %v4253, 7
    %v4255 = vsub.s32 %v4252, %v4254
    %v4256 = vrot.slane %v4242, %v4255
    %v4257 = vcombine.low %v3564, %v3660
    %v4258 = vcombine.high %v3564, %v3660
    %v4260 = vunpack.c.l.s4 1983009808
    %v4261 = vunpack.c.0.s8 %v4260
    %v4262 = vlaneseq
    %v4263 = vshrl.u32 %v4262, 7
    %v4264 = vsub.s32 %v4261, %v4263
    %v4265 = vrot.slane %v4257, %v4264
    %v4267 = vunpack.c.l.s4 1983009808
    %v4268 = vunpack.c.0.s8 %v4267
    %v4269 = vlaneseq
    %v4270 = vshrl.u32 %v4269, 7
    %v4271 = vsub.s32 %v4268, %v4270
    %v4272 = vrot.slane %v4258, %v4271
    %v4273 = vcombine.low %v3708, %v3804
    %v4274 = vcombine.high %v3708, %v3804
    %v4276 = vunpack.c.l.s4 1983009808
    %v4277 = vunpack.c.0.s8 %v4276
    %v4278 = vlaneseq
    %v4279 = vshrl.u32 %v4278, 7
    %v4280 = vsub.s32 %v4277, %v4279
    %v4281 = vrot.slane %v4273, %v4280
    %v4283 = vunpack.c.l.s4 1983009808
    %v4284 = vunpack.c.0.s8 %v4283
    %v4285 = vlaneseq
    %v4286 = vshrl.u32 %v4285, 7
    %v4287 = vsub.s32 %v4284, %v4286
    %v4288 = vrot.slane %v4274, %v4287
    %v4289 = vcombine.low %v3756, %v3852
    %v4290 = vcombine.high %v3756, %v3852
    %v4292 = vunpack.c.l.s4 1983009808
    %v4293 = vunpack.c.0.s8 %v4292
    %v4294 = vlaneseq
    %v4295 = vshrl.u32 %v4294, 7
    %v4296 = vsub.s32 %v4293, %v4295
    %v4297 = vrot.slane %v4289, %v4296
    %v4299 = vunpack.c.l.s4 1983009808
    %v4300 = vunpack.c.0.s8 %v4299
    %v4301 = vlaneseq
    %v4302 = vshrl.u32 %v4301, 7
    %v4303 = vsub.s32 %v4300, %v4302
    %v4304 = vrot.slane %v4290, %v4303
    %v4305 = vcombine.low %v4249, %v4265
    %v4306 = vcombine.high %v4249, %v4265
    %v4308 = vunpack.c.l.s4 1934713408
    %v4309 = vunpack.c.0.s8 %v4308
    %v4310 = vlaneseq
    %v4311 = vshrl.u32 %v4310, 7
    %v4312 = vsub.s32 %v4309, %v4311
    %v4313 = vrot.slane %v4305, %v4312
    %v4315 = vunpack.c.l.s4 1934713408
    %v4316 = vunpack.c.0.s8 %v4315
    %v4317 = vlaneseq
    %v4318 = vshrl.u32 %v4317, 7
    %v4319 = vsub.s32 %v4316, %v4318
    %v4320 = vrot.slane %v4306, %v4319
    %v4321 = vcombine.low %v4256, %v4272
    %v4322 = vcombine.high %v4256, %v4272
    %v4324 = vunpack.c.l.s4 1934713408
    %v4325 = vunpack.c.0.s8 %v4324
    %v4326 = vlaneseq
    %v4327 = vshrl.u32 %v4326, 7
    %v4328 = vsub.s32 %v4325, %v4327
    %v4329 = vrot.slane %v4321, %v4328
    %v4331 = vunpack.c.l.s4 1934713408
    %v4332 = vunpack.c.0.s8 %v4331
    %v4333 = vlaneseq
    %v4334 = vshrl.u32 %v4333, 7
    %v4335 = vsub.s32 %v4332, %v4334
    %v4336 = vrot.slane %v4322, %v4335
    %v4337 = vcombine.low %v4281, %v4297
    %v4338 = vcombine.high %v4281, %v4297
    %v4340 = vunpack.c.l.s4 1934713408
    %v4341 = vunpack.c.0.s8 %v4340
    %v4342 = vlaneseq
    %v4343 = vshrl.u32 %v4342, 7
    %v4344 = vsub.s32 %v4341, %v4343
    %v4345 = vrot.slane %v4337, %v4344
    %v4347 = vunpack.c.l.s4 1934713408
    %v4348 = vunpack.c.0.s8 %v4347
    %v4349 = vlaneseq
    %v4350 = vshrl.u32 %v4349, 7
    %v4351 = vsub.s32 %v4348, %v4350
    %v4352 = vrot.slane %v4338, %v4351
    %v4353 = vcombine.low %v4288, %v4304
    %v4354 = vcombine.high %v4288, %v4304
    %v4356 = vunpack.c.l.s4 1934713408
    %v4357 = vunpack.c.0.s8 %v4356
    %v4358 = vlaneseq
    %v4359 = vshrl.u32 %v4358, 7
    %v4360 = vsub.s32 %v4357, %v4359
    %v4361 = vrot.slane %v4353, %v4360
    %v4363 = vunpack.c.l.s4 1934713408
    %v4364 = vunpack.c.0.s8 %v4363
    %v4365 = vlaneseq
    %v4366 = vshrl.u32 %v4365, 7
    %v4367 = vsub.s32 %v4364, %v4366
    %v4368 = vrot.slane %v4354, %v4367
    %v4369 = vcombine.low %v4313, %v4345
    %v4370 = vcombine.high %v4313, %v4345
    %v4371 = vcombine.low %v4320, %v4352
    %v4372 = vcombine.high %v4320, %v4352
    %v4373 = vcombine.low %v4329, %v4361
    %v4374 = vcombine.high %v4329, %v4361
    %v4375 = vcombine.low %v4336, %v4368
    %v4376 = vcombine.high %v4336, %v4368
    %v4377 = vcombine.low %v3900, %v3996
    %v4378 = vcombine.high %v3900, %v3996
    %v4380 = vunpack.c.l.s4 1983009808
    %v4381 = vunpack.c.0.s8 %v4380
    %v4382 = vlaneseq
    %v4383 = vshrl.u32 %v4382, 7
    %v4384 = vsub.s32 %v4381, %v4383
    %v4385 = vrot.slane %v4377, %v4384
    %v4387 = vunpack.c.l.s4 1983009808
    %v4388 = vunpack.c.0.s8 %v4387
    %v4389 = vlaneseq
    %v4390 = vshrl.u32 %v4389, 7
    %v4391 = vsub.s32 %v4388, %v4390
    %v4392 = vrot.slane %v4378, %v4391
    %v4393 = vcombine.low %v3948, %v4044
    %v4394 = vcombine.high %v3948, %v4044
    %v4396 = vunpack.c.l.s4 1983009808
    %v4397 = vunpack.c.0.s8 %v4396
    %v4398 = vlaneseq
    %v4399 = vshrl.u32 %v4398, 7
    %v4400 = vsub.s32 %v4397, %v4399
    %v4401 = vrot.slane %v4393, %v4400
    %v4403 = vunpack.c.l.s4 1983009808
    %v4404 = vunpack.c.0.s8 %v4403
    %v4405 = vlaneseq
    %v4406 = vshrl.u32 %v4405, 7
    %v4407 = vsub.s32 %v4404, %v4406
    %v4408 = vrot.slane %v4394, %v4407
    %v4409 = vcombine.low %v4092, %v4188
    %v4410 = vcombine.high %v4092, %v4188
    %v4412 = vunpack.c.l.s4 1983009808
    %v4413 = vunpack.c.0.s8 %v4412
    %v4414 = vlaneseq
    %v4415 = vshrl.u32 %v4414, 7
    %v4416 = vsub.s32 %v4413, %v4415
    %v4417 = vrot.slane %v4409, %v4416
    %v4419 = vunpack.c.l.s4 1983009808
    %v4420 = vunpack.c.0.s8 %v4419
    %v4421 = vlaneseq
    %v4422 = vshrl.u32 %v4421, 7
    %v4423 = vsub.s32 %v4420, %v4422
    %v4424 = vrot.slane %v4410, %v4423
    %v4425 = vcombine.low %v4140, %v4236
    %v4426 = vcombine.high %v4140, %v4236
    %v4428 = vunpack.c.l.s4 1983009808
    %v4429 = vunpack.c.0.s8 %v4428
    %v4430 = vlaneseq
    %v4431 = vshrl.u32 %v4430, 7
    %v4432 = vsub.s32 %v4429, %v4431
    %v4433 = vrot.slane %v4425, %v4432
    %v4435 = vunpack.c.l.s4 1983009808
    %v4436 = vunpack.c.0.s8 %v4435
    %v4437 = vlaneseq
    %v4438 = vshrl.u32 %v4437, 7
    %v4439 = vsub.s32 %v4436, %v4438
    %v4440 = vrot.slane %v4426, %v4439
    %v4441 = vcombine.low %v4385, %v4401
    %v4442 = vcombine.high %v4385, %v4401
    %v4444 = vunpack.c.l.s4 1934713408
    %v4445 = vunpack.c.0.s8 %v4444
    %v4446 = vlaneseq
    %v4447 = vshrl.u32 %v4446, 7
    %v4448 = vsub.s32 %v4445, %v4447
    %v4449 = vrot.slane %v4441, %v4448
    %v4451 = vunpack.c.l.s4 1934713408
    %v4452 = vunpack.c.0.s8 %v4451
    %v4453 = vlaneseq
    %v4454 = vshrl.u32 %v4453, 7
    %v4455 = vsub.s32 %v4452, %v4454
    %v4456 = vrot.slane %v4442, %v4455
    %v4457 = vcombine.low %v4392, %v4408
    %v4458 = vcombine.high %v4392, %v4408
    %v4460 = vunpack.c.l.s4 1934713408
    %v4461 = vunpack.c.0.s8 %v4460
    %v4462 = vlaneseq
    %v4463 = vshrl.u32 %v4462, 7
    %v4464 = vsub.s32 %v4461, %v4463
    %v4465 = vrot.slane %v4457, %v4464
    %v4467 = vunpack.c.l.s4 1934713408
    %v4468 = vunpack.c.0.s8 %v4467
    %v4469 = vlaneseq
    %v4470 = vshrl.u32 %v4469, 7
    %v4471 = vsub.s32 %v4468, %v4470
    %v4472 = vrot.slane %v4458, %v4471
    %v4473 = vcombine.low %v4417, %v4433
    %v4474 = vcombine.high %v4417, %v4433
    %v4476 = vunpack.c.l.s4 1934713408
    %v4477 = vunpack.c.0.s8 %v4476
    %v4478 = vlaneseq
    %v4479 = vshrl.u32 %v4478, 7
    %v4480 = vsub.s32 %v4477, %v4479
    %v4481 = vrot.slane %v4473, %v4480
    %v4483 = vunpack.c.l.s4 1934713408
    %v4484 = vunpack.c.0.s8 %v4483
    %v4485 = vlaneseq
    %v4486 = vshrl.u32 %v4485, 7
    %v4487 = vsub.s32 %v4484, %v4486
    %v4488 = vrot.slane %v4474, %v4487
    %v4489 = vcombine.low %v4424, %v4440
    %v4490 = vcombine.high %v4424, %v4440
    %v4492 = vunpack.c.l.s4 1934713408
    %v4493 = vunpack.c.0.s8 %v4492
    %v4494 = vlaneseq
    %v4495 = vshrl.u32 %v4494, 7
    %v4496 = vsub.s32 %v4493, %v4495
    %v4497 = vrot.slane %v4489, %v4496
    %v4499 = vunpack.c.l.s4 1934713408
    %v4500 = vunpack.c.0.s8 %v4499
    %v4501 = vlaneseq
    %v4502 = vshrl.u32 %v4501, 7
    %v4503 = vsub.s32 %v4500, %v4502
    %v4504 = vrot.slane %v4490, %v4503
    %v4505 = vcombine.low %v4449, %v4481
    %v4506 = vcombine.high %v4449, %v4481
    %v4507 = vcombine.low %v4456, %v4488
    %v4508 = vcombine.high %v4456, %v4488
    %v4509 = vcombine.low %v4465, %v4497
    %v4510 = vcombine.high %v4465, %v4497
    %v4511 = vcombine.low %v4472, %v4504
    %v4512 = vcombine.high %v4472, %v4504
    %v4513 = vadd.f32 %v4369, %v1307
    %v4514 = vadd.f32 %v4370, %v1355
    %v4515 = vadd.f32 %v4371, %v1403
    %v4516 = vadd.f32 %v4372, %v1451
    %v4517 = vadd.f32 %v4373, %v1499
    %v4518 = vadd.f32 %v4374, %v1547
    %v4519 = vadd.f32 %v4375, %v1595
    %v4520 = vadd.f32 %v4376, %v1643
    %v4521 = vadd.f32 %v4505, %v1691
    %v4522 = vadd.f32 %v4506, %v1739
    %v4523 = vadd.f32 %v4507, %v1787
    %v4524 = vadd.f32 %v4508, %v1835
    %v4525 = vadd.f32 %v4509, %v1883
    %v4526 = vadd.f32 %v4510, %v1931
    %v4527 = vadd.f32 %v4511, %v1979
    %v4528 = vadd.f32 %v4512, %v2027
    %v4529 = vmul.f32 %v4513, 0.5
    %v4530 = vmul.f32 %v4514, 0.5
    %v4531 = vmul.f32 %v4515, 0.5
    %v4532 = vmul.f32 %v4516, 0.5
    %v4533 = vmul.f32 %v4517, 0.5
    %v4534 = vmul.f32 %v4518, 0.5
    %v4535 = vmul.f32 %v4519, 0.5
    %v4536 = vmul.f32 %v4520, 0.5
    %v4537 = vmul.f32 %v4521, 0.5
    %v4538 = vmul.f32 %v4522, 0.5
    %v4539 = vmul.f32 %v4523, 0.5
    %v4540 = vmul.f32 %v4524, 0.5
    %v4541 = vmul.f32 %v4525, 0.5
    %v4542 = vmul.f32 %v4526, 0.5
    %v4543 = vmul.f32 %v4527, 0.5
    %v4544 = vmul.f32 %v4528, 0.5
    %v4545 = vadd.f32 %v4529, %v38
    %v4546 = vadd.f32 %v4530, %v39
    %v4547 = vadd.f32 %v4531, %v40
    %v4548 = vadd.f32 %v4532, %v41
    %v4549 = vadd.f32 %v4533, %v42
    %v4550 = vadd.f32 %v4534, %v43
    %v4551 = vadd.f32 %v4535, %v44
    %v4552 = vadd.f32 %v4536, %v45
    %v4553 = vadd.f32 %v4537, %v46
    %v4554 = vadd.f32 %v4538, %v47
    %v4555 = vadd.f32 %v4539, %v48
    %v4556 = vadd.f32 %v4540, %v49
    %v4557 = vadd.f32 %v4541, %v50
    %v4558 = vadd.f32 %v4542, %v51
    %v4559 = vadd.f32 %v4543, %v52
    %v4560 = vadd.f32 %v4544, %v53
    %v4561 = vsel %vm288, %v207, 0.0
    %v4562 = vrot.slane %v4561, 4
    %v4563 = vadd.f32 %v4561, %v4562
    %v4564 = vrot.slane %v4563, 2
    %v4565 = vadd.f32 %v4563, %v4564
    %v4566 = vrot.slane %v4565, 1
    %v4567 = vadd.f32 %v4565, %v4566
    %v4568 = vsel %vm288, %v210, 0.0
    %v4569 = vrot.slane %v4568, 4
    %v4570 = vadd.f32 %v4568, %v4569
    %v4571 = vrot.slane %v4570, 2
    %v4572 = vadd.f32 %v4570, %v4571
    %v4573 = vrot.slane %v4572, 1
    %v4574 = vadd.f32 %v4572, %v4573
    %v4575 = vsel %vm288, %v215, 0.0
    %v4576 = vrot.slane %v4575, 4
    %v4577 = vadd.f32 %v4575, %v4576
    %v4578 = vrot.slane %v4577, 2
    %v4579 = vadd.f32 %v4577, %v4578
    %v4580 = vrot.slane %v4579, 1
    %v4581 = vadd.f32 %v4579, %v4580
    %v4582 = vsel %vm288, %v218, 0.0
    %v4583 = vrot.slane %v4582, 4
    %v4584 = vadd.f32 %v4582, %v4583
    %v4585 = vrot.slane %v4584, 2
    %v4586 = vadd.f32 %v4584, %v4585
    %v4587 = vrot.slane %v4586, 1
    %v4588 = vadd.f32 %v4586, %v4587
    %v4589 = vsel %vm288, %v223, 0.0
    %v4590 = vrot.slane %v4589, 4
    %v4591 = vadd.f32 %v4589, %v4590
    %v4592 = vrot.slane %v4591, 2
    %v4593 = vadd.f32 %v4591, %v4592
    %v4594 = vrot.slane %v4593, 1
    %v4595 = vadd.f32 %v4593, %v4594
    %v4596 = vsel %vm288, %v226, 0.0
    %v4597 = vrot.slane %v4596, 4
    %v4598 = vadd.f32 %v4596, %v4597
    %v4599 = vrot.slane %v4598, 2
    %v4600 = vadd.f32 %v4598, %v4599
    %v4601 = vrot.slane %v4600, 1
    %v4602 = vadd.f32 %v4600, %v4601
    %v4603 = vsel %vm288, %v231, 0.0
    %v4604 = vrot.slane %v4603, 4
    %v4605 = vadd.f32 %v4603, %v4604
    %v4606 = vrot.slane %v4605, 2
    %v4607 = vadd.f32 %v4605, %v4606
    %v4608 = vrot.slane %v4607, 1
    %v4609 = vadd.f32 %v4607, %v4608
    %v4610 = vsel %vm288, %v234, 0.0
    %v4611 = vrot.slane %v4610, 4
    %v4612 = vadd.f32 %v4610, %v4611
    %v4613 = vrot.slane %v4612, 2
    %v4614 = vadd.f32 %v4612, %v4613
    %v4615 = vrot.slane %v4614, 1
    %v4616 = vadd.f32 %v4614, %v4615
    %v4617 = vsel %vm288, %v239, 0.0
    %v4618 = vrot.slane %v4617, 4
    %v4619 = vadd.f32 %v4617, %v4618
    %v4620 = vrot.slane %v4619, 2
    %v4621 = vadd.f32 %v4619, %v4620
    %v4622 = vrot.slane %v4621, 1
    %v4623 = vadd.f32 %v4621, %v4622
    %v4624 = vsel %vm288, %v242, 0.0
    %v4625 = vrot.slane %v4624, 4
    %v4626 = vadd.f32 %v4624, %v4625
    %v4627 = vrot.slane %v4626, 2
    %v4628 = vadd.f32 %v4626, %v4627
    %v4629 = vrot.slane %v4628, 1
    %v4630 = vadd.f32 %v4628, %v4629
    %v4631 = vsel %vm288, %v247, 0.0
    %v4632 = vrot.slane %v4631, 4
    %v4633 = vadd.f32 %v4631, %v4632
    %v4634 = vrot.slane %v4633, 2
    %v4635 = vadd.f32 %v4633, %v4634
    %v4636 = vrot.slane %v4635, 1
    %v4637 = vadd.f32 %v4635, %v4636
    %v4638 = vsel %vm288, %v250, 0.0
    %v4639 = vrot.slane %v4638, 4
    %v4640 = vadd.f32 %v4638, %v4639
    %v4641 = vrot.slane %v4640, 2
    %v4642 = vadd.f32 %v4640, %v4641
    %v4643 = vrot.slane %v4642, 1
    %v4644 = vadd.f32 %v4642, %v4643
    %v4645 = vsel %vm288, %v255, 0.0
    %v4646 = vrot.slane %v4645, 4
    %v4647 = vadd.f32 %v4645, %v4646
    %v4648 = vrot.slane %v4647, 2
    %v4649 = vadd.f32 %v4647, %v4648
    %v4650 = vrot.slane %v4649, 1
    %v4651 = vadd.f32 %v4649, %v4650
    %v4652 = vsel %vm288, %v258, 0.0
    %v4653 = vrot.slane %v4652, 4
    %v4654 = vadd.f32 %v4652, %v4653
    %v4655 = vrot.slane %v4654, 2
    %v4656 = vadd.f32 %v4654, %v4655
    %v4657 = vrot.slane %v4656, 1
    %v4658 = vadd.f32 %v4656, %v4657
    %v4659 = vsel %vm288, %v263, 0.0
    %v4660 = vrot.slane %v4659, 4
    %v4661 = vadd.f32 %v4659, %v4660
    %v4662 = vrot.slane %v4661, 2
    %v4663 = vadd.f32 %v4661, %v4662
    %v4664 = vrot.slane %v4663, 1
    %v4665 = vadd.f32 %v4663, %v4664
    %v4666 = vsel %vm288, %v266, 0.0
    %v4667 = vrot.slane %v4666, 4
    %v4668 = vadd.f32 %v4666, %v4667
    %v4669 = vrot.slane %v4668, 2
    %v4670 = vadd.f32 %v4668, %v4669
    %v4671 = vrot.slane %v4670, 1
    %v4672 = vadd.f32 %v4670, %v4671
    %v4673 = vrcp.pop 8.0
    %v4674 = vmul.f32 %v4567, %v4673
    %v4675 = vmul.f32 %v4574, %v4673
    %v4676 = vmul.f32 %v4581, %v4673
    %v4677 = vmul.f32 %v4588, %v4673
    %v4678 = vmul.f32 %v4595, %v4673
    %v4679 = vmul.f32 %v4602, %v4673
    %v4680 = vmul.f32 %v4609, %v4673
    %v4681 = vmul.f32 %v4616, %v4673
    %v4682 = vmul.f32 %v4623, %v4673
    %v4683 = vmul.f32 %v4630, %v4673
    %v4684 = vmul.f32 %v4637, %v4673
    %v4685 = vmul.f32 %v4644, %v4673
    %v4686 = vmul.f32 %v4651, %v4673
    %v4687 = vmul.f32 %v4658, %v4673
    %v4688 = vmul.f32 %v4665, %v4673
    %v4689 = vmul.f32 %v4672, %v4673
    %vm4690 = vcmask 261248
    %v4691 = vsel %vm4690, %v207, 0.0
    %v4692 = vsel %vm4690, %v210, 0.0
    %v4693 = vadd.f32 %v4691, %v4692
    %v4694 = vsel %vm4690, %v215, 0.0
    %v4695 = vadd.f32 %v4693, %v4694
    %v4696 = vsel %vm4690, %v218, 0.0
    %v4697 = vadd.f32 %v4695, %v4696
    %v4698 = vsel %vm4690, %v223, 0.0
    %v4699 = vadd.f32 %v4697, %v4698
    %v4700 = vsel %vm4690, %v226, 0.0
    %v4701 = vadd.f32 %v4699, %v4700
    %v4702 = vsel %vm4690, %v231, 0.0
    %v4703 = vadd.f32 %v4701, %v4702
    %v4704 = vsel %vm4690, %v234, 0.0
    %v4705 = vadd.f32 %v4703, %v4704
    %v4706 = vsel %vm4690, %v239, 0.0
    %v4707 = vsel %vm4690, %v242, 0.0
    %v4708 = vadd.f32 %v4706, %v4707
    %v4709 = vsel %vm4690, %v247, 0.0
    %v4710 = vadd.f32 %v4708, %v4709
    %v4711 = vsel %vm4690, %v250, 0.0
    %v4712 = vadd.f32 %v4710, %v4711
    %v4713 = vsel %vm4690, %v255, 0.0
    %v4714 = vadd.f32 %v4712, %v4713
    %v4715 = vsel %vm4690, %v258, 0.0
    %v4716 = vadd.f32 %v4714, %v4715
    %v4717 = vsel %vm4690, %v263, 0.0
    %v4718 = vadd.f32 %v4716, %v4717
    %v4719 = vsel %vm4690, %v266, 0.0
    %v4720 = vadd.f32 %v4718, %v4719
    %v4721 = vmul.f32 %v4705, %v4673
    %v4722 = vmul.f32 %v4720, %v4673
    %v4723 = vpack.c.bf16 %v4545, %v4545
    %v4724 = vpack.c.bf16 %v4546, %v4546
    %v4725 = vpack.c.bf16 %v4547, %v4547
    %v4726 = vpack.c.bf16 %v4548, %v4548
    %v4727 = vpack.c.bf16 %v4549, %v4549
    %v4728 = vpack.c.bf16 %v4550, %v4550
    %v4729 = vpack.c.bf16 %v4551, %v4551
    %v4730 = vpack.c.bf16 %v4552, %v4552
    %v4731 = vpack.c.bf16 %v4553, %v4553
    %v4732 = vpack.c.bf16 %v4554, %v4554
    %v4733 = vpack.c.bf16 %v4555, %v4555
    %v4734 = vpack.c.bf16 %v4556, %v4556
    %v4735 = vpack.c.bf16 %v4557, %v4557
    %v4736 = vpack.c.bf16 %v4558, %v4558
    %v4737 = vpack.c.bf16 %v4559, %v4559
    %v4738 = vpack.c.bf16 %v4560, %v4560
    %v4755 = vunpack.c.l.b16 %v4723
    %v4756 = vunpack.c.l.b16 %v4724
    %v4757 = vunpack.c.l.b16 %v4725
    %v4758 = vunpack.c.l.b16 %v4726
    %v4759 = vunpack.c.l.b16 %v4727
    %v4760 = vunpack.c.l.b16 %v4728
    %v4761 = vunpack.c.l.b16 %v4729
    %v4762 = vunpack.c.l.b16 %v4730
    %v4763 = vunpack.c.l.b16 %v4731
    %v4764 = vunpack.c.l.b16 %v4732
    %v4765 = vunpack.c.l.b16 %v4733
    %v4766 = vunpack.c.l.b16 %v4734
    %v4767 = vunpack.c.l.b16 %v4735
    %v4768 = vunpack.c.l.b16 %v4736
    %v4769 = vunpack.c.l.b16 %v4737
    %v4770 = vunpack.c.l.b16 %v4738
    %v4771 = vpack.c.b16 %v4756, %v4755
    %v4772 = vpack.c.b16 %v4758, %v4757
    %v4773 = vpack.c.b16 %v4760, %v4759
    %v4774 = vpack.c.b16 %v4762, %v4761
    %v4775 = vpack.c.b16 %v4764, %v4763
    %v4776 = vpack.c.b16 %v4766, %v4765
    %v4777 = vpack.c.b16 %v4768, %v4767
    %v4778 = vpack.c.b16 %v4770, %v4769
    %v4783 = vunpack.c.l.b16 %v59
    %v4784 = vunpack.c.l.b16 %v60
    %v4785 = vunpack.c.l.b16 %v61
    %v4786 = vunpack.c.l.b16 %v62
    %v4787 = vpack.c.b16 %v4784, %v4783
    %v4788 = vpack.c.b16 %v4786, %v4785
    %v4792 = vsel %vm147, %v4771, 0
    %v4795 = vsel %vm147, %v4772, 0
    %v4798 = vsel %vm147, %v4773, 0
    %v4801 = vsel %vm147, %v4774, 0
    %v4804 = vsel %vm147, %v4775, 0
    %v4807 = vsel %vm147, %v4776, 0
    %v4810 = vsel %vm147, %v4777, 0
    %v4813 = vsel %vm147, %v4778, 0
    %4815 = vmatprep.subr.bf16.mxu0 0
    %4816 = vmatpush1.bf16.msra.mxu0 0
    %4817 = vmatprep.subr.bf16.mxu0 0
    %4818 = vmatpush1.bf16.msra.mxu0 0
    %4819 = vmatprep.subr.bf16.mxu0 0
    %4820 = vmatpush1.bf16.msra.mxu0 0
    %4821 = vmatprep.subr.bf16.mxu0 0
    %4822 = vmatpush1.bf16.msra.mxu0 0
    %4823 = vmatprep.subr.bf16.mxu0 0
    %4824 = vmatpush1.bf16.msra.mxu0 0
    %4825 = vmatprep.subr.bf16.mxu0 0
    %4826 = vmatpush1.bf16.msra.mxu0 0
    %4827 = vmatprep.subr.bf16.mxu0 0
    %4828 = vmatpush1.bf16.msra.mxu0 %v4788
    %4829 = vmatprep.subr.bf16.mxu0 0
    %4830 = vmatpush1.bf16.msra.mxu0 %v4787
    %4831 = vmatprep.subr.bf16.mxu0 0
    %4832 = vmatpush2.bf16.msra.mxu0 0
    %4833 = vmatprep.subr.bf16.mxu0 0
    %4834 = vmatpush2.bf16.msra.mxu0 0
    %4835 = vmatprep.subr.bf16.mxu0 0
    %4836 = vmatpush2.bf16.msra.mxu0 0
    %4837 = vmatprep.subr.bf16.mxu0 0
    %4838 = vmatpush2.bf16.msra.mxu0 0
    %4839 = vmatprep.subr.bf16.mxu0 0
    %4840 = vmatpush2.bf16.msra.mxu0 0
    %4841 = vmatprep.subr.bf16.mxu0 0
    %4842 = vmatpush2.bf16.msra.mxu0 0
    %4843 = vmatprep.subr.bf16.mxu0 0
    %4844 = vmatpush2.bf16.msra.mxu0 0
    %4845 = vmatprep.subr.bf16.mxu0 0
    %4846 = vmatpush2.bf16.msra.mxu0 0
    %4847 = vmatprep.mubr.bf16.mxu0 0
    %4848 = vmatmul.mubr.bf16.gmra.mxu0 %v4792
    %v4849 = vpop.f32.mrf.mxu0
    %v4850 = vadd.f32 0.0, %v4849
    %v4851 = vpop.f32.mrf.mxu0
    %v4852 = vpop.f32.mrf.mxu0
    %v4853 = vadd.f32 0.0, %v4852
    %v4854 = vpop.f32.mrf.mxu0
    %4855 = vmatprep.mubr.bf16.mxu0 0
    %4856 = vmatmul.mubr.bf16.gmra.mxu0 %v4795
    %v4857 = vpop.f32.mrf.mxu0
    %v4858 = vadd.f32 0.0, %v4857
    %v4859 = vpop.f32.mrf.mxu0
    %v4860 = vpop.f32.mrf.mxu0
    %v4861 = vadd.f32 0.0, %v4860
    %v4862 = vpop.f32.mrf.mxu0
    %4863 = vmatprep.mubr.bf16.mxu0 0
    %4864 = vmatmul.mubr.bf16.gmra.mxu0 %v4798
    %v4865 = vpop.f32.mrf.mxu0
    %v4866 = vadd.f32 0.0, %v4865
    %v4867 = vpop.f32.mrf.mxu0
    %v4868 = vpop.f32.mrf.mxu0
    %v4869 = vadd.f32 0.0, %v4868
    %v4870 = vpop.f32.mrf.mxu0
    %4871 = vmatprep.mubr.bf16.mxu0 0
    %4872 = vmatmul.mubr.bf16.gmra.mxu0 %v4801
    %v4873 = vpop.f32.mrf.mxu0
    %v4874 = vadd.f32 0.0, %v4873
    %v4875 = vpop.f32.mrf.mxu0
    %v4876 = vpop.f32.mrf.mxu0
    %v4877 = vadd.f32 0.0, %v4876
    %v4878 = vpop.f32.mrf.mxu0
    %4879 = vmatprep.mubr.bf16.mxu0 0
    %4880 = vmatmul.mubr.bf16.gmra.mxu0 %v4804
    %v4881 = vpop.f32.mrf.mxu0
    %v4882 = vadd.f32 0.0, %v4881
    %v4883 = vpop.f32.mrf.mxu0
    %v4884 = vpop.f32.mrf.mxu0
    %v4885 = vadd.f32 0.0, %v4884
    %v4886 = vpop.f32.mrf.mxu0
    %4887 = vmatprep.mubr.bf16.mxu0 0
    %4888 = vmatmul.mubr.bf16.gmra.mxu0 %v4807
    %v4889 = vpop.f32.mrf.mxu0
    %v4890 = vadd.f32 0.0, %v4889
    %v4891 = vpop.f32.mrf.mxu0
    %v4892 = vpop.f32.mrf.mxu0
    %v4893 = vadd.f32 0.0, %v4892
    %v4894 = vpop.f32.mrf.mxu0
    %4895 = vmatprep.mubr.bf16.mxu0 0
    %4896 = vmatmul.mubr.bf16.gmra.mxu0 %v4810
    %v4897 = vpop.f32.mrf.mxu0
    %v4898 = vadd.f32 0.0, %v4897
    %v4899 = vpop.f32.mrf.mxu0
    %v4900 = vpop.f32.mrf.mxu0
    %v4901 = vadd.f32 0.0, %v4900
    %v4902 = vpop.f32.mrf.mxu0
    %4903 = vmatprep.mubr.bf16.mxu0 0
    %4904 = vmatmul.mubr.bf16.gmra.mxu0 %v4813
    %v4905 = vpop.f32.mrf.mxu0
    %v4906 = vadd.f32 0.0, %v4905
    %v4907 = vpop.f32.mrf.mxu0
    %v4908 = vpop.f32.mrf.mxu0
    %v4909 = vadd.f32 0.0, %v4908
    %v4910 = vpop.f32.mrf.mxu0
    %4911 = vdwg.mxu0
    %v4912 = vpack.c.bf16 %v4850, %v4850
    %v4913 = vpack.c.bf16 %v4853, %v4853
    %v4914 = vpack.c.bf16 %v4858, %v4858
    %v4915 = vpack.c.bf16 %v4861, %v4861
    %v4916 = vpack.c.bf16 %v4866, %v4866
    %v4917 = vpack.c.bf16 %v4869, %v4869
    %v4918 = vpack.c.bf16 %v4874, %v4874
    %v4919 = vpack.c.bf16 %v4877, %v4877
    %v4920 = vpack.c.bf16 %v4882, %v4882
    %v4921 = vpack.c.bf16 %v4885, %v4885
    %v4922 = vpack.c.bf16 %v4890, %v4890
    %v4923 = vpack.c.bf16 %v4893, %v4893
    %v4924 = vpack.c.bf16 %v4898, %v4898
    %v4925 = vpack.c.bf16 %v4901, %v4901
    %v4926 = vpack.c.bf16 %v4906, %v4906
    %v4927 = vpack.c.bf16 %v4909, %v4909
    %4929 = vrot.lane.b32.xlu0 %v4912, 112
    %v4930 = vpop.permute.xlu0 %4929
    %v4932 = vsel %vm288, %v4912, 0
    %v4935 = vsel %vm288, %v4930, 0
    %4937 = vmatprep.subr.bf16.mxu0 0
    %4938 = vmatpush1.bf16.xpose.msra.mxu0 0
    %4939 = vmatprep.subr.bf16.mxu0 0
    %4940 = vmatpush1.bf16.xpose.msra.mxu0 0
    %4941 = vmatprep.subr.bf16.mxu0 0
    %4942 = vmatpush1.bf16.xpose.msra.mxu0 0
    %4943 = vmatprep.subr.bf16.mxu0 0
    %4944 = vmatpush1.bf16.xpose.msra.mxu0 0
    %4945 = vmatprep.subr.bf16.mxu0 0
    %4946 = vmatpush1.bf16.xpose.msra.mxu0 0
    %4947 = vmatprep.subr.bf16.mxu0 0
    %4948 = vmatpush1.bf16.xpose.msra.mxu0 0
    %4949 = vmatprep.subr.bf16.mxu0 0
    %4950 = vmatpush1.bf16.xpose.msra.mxu0 0
    %4951 = vmatprep.subr.bf16.mxu0 0
    %4952 = vmatpush1.bf16.xpose.msra.mxu0 %v4935
    %4953 = vmatprep.subr.bf16.mxu0 0
    %4954 = vmatpush2.bf16.xpose.msra.mxu0 0
    %4955 = vmatprep.subr.bf16.mxu0 0
    %4956 = vmatpush2.bf16.xpose.msra.mxu0 0
    %4957 = vmatprep.subr.bf16.mxu0 0
    %4958 = vmatpush2.bf16.xpose.msra.mxu0 0
    %4959 = vmatprep.subr.bf16.mxu0 0
    %4960 = vmatpush2.bf16.xpose.msra.mxu0 0
    %4961 = vmatprep.subr.bf16.mxu0 0
    %4962 = vmatpush2.bf16.xpose.msra.mxu0 0
    %4963 = vmatprep.subr.bf16.mxu0 0
    %4964 = vmatpush2.bf16.xpose.msra.mxu0 0
    %4965 = vmatprep.subr.bf16.mxu0 0
    %4966 = vmatpush2.bf16.xpose.msra.mxu0 0
    %4967 = vmatprep.subr.bf16.mxu0 0
    %4968 = vmatpush2.bf16.xpose.msra.mxu0 0
    %4969 = vmatprep.mubr.bf16.mxu0 0
    %4970 = vmatmul.mubr.bf16.gmra.mxu0 %v4932
    %v4971 = vpop.f32.mrf.mxu0
    %v4972 = vadd.f32 0.0, %v4971
    %v4973 = vpop.f32.mrf.mxu0
    %v4974 = vpop.f32.mrf.mxu0
    %v4975 = vpop.f32.mrf.mxu0
    %4976 = vdwg.mxu0
    %4978 = vrot.lane.b32.xlu0 %v4913, 112
    %v4979 = vpop.permute.xlu0 %4978
    %v4981 = vsel %vm288, %v4913, 0
    %v4984 = vsel %vm288, %v4979, 0
    %4986 = vmatprep.subr.bf16.mxu0 0
    %4987 = vmatpush1.bf16.xpose.msra.mxu0 0
    %4988 = vmatprep.subr.bf16.mxu0 0
    %4989 = vmatpush1.bf16.xpose.msra.mxu0 0
    %4990 = vmatprep.subr.bf16.mxu0 0
    %4991 = vmatpush1.bf16.xpose.msra.mxu0 0
    %4992 = vmatprep.subr.bf16.mxu0 0
    %4993 = vmatpush1.bf16.xpose.msra.mxu0 0
    %4994 = vmatprep.subr.bf16.mxu0 0
    %4995 = vmatpush1.bf16.xpose.msra.mxu0 0
    %4996 = vmatprep.subr.bf16.mxu0 0
    %4997 = vmatpush1.bf16.xpose.msra.mxu0 0
    %4998 = vmatprep.subr.bf16.mxu0 0
    %4999 = vmatpush1.bf16.xpose.msra.mxu0 0
    %5000 = vmatprep.subr.bf16.mxu0 0
    %5001 = vmatpush1.bf16.xpose.msra.mxu0 %v4984
    %5002 = vmatprep.subr.bf16.mxu0 0
    %5003 = vmatpush2.bf16.xpose.msra.mxu0 0
    %5004 = vmatprep.subr.bf16.mxu0 0
    %5005 = vmatpush2.bf16.xpose.msra.mxu0 0
    %5006 = vmatprep.subr.bf16.mxu0 0
    %5007 = vmatpush2.bf16.xpose.msra.mxu0 0
    %5008 = vmatprep.subr.bf16.mxu0 0
    %5009 = vmatpush2.bf16.xpose.msra.mxu0 0
    %5010 = vmatprep.subr.bf16.mxu0 0
    %5011 = vmatpush2.bf16.xpose.msra.mxu0 0
    %5012 = vmatprep.subr.bf16.mxu0 0
    %5013 = vmatpush2.bf16.xpose.msra.mxu0 0
    %5014 = vmatprep.subr.bf16.mxu0 0
    %5015 = vmatpush2.bf16.xpose.msra.mxu0 0
    %5016 = vmatprep.subr.bf16.mxu0 0
    %5017 = vmatpush2.bf16.xpose.msra.mxu0 0
    %5018 = vmatprep.mubr.bf16.mxu0 0
    %5019 = vmatmul.mubr.bf16.gmra.mxu0 %v4981
    %v5020 = vpop.f32.mrf.mxu0
    %v5021 = vadd.f32 0.0, %v5020
    %v5022 = vpop.f32.mrf.mxu0
    %v5023 = vpop.f32.mrf.mxu0
    %v5024 = vpop.f32.mrf.mxu0
    %5025 = vdwg.mxu0
    %5027 = vrot.lane.b32.xlu0 %v4914, 112
    %v5028 = vpop.permute.xlu0 %5027
    %v5030 = vsel %vm288, %v4914, 0
    %v5033 = vsel %vm288, %v5028, 0
    %5035 = vmatprep.subr.bf16.mxu0 0
    %5036 = vmatpush1.bf16.xpose.msra.mxu0 0
    %5037 = vmatprep.subr.bf16.mxu0 0
    %5038 = vmatpush1.bf16.xpose.msra.mxu0 0
    %5039 = vmatprep.subr.bf16.mxu0 0
    %5040 = vmatpush1.bf16.xpose.msra.mxu0 0
    %5041 = vmatprep.subr.bf16.mxu0 0
    %5042 = vmatpush1.bf16.xpose.msra.mxu0 0
    %5043 = vmatprep.subr.bf16.mxu0 0
    %5044 = vmatpush1.bf16.xpose.msra.mxu0 0
    %5045 = vmatprep.subr.bf16.mxu0 0
    %5046 = vmatpush1.bf16.xpose.msra.mxu0 0
    %5047 = vmatprep.subr.bf16.mxu0 0
    %5048 = vmatpush1.bf16.xpose.msra.mxu0 0
    %5049 = vmatprep.subr.bf16.mxu0 0
    %5050 = vmatpush1.bf16.xpose.msra.mxu0 %v5033
    %5051 = vmatprep.subr.bf16.mxu0 0
    %5052 = vmatpush2.bf16.xpose.msra.mxu0 0
    %5053 = vmatprep.subr.bf16.mxu0 0
    %5054 = vmatpush2.bf16.xpose.msra.mxu0 0
    %5055 = vmatprep.subr.bf16.mxu0 0
    %5056 = vmatpush2.bf16.xpose.msra.mxu0 0
    %5057 = vmatprep.subr.bf16.mxu0 0
    %5058 = vmatpush2.bf16.xpose.msra.mxu0 0
    %5059 = vmatprep.subr.bf16.mxu0 0
    %5060 = vmatpush2.bf16.xpose.msra.mxu0 0
    %5061 = vmatprep.subr.bf16.mxu0 0
    %5062 = vmatpush2.bf16.xpose.msra.mxu0 0
    %5063 = vmatprep.subr.bf16.mxu0 0
    %5064 = vmatpush2.bf16.xpose.msra.mxu0 0
    %5065 = vmatprep.subr.bf16.mxu0 0
    %5066 = vmatpush2.bf16.xpose.msra.mxu0 0
    %5067 = vmatprep.mubr.bf16.mxu0 0
    %5068 = vmatmul.mubr.bf16.gmra.mxu0 %v5030
    %v5069 = vpop.f32.mrf.mxu0
    %v5070 = vadd.f32 0.0, %v5069
    %v5071 = vpop.f32.mrf.mxu0
    %v5072 = vpop.f32.mrf.mxu0
    %v5073 = vpop.f32.mrf.mxu0
    %5074 = vdwg.mxu0
    %5076 = vrot.lane.b32.xlu0 %v4915, 112
    %v5077 = vpop.permute.xlu0 %5076
    %v5079 = vsel %vm288, %v4915, 0
    %v5082 = vsel %vm288, %v5077, 0
    %5084 = vmatprep.subr.bf16.mxu0 0
    %5085 = vmatpush1.bf16.xpose.msra.mxu0 0
    %5086 = vmatprep.subr.bf16.mxu0 0
    %5087 = vmatpush1.bf16.xpose.msra.mxu0 0
    %5088 = vmatprep.subr.bf16.mxu0 0
    %5089 = vmatpush1.bf16.xpose.msra.mxu0 0
    %5090 = vmatprep.subr.bf16.mxu0 0
    %5091 = vmatpush1.bf16.xpose.msra.mxu0 0
    %5092 = vmatprep.subr.bf16.mxu0 0
    %5093 = vmatpush1.bf16.xpose.msra.mxu0 0
    %5094 = vmatprep.subr.bf16.mxu0 0
    %5095 = vmatpush1.bf16.xpose.msra.mxu0 0
    %5096 = vmatprep.subr.bf16.mxu0 0
    %5097 = vmatpush1.bf16.xpose.msra.mxu0 0
    %5098 = vmatprep.subr.bf16.mxu0 0
    %5099 = vmatpush1.bf16.xpose.msra.mxu0 %v5082
    %5100 = vmatprep.subr.bf16.mxu0 0
    %5101 = vmatpush2.bf16.xpose.msra.mxu0 0
    %5102 = vmatprep.subr.bf16.mxu0 0
    %5103 = vmatpush2.bf16.xpose.msra.mxu0 0
    %5104 = vmatprep.subr.bf16.mxu0 0
    %5105 = vmatpush2.bf16.xpose.msra.mxu0 0
    %5106 = vmatprep.subr.bf16.mxu0 0
    %5107 = vmatpush2.bf16.xpose.msra.mxu0 0
    %5108 = vmatprep.subr.bf16.mxu0 0
    %5109 = vmatpush2.bf16.xpose.msra.mxu0 0
    %5110 = vmatprep.subr.bf16.mxu0 0
    %5111 = vmatpush2.bf16.xpose.msra.mxu0 0
    %5112 = vmatprep.subr.bf16.mxu0 0
    %5113 = vmatpush2.bf16.xpose.msra.mxu0 0
    %5114 = vmatprep.subr.bf16.mxu0 0
    %5115 = vmatpush2.bf16.xpose.msra.mxu0 0
    %5116 = vmatprep.mubr.bf16.mxu0 0
    %5117 = vmatmul.mubr.bf16.gmra.mxu0 %v5079
    %v5118 = vpop.f32.mrf.mxu0
    %v5119 = vadd.f32 0.0, %v5118
    %v5120 = vpop.f32.mrf.mxu0
    %v5121 = vpop.f32.mrf.mxu0
    %v5122 = vpop.f32.mrf.mxu0
    %5123 = vdwg.mxu0
    %5125 = vrot.lane.b32.xlu0 %v4916, 112
    %v5126 = vpop.permute.xlu0 %5125
    %v5128 = vsel %vm288, %v4916, 0
    %v5131 = vsel %vm288, %v5126, 0
    %5133 = vmatprep.subr.bf16.mxu0 0
    %5134 = vmatpush1.bf16.xpose.msra.mxu0 0
    %5135 = vmatprep.subr.bf16.mxu0 0
    %5136 = vmatpush1.bf16.xpose.msra.mxu0 0
    %5137 = vmatprep.subr.bf16.mxu0 0
    %5138 = vmatpush1.bf16.xpose.msra.mxu0 0
    %5139 = vmatprep.subr.bf16.mxu0 0
    %5140 = vmatpush1.bf16.xpose.msra.mxu0 0
    %5141 = vmatprep.subr.bf16.mxu0 0
    %5142 = vmatpush1.bf16.xpose.msra.mxu0 0
    %5143 = vmatprep.subr.bf16.mxu0 0
    %5144 = vmatpush1.bf16.xpose.msra.mxu0 0
    %5145 = vmatprep.subr.bf16.mxu0 0
    %5146 = vmatpush1.bf16.xpose.msra.mxu0 0
    %5147 = vmatprep.subr.bf16.mxu0 0
    %5148 = vmatpush1.bf16.xpose.msra.mxu0 %v5131
    %5149 = vmatprep.subr.bf16.mxu0 0
    %5150 = vmatpush2.bf16.xpose.msra.mxu0 0
    %5151 = vmatprep.subr.bf16.mxu0 0
    %5152 = vmatpush2.bf16.xpose.msra.mxu0 0
    %5153 = vmatprep.subr.bf16.mxu0 0
    %5154 = vmatpush2.bf16.xpose.msra.mxu0 0
    %5155 = vmatprep.subr.bf16.mxu0 0
    %5156 = vmatpush2.bf16.xpose.msra.mxu0 0
    %5157 = vmatprep.subr.bf16.mxu0 0
    %5158 = vmatpush2.bf16.xpose.msra.mxu0 0
    %5159 = vmatprep.subr.bf16.mxu0 0
    %5160 = vmatpush2.bf16.xpose.msra.mxu0 0
    %5161 = vmatprep.subr.bf16.mxu0 0
    %5162 = vmatpush2.bf16.xpose.msra.mxu0 0
    %5163 = vmatprep.subr.bf16.mxu0 0
    %5164 = vmatpush2.bf16.xpose.msra.mxu0 0
    %5165 = vmatprep.mubr.bf16.mxu0 0
    %5166 = vmatmul.mubr.bf16.gmra.mxu0 %v5128
    %v5167 = vpop.f32.mrf.mxu0
    %v5168 = vadd.f32 0.0, %v5167
    %v5169 = vpop.f32.mrf.mxu0
    %v5170 = vpop.f32.mrf.mxu0
    %v5171 = vpop.f32.mrf.mxu0
    %5172 = vdwg.mxu0
    %5174 = vrot.lane.b32.xlu0 %v4917, 112
    %v5175 = vpop.permute.xlu0 %5174
    %v5177 = vsel %vm288, %v4917, 0
    %v5180 = vsel %vm288, %v5175, 0
    %5182 = vmatprep.subr.bf16.mxu0 0
    %5183 = vmatpush1.bf16.xpose.msra.mxu0 0
    %5184 = vmatprep.subr.bf16.mxu0 0
    %5185 = vmatpush1.bf16.xpose.msra.mxu0 0
    %5186 = vmatprep.subr.bf16.mxu0 0
    %5187 = vmatpush1.bf16.xpose.msra.mxu0 0
    %5188 = vmatprep.subr.bf16.mxu0 0
    %5189 = vmatpush1.bf16.xpose.msra.mxu0 0
    %5190 = vmatprep.subr.bf16.mxu0 0
    %5191 = vmatpush1.bf16.xpose.msra.mxu0 0
    %5192 = vmatprep.subr.bf16.mxu0 0
    %5193 = vmatpush1.bf16.xpose.msra.mxu0 0
    %5194 = vmatprep.subr.bf16.mxu0 0
    %5195 = vmatpush1.bf16.xpose.msra.mxu0 0
    %5196 = vmatprep.subr.bf16.mxu0 0
    %5197 = vmatpush1.bf16.xpose.msra.mxu0 %v5180
    %5198 = vmatprep.subr.bf16.mxu0 0
    %5199 = vmatpush2.bf16.xpose.msra.mxu0 0
    %5200 = vmatprep.subr.bf16.mxu0 0
    %5201 = vmatpush2.bf16.xpose.msra.mxu0 0
    %5202 = vmatprep.subr.bf16.mxu0 0
    %5203 = vmatpush2.bf16.xpose.msra.mxu0 0
    %5204 = vmatprep.subr.bf16.mxu0 0
    %5205 = vmatpush2.bf16.xpose.msra.mxu0 0
    %5206 = vmatprep.subr.bf16.mxu0 0
    %5207 = vmatpush2.bf16.xpose.msra.mxu0 0
    %5208 = vmatprep.subr.bf16.mxu0 0
    %5209 = vmatpush2.bf16.xpose.msra.mxu0 0
    %5210 = vmatprep.subr.bf16.mxu0 0
    %5211 = vmatpush2.bf16.xpose.msra.mxu0 0
    %5212 = vmatprep.subr.bf16.mxu0 0
    %5213 = vmatpush2.bf16.xpose.msra.mxu0 0
    %5214 = vmatprep.mubr.bf16.mxu0 0
    %5215 = vmatmul.mubr.bf16.gmra.mxu0 %v5177
    %v5216 = vpop.f32.mrf.mxu0
    %v5217 = vadd.f32 0.0, %v5216
    %v5218 = vpop.f32.mrf.mxu0
    %v5219 = vpop.f32.mrf.mxu0
    %v5220 = vpop.f32.mrf.mxu0
    %5221 = vdwg.mxu0
    %5223 = vrot.lane.b32.xlu0 %v4918, 112
    %v5224 = vpop.permute.xlu0 %5223
    %v5226 = vsel %vm288, %v4918, 0
    %v5229 = vsel %vm288, %v5224, 0
    %5231 = vmatprep.subr.bf16.mxu0 0
    %5232 = vmatpush1.bf16.xpose.msra.mxu0 0
    %5233 = vmatprep.subr.bf16.mxu0 0
    %5234 = vmatpush1.bf16.xpose.msra.mxu0 0
    %5235 = vmatprep.subr.bf16.mxu0 0
    %5236 = vmatpush1.bf16.xpose.msra.mxu0 0
    %5237 = vmatprep.subr.bf16.mxu0 0
    %5238 = vmatpush1.bf16.xpose.msra.mxu0 0
    %5239 = vmatprep.subr.bf16.mxu0 0
    %5240 = vmatpush1.bf16.xpose.msra.mxu0 0
    %5241 = vmatprep.subr.bf16.mxu0 0
    %5242 = vmatpush1.bf16.xpose.msra.mxu0 0
    %5243 = vmatprep.subr.bf16.mxu0 0
    %5244 = vmatpush1.bf16.xpose.msra.mxu0 0
    %5245 = vmatprep.subr.bf16.mxu0 0
    %5246 = vmatpush1.bf16.xpose.msra.mxu0 %v5229
    %5247 = vmatprep.subr.bf16.mxu0 0
    %5248 = vmatpush2.bf16.xpose.msra.mxu0 0
    %5249 = vmatprep.subr.bf16.mxu0 0
    %5250 = vmatpush2.bf16.xpose.msra.mxu0 0
    %5251 = vmatprep.subr.bf16.mxu0 0
    %5252 = vmatpush2.bf16.xpose.msra.mxu0 0
    %5253 = vmatprep.subr.bf16.mxu0 0
    %5254 = vmatpush2.bf16.xpose.msra.mxu0 0
    %5255 = vmatprep.subr.bf16.mxu0 0
    %5256 = vmatpush2.bf16.xpose.msra.mxu0 0
    %5257 = vmatprep.subr.bf16.mxu0 0
    %5258 = vmatpush2.bf16.xpose.msra.mxu0 0
    %5259 = vmatprep.subr.bf16.mxu0 0
    %5260 = vmatpush2.bf16.xpose.msra.mxu0 0
    %5261 = vmatprep.subr.bf16.mxu0 0
    %5262 = vmatpush2.bf16.xpose.msra.mxu0 0
    %5263 = vmatprep.mubr.bf16.mxu0 0
    %5264 = vmatmul.mubr.bf16.gmra.mxu0 %v5226
    %v5265 = vpop.f32.mrf.mxu0
    %v5266 = vadd.f32 0.0, %v5265
    %v5267 = vpop.f32.mrf.mxu0
    %v5268 = vpop.f32.mrf.mxu0
    %v5269 = vpop.f32.mrf.mxu0
    %5270 = vdwg.mxu0
    %5272 = vrot.lane.b32.xlu0 %v4919, 112
    %v5273 = vpop.permute.xlu0 %5272
    %v5275 = vsel %vm288, %v4919, 0
    %v5278 = vsel %vm288, %v5273, 0
    %5280 = vmatprep.subr.bf16.mxu0 0
    %5281 = vmatpush1.bf16.xpose.msra.mxu0 0
    %5282 = vmatprep.subr.bf16.mxu0 0
    %5283 = vmatpush1.bf16.xpose.msra.mxu0 0
    %5284 = vmatprep.subr.bf16.mxu0 0
    %5285 = vmatpush1.bf16.xpose.msra.mxu0 0
    %5286 = vmatprep.subr.bf16.mxu0 0
    %5287 = vmatpush1.bf16.xpose.msra.mxu0 0
    %5288 = vmatprep.subr.bf16.mxu0 0
    %5289 = vmatpush1.bf16.xpose.msra.mxu0 0
    %5290 = vmatprep.subr.bf16.mxu0 0
    %5291 = vmatpush1.bf16.xpose.msra.mxu0 0
    %5292 = vmatprep.subr.bf16.mxu0 0
    %5293 = vmatpush1.bf16.xpose.msra.mxu0 0
    %5294 = vmatprep.subr.bf16.mxu0 0
    %5295 = vmatpush1.bf16.xpose.msra.mxu0 %v5278
    %5296 = vmatprep.subr.bf16.mxu0 0
    %5297 = vmatpush2.bf16.xpose.msra.mxu0 0
    %5298 = vmatprep.subr.bf16.mxu0 0
    %5299 = vmatpush2.bf16.xpose.msra.mxu0 0
    %5300 = vmatprep.subr.bf16.mxu0 0
    %5301 = vmatpush2.bf16.xpose.msra.mxu0 0
    %5302 = vmatprep.subr.bf16.mxu0 0
    %5303 = vmatpush2.bf16.xpose.msra.mxu0 0
    %5304 = vmatprep.subr.bf16.mxu0 0
    %5305 = vmatpush2.bf16.xpose.msra.mxu0 0
    %5306 = vmatprep.subr.bf16.mxu0 0
    %5307 = vmatpush2.bf16.xpose.msra.mxu0 0
    %5308 = vmatprep.subr.bf16.mxu0 0
    %5309 = vmatpush2.bf16.xpose.msra.mxu0 0
    %5310 = vmatprep.subr.bf16.mxu0 0
    %5311 = vmatpush2.bf16.xpose.msra.mxu0 0
    %5312 = vmatprep.mubr.bf16.mxu0 0
    %5313 = vmatmul.mubr.bf16.gmra.mxu0 %v5275
    %v5314 = vpop.f32.mrf.mxu0
    %v5315 = vadd.f32 0.0, %v5314
    %v5316 = vpop.f32.mrf.mxu0
    %v5317 = vpop.f32.mrf.mxu0
    %v5318 = vpop.f32.mrf.mxu0
    %5319 = vdwg.mxu0
    %5321 = vrot.lane.b32.xlu0 %v4920, 112
    %v5322 = vpop.permute.xlu0 %5321
    %v5324 = vsel %vm288, %v4920, 0
    %v5327 = vsel %vm288, %v5322, 0
    %5329 = vmatprep.subr.bf16.mxu0 0
    %5330 = vmatpush1.bf16.xpose.msra.mxu0 0
    %5331 = vmatprep.subr.bf16.mxu0 0
    %5332 = vmatpush1.bf16.xpose.msra.mxu0 0
    %5333 = vmatprep.subr.bf16.mxu0 0
    %5334 = vmatpush1.bf16.xpose.msra.mxu0 0
    %5335 = vmatprep.subr.bf16.mxu0 0
    %5336 = vmatpush1.bf16.xpose.msra.mxu0 0
    %5337 = vmatprep.subr.bf16.mxu0 0
    %5338 = vmatpush1.bf16.xpose.msra.mxu0 0
    %5339 = vmatprep.subr.bf16.mxu0 0
    %5340 = vmatpush1.bf16.xpose.msra.mxu0 0
    %5341 = vmatprep.subr.bf16.mxu0 0
    %5342 = vmatpush1.bf16.xpose.msra.mxu0 0
    %5343 = vmatprep.subr.bf16.mxu0 0
    %5344 = vmatpush1.bf16.xpose.msra.mxu0 %v5327
    %5345 = vmatprep.subr.bf16.mxu0 0
    %5346 = vmatpush2.bf16.xpose.msra.mxu0 0
    %5347 = vmatprep.subr.bf16.mxu0 0
    %5348 = vmatpush2.bf16.xpose.msra.mxu0 0
    %5349 = vmatprep.subr.bf16.mxu0 0
    %5350 = vmatpush2.bf16.xpose.msra.mxu0 0
    %5351 = vmatprep.subr.bf16.mxu0 0
    %5352 = vmatpush2.bf16.xpose.msra.mxu0 0
    %5353 = vmatprep.subr.bf16.mxu0 0
    %5354 = vmatpush2.bf16.xpose.msra.mxu0 0
    %5355 = vmatprep.subr.bf16.mxu0 0
    %5356 = vmatpush2.bf16.xpose.msra.mxu0 0
    %5357 = vmatprep.subr.bf16.mxu0 0
    %5358 = vmatpush2.bf16.xpose.msra.mxu0 0
    %5359 = vmatprep.subr.bf16.mxu0 0
    %5360 = vmatpush2.bf16.xpose.msra.mxu0 0
    %5361 = vmatprep.mubr.bf16.mxu0 0
    %5362 = vmatmul.mubr.bf16.gmra.mxu0 %v5324
    %v5363 = vpop.f32.mrf.mxu0
    %v5364 = vadd.f32 0.0, %v5363
    %v5365 = vpop.f32.mrf.mxu0
    %v5366 = vpop.f32.mrf.mxu0
    %v5367 = vpop.f32.mrf.mxu0
    %5368 = vdwg.mxu0
    %5370 = vrot.lane.b32.xlu0 %v4921, 112
    %v5371 = vpop.permute.xlu0 %5370
    %v5373 = vsel %vm288, %v4921, 0
    %v5376 = vsel %vm288, %v5371, 0
    %5378 = vmatprep.subr.bf16.mxu0 0
    %5379 = vmatpush1.bf16.xpose.msra.mxu0 0
    %5380 = vmatprep.subr.bf16.mxu0 0
    %5381 = vmatpush1.bf16.xpose.msra.mxu0 0
    %5382 = vmatprep.subr.bf16.mxu0 0
    %5383 = vmatpush1.bf16.xpose.msra.mxu0 0
    %5384 = vmatprep.subr.bf16.mxu0 0
    %5385 = vmatpush1.bf16.xpose.msra.mxu0 0
    %5386 = vmatprep.subr.bf16.mxu0 0
    %5387 = vmatpush1.bf16.xpose.msra.mxu0 0
    %5388 = vmatprep.subr.bf16.mxu0 0
    %5389 = vmatpush1.bf16.xpose.msra.mxu0 0
    %5390 = vmatprep.subr.bf16.mxu0 0
    %5391 = vmatpush1.bf16.xpose.msra.mxu0 0
    %5392 = vmatprep.subr.bf16.mxu0 0
    %5393 = vmatpush1.bf16.xpose.msra.mxu0 %v5376
    %5394 = vmatprep.subr.bf16.mxu0 0
    %5395 = vmatpush2.bf16.xpose.msra.mxu0 0
    %5396 = vmatprep.subr.bf16.mxu0 0
    %5397 = vmatpush2.bf16.xpose.msra.mxu0 0
    %5398 = vmatprep.subr.bf16.mxu0 0
    %5399 = vmatpush2.bf16.xpose.msra.mxu0 0
    %5400 = vmatprep.subr.bf16.mxu0 0
    %5401 = vmatpush2.bf16.xpose.msra.mxu0 0
    %5402 = vmatprep.subr.bf16.mxu0 0
    %5403 = vmatpush2.bf16.xpose.msra.mxu0 0
    %5404 = vmatprep.subr.bf16.mxu0 0
    %5405 = vmatpush2.bf16.xpose.msra.mxu0 0
    %5406 = vmatprep.subr.bf16.mxu0 0
    %5407 = vmatpush2.bf16.xpose.msra.mxu0 0
    %5408 = vmatprep.subr.bf16.mxu0 0
    %5409 = vmatpush2.bf16.xpose.msra.mxu0 0
    %5410 = vmatprep.mubr.bf16.mxu0 0
    %5411 = vmatmul.mubr.bf16.gmra.mxu0 %v5373
    %v5412 = vpop.f32.mrf.mxu0
    %v5413 = vadd.f32 0.0, %v5412
    %v5414 = vpop.f32.mrf.mxu0
    %v5415 = vpop.f32.mrf.mxu0
    %v5416 = vpop.f32.mrf.mxu0
    %5417 = vdwg.mxu0
    %5419 = vrot.lane.b32.xlu0 %v4922, 112
    %v5420 = vpop.permute.xlu0 %5419
    %v5422 = vsel %vm288, %v4922, 0
    %v5425 = vsel %vm288, %v5420, 0
    %5427 = vmatprep.subr.bf16.mxu0 0
    %5428 = vmatpush1.bf16.xpose.msra.mxu0 0
    %5429 = vmatprep.subr.bf16.mxu0 0
    %5430 = vmatpush1.bf16.xpose.msra.mxu0 0
    %5431 = vmatprep.subr.bf16.mxu0 0
    %5432 = vmatpush1.bf16.xpose.msra.mxu0 0
    %5433 = vmatprep.subr.bf16.mxu0 0
    %5434 = vmatpush1.bf16.xpose.msra.mxu0 0
    %5435 = vmatprep.subr.bf16.mxu0 0
    %5436 = vmatpush1.bf16.xpose.msra.mxu0 0
    %5437 = vmatprep.subr.bf16.mxu0 0
    %5438 = vmatpush1.bf16.xpose.msra.mxu0 0
    %5439 = vmatprep.subr.bf16.mxu0 0
    %5440 = vmatpush1.bf16.xpose.msra.mxu0 0
    %5441 = vmatprep.subr.bf16.mxu0 0
    %5442 = vmatpush1.bf16.xpose.msra.mxu0 %v5425
    %5443 = vmatprep.subr.bf16.mxu0 0
    %5444 = vmatpush2.bf16.xpose.msra.mxu0 0
    %5445 = vmatprep.subr.bf16.mxu0 0
    %5446 = vmatpush2.bf16.xpose.msra.mxu0 0
    %5447 = vmatprep.subr.bf16.mxu0 0
    %5448 = vmatpush2.bf16.xpose.msra.mxu0 0
    %5449 = vmatprep.subr.bf16.mxu0 0
    %5450 = vmatpush2.bf16.xpose.msra.mxu0 0
    %5451 = vmatprep.subr.bf16.mxu0 0
    %5452 = vmatpush2.bf16.xpose.msra.mxu0 0
    %5453 = vmatprep.subr.bf16.mxu0 0
    %5454 = vmatpush2.bf16.xpose.msra.mxu0 0
    %5455 = vmatprep.subr.bf16.mxu0 0
    %5456 = vmatpush2.bf16.xpose.msra.mxu0 0
    %5457 = vmatprep.subr.bf16.mxu0 0
    %5458 = vmatpush2.bf16.xpose.msra.mxu0 0
    %5459 = vmatprep.mubr.bf16.mxu0 0
    %5460 = vmatmul.mubr.bf16.gmra.mxu0 %v5422
    %v5461 = vpop.f32.mrf.mxu0
    %v5462 = vadd.f32 0.0, %v5461
    %v5463 = vpop.f32.mrf.mxu0
    %v5464 = vpop.f32.mrf.mxu0
    %v5465 = vpop.f32.mrf.mxu0
    %5466 = vdwg.mxu0
    %5468 = vrot.lane.b32.xlu0 %v4923, 112
    %v5469 = vpop.permute.xlu0 %5468
    %v5471 = vsel %vm288, %v4923, 0
    %v5474 = vsel %vm288, %v5469, 0
    %5476 = vmatprep.subr.bf16.mxu0 0
    %5477 = vmatpush1.bf16.xpose.msra.mxu0 0
    %5478 = vmatprep.subr.bf16.mxu0 0
    %5479 = vmatpush1.bf16.xpose.msra.mxu0 0
    %5480 = vmatprep.subr.bf16.mxu0 0
    %5481 = vmatpush1.bf16.xpose.msra.mxu0 0
    %5482 = vmatprep.subr.bf16.mxu0 0
    %5483 = vmatpush1.bf16.xpose.msra.mxu0 0
    %5484 = vmatprep.subr.bf16.mxu0 0
    %5485 = vmatpush1.bf16.xpose.msra.mxu0 0
    %5486 = vmatprep.subr.bf16.mxu0 0
    %5487 = vmatpush1.bf16.xpose.msra.mxu0 0
    %5488 = vmatprep.subr.bf16.mxu0 0
    %5489 = vmatpush1.bf16.xpose.msra.mxu0 0
    %5490 = vmatprep.subr.bf16.mxu0 0
    %5491 = vmatpush1.bf16.xpose.msra.mxu0 %v5474
    %5492 = vmatprep.subr.bf16.mxu0 0
    %5493 = vmatpush2.bf16.xpose.msra.mxu0 0
    %5494 = vmatprep.subr.bf16.mxu0 0
    %5495 = vmatpush2.bf16.xpose.msra.mxu0 0
    %5496 = vmatprep.subr.bf16.mxu0 0
    %5497 = vmatpush2.bf16.xpose.msra.mxu0 0
    %5498 = vmatprep.subr.bf16.mxu0 0
    %5499 = vmatpush2.bf16.xpose.msra.mxu0 0
    %5500 = vmatprep.subr.bf16.mxu0 0
    %5501 = vmatpush2.bf16.xpose.msra.mxu0 0
    %5502 = vmatprep.subr.bf16.mxu0 0
    %5503 = vmatpush2.bf16.xpose.msra.mxu0 0
    %5504 = vmatprep.subr.bf16.mxu0 0
    %5505 = vmatpush2.bf16.xpose.msra.mxu0 0
    %5506 = vmatprep.subr.bf16.mxu0 0
    %5507 = vmatpush2.bf16.xpose.msra.mxu0 0
    %5508 = vmatprep.mubr.bf16.mxu0 0
    %5509 = vmatmul.mubr.bf16.gmra.mxu0 %v5471
    %v5510 = vpop.f32.mrf.mxu0
    %v5511 = vadd.f32 0.0, %v5510
    %v5512 = vpop.f32.mrf.mxu0
    %v5513 = vpop.f32.mrf.mxu0
    %v5514 = vpop.f32.mrf.mxu0
    %5515 = vdwg.mxu0
    %5517 = vrot.lane.b32.xlu0 %v4924, 112
    %v5518 = vpop.permute.xlu0 %5517
    %v5520 = vsel %vm288, %v4924, 0
    %v5523 = vsel %vm288, %v5518, 0
    %5525 = vmatprep.subr.bf16.mxu0 0
    %5526 = vmatpush1.bf16.xpose.msra.mxu0 0
    %5527 = vmatprep.subr.bf16.mxu0 0
    %5528 = vmatpush1.bf16.xpose.msra.mxu0 0
    %5529 = vmatprep.subr.bf16.mxu0 0
    %5530 = vmatpush1.bf16.xpose.msra.mxu0 0
    %5531 = vmatprep.subr.bf16.mxu0 0
    %5532 = vmatpush1.bf16.xpose.msra.mxu0 0
    %5533 = vmatprep.subr.bf16.mxu0 0
    %5534 = vmatpush1.bf16.xpose.msra.mxu0 0
    %5535 = vmatprep.subr.bf16.mxu0 0
    %5536 = vmatpush1.bf16.xpose.msra.mxu0 0
    %5537 = vmatprep.subr.bf16.mxu0 0
    %5538 = vmatpush1.bf16.xpose.msra.mxu0 0
    %5539 = vmatprep.subr.bf16.mxu0 0
    %5540 = vmatpush1.bf16.xpose.msra.mxu0 %v5523
    %5541 = vmatprep.subr.bf16.mxu0 0
    %5542 = vmatpush2.bf16.xpose.msra.mxu0 0
    %5543 = vmatprep.subr.bf16.mxu0 0
    %5544 = vmatpush2.bf16.xpose.msra.mxu0 0
    %5545 = vmatprep.subr.bf16.mxu0 0
    %5546 = vmatpush2.bf16.xpose.msra.mxu0 0
    %5547 = vmatprep.subr.bf16.mxu0 0
    %5548 = vmatpush2.bf16.xpose.msra.mxu0 0
    %5549 = vmatprep.subr.bf16.mxu0 0
    %5550 = vmatpush2.bf16.xpose.msra.mxu0 0
    %5551 = vmatprep.subr.bf16.mxu0 0
    %5552 = vmatpush2.bf16.xpose.msra.mxu0 0
    %5553 = vmatprep.subr.bf16.mxu0 0
    %5554 = vmatpush2.bf16.xpose.msra.mxu0 0
    %5555 = vmatprep.subr.bf16.mxu0 0
    %5556 = vmatpush2.bf16.xpose.msra.mxu0 0
    %5557 = vmatprep.mubr.bf16.mxu0 0
    %5558 = vmatmul.mubr.bf16.gmra.mxu0 %v5520
    %v5559 = vpop.f32.mrf.mxu0
    %v5560 = vadd.f32 0.0, %v5559
    %v5561 = vpop.f32.mrf.mxu0
    %v5562 = vpop.f32.mrf.mxu0
    %v5563 = vpop.f32.mrf.mxu0
    %5564 = vdwg.mxu0
    %5566 = vrot.lane.b32.xlu0 %v4925, 112
    %v5567 = vpop.permute.xlu0 %5566
    %v5569 = vsel %vm288, %v4925, 0
    %v5572 = vsel %vm288, %v5567, 0
    %5574 = vmatprep.subr.bf16.mxu0 0
    %5575 = vmatpush1.bf16.xpose.msra.mxu0 0
    %5576 = vmatprep.subr.bf16.mxu0 0
    %5577 = vmatpush1.bf16.xpose.msra.mxu0 0
    %5578 = vmatprep.subr.bf16.mxu0 0
    %5579 = vmatpush1.bf16.xpose.msra.mxu0 0
    %5580 = vmatprep.subr.bf16.mxu0 0
    %5581 = vmatpush1.bf16.xpose.msra.mxu0 0
    %5582 = vmatprep.subr.bf16.mxu0 0
    %5583 = vmatpush1.bf16.xpose.msra.mxu0 0
    %5584 = vmatprep.subr.bf16.mxu0 0
    %5585 = vmatpush1.bf16.xpose.msra.mxu0 0
    %5586 = vmatprep.subr.bf16.mxu0 0
    %5587 = vmatpush1.bf16.xpose.msra.mxu0 0
    %5588 = vmatprep.subr.bf16.mxu0 0
    %5589 = vmatpush1.bf16.xpose.msra.mxu0 %v5572
    %5590 = vmatprep.subr.bf16.mxu0 0
    %5591 = vmatpush2.bf16.xpose.msra.mxu0 0
    %5592 = vmatprep.subr.bf16.mxu0 0
    %5593 = vmatpush2.bf16.xpose.msra.mxu0 0
    %5594 = vmatprep.subr.bf16.mxu0 0
    %5595 = vmatpush2.bf16.xpose.msra.mxu0 0
    %5596 = vmatprep.subr.bf16.mxu0 0
    %5597 = vmatpush2.bf16.xpose.msra.mxu0 0
    %5598 = vmatprep.subr.bf16.mxu0 0
    %5599 = vmatpush2.bf16.xpose.msra.mxu0 0
    %5600 = vmatprep.subr.bf16.mxu0 0
    %5601 = vmatpush2.bf16.xpose.msra.mxu0 0
    %5602 = vmatprep.subr.bf16.mxu0 0
    %5603 = vmatpush2.bf16.xpose.msra.mxu0 0
    %5604 = vmatprep.subr.bf16.mxu0 0
    %5605 = vmatpush2.bf16.xpose.msra.mxu0 0
    %5606 = vmatprep.mubr.bf16.mxu0 0
    %5607 = vmatmul.mubr.bf16.gmra.mxu0 %v5569
    %v5608 = vpop.f32.mrf.mxu0
    %v5609 = vadd.f32 0.0, %v5608
    %v5610 = vpop.f32.mrf.mxu0
    %v5611 = vpop.f32.mrf.mxu0
    %v5612 = vpop.f32.mrf.mxu0
    %5613 = vdwg.mxu0
    %5615 = vrot.lane.b32.xlu0 %v4926, 112
    %v5616 = vpop.permute.xlu0 %5615
    %v5618 = vsel %vm288, %v4926, 0
    %v5621 = vsel %vm288, %v5616, 0
    %5623 = vmatprep.subr.bf16.mxu0 0
    %5624 = vmatpush1.bf16.xpose.msra.mxu0 0
    %5625 = vmatprep.subr.bf16.mxu0 0
    %5626 = vmatpush1.bf16.xpose.msra.mxu0 0
    %5627 = vmatprep.subr.bf16.mxu0 0
    %5628 = vmatpush1.bf16.xpose.msra.mxu0 0
    %5629 = vmatprep.subr.bf16.mxu0 0
    %5630 = vmatpush1.bf16.xpose.msra.mxu0 0
    %5631 = vmatprep.subr.bf16.mxu0 0
    %5632 = vmatpush1.bf16.xpose.msra.mxu0 0
    %5633 = vmatprep.subr.bf16.mxu0 0
    %5634 = vmatpush1.bf16.xpose.msra.mxu0 0
    %5635 = vmatprep.subr.bf16.mxu0 0
    %5636 = vmatpush1.bf16.xpose.msra.mxu0 0
    %5637 = vmatprep.subr.bf16.mxu0 0
    %5638 = vmatpush1.bf16.xpose.msra.mxu0 %v5621
    %5639 = vmatprep.subr.bf16.mxu0 0
    %5640 = vmatpush2.bf16.xpose.msra.mxu0 0
    %5641 = vmatprep.subr.bf16.mxu0 0
    %5642 = vmatpush2.bf16.xpose.msra.mxu0 0
    %5643 = vmatprep.subr.bf16.mxu0 0
    %5644 = vmatpush2.bf16.xpose.msra.mxu0 0
    %5645 = vmatprep.subr.bf16.mxu0 0
    %5646 = vmatpush2.bf16.xpose.msra.mxu0 0
    %5647 = vmatprep.subr.bf16.mxu0 0
    %5648 = vmatpush2.bf16.xpose.msra.mxu0 0
    %5649 = vmatprep.subr.bf16.mxu0 0
    %5650 = vmatpush2.bf16.xpose.msra.mxu0 0
    %5651 = vmatprep.subr.bf16.mxu0 0
    %5652 = vmatpush2.bf16.xpose.msra.mxu0 0
    %5653 = vmatprep.subr.bf16.mxu0 0
    %5654 = vmatpush2.bf16.xpose.msra.mxu0 0
    %5655 = vmatprep.mubr.bf16.mxu0 0
    %5656 = vmatmul.mubr.bf16.gmra.mxu0 %v5618
    %v5657 = vpop.f32.mrf.mxu0
    %v5658 = vadd.f32 0.0, %v5657
    %v5659 = vpop.f32.mrf.mxu0
    %v5660 = vpop.f32.mrf.mxu0
    %v5661 = vpop.f32.mrf.mxu0
    %5662 = vdwg.mxu0
    %5664 = vrot.lane.b32.xlu0 %v4927, 112
    %v5665 = vpop.permute.xlu0 %5664
    %v5667 = vsel %vm288, %v4927, 0
    %v5670 = vsel %vm288, %v5665, 0
    %5672 = vmatprep.subr.bf16.mxu0 0
    %5673 = vmatpush1.bf16.xpose.msra.mxu0 0
    %5674 = vmatprep.subr.bf16.mxu0 0
    %5675 = vmatpush1.bf16.xpose.msra.mxu0 0
    %5676 = vmatprep.subr.bf16.mxu0 0
    %5677 = vmatpush1.bf16.xpose.msra.mxu0 0
    %5678 = vmatprep.subr.bf16.mxu0 0
    %5679 = vmatpush1.bf16.xpose.msra.mxu0 0
    %5680 = vmatprep.subr.bf16.mxu0 0
    %5681 = vmatpush1.bf16.xpose.msra.mxu0 0
    %5682 = vmatprep.subr.bf16.mxu0 0
    %5683 = vmatpush1.bf16.xpose.msra.mxu0 0
    %5684 = vmatprep.subr.bf16.mxu0 0
    %5685 = vmatpush1.bf16.xpose.msra.mxu0 0
    %5686 = vmatprep.subr.bf16.mxu0 0
    %5687 = vmatpush1.bf16.xpose.msra.mxu0 %v5670
    %5688 = vmatprep.subr.bf16.mxu0 0
    %5689 = vmatpush2.bf16.xpose.msra.mxu0 0
    %5690 = vmatprep.subr.bf16.mxu0 0
    %5691 = vmatpush2.bf16.xpose.msra.mxu0 0
    %5692 = vmatprep.subr.bf16.mxu0 0
    %5693 = vmatpush2.bf16.xpose.msra.mxu0 0
    %5694 = vmatprep.subr.bf16.mxu0 0
    %5695 = vmatpush2.bf16.xpose.msra.mxu0 0
    %5696 = vmatprep.subr.bf16.mxu0 0
    %5697 = vmatpush2.bf16.xpose.msra.mxu0 0
    %5698 = vmatprep.subr.bf16.mxu0 0
    %5699 = vmatpush2.bf16.xpose.msra.mxu0 0
    %5700 = vmatprep.subr.bf16.mxu0 0
    %5701 = vmatpush2.bf16.xpose.msra.mxu0 0
    %5702 = vmatprep.subr.bf16.mxu0 0
    %5703 = vmatpush2.bf16.xpose.msra.mxu0 0
    %5704 = vmatprep.mubr.bf16.mxu0 0
    %5705 = vmatmul.mubr.bf16.gmra.mxu0 %v5667
    %v5706 = vpop.f32.mrf.mxu0
    %v5707 = vadd.f32 0.0, %v5706
    %v5708 = vpop.f32.mrf.mxu0
    %v5709 = vpop.f32.mrf.mxu0
    %v5710 = vpop.f32.mrf.mxu0
    %5711 = vdwg.mxu0
    %v5712 = vsel %vm1070, %v4972, -inf
    %5713 = vmax.xlane.f32.xlu0 %v5712
    %v5714 = vpop.xlane.xlu0 %5713
    %v5715 = vsel %vm1070, %v5021, -inf
    %5716 = vmax.xlane.f32.xlu0 %v5715
    %v5717 = vpop.xlane.xlu0 %5716
    %v5718 = vsel %vm1070, %v5070, -inf
    %5719 = vmax.xlane.f32.xlu0 %v5718
    %v5720 = vpop.xlane.xlu0 %5719
    %v5721 = vsel %vm1070, %v5119, -inf
    %5722 = vmax.xlane.f32.xlu0 %v5721
    %v5723 = vpop.xlane.xlu0 %5722
    %v5724 = vsel %vm1070, %v5168, -inf
    %5725 = vmax.xlane.f32.xlu0 %v5724
    %v5726 = vpop.xlane.xlu0 %5725
    %v5727 = vsel %vm1070, %v5217, -inf
    %5728 = vmax.xlane.f32.xlu0 %v5727
    %v5729 = vpop.xlane.xlu0 %5728
    %v5730 = vsel %vm1070, %v5266, -inf
    %5731 = vmax.xlane.f32.xlu0 %v5730
    %v5732 = vpop.xlane.xlu0 %5731
    %v5733 = vsel %vm1070, %v5315, -inf
    %5734 = vmax.xlane.f32.xlu0 %v5733
    %v5735 = vpop.xlane.xlu0 %5734
    %v5736 = vsel %vm1070, %v5364, -inf
    %5737 = vmax.xlane.f32.xlu0 %v5736
    %v5738 = vpop.xlane.xlu0 %5737
    %v5739 = vsel %vm1070, %v5413, -inf
    %5740 = vmax.xlane.f32.xlu0 %v5739
    %v5741 = vpop.xlane.xlu0 %5740
    %v5742 = vsel %vm1070, %v5462, -inf
    %5743 = vmax.xlane.f32.xlu0 %v5742
    %v5744 = vpop.xlane.xlu0 %5743
    %v5745 = vsel %vm1070, %v5511, -inf
    %5746 = vmax.xlane.f32.xlu0 %v5745
    %v5747 = vpop.xlane.xlu0 %5746
    %v5748 = vsel %vm1070, %v5560, -inf
    %5749 = vmax.xlane.f32.xlu0 %v5748
    %v5750 = vpop.xlane.xlu0 %5749
    %v5751 = vsel %vm1070, %v5609, -inf
    %5752 = vmax.xlane.f32.xlu0 %v5751
    %v5753 = vpop.xlane.xlu0 %5752
    %v5754 = vsel %vm1070, %v5658, -inf
    %5755 = vmax.xlane.f32.xlu0 %v5754
    %v5756 = vpop.xlane.xlu0 %5755
    %v5757 = vsel %vm1070, %v5707, -inf
    %5758 = vmax.xlane.f32.xlu0 %v5757
    %v5759 = vpop.xlane.xlu0 %5758
    %v5760 = vsub.f32 %v4972, %v5714
    %v5761 = vsub.f32 %v5021, %v5717
    %v5762 = vsub.f32 %v5070, %v5720
    %v5763 = vsub.f32 %v5119, %v5723
    %v5764 = vsub.f32 %v5168, %v5726
    %v5765 = vsub.f32 %v5217, %v5729
    %v5766 = vsub.f32 %v5266, %v5732
    %v5767 = vsub.f32 %v5315, %v5735
    %v5768 = vsub.f32 %v5364, %v5738
    %v5769 = vsub.f32 %v5413, %v5741
    %v5770 = vsub.f32 %v5462, %v5744
    %v5771 = vsub.f32 %v5511, %v5747
    %v5772 = vsub.f32 %v5560, %v5750
    %v5773 = vsub.f32 %v5609, %v5753
    %v5774 = vsub.f32 %v5658, %v5756
    %v5775 = vsub.f32 %v5707, %v5759
    %v5776 = vmul.f32 %v5760, 1.442695
    %v5777 = vpow.pop %v5776
    %v5778 = vmul.f32 %v5761, 1.442695
    %v5779 = vpow.pop %v5778
    %v5780 = vmul.f32 %v5762, 1.442695
    %v5781 = vpow.pop %v5780
    %v5782 = vmul.f32 %v5763, 1.442695
    %v5783 = vpow.pop %v5782
    %v5784 = vmul.f32 %v5764, 1.442695
    %v5785 = vpow.pop %v5784
    %v5786 = vmul.f32 %v5765, 1.442695
    %v5787 = vpow.pop %v5786
    %v5788 = vmul.f32 %v5766, 1.442695
    %v5789 = vpow.pop %v5788
    %v5790 = vmul.f32 %v5767, 1.442695
    %v5791 = vpow.pop %v5790
    %v5792 = vmul.f32 %v5768, 1.442695
    %v5793 = vpow.pop %v5792
    %v5794 = vmul.f32 %v5769, 1.442695
    %v5795 = vpow.pop %v5794
    %v5796 = vmul.f32 %v5770, 1.442695
    %v5797 = vpow.pop %v5796
    %v5798 = vmul.f32 %v5771, 1.442695
    %v5799 = vpow.pop %v5798
    %v5800 = vmul.f32 %v5772, 1.442695
    %v5801 = vpow.pop %v5800
    %v5802 = vmul.f32 %v5773, 1.442695
    %v5803 = vpow.pop %v5802
    %v5804 = vmul.f32 %v5774, 1.442695
    %v5805 = vpow.pop %v5804
    %v5806 = vmul.f32 %v5775, 1.442695
    %v5807 = vpow.pop %v5806
    %v5808 = vsel %vm1070, %v5777, 0.0
    %5809 = vadd.xlane.f32.xlu0 %v5808
    %v5810 = vpop.xlane.xlu0 %5809
    %v5811 = vsel %vm1070, %v5779, 0.0
    %5812 = vadd.xlane.f32.xlu0 %v5811
    %v5813 = vpop.xlane.xlu0 %5812
    %v5814 = vsel %vm1070, %v5781, 0.0
    %5815 = vadd.xlane.f32.xlu0 %v5814
    %v5816 = vpop.xlane.xlu0 %5815
    %v5817 = vsel %vm1070, %v5783, 0.0
    %5818 = vadd.xlane.f32.xlu0 %v5817
    %v5819 = vpop.xlane.xlu0 %5818
    %v5820 = vsel %vm1070, %v5785, 0.0
    %5821 = vadd.xlane.f32.xlu0 %v5820
    %v5822 = vpop.xlane.xlu0 %5821
    %v5823 = vsel %vm1070, %v5787, 0.0
    %5824 = vadd.xlane.f32.xlu0 %v5823
    %v5825 = vpop.xlane.xlu0 %5824
    %v5826 = vsel %vm1070, %v5789, 0.0
    %5827 = vadd.xlane.f32.xlu0 %v5826
    %v5828 = vpop.xlane.xlu0 %5827
    %v5829 = vsel %vm1070, %v5791, 0.0
    %5830 = vadd.xlane.f32.xlu0 %v5829
    %v5831 = vpop.xlane.xlu0 %5830
    %v5832 = vsel %vm1070, %v5793, 0.0
    %5833 = vadd.xlane.f32.xlu0 %v5832
    %v5834 = vpop.xlane.xlu0 %5833
    %v5835 = vsel %vm1070, %v5795, 0.0
    %5836 = vadd.xlane.f32.xlu0 %v5835
    %v5837 = vpop.xlane.xlu0 %5836
    %v5838 = vsel %vm1070, %v5797, 0.0
    %5839 = vadd.xlane.f32.xlu0 %v5838
    %v5840 = vpop.xlane.xlu0 %5839
    %v5841 = vsel %vm1070, %v5799, 0.0
    %5842 = vadd.xlane.f32.xlu0 %v5841
    %v5843 = vpop.xlane.xlu0 %5842
    %v5844 = vsel %vm1070, %v5801, 0.0
    %5845 = vadd.xlane.f32.xlu0 %v5844
    %v5846 = vpop.xlane.xlu0 %5845
    %v5847 = vsel %vm1070, %v5803, 0.0
    %5848 = vadd.xlane.f32.xlu0 %v5847
    %v5849 = vpop.xlane.xlu0 %5848
    %v5850 = vsel %vm1070, %v5805, 0.0
    %5851 = vadd.xlane.f32.xlu0 %v5850
    %v5852 = vpop.xlane.xlu0 %5851
    %v5853 = vsel %vm1070, %v5807, 0.0
    %5854 = vadd.xlane.f32.xlu0 %v5853
    %v5855 = vpop.xlane.xlu0 %5854
    %v5856 = vrcp.pop %v5810
    %v5857 = vrcp.pop %v5813
    %v5858 = vrcp.pop %v5816
    %v5859 = vrcp.pop %v5819
    %v5860 = vrcp.pop %v5822
    %v5861 = vrcp.pop %v5825
    %v5862 = vrcp.pop %v5828
    %v5863 = vrcp.pop %v5831
    %v5864 = vrcp.pop %v5834
    %v5865 = vrcp.pop %v5837
    %v5866 = vrcp.pop %v5840
    %v5867 = vrcp.pop %v5843
    %v5868 = vrcp.pop %v5846
    %v5869 = vrcp.pop %v5849
    %v5870 = vrcp.pop %v5852
    %v5871 = vrcp.pop %v5855
    %v5872 = vmul.f32 %v5777, %v5856
    %v5873 = vmul.f32 %v5779, %v5857
    %v5874 = vmul.f32 %v5781, %v5858
    %v5875 = vmul.f32 %v5783, %v5859
    %v5876 = vmul.f32 %v5785, %v5860
    %v5877 = vmul.f32 %v5787, %v5861
    %v5878 = vmul.f32 %v5789, %v5862
    %v5879 = vmul.f32 %v5791, %v5863
    %v5880 = vmul.f32 %v5793, %v5864
    %v5881 = vmul.f32 %v5795, %v5865
    %v5882 = vmul.f32 %v5797, %v5866
    %v5883 = vmul.f32 %v5799, %v5867
    %v5884 = vmul.f32 %v5801, %v5868
    %v5885 = vmul.f32 %v5803, %v5869
    %v5886 = vmul.f32 %v5805, %v5870
    %v5887 = vmul.f32 %v5807, %v5871
    %v5888 = vpack.c.bf16 %v5872, %v5872
    %v5889 = vpack.c.bf16 %v5873, %v5873
    %v5890 = vpack.c.bf16 %v5874, %v5874
    %v5891 = vpack.c.bf16 %v5875, %v5875
    %v5892 = vpack.c.bf16 %v5876, %v5876
    %v5893 = vpack.c.bf16 %v5877, %v5877
    %v5894 = vpack.c.bf16 %v5878, %v5878
    %v5895 = vpack.c.bf16 %v5879, %v5879
    %v5896 = vpack.c.bf16 %v5880, %v5880
    %v5897 = vpack.c.bf16 %v5881, %v5881
    %v5898 = vpack.c.bf16 %v5882, %v5882
    %v5899 = vpack.c.bf16 %v5883, %v5883
    %v5900 = vpack.c.bf16 %v5884, %v5884
    %v5901 = vpack.c.bf16 %v5885, %v5885
    %v5902 = vpack.c.bf16 %v5886, %v5886
    %v5903 = vpack.c.bf16 %v5887, %v5887
    %5904 = vrot.lane.b32.xlu0 %v4912, 96
    %v5905 = vpop.permute.xlu0 %5904
    %v5907 = vsel %vm1070, %v5888, 0
    %v5910 = vsel %vm1268, %v5905, 0
    %5912 = vmatprep.subr.bf16.mxu0 0
    %5913 = vmatpush1.bf16.msra.mxu0 0
    %5914 = vmatprep.subr.bf16.mxu0 0
    %5915 = vmatpush1.bf16.msra.mxu0 0
    %5916 = vmatprep.subr.bf16.mxu0 0
    %5917 = vmatpush1.bf16.msra.mxu0 0
    %5918 = vmatprep.subr.bf16.mxu0 0
    %5919 = vmatpush1.bf16.msra.mxu0 0
    %5920 = vmatprep.subr.bf16.mxu0 0
    %5921 = vmatpush1.bf16.msra.mxu0 0
    %5922 = vmatprep.subr.bf16.mxu0 0
    %5923 = vmatpush1.bf16.msra.mxu0 0
    %5924 = vmatprep.subr.bf16.mxu0 0
    %5925 = vmatpush1.bf16.msra.mxu0 0
    %5926 = vmatprep.subr.bf16.mxu0 0
    %5927 = vmatpush1.bf16.msra.mxu0 %v5910
    %5928 = vmatprep.subr.bf16.mxu0 0
    %5929 = vmatpush2.bf16.msra.mxu0 0
    %5930 = vmatprep.subr.bf16.mxu0 0
    %5931 = vmatpush2.bf16.msra.mxu0 0
    %5932 = vmatprep.subr.bf16.mxu0 0
    %5933 = vmatpush2.bf16.msra.mxu0 0
    %5934 = vmatprep.subr.bf16.mxu0 0
    %5935 = vmatpush2.bf16.msra.mxu0 0
    %5936 = vmatprep.subr.bf16.mxu0 0
    %5937 = vmatpush2.bf16.msra.mxu0 0
    %5938 = vmatprep.subr.bf16.mxu0 0
    %5939 = vmatpush2.bf16.msra.mxu0 0
    %5940 = vmatprep.subr.bf16.mxu0 0
    %5941 = vmatpush2.bf16.msra.mxu0 0
    %5942 = vmatprep.subr.bf16.mxu0 0
    %5943 = vmatpush2.bf16.msra.mxu0 0
    %5944 = vmatprep.mubr.bf16.mxu0 0
    %5945 = vmatmul.mubr.bf16.gmra.mxu0 %v5907
    %v5946 = vpop.f32.mrf.mxu0
    %v5947 = vadd.f32 0.0, %v5946
    %v5948 = vpop.f32.mrf.mxu0
    %v5949 = vpop.f32.mrf.mxu0
    %v5950 = vpop.f32.mrf.mxu0
    %5951 = vdwg.mxu0
    %5952 = vrot.lane.b32.xlu0 %v4913, 96
    %v5953 = vpop.permute.xlu0 %5952
    %v5955 = vsel %vm1070, %v5889, 0
    %v5958 = vsel %vm1268, %v5953, 0
    %5960 = vmatprep.subr.bf16.mxu0 0
    %5961 = vmatpush1.bf16.msra.mxu0 0
    %5962 = vmatprep.subr.bf16.mxu0 0
    %5963 = vmatpush1.bf16.msra.mxu0 0
    %5964 = vmatprep.subr.bf16.mxu0 0
    %5965 = vmatpush1.bf16.msra.mxu0 0
    %5966 = vmatprep.subr.bf16.mxu0 0
    %5967 = vmatpush1.bf16.msra.mxu0 0
    %5968 = vmatprep.subr.bf16.mxu0 0
    %5969 = vmatpush1.bf16.msra.mxu0 0
    %5970 = vmatprep.subr.bf16.mxu0 0
    %5971 = vmatpush1.bf16.msra.mxu0 0
    %5972 = vmatprep.subr.bf16.mxu0 0
    %5973 = vmatpush1.bf16.msra.mxu0 0
    %5974 = vmatprep.subr.bf16.mxu0 0
    %5975 = vmatpush1.bf16.msra.mxu0 %v5958
    %5976 = vmatprep.subr.bf16.mxu0 0
    %5977 = vmatpush2.bf16.msra.mxu0 0
    %5978 = vmatprep.subr.bf16.mxu0 0
    %5979 = vmatpush2.bf16.msra.mxu0 0
    %5980 = vmatprep.subr.bf16.mxu0 0
    %5981 = vmatpush2.bf16.msra.mxu0 0
    %5982 = vmatprep.subr.bf16.mxu0 0
    %5983 = vmatpush2.bf16.msra.mxu0 0
    %5984 = vmatprep.subr.bf16.mxu0 0
    %5985 = vmatpush2.bf16.msra.mxu0 0
    %5986 = vmatprep.subr.bf16.mxu0 0
    %5987 = vmatpush2.bf16.msra.mxu0 0
    %5988 = vmatprep.subr.bf16.mxu0 0
    %5989 = vmatpush2.bf16.msra.mxu0 0
    %5990 = vmatprep.subr.bf16.mxu0 0
    %5991 = vmatpush2.bf16.msra.mxu0 0
    %5992 = vmatprep.mubr.bf16.mxu0 0
    %5993 = vmatmul.mubr.bf16.gmra.mxu0 %v5955
    %v5994 = vpop.f32.mrf.mxu0
    %v5995 = vadd.f32 0.0, %v5994
    %v5996 = vpop.f32.mrf.mxu0
    %v5997 = vpop.f32.mrf.mxu0
    %v5998 = vpop.f32.mrf.mxu0
    %5999 = vdwg.mxu0
    %6000 = vrot.lane.b32.xlu0 %v4914, 96
    %v6001 = vpop.permute.xlu0 %6000
    %v6003 = vsel %vm1070, %v5890, 0
    %v6006 = vsel %vm1268, %v6001, 0
    %6008 = vmatprep.subr.bf16.mxu0 0
    %6009 = vmatpush1.bf16.msra.mxu0 0
    %6010 = vmatprep.subr.bf16.mxu0 0
    %6011 = vmatpush1.bf16.msra.mxu0 0
    %6012 = vmatprep.subr.bf16.mxu0 0
    %6013 = vmatpush1.bf16.msra.mxu0 0
    %6014 = vmatprep.subr.bf16.mxu0 0
    %6015 = vmatpush1.bf16.msra.mxu0 0
    %6016 = vmatprep.subr.bf16.mxu0 0
    %6017 = vmatpush1.bf16.msra.mxu0 0
    %6018 = vmatprep.subr.bf16.mxu0 0
    %6019 = vmatpush1.bf16.msra.mxu0 0
    %6020 = vmatprep.subr.bf16.mxu0 0
    %6021 = vmatpush1.bf16.msra.mxu0 0
    %6022 = vmatprep.subr.bf16.mxu0 0
    %6023 = vmatpush1.bf16.msra.mxu0 %v6006
    %6024 = vmatprep.subr.bf16.mxu0 0
    %6025 = vmatpush2.bf16.msra.mxu0 0
    %6026 = vmatprep.subr.bf16.mxu0 0
    %6027 = vmatpush2.bf16.msra.mxu0 0
    %6028 = vmatprep.subr.bf16.mxu0 0
    %6029 = vmatpush2.bf16.msra.mxu0 0
    %6030 = vmatprep.subr.bf16.mxu0 0
    %6031 = vmatpush2.bf16.msra.mxu0 0
    %6032 = vmatprep.subr.bf16.mxu0 0
    %6033 = vmatpush2.bf16.msra.mxu0 0
    %6034 = vmatprep.subr.bf16.mxu0 0
    %6035 = vmatpush2.bf16.msra.mxu0 0
    %6036 = vmatprep.subr.bf16.mxu0 0
    %6037 = vmatpush2.bf16.msra.mxu0 0
    %6038 = vmatprep.subr.bf16.mxu0 0
    %6039 = vmatpush2.bf16.msra.mxu0 0
    %6040 = vmatprep.mubr.bf16.mxu0 0
    %6041 = vmatmul.mubr.bf16.gmra.mxu0 %v6003
    %v6042 = vpop.f32.mrf.mxu0
    %v6043 = vadd.f32 0.0, %v6042
    %v6044 = vpop.f32.mrf.mxu0
    %v6045 = vpop.f32.mrf.mxu0
    %v6046 = vpop.f32.mrf.mxu0
    %6047 = vdwg.mxu0
    %6048 = vrot.lane.b32.xlu0 %v4915, 96
    %v6049 = vpop.permute.xlu0 %6048
    %v6051 = vsel %vm1070, %v5891, 0
    %v6054 = vsel %vm1268, %v6049, 0
    %6056 = vmatprep.subr.bf16.mxu0 0
    %6057 = vmatpush1.bf16.msra.mxu0 0
    %6058 = vmatprep.subr.bf16.mxu0 0
    %6059 = vmatpush1.bf16.msra.mxu0 0
    %6060 = vmatprep.subr.bf16.mxu0 0
    %6061 = vmatpush1.bf16.msra.mxu0 0
    %6062 = vmatprep.subr.bf16.mxu0 0
    %6063 = vmatpush1.bf16.msra.mxu0 0
    %6064 = vmatprep.subr.bf16.mxu0 0
    %6065 = vmatpush1.bf16.msra.mxu0 0
    %6066 = vmatprep.subr.bf16.mxu0 0
    %6067 = vmatpush1.bf16.msra.mxu0 0
    %6068 = vmatprep.subr.bf16.mxu0 0
    %6069 = vmatpush1.bf16.msra.mxu0 0
    %6070 = vmatprep.subr.bf16.mxu0 0
    %6071 = vmatpush1.bf16.msra.mxu0 %v6054
    %6072 = vmatprep.subr.bf16.mxu0 0
    %6073 = vmatpush2.bf16.msra.mxu0 0
    %6074 = vmatprep.subr.bf16.mxu0 0
    %6075 = vmatpush2.bf16.msra.mxu0 0
    %6076 = vmatprep.subr.bf16.mxu0 0
    %6077 = vmatpush2.bf16.msra.mxu0 0
    %6078 = vmatprep.subr.bf16.mxu0 0
    %6079 = vmatpush2.bf16.msra.mxu0 0
    %6080 = vmatprep.subr.bf16.mxu0 0
    %6081 = vmatpush2.bf16.msra.mxu0 0
    %6082 = vmatprep.subr.bf16.mxu0 0
    %6083 = vmatpush2.bf16.msra.mxu0 0
    %6084 = vmatprep.subr.bf16.mxu0 0
    %6085 = vmatpush2.bf16.msra.mxu0 0
    %6086 = vmatprep.subr.bf16.mxu0 0
    %6087 = vmatpush2.bf16.msra.mxu0 0
    %6088 = vmatprep.mubr.bf16.mxu0 0
    %6089 = vmatmul.mubr.bf16.gmra.mxu0 %v6051
    %v6090 = vpop.f32.mrf.mxu0
    %v6091 = vadd.f32 0.0, %v6090
    %v6092 = vpop.f32.mrf.mxu0
    %v6093 = vpop.f32.mrf.mxu0
    %v6094 = vpop.f32.mrf.mxu0
    %6095 = vdwg.mxu0
    %6096 = vrot.lane.b32.xlu0 %v4916, 96
    %v6097 = vpop.permute.xlu0 %6096
    %v6099 = vsel %vm1070, %v5892, 0
    %v6102 = vsel %vm1268, %v6097, 0
    %6104 = vmatprep.subr.bf16.mxu0 0
    %6105 = vmatpush1.bf16.msra.mxu0 0
    %6106 = vmatprep.subr.bf16.mxu0 0
    %6107 = vmatpush1.bf16.msra.mxu0 0
    %6108 = vmatprep.subr.bf16.mxu0 0
    %6109 = vmatpush1.bf16.msra.mxu0 0
    %6110 = vmatprep.subr.bf16.mxu0 0
    %6111 = vmatpush1.bf16.msra.mxu0 0
    %6112 = vmatprep.subr.bf16.mxu0 0
    %6113 = vmatpush1.bf16.msra.mxu0 0
    %6114 = vmatprep.subr.bf16.mxu0 0
    %6115 = vmatpush1.bf16.msra.mxu0 0
    %6116 = vmatprep.subr.bf16.mxu0 0
    %6117 = vmatpush1.bf16.msra.mxu0 0
    %6118 = vmatprep.subr.bf16.mxu0 0
    %6119 = vmatpush1.bf16.msra.mxu0 %v6102
    %6120 = vmatprep.subr.bf16.mxu0 0
    %6121 = vmatpush2.bf16.msra.mxu0 0
    %6122 = vmatprep.subr.bf16.mxu0 0
    %6123 = vmatpush2.bf16.msra.mxu0 0
    %6124 = vmatprep.subr.bf16.mxu0 0
    %6125 = vmatpush2.bf16.msra.mxu0 0
    %6126 = vmatprep.subr.bf16.mxu0 0
    %6127 = vmatpush2.bf16.msra.mxu0 0
    %6128 = vmatprep.subr.bf16.mxu0 0
    %6129 = vmatpush2.bf16.msra.mxu0 0
    %6130 = vmatprep.subr.bf16.mxu0 0
    %6131 = vmatpush2.bf16.msra.mxu0 0
    %6132 = vmatprep.subr.bf16.mxu0 0
    %6133 = vmatpush2.bf16.msra.mxu0 0
    %6134 = vmatprep.subr.bf16.mxu0 0
    %6135 = vmatpush2.bf16.msra.mxu0 0
    %6136 = vmatprep.mubr.bf16.mxu0 0
    %6137 = vmatmul.mubr.bf16.gmra.mxu0 %v6099
    %v6138 = vpop.f32.mrf.mxu0
    %v6139 = vadd.f32 0.0, %v6138
    %v6140 = vpop.f32.mrf.mxu0
    %v6141 = vpop.f32.mrf.mxu0
    %v6142 = vpop.f32.mrf.mxu0
    %6143 = vdwg.mxu0
    %6144 = vrot.lane.b32.xlu0 %v4917, 96
    %v6145 = vpop.permute.xlu0 %6144
    %v6147 = vsel %vm1070, %v5893, 0
    %v6150 = vsel %vm1268, %v6145, 0
    %6152 = vmatprep.subr.bf16.mxu0 0
    %6153 = vmatpush1.bf16.msra.mxu0 0
    %6154 = vmatprep.subr.bf16.mxu0 0
    %6155 = vmatpush1.bf16.msra.mxu0 0
    %6156 = vmatprep.subr.bf16.mxu0 0
    %6157 = vmatpush1.bf16.msra.mxu0 0
    %6158 = vmatprep.subr.bf16.mxu0 0
    %6159 = vmatpush1.bf16.msra.mxu0 0
    %6160 = vmatprep.subr.bf16.mxu0 0
    %6161 = vmatpush1.bf16.msra.mxu0 0
    %6162 = vmatprep.subr.bf16.mxu0 0
    %6163 = vmatpush1.bf16.msra.mxu0 0
    %6164 = vmatprep.subr.bf16.mxu0 0
    %6165 = vmatpush1.bf16.msra.mxu0 0
    %6166 = vmatprep.subr.bf16.mxu0 0
    %6167 = vmatpush1.bf16.msra.mxu0 %v6150
    %6168 = vmatprep.subr.bf16.mxu0 0
    %6169 = vmatpush2.bf16.msra.mxu0 0
    %6170 = vmatprep.subr.bf16.mxu0 0
    %6171 = vmatpush2.bf16.msra.mxu0 0
    %6172 = vmatprep.subr.bf16.mxu0 0
    %6173 = vmatpush2.bf16.msra.mxu0 0
    %6174 = vmatprep.subr.bf16.mxu0 0
    %6175 = vmatpush2.bf16.msra.mxu0 0
    %6176 = vmatprep.subr.bf16.mxu0 0
    %6177 = vmatpush2.bf16.msra.mxu0 0
    %6178 = vmatprep.subr.bf16.mxu0 0
    %6179 = vmatpush2.bf16.msra.mxu0 0
    %6180 = vmatprep.subr.bf16.mxu0 0
    %6181 = vmatpush2.bf16.msra.mxu0 0
    %6182 = vmatprep.subr.bf16.mxu0 0
    %6183 = vmatpush2.bf16.msra.mxu0 0
    %6184 = vmatprep.mubr.bf16.mxu0 0
    %6185 = vmatmul.mubr.bf16.gmra.mxu0 %v6147
    %v6186 = vpop.f32.mrf.mxu0
    %v6187 = vadd.f32 0.0, %v6186
    %v6188 = vpop.f32.mrf.mxu0
    %v6189 = vpop.f32.mrf.mxu0
    %v6190 = vpop.f32.mrf.mxu0
    %6191 = vdwg.mxu0
    %6192 = vrot.lane.b32.xlu0 %v4918, 96
    %v6193 = vpop.permute.xlu0 %6192
    %v6195 = vsel %vm1070, %v5894, 0
    %v6198 = vsel %vm1268, %v6193, 0
    %6200 = vmatprep.subr.bf16.mxu0 0
    %6201 = vmatpush1.bf16.msra.mxu0 0
    %6202 = vmatprep.subr.bf16.mxu0 0
    %6203 = vmatpush1.bf16.msra.mxu0 0
    %6204 = vmatprep.subr.bf16.mxu0 0
    %6205 = vmatpush1.bf16.msra.mxu0 0
    %6206 = vmatprep.subr.bf16.mxu0 0
    %6207 = vmatpush1.bf16.msra.mxu0 0
    %6208 = vmatprep.subr.bf16.mxu0 0
    %6209 = vmatpush1.bf16.msra.mxu0 0
    %6210 = vmatprep.subr.bf16.mxu0 0
    %6211 = vmatpush1.bf16.msra.mxu0 0
    %6212 = vmatprep.subr.bf16.mxu0 0
    %6213 = vmatpush1.bf16.msra.mxu0 0
    %6214 = vmatprep.subr.bf16.mxu0 0
    %6215 = vmatpush1.bf16.msra.mxu0 %v6198
    %6216 = vmatprep.subr.bf16.mxu0 0
    %6217 = vmatpush2.bf16.msra.mxu0 0
    %6218 = vmatprep.subr.bf16.mxu0 0
    %6219 = vmatpush2.bf16.msra.mxu0 0
    %6220 = vmatprep.subr.bf16.mxu0 0
    %6221 = vmatpush2.bf16.msra.mxu0 0
    %6222 = vmatprep.subr.bf16.mxu0 0
    %6223 = vmatpush2.bf16.msra.mxu0 0
    %6224 = vmatprep.subr.bf16.mxu0 0
    %6225 = vmatpush2.bf16.msra.mxu0 0
    %6226 = vmatprep.subr.bf16.mxu0 0
    %6227 = vmatpush2.bf16.msra.mxu0 0
    %6228 = vmatprep.subr.bf16.mxu0 0
    %6229 = vmatpush2.bf16.msra.mxu0 0
    %6230 = vmatprep.subr.bf16.mxu0 0
    %6231 = vmatpush2.bf16.msra.mxu0 0
    %6232 = vmatprep.mubr.bf16.mxu0 0
    %6233 = vmatmul.mubr.bf16.gmra.mxu0 %v6195
    %v6234 = vpop.f32.mrf.mxu0
    %v6235 = vadd.f32 0.0, %v6234
    %v6236 = vpop.f32.mrf.mxu0
    %v6237 = vpop.f32.mrf.mxu0
    %v6238 = vpop.f32.mrf.mxu0
    %6239 = vdwg.mxu0
    %6240 = vrot.lane.b32.xlu0 %v4919, 96
    %v6241 = vpop.permute.xlu0 %6240
    %v6243 = vsel %vm1070, %v5895, 0
    %v6246 = vsel %vm1268, %v6241, 0
    %6248 = vmatprep.subr.bf16.mxu0 0
    %6249 = vmatpush1.bf16.msra.mxu0 0
    %6250 = vmatprep.subr.bf16.mxu0 0
    %6251 = vmatpush1.bf16.msra.mxu0 0
    %6252 = vmatprep.subr.bf16.mxu0 0
    %6253 = vmatpush1.bf16.msra.mxu0 0
    %6254 = vmatprep.subr.bf16.mxu0 0
    %6255 = vmatpush1.bf16.msra.mxu0 0
    %6256 = vmatprep.subr.bf16.mxu0 0
    %6257 = vmatpush1.bf16.msra.mxu0 0
    %6258 = vmatprep.subr.bf16.mxu0 0
    %6259 = vmatpush1.bf16.msra.mxu0 0
    %6260 = vmatprep.subr.bf16.mxu0 0
    %6261 = vmatpush1.bf16.msra.mxu0 0
    %6262 = vmatprep.subr.bf16.mxu0 0
    %6263 = vmatpush1.bf16.msra.mxu0 %v6246
    %6264 = vmatprep.subr.bf16.mxu0 0
    %6265 = vmatpush2.bf16.msra.mxu0 0
    %6266 = vmatprep.subr.bf16.mxu0 0
    %6267 = vmatpush2.bf16.msra.mxu0 0
    %6268 = vmatprep.subr.bf16.mxu0 0
    %6269 = vmatpush2.bf16.msra.mxu0 0
    %6270 = vmatprep.subr.bf16.mxu0 0
    %6271 = vmatpush2.bf16.msra.mxu0 0
    %6272 = vmatprep.subr.bf16.mxu0 0
    %6273 = vmatpush2.bf16.msra.mxu0 0
    %6274 = vmatprep.subr.bf16.mxu0 0
    %6275 = vmatpush2.bf16.msra.mxu0 0
    %6276 = vmatprep.subr.bf16.mxu0 0
    %6277 = vmatpush2.bf16.msra.mxu0 0
    %6278 = vmatprep.subr.bf16.mxu0 0
    %6279 = vmatpush2.bf16.msra.mxu0 0
    %6280 = vmatprep.mubr.bf16.mxu0 0
    %6281 = vmatmul.mubr.bf16.gmra.mxu0 %v6243
    %v6282 = vpop.f32.mrf.mxu0
    %v6283 = vadd.f32 0.0, %v6282
    %v6284 = vpop.f32.mrf.mxu0
    %v6285 = vpop.f32.mrf.mxu0
    %v6286 = vpop.f32.mrf.mxu0
    %6287 = vdwg.mxu0
    %6288 = vrot.lane.b32.xlu0 %v4920, 96
    %v6289 = vpop.permute.xlu0 %6288
    %v6291 = vsel %vm1070, %v5896, 0
    %v6294 = vsel %vm1268, %v6289, 0
    %6296 = vmatprep.subr.bf16.mxu0 0
    %6297 = vmatpush1.bf16.msra.mxu0 0
    %6298 = vmatprep.subr.bf16.mxu0 0
    %6299 = vmatpush1.bf16.msra.mxu0 0
    %6300 = vmatprep.subr.bf16.mxu0 0
    %6301 = vmatpush1.bf16.msra.mxu0 0
    %6302 = vmatprep.subr.bf16.mxu0 0
    %6303 = vmatpush1.bf16.msra.mxu0 0
    %6304 = vmatprep.subr.bf16.mxu0 0
    %6305 = vmatpush1.bf16.msra.mxu0 0
    %6306 = vmatprep.subr.bf16.mxu0 0
    %6307 = vmatpush1.bf16.msra.mxu0 0
    %6308 = vmatprep.subr.bf16.mxu0 0
    %6309 = vmatpush1.bf16.msra.mxu0 0
    %6310 = vmatprep.subr.bf16.mxu0 0
    %6311 = vmatpush1.bf16.msra.mxu0 %v6294
    %6312 = vmatprep.subr.bf16.mxu0 0
    %6313 = vmatpush2.bf16.msra.mxu0 0
    %6314 = vmatprep.subr.bf16.mxu0 0
    %6315 = vmatpush2.bf16.msra.mxu0 0
    %6316 = vmatprep.subr.bf16.mxu0 0
    %6317 = vmatpush2.bf16.msra.mxu0 0
    %6318 = vmatprep.subr.bf16.mxu0 0
    %6319 = vmatpush2.bf16.msra.mxu0 0
    %6320 = vmatprep.subr.bf16.mxu0 0
    %6321 = vmatpush2.bf16.msra.mxu0 0
    %6322 = vmatprep.subr.bf16.mxu0 0
    %6323 = vmatpush2.bf16.msra.mxu0 0
    %6324 = vmatprep.subr.bf16.mxu0 0
    %6325 = vmatpush2.bf16.msra.mxu0 0
    %6326 = vmatprep.subr.bf16.mxu0 0
    %6327 = vmatpush2.bf16.msra.mxu0 0
    %6328 = vmatprep.mubr.bf16.mxu0 0
    %6329 = vmatmul.mubr.bf16.gmra.mxu0 %v6291
    %v6330 = vpop.f32.mrf.mxu0
    %v6331 = vadd.f32 0.0, %v6330
    %v6332 = vpop.f32.mrf.mxu0
    %v6333 = vpop.f32.mrf.mxu0
    %v6334 = vpop.f32.mrf.mxu0
    %6335 = vdwg.mxu0
    %6336 = vrot.lane.b32.xlu0 %v4921, 96
    %v6337 = vpop.permute.xlu0 %6336
    %v6339 = vsel %vm1070, %v5897, 0
    %v6342 = vsel %vm1268, %v6337, 0
    %6344 = vmatprep.subr.bf16.mxu0 0
    %6345 = vmatpush1.bf16.msra.mxu0 0
    %6346 = vmatprep.subr.bf16.mxu0 0
    %6347 = vmatpush1.bf16.msra.mxu0 0
    %6348 = vmatprep.subr.bf16.mxu0 0
    %6349 = vmatpush1.bf16.msra.mxu0 0
    %6350 = vmatprep.subr.bf16.mxu0 0
    %6351 = vmatpush1.bf16.msra.mxu0 0
    %6352 = vmatprep.subr.bf16.mxu0 0
    %6353 = vmatpush1.bf16.msra.mxu0 0
    %6354 = vmatprep.subr.bf16.mxu0 0
    %6355 = vmatpush1.bf16.msra.mxu0 0
    %6356 = vmatprep.subr.bf16.mxu0 0
    %6357 = vmatpush1.bf16.msra.mxu0 0
    %6358 = vmatprep.subr.bf16.mxu0 0
    %6359 = vmatpush1.bf16.msra.mxu0 %v6342
    %6360 = vmatprep.subr.bf16.mxu0 0
    %6361 = vmatpush2.bf16.msra.mxu0 0
    %6362 = vmatprep.subr.bf16.mxu0 0
    %6363 = vmatpush2.bf16.msra.mxu0 0
    %6364 = vmatprep.subr.bf16.mxu0 0
    %6365 = vmatpush2.bf16.msra.mxu0 0
    %6366 = vmatprep.subr.bf16.mxu0 0
    %6367 = vmatpush2.bf16.msra.mxu0 0
    %6368 = vmatprep.subr.bf16.mxu0 0
    %6369 = vmatpush2.bf16.msra.mxu0 0
    %6370 = vmatprep.subr.bf16.mxu0 0
    %6371 = vmatpush2.bf16.msra.mxu0 0
    %6372 = vmatprep.subr.bf16.mxu0 0
    %6373 = vmatpush2.bf16.msra.mxu0 0
    %6374 = vmatprep.subr.bf16.mxu0 0
    %6375 = vmatpush2.bf16.msra.mxu0 0
    %6376 = vmatprep.mubr.bf16.mxu0 0
    %6377 = vmatmul.mubr.bf16.gmra.mxu0 %v6339
    %v6378 = vpop.f32.mrf.mxu0
    %v6379 = vadd.f32 0.0, %v6378
    %v6380 = vpop.f32.mrf.mxu0
    %v6381 = vpop.f32.mrf.mxu0
    %v6382 = vpop.f32.mrf.mxu0
    %6383 = vdwg.mxu0
    %6384 = vrot.lane.b32.xlu0 %v4922, 96
    %v6385 = vpop.permute.xlu0 %6384
    %v6387 = vsel %vm1070, %v5898, 0
    %v6390 = vsel %vm1268, %v6385, 0
    %6392 = vmatprep.subr.bf16.mxu0 0
    %6393 = vmatpush1.bf16.msra.mxu0 0
    %6394 = vmatprep.subr.bf16.mxu0 0
    %6395 = vmatpush1.bf16.msra.mxu0 0
    %6396 = vmatprep.subr.bf16.mxu0 0
    %6397 = vmatpush1.bf16.msra.mxu0 0
    %6398 = vmatprep.subr.bf16.mxu0 0
    %6399 = vmatpush1.bf16.msra.mxu0 0
    %6400 = vmatprep.subr.bf16.mxu0 0
    %6401 = vmatpush1.bf16.msra.mxu0 0
    %6402 = vmatprep.subr.bf16.mxu0 0
    %6403 = vmatpush1.bf16.msra.mxu0 0
    %6404 = vmatprep.subr.bf16.mxu0 0
    %6405 = vmatpush1.bf16.msra.mxu0 0
    %6406 = vmatprep.subr.bf16.mxu0 0
    %6407 = vmatpush1.bf16.msra.mxu0 %v6390
    %6408 = vmatprep.subr.bf16.mxu0 0
    %6409 = vmatpush2.bf16.msra.mxu0 0
    %6410 = vmatprep.subr.bf16.mxu0 0
    %6411 = vmatpush2.bf16.msra.mxu0 0
    %6412 = vmatprep.subr.bf16.mxu0 0
    %6413 = vmatpush2.bf16.msra.mxu0 0
    %6414 = vmatprep.subr.bf16.mxu0 0
    %6415 = vmatpush2.bf16.msra.mxu0 0
    %6416 = vmatprep.subr.bf16.mxu0 0
    %6417 = vmatpush2.bf16.msra.mxu0 0
    %6418 = vmatprep.subr.bf16.mxu0 0
    %6419 = vmatpush2.bf16.msra.mxu0 0
    %6420 = vmatprep.subr.bf16.mxu0 0
    %6421 = vmatpush2.bf16.msra.mxu0 0
    %6422 = vmatprep.subr.bf16.mxu0 0
    %6423 = vmatpush2.bf16.msra.mxu0 0
    %6424 = vmatprep.mubr.bf16.mxu0 0
    %6425 = vmatmul.mubr.bf16.gmra.mxu0 %v6387
    %v6426 = vpop.f32.mrf.mxu0
    %v6427 = vadd.f32 0.0, %v6426
    %v6428 = vpop.f32.mrf.mxu0
    %v6429 = vpop.f32.mrf.mxu0
    %v6430 = vpop.f32.mrf.mxu0
    %6431 = vdwg.mxu0
    %6432 = vrot.lane.b32.xlu0 %v4923, 96
    %v6433 = vpop.permute.xlu0 %6432
    %v6435 = vsel %vm1070, %v5899, 0
    %v6438 = vsel %vm1268, %v6433, 0
    %6440 = vmatprep.subr.bf16.mxu0 0
    %6441 = vmatpush1.bf16.msra.mxu0 0
    %6442 = vmatprep.subr.bf16.mxu0 0
    %6443 = vmatpush1.bf16.msra.mxu0 0
    %6444 = vmatprep.subr.bf16.mxu0 0
    %6445 = vmatpush1.bf16.msra.mxu0 0
    %6446 = vmatprep.subr.bf16.mxu0 0
    %6447 = vmatpush1.bf16.msra.mxu0 0
    %6448 = vmatprep.subr.bf16.mxu0 0
    %6449 = vmatpush1.bf16.msra.mxu0 0
    %6450 = vmatprep.subr.bf16.mxu0 0
    %6451 = vmatpush1.bf16.msra.mxu0 0
    %6452 = vmatprep.subr.bf16.mxu0 0
    %6453 = vmatpush1.bf16.msra.mxu0 0
    %6454 = vmatprep.subr.bf16.mxu0 0
    %6455 = vmatpush1.bf16.msra.mxu0 %v6438
    %6456 = vmatprep.subr.bf16.mxu0 0
    %6457 = vmatpush2.bf16.msra.mxu0 0
    %6458 = vmatprep.subr.bf16.mxu0 0
    %6459 = vmatpush2.bf16.msra.mxu0 0
    %6460 = vmatprep.subr.bf16.mxu0 0
    %6461 = vmatpush2.bf16.msra.mxu0 0
    %6462 = vmatprep.subr.bf16.mxu0 0
    %6463 = vmatpush2.bf16.msra.mxu0 0
    %6464 = vmatprep.subr.bf16.mxu0 0
    %6465 = vmatpush2.bf16.msra.mxu0 0
    %6466 = vmatprep.subr.bf16.mxu0 0
    %6467 = vmatpush2.bf16.msra.mxu0 0
    %6468 = vmatprep.subr.bf16.mxu0 0
    %6469 = vmatpush2.bf16.msra.mxu0 0
    %6470 = vmatprep.subr.bf16.mxu0 0
    %6471 = vmatpush2.bf16.msra.mxu0 0
    %6472 = vmatprep.mubr.bf16.mxu0 0
    %6473 = vmatmul.mubr.bf16.gmra.mxu0 %v6435
    %v6474 = vpop.f32.mrf.mxu0
    %v6475 = vadd.f32 0.0, %v6474
    %v6476 = vpop.f32.mrf.mxu0
    %v6477 = vpop.f32.mrf.mxu0
    %v6478 = vpop.f32.mrf.mxu0
    %6479 = vdwg.mxu0
    %6480 = vrot.lane.b32.xlu0 %v4924, 96
    %v6481 = vpop.permute.xlu0 %6480
    %v6483 = vsel %vm1070, %v5900, 0
    %v6486 = vsel %vm1268, %v6481, 0
    %6488 = vmatprep.subr.bf16.mxu0 0
    %6489 = vmatpush1.bf16.msra.mxu0 0
    %6490 = vmatprep.subr.bf16.mxu0 0
    %6491 = vmatpush1.bf16.msra.mxu0 0
    %6492 = vmatprep.subr.bf16.mxu0 0
    %6493 = vmatpush1.bf16.msra.mxu0 0
    %6494 = vmatprep.subr.bf16.mxu0 0
    %6495 = vmatpush1.bf16.msra.mxu0 0
    %6496 = vmatprep.subr.bf16.mxu0 0
    %6497 = vmatpush1.bf16.msra.mxu0 0
    %6498 = vmatprep.subr.bf16.mxu0 0
    %6499 = vmatpush1.bf16.msra.mxu0 0
    %6500 = vmatprep.subr.bf16.mxu0 0
    %6501 = vmatpush1.bf16.msra.mxu0 0
    %6502 = vmatprep.subr.bf16.mxu0 0
    %6503 = vmatpush1.bf16.msra.mxu0 %v6486
    %6504 = vmatprep.subr.bf16.mxu0 0
    %6505 = vmatpush2.bf16.msra.mxu0 0
    %6506 = vmatprep.subr.bf16.mxu0 0
    %6507 = vmatpush2.bf16.msra.mxu0 0
    %6508 = vmatprep.subr.bf16.mxu0 0
    %6509 = vmatpush2.bf16.msra.mxu0 0
    %6510 = vmatprep.subr.bf16.mxu0 0
    %6511 = vmatpush2.bf16.msra.mxu0 0
    %6512 = vmatprep.subr.bf16.mxu0 0
    %6513 = vmatpush2.bf16.msra.mxu0 0
    %6514 = vmatprep.subr.bf16.mxu0 0
    %6515 = vmatpush2.bf16.msra.mxu0 0
    %6516 = vmatprep.subr.bf16.mxu0 0
    %6517 = vmatpush2.bf16.msra.mxu0 0
    %6518 = vmatprep.subr.bf16.mxu0 0
    %6519 = vmatpush2.bf16.msra.mxu0 0
    %6520 = vmatprep.mubr.bf16.mxu0 0
    %6521 = vmatmul.mubr.bf16.gmra.mxu0 %v6483
    %v6522 = vpop.f32.mrf.mxu0
    %v6523 = vadd.f32 0.0, %v6522
    %v6524 = vpop.f32.mrf.mxu0
    %v6525 = vpop.f32.mrf.mxu0
    %v6526 = vpop.f32.mrf.mxu0
    %6527 = vdwg.mxu0
    %6528 = vrot.lane.b32.xlu0 %v4925, 96
    %v6529 = vpop.permute.xlu0 %6528
    %v6531 = vsel %vm1070, %v5901, 0
    %v6534 = vsel %vm1268, %v6529, 0
    %6536 = vmatprep.subr.bf16.mxu0 0
    %6537 = vmatpush1.bf16.msra.mxu0 0
    %6538 = vmatprep.subr.bf16.mxu0 0
    %6539 = vmatpush1.bf16.msra.mxu0 0
    %6540 = vmatprep.subr.bf16.mxu0 0
    %6541 = vmatpush1.bf16.msra.mxu0 0
    %6542 = vmatprep.subr.bf16.mxu0 0
    %6543 = vmatpush1.bf16.msra.mxu0 0
    %6544 = vmatprep.subr.bf16.mxu0 0
    %6545 = vmatpush1.bf16.msra.mxu0 0
    %6546 = vmatprep.subr.bf16.mxu0 0
    %6547 = vmatpush1.bf16.msra.mxu0 0
    %6548 = vmatprep.subr.bf16.mxu0 0
    %6549 = vmatpush1.bf16.msra.mxu0 0
    %6550 = vmatprep.subr.bf16.mxu0 0
    %6551 = vmatpush1.bf16.msra.mxu0 %v6534
    %6552 = vmatprep.subr.bf16.mxu0 0
    %6553 = vmatpush2.bf16.msra.mxu0 0
    %6554 = vmatprep.subr.bf16.mxu0 0
    %6555 = vmatpush2.bf16.msra.mxu0 0
    %6556 = vmatprep.subr.bf16.mxu0 0
    %6557 = vmatpush2.bf16.msra.mxu0 0
    %6558 = vmatprep.subr.bf16.mxu0 0
    %6559 = vmatpush2.bf16.msra.mxu0 0
    %6560 = vmatprep.subr.bf16.mxu0 0
    %6561 = vmatpush2.bf16.msra.mxu0 0
    %6562 = vmatprep.subr.bf16.mxu0 0
    %6563 = vmatpush2.bf16.msra.mxu0 0
    %6564 = vmatprep.subr.bf16.mxu0 0
    %6565 = vmatpush2.bf16.msra.mxu0 0
    %6566 = vmatprep.subr.bf16.mxu0 0
    %6567 = vmatpush2.bf16.msra.mxu0 0
    %6568 = vmatprep.mubr.bf16.mxu0 0
    %6569 = vmatmul.mubr.bf16.gmra.mxu0 %v6531
    %v6570 = vpop.f32.mrf.mxu0
    %v6571 = vadd.f32 0.0, %v6570
    %v6572 = vpop.f32.mrf.mxu0
    %v6573 = vpop.f32.mrf.mxu0
    %v6574 = vpop.f32.mrf.mxu0
    %6575 = vdwg.mxu0
    %6576 = vrot.lane.b32.xlu0 %v4926, 96
    %v6577 = vpop.permute.xlu0 %6576
    %v6579 = vsel %vm1070, %v5902, 0
    %v6582 = vsel %vm1268, %v6577, 0
    %6584 = vmatprep.subr.bf16.mxu0 0
    %6585 = vmatpush1.bf16.msra.mxu0 0
    %6586 = vmatprep.subr.bf16.mxu0 0
    %6587 = vmatpush1.bf16.msra.mxu0 0
    %6588 = vmatprep.subr.bf16.mxu0 0
    %6589 = vmatpush1.bf16.msra.mxu0 0
    %6590 = vmatprep.subr.bf16.mxu0 0
    %6591 = vmatpush1.bf16.msra.mxu0 0
    %6592 = vmatprep.subr.bf16.mxu0 0
    %6593 = vmatpush1.bf16.msra.mxu0 0
    %6594 = vmatprep.subr.bf16.mxu0 0
    %6595 = vmatpush1.bf16.msra.mxu0 0
    %6596 = vmatprep.subr.bf16.mxu0 0
    %6597 = vmatpush1.bf16.msra.mxu0 0
    %6598 = vmatprep.subr.bf16.mxu0 0
    %6599 = vmatpush1.bf16.msra.mxu0 %v6582
    %6600 = vmatprep.subr.bf16.mxu0 0
    %6601 = vmatpush2.bf16.msra.mxu0 0
    %6602 = vmatprep.subr.bf16.mxu0 0
    %6603 = vmatpush2.bf16.msra.mxu0 0
    %6604 = vmatprep.subr.bf16.mxu0 0
    %6605 = vmatpush2.bf16.msra.mxu0 0
    %6606 = vmatprep.subr.bf16.mxu0 0
    %6607 = vmatpush2.bf16.msra.mxu0 0
    %6608 = vmatprep.subr.bf16.mxu0 0
    %6609 = vmatpush2.bf16.msra.mxu0 0
    %6610 = vmatprep.subr.bf16.mxu0 0
    %6611 = vmatpush2.bf16.msra.mxu0 0
    %6612 = vmatprep.subr.bf16.mxu0 0
    %6613 = vmatpush2.bf16.msra.mxu0 0
    %6614 = vmatprep.subr.bf16.mxu0 0
    %6615 = vmatpush2.bf16.msra.mxu0 0
    %6616 = vmatprep.mubr.bf16.mxu0 0
    %6617 = vmatmul.mubr.bf16.gmra.mxu0 %v6579
    %v6618 = vpop.f32.mrf.mxu0
    %v6619 = vadd.f32 0.0, %v6618
    %v6620 = vpop.f32.mrf.mxu0
    %v6621 = vpop.f32.mrf.mxu0
    %v6622 = vpop.f32.mrf.mxu0
    %6623 = vdwg.mxu0
    %6624 = vrot.lane.b32.xlu0 %v4927, 96
    %v6625 = vpop.permute.xlu0 %6624
    %v6627 = vsel %vm1070, %v5903, 0
    %v6630 = vsel %vm1268, %v6625, 0
    %6632 = vmatprep.subr.bf16.mxu0 0
    %6633 = vmatpush1.bf16.msra.mxu0 0
    %6634 = vmatprep.subr.bf16.mxu0 0
    %6635 = vmatpush1.bf16.msra.mxu0 0
    %6636 = vmatprep.subr.bf16.mxu0 0
    %6637 = vmatpush1.bf16.msra.mxu0 0
    %6638 = vmatprep.subr.bf16.mxu0 0
    %6639 = vmatpush1.bf16.msra.mxu0 0
    %6640 = vmatprep.subr.bf16.mxu0 0
    %6641 = vmatpush1.bf16.msra.mxu0 0
    %6642 = vmatprep.subr.bf16.mxu0 0
    %6643 = vmatpush1.bf16.msra.mxu0 0
    %6644 = vmatprep.subr.bf16.mxu0 0
    %6645 = vmatpush1.bf16.msra.mxu0 0
    %6646 = vmatprep.subr.bf16.mxu0 0
    %6647 = vmatpush1.bf16.msra.mxu0 %v6630
    %6648 = vmatprep.subr.bf16.mxu0 0
    %6649 = vmatpush2.bf16.msra.mxu0 0
    %6650 = vmatprep.subr.bf16.mxu0 0
    %6651 = vmatpush2.bf16.msra.mxu0 0
    %6652 = vmatprep.subr.bf16.mxu0 0
    %6653 = vmatpush2.bf16.msra.mxu0 0
    %6654 = vmatprep.subr.bf16.mxu0 0
    %6655 = vmatpush2.bf16.msra.mxu0 0
    %6656 = vmatprep.subr.bf16.mxu0 0
    %6657 = vmatpush2.bf16.msra.mxu0 0
    %6658 = vmatprep.subr.bf16.mxu0 0
    %6659 = vmatpush2.bf16.msra.mxu0 0
    %6660 = vmatprep.subr.bf16.mxu0 0
    %6661 = vmatpush2.bf16.msra.mxu0 0
    %6662 = vmatprep.subr.bf16.mxu0 0
    %6663 = vmatpush2.bf16.msra.mxu0 0
    %6664 = vmatprep.mubr.bf16.mxu0 0
    %6665 = vmatmul.mubr.bf16.gmra.mxu0 %v6627
    %v6666 = vpop.f32.mrf.mxu0
    %v6667 = vadd.f32 0.0, %v6666
    %v6668 = vpop.f32.mrf.mxu0
    %v6669 = vpop.f32.mrf.mxu0
    %v6670 = vpop.f32.mrf.mxu0
    %6671 = vdwg.mxu0
    %v6672 = vcombine.low %v4545, %v4547
    %v6673 = vcombine.high %v4545, %v4547
    %v6675 = vunpack.c.l.s4 1983009808
    %v6676 = vunpack.c.0.s8 %v6675
    %v6677 = vlaneseq
    %v6678 = vshrl.u32 %v6677, 7
    %v6679 = vsub.s32 %v6676, %v6678
    %v6680 = vrot.slane %v6672, %v6679
    %v6682 = vunpack.c.l.s4 1983009808
    %v6683 = vunpack.c.0.s8 %v6682
    %v6684 = vlaneseq
    %v6685 = vshrl.u32 %v6684, 7
    %v6686 = vsub.s32 %v6683, %v6685
    %v6687 = vrot.slane %v6673, %v6686
    %v6688 = vcombine.low %v4546, %v4548
    %v6689 = vcombine.high %v4546, %v4548
    %v6691 = vunpack.c.l.s4 1983009808
    %v6692 = vunpack.c.0.s8 %v6691
    %v6693 = vlaneseq
    %v6694 = vshrl.u32 %v6693, 7
    %v6695 = vsub.s32 %v6692, %v6694
    %v6696 = vrot.slane %v6688, %v6695
    %v6698 = vunpack.c.l.s4 1983009808
    %v6699 = vunpack.c.0.s8 %v6698
    %v6700 = vlaneseq
    %v6701 = vshrl.u32 %v6700, 7
    %v6702 = vsub.s32 %v6699, %v6701
    %v6703 = vrot.slane %v6689, %v6702
    %v6704 = vcombine.low %v4549, %v4551
    %v6705 = vcombine.high %v4549, %v4551
    %v6707 = vunpack.c.l.s4 1983009808
    %v6708 = vunpack.c.0.s8 %v6707
    %v6709 = vlaneseq
    %v6710 = vshrl.u32 %v6709, 7
    %v6711 = vsub.s32 %v6708, %v6710
    %v6712 = vrot.slane %v6704, %v6711
    %v6714 = vunpack.c.l.s4 1983009808
    %v6715 = vunpack.c.0.s8 %v6714
    %v6716 = vlaneseq
    %v6717 = vshrl.u32 %v6716, 7
    %v6718 = vsub.s32 %v6715, %v6717
    %v6719 = vrot.slane %v6705, %v6718
    %v6720 = vcombine.low %v4550, %v4552
    %v6721 = vcombine.high %v4550, %v4552
    %v6723 = vunpack.c.l.s4 1983009808
    %v6724 = vunpack.c.0.s8 %v6723
    %v6725 = vlaneseq
    %v6726 = vshrl.u32 %v6725, 7
    %v6727 = vsub.s32 %v6724, %v6726
    %v6728 = vrot.slane %v6720, %v6727
    %v6730 = vunpack.c.l.s4 1983009808
    %v6731 = vunpack.c.0.s8 %v6730
    %v6732 = vlaneseq
    %v6733 = vshrl.u32 %v6732, 7
    %v6734 = vsub.s32 %v6731, %v6733
    %v6735 = vrot.slane %v6721, %v6734
    %v6736 = vcombine.low %v6680, %v6696
    %v6737 = vcombine.high %v6680, %v6696
    %v6739 = vunpack.c.l.s4 1934713408
    %v6740 = vunpack.c.0.s8 %v6739
    %v6741 = vlaneseq
    %v6742 = vshrl.u32 %v6741, 7
    %v6743 = vsub.s32 %v6740, %v6742
    %v6744 = vrot.slane %v6736, %v6743
    %v6746 = vunpack.c.l.s4 1934713408
    %v6747 = vunpack.c.0.s8 %v6746
    %v6748 = vlaneseq
    %v6749 = vshrl.u32 %v6748, 7
    %v6750 = vsub.s32 %v6747, %v6749
    %v6751 = vrot.slane %v6737, %v6750
    %v6752 = vcombine.low %v6687, %v6703
    %v6753 = vcombine.high %v6687, %v6703
    %v6755 = vunpack.c.l.s4 1934713408
    %v6756 = vunpack.c.0.s8 %v6755
    %v6757 = vlaneseq
    %v6758 = vshrl.u32 %v6757, 7
    %v6759 = vsub.s32 %v6756, %v6758
    %v6760 = vrot.slane %v6752, %v6759
    %v6762 = vunpack.c.l.s4 1934713408
    %v6763 = vunpack.c.0.s8 %v6762
    %v6764 = vlaneseq
    %v6765 = vshrl.u32 %v6764, 7
    %v6766 = vsub.s32 %v6763, %v6765
    %v6767 = vrot.slane %v6753, %v6766
    %v6768 = vcombine.low %v6712, %v6728
    %v6769 = vcombine.high %v6712, %v6728
    %v6771 = vunpack.c.l.s4 1934713408
    %v6772 = vunpack.c.0.s8 %v6771
    %v6773 = vlaneseq
    %v6774 = vshrl.u32 %v6773, 7
    %v6775 = vsub.s32 %v6772, %v6774
    %v6776 = vrot.slane %v6768, %v6775
    %v6778 = vunpack.c.l.s4 1934713408
    %v6779 = vunpack.c.0.s8 %v6778
    %v6780 = vlaneseq
    %v6781 = vshrl.u32 %v6780, 7
    %v6782 = vsub.s32 %v6779, %v6781
    %v6783 = vrot.slane %v6769, %v6782
    %v6784 = vcombine.low %v6719, %v6735
    %v6785 = vcombine.high %v6719, %v6735
    %v6787 = vunpack.c.l.s4 1934713408
    %v6788 = vunpack.c.0.s8 %v6787
    %v6789 = vlaneseq
    %v6790 = vshrl.u32 %v6789, 7
    %v6791 = vsub.s32 %v6788, %v6790
    %v6792 = vrot.slane %v6784, %v6791
    %v6794 = vunpack.c.l.s4 1934713408
    %v6795 = vunpack.c.0.s8 %v6794
    %v6796 = vlaneseq
    %v6797 = vshrl.u32 %v6796, 7
    %v6798 = vsub.s32 %v6795, %v6797
    %v6799 = vrot.slane %v6785, %v6798
    %v6800 = vcombine.low %v6744, %v6776
    %v6801 = vcombine.high %v6744, %v6776
    %v6802 = vcombine.low %v6751, %v6783
    %v6803 = vcombine.high %v6751, %v6783
    %v6804 = vcombine.low %v6760, %v6792
    %v6805 = vcombine.high %v6760, %v6792
    %v6806 = vcombine.low %v6767, %v6799
    %v6807 = vcombine.high %v6767, %v6799
    %v6808 = vcombine.low %v4553, %v4555
    %v6809 = vcombine.high %v4553, %v4555
    %v6811 = vunpack.c.l.s4 1983009808
    %v6812 = vunpack.c.0.s8 %v6811
    %v6813 = vlaneseq
    %v6814 = vshrl.u32 %v6813, 7
    %v6815 = vsub.s32 %v6812, %v6814
    %v6816 = vrot.slane %v6808, %v6815
    %v6818 = vunpack.c.l.s4 1983009808
    %v6819 = vunpack.c.0.s8 %v6818
    %v6820 = vlaneseq
    %v6821 = vshrl.u32 %v6820, 7
    %v6822 = vsub.s32 %v6819, %v6821
    %v6823 = vrot.slane %v6809, %v6822
    %v6824 = vcombine.low %v4554, %v4556
    %v6825 = vcombine.high %v4554, %v4556
    %v6827 = vunpack.c.l.s4 1983009808
    %v6828 = vunpack.c.0.s8 %v6827
    %v6829 = vlaneseq
    %v6830 = vshrl.u32 %v6829, 7
    %v6831 = vsub.s32 %v6828, %v6830
    %v6832 = vrot.slane %v6824, %v6831
    %v6834 = vunpack.c.l.s4 1983009808
    %v6835 = vunpack.c.0.s8 %v6834
    %v6836 = vlaneseq
    %v6837 = vshrl.u32 %v6836, 7
    %v6838 = vsub.s32 %v6835, %v6837
    %v6839 = vrot.slane %v6825, %v6838
    %v6840 = vcombine.low %v4557, %v4559
    %v6841 = vcombine.high %v4557, %v4559
    %v6843 = vunpack.c.l.s4 1983009808
    %v6844 = vunpack.c.0.s8 %v6843
    %v6845 = vlaneseq
    %v6846 = vshrl.u32 %v6845, 7
    %v6847 = vsub.s32 %v6844, %v6846
    %v6848 = vrot.slane %v6840, %v6847
    %v6850 = vunpack.c.l.s4 1983009808
    %v6851 = vunpack.c.0.s8 %v6850
    %v6852 = vlaneseq
    %v6853 = vshrl.u32 %v6852, 7
    %v6854 = vsub.s32 %v6851, %v6853
    %v6855 = vrot.slane %v6841, %v6854
    %v6856 = vcombine.low %v4558, %v4560
    %v6857 = vcombine.high %v4558, %v4560
    %v6859 = vunpack.c.l.s4 1983009808
    %v6860 = vunpack.c.0.s8 %v6859
    %v6861 = vlaneseq
    %v6862 = vshrl.u32 %v6861, 7
    %v6863 = vsub.s32 %v6860, %v6862
    %v6864 = vrot.slane %v6856, %v6863
    %v6866 = vunpack.c.l.s4 1983009808
    %v6867 = vunpack.c.0.s8 %v6866
    %v6868 = vlaneseq
    %v6869 = vshrl.u32 %v6868, 7
    %v6870 = vsub.s32 %v6867, %v6869
    %v6871 = vrot.slane %v6857, %v6870
    %v6872 = vcombine.low %v6816, %v6832
    %v6873 = vcombine.high %v6816, %v6832
    %v6875 = vunpack.c.l.s4 1934713408
    %v6876 = vunpack.c.0.s8 %v6875
    %v6877 = vlaneseq
    %v6878 = vshrl.u32 %v6877, 7
    %v6879 = vsub.s32 %v6876, %v6878
    %v6880 = vrot.slane %v6872, %v6879
    %v6882 = vunpack.c.l.s4 1934713408
    %v6883 = vunpack.c.0.s8 %v6882
    %v6884 = vlaneseq
    %v6885 = vshrl.u32 %v6884, 7
    %v6886 = vsub.s32 %v6883, %v6885
    %v6887 = vrot.slane %v6873, %v6886
    %v6888 = vcombine.low %v6823, %v6839
    %v6889 = vcombine.high %v6823, %v6839
    %v6891 = vunpack.c.l.s4 1934713408
    %v6892 = vunpack.c.0.s8 %v6891
    %v6893 = vlaneseq
    %v6894 = vshrl.u32 %v6893, 7
    %v6895 = vsub.s32 %v6892, %v6894
    %v6896 = vrot.slane %v6888, %v6895
    %v6898 = vunpack.c.l.s4 1934713408
    %v6899 = vunpack.c.0.s8 %v6898
    %v6900 = vlaneseq
    %v6901 = vshrl.u32 %v6900, 7
    %v6902 = vsub.s32 %v6899, %v6901
    %v6903 = vrot.slane %v6889, %v6902
    %v6904 = vcombine.low %v6848, %v6864
    %v6905 = vcombine.high %v6848, %v6864
    %v6907 = vunpack.c.l.s4 1934713408
    %v6908 = vunpack.c.0.s8 %v6907
    %v6909 = vlaneseq
    %v6910 = vshrl.u32 %v6909, 7
    %v6911 = vsub.s32 %v6908, %v6910
    %v6912 = vrot.slane %v6904, %v6911
    %v6914 = vunpack.c.l.s4 1934713408
    %v6915 = vunpack.c.0.s8 %v6914
    %v6916 = vlaneseq
    %v6917 = vshrl.u32 %v6916, 7
    %v6918 = vsub.s32 %v6915, %v6917
    %v6919 = vrot.slane %v6905, %v6918
    %v6920 = vcombine.low %v6855, %v6871
    %v6921 = vcombine.high %v6855, %v6871
    %v6923 = vunpack.c.l.s4 1934713408
    %v6924 = vunpack.c.0.s8 %v6923
    %v6925 = vlaneseq
    %v6926 = vshrl.u32 %v6925, 7
    %v6927 = vsub.s32 %v6924, %v6926
    %v6928 = vrot.slane %v6920, %v6927
    %v6930 = vunpack.c.l.s4 1934713408
    %v6931 = vunpack.c.0.s8 %v6930
    %v6932 = vlaneseq
    %v6933 = vshrl.u32 %v6932, 7
    %v6934 = vsub.s32 %v6931, %v6933
    %v6935 = vrot.slane %v6921, %v6934
    %v6936 = vcombine.low %v6880, %v6912
    %v6937 = vcombine.high %v6880, %v6912
    %v6938 = vcombine.low %v6887, %v6919
    %v6939 = vcombine.high %v6887, %v6919
    %v6940 = vcombine.low %v6896, %v6928
    %v6941 = vcombine.high %v6896, %v6928
    %v6942 = vcombine.low %v6903, %v6935
    %v6943 = vcombine.high %v6903, %v6935
    %v6944 = vpack.c.bf16 %v6800, %v6800
    %v6945 = vpack.c.bf16 %v6801, %v6801
    %v6946 = vpack.c.bf16 %v6802, %v6802
    %v6947 = vpack.c.bf16 %v6803, %v6803
    %v6948 = vpack.c.bf16 %v6804, %v6804
    %v6949 = vpack.c.bf16 %v6805, %v6805
    %v6950 = vpack.c.bf16 %v6806, %v6806
    %v6951 = vpack.c.bf16 %v6807, %v6807
    %v6952 = vpack.c.bf16 %v6936, %v6936
    %v6953 = vpack.c.bf16 %v6937, %v6937
    %v6954 = vpack.c.bf16 %v6938, %v6938
    %v6955 = vpack.c.bf16 %v6939, %v6939
    %v6956 = vpack.c.bf16 %v6940, %v6940
    %v6957 = vpack.c.bf16 %v6941, %v6941
    %v6958 = vpack.c.bf16 %v6942, %v6942
    %v6959 = vpack.c.bf16 %v6943, %v6943
    %v6976 = vunpack.c.l.b16 %v6944
    %v6977 = vunpack.c.l.b16 %v6945
    %v6978 = vunpack.c.l.b16 %v6946
    %v6979 = vunpack.c.l.b16 %v6947
    %v6980 = vunpack.c.l.b16 %v6948
    %v6981 = vunpack.c.l.b16 %v6949
    %v6982 = vunpack.c.l.b16 %v6950
    %v6983 = vunpack.c.l.b16 %v6951
    %v6984 = vunpack.c.l.b16 %v6952
    %v6985 = vunpack.c.l.b16 %v6953
    %v6986 = vunpack.c.l.b16 %v6954
    %v6987 = vunpack.c.l.b16 %v6955
    %v6988 = vunpack.c.l.b16 %v6956
    %v6989 = vunpack.c.l.b16 %v6957
    %v6990 = vunpack.c.l.b16 %v6958
    %v6991 = vunpack.c.l.b16 %v6959
    %v6992 = vpack.c.b16 %v6977, %v6976
    %v6993 = vpack.c.b16 %v6979, %v6978
    %v6994 = vpack.c.b16 %v6981, %v6980
    %v6995 = vpack.c.b16 %v6983, %v6982
    %v6996 = vpack.c.b16 %v6985, %v6984
    %v6997 = vpack.c.b16 %v6987, %v6986
    %v6998 = vpack.c.b16 %v6989, %v6988
    %v6999 = vpack.c.b16 %v6991, %v6990
    %v7001 = vsel %vm147, %v6992, 0
    %v7004 = vsel %vm147, %v6993, 0
    %v7007 = vsel %vm147, %v6994, 0
    %v7010 = vsel %vm147, %v6995, 0
    %v7013 = vsel %vm147, %v6996, 0
    %v7016 = vsel %vm147, %v6997, 0
    %v7019 = vsel %vm147, %v6998, 0
    %v7022 = vsel %vm147, %v6999, 0
    %7024 = vmatprep.subr.bf16.mxu0 0
    %7025 = vmatpush1.bf16.msra.mxu0 0
    %7026 = vmatprep.subr.bf16.mxu0 0
    %7027 = vmatpush1.bf16.msra.mxu0 0
    %7028 = vmatprep.subr.bf16.mxu0 0
    %7029 = vmatpush1.bf16.msra.mxu0 0
    %7030 = vmatprep.subr.bf16.mxu0 0
    %7031 = vmatpush1.bf16.msra.mxu0 0
    %7032 = vmatprep.subr.bf16.mxu0 0
    %7033 = vmatpush1.bf16.msra.mxu0 0
    %7034 = vmatprep.subr.bf16.mxu0 0
    %7035 = vmatpush1.bf16.msra.mxu0 0
    %7036 = vmatprep.subr.bf16.mxu0 0
    %7037 = vmatpush1.bf16.msra.mxu0 %v4788
    %7038 = vmatprep.subr.bf16.mxu0 0
    %7039 = vmatpush1.bf16.msra.mxu0 %v4787
    %7040 = vmatprep.subr.bf16.mxu0 0
    %7041 = vmatpush2.bf16.msra.mxu0 0
    %7042 = vmatprep.subr.bf16.mxu0 0
    %7043 = vmatpush2.bf16.msra.mxu0 0
    %7044 = vmatprep.subr.bf16.mxu0 0
    %7045 = vmatpush2.bf16.msra.mxu0 0
    %7046 = vmatprep.subr.bf16.mxu0 0
    %7047 = vmatpush2.bf16.msra.mxu0 0
    %7048 = vmatprep.subr.bf16.mxu0 0
    %7049 = vmatpush2.bf16.msra.mxu0 0
    %7050 = vmatprep.subr.bf16.mxu0 0
    %7051 = vmatpush2.bf16.msra.mxu0 0
    %7052 = vmatprep.subr.bf16.mxu0 0
    %7053 = vmatpush2.bf16.msra.mxu0 0
    %7054 = vmatprep.subr.bf16.mxu0 0
    %7055 = vmatpush2.bf16.msra.mxu0 0
    %7056 = vmatprep.mubr.bf16.mxu0 0
    %7057 = vmatmul.mubr.bf16.gmra.mxu0 %v7001
    %v7058 = vpop.f32.mrf.mxu0
    %v7059 = vadd.f32 0.0, %v7058
    %v7060 = vpop.f32.mrf.mxu0
    %v7061 = vpop.f32.mrf.mxu0
    %v7062 = vadd.f32 0.0, %v7061
    %v7063 = vpop.f32.mrf.mxu0
    %7064 = vmatprep.mubr.bf16.mxu0 0
    %7065 = vmatmul.mubr.bf16.gmra.mxu0 %v7004
    %v7066 = vpop.f32.mrf.mxu0
    %v7067 = vadd.f32 0.0, %v7066
    %v7068 = vpop.f32.mrf.mxu0
    %v7069 = vpop.f32.mrf.mxu0
    %v7070 = vadd.f32 0.0, %v7069
    %v7071 = vpop.f32.mrf.mxu0
    %7072 = vmatprep.mubr.bf16.mxu0 0
    %7073 = vmatmul.mubr.bf16.gmra.mxu0 %v7007
    %v7074 = vpop.f32.mrf.mxu0
    %v7075 = vadd.f32 0.0, %v7074
    %v7076 = vpop.f32.mrf.mxu0
    %v7077 = vpop.f32.mrf.mxu0
    %v7078 = vadd.f32 0.0, %v7077
    %v7079 = vpop.f32.mrf.mxu0
    %7080 = vmatprep.mubr.bf16.mxu0 0
    %7081 = vmatmul.mubr.bf16.gmra.mxu0 %v7010
    %v7082 = vpop.f32.mrf.mxu0
    %v7083 = vadd.f32 0.0, %v7082
    %v7084 = vpop.f32.mrf.mxu0
    %v7085 = vpop.f32.mrf.mxu0
    %v7086 = vadd.f32 0.0, %v7085
    %v7087 = vpop.f32.mrf.mxu0
    %7088 = vmatprep.mubr.bf16.mxu0 0
    %7089 = vmatmul.mubr.bf16.gmra.mxu0 %v7013
    %v7090 = vpop.f32.mrf.mxu0
    %v7091 = vadd.f32 0.0, %v7090
    %v7092 = vpop.f32.mrf.mxu0
    %v7093 = vpop.f32.mrf.mxu0
    %v7094 = vadd.f32 0.0, %v7093
    %v7095 = vpop.f32.mrf.mxu0
    %7096 = vmatprep.mubr.bf16.mxu0 0
    %7097 = vmatmul.mubr.bf16.gmra.mxu0 %v7016
    %v7098 = vpop.f32.mrf.mxu0
    %v7099 = vadd.f32 0.0, %v7098
    %v7100 = vpop.f32.mrf.mxu0
    %v7101 = vpop.f32.mrf.mxu0
    %v7102 = vadd.f32 0.0, %v7101
    %v7103 = vpop.f32.mrf.mxu0
    %7104 = vmatprep.mubr.bf16.mxu0 0
    %7105 = vmatmul.mubr.bf16.gmra.mxu0 %v7019
    %v7106 = vpop.f32.mrf.mxu0
    %v7107 = vadd.f32 0.0, %v7106
    %v7108 = vpop.f32.mrf.mxu0
    %v7109 = vpop.f32.mrf.mxu0
    %v7110 = vadd.f32 0.0, %v7109
    %v7111 = vpop.f32.mrf.mxu0
    %7112 = vmatprep.mubr.bf16.mxu0 0
    %7113 = vmatmul.mubr.bf16.gmra.mxu0 %v7022
    %v7114 = vpop.f32.mrf.mxu0
    %v7115 = vadd.f32 0.0, %v7114
    %v7116 = vpop.f32.mrf.mxu0
    %v7117 = vpop.f32.mrf.mxu0
    %v7118 = vadd.f32 0.0, %v7117
    %v7119 = vpop.f32.mrf.mxu0
    %7120 = vdwg.mxu0
    %v7121 = vpack.c.bf16 %v7059, %v7059
    %v7122 = vpack.c.bf16 %v7062, %v7062
    %v7123 = vpack.c.bf16 %v7067, %v7067
    %v7124 = vpack.c.bf16 %v7070, %v7070
    %v7125 = vpack.c.bf16 %v7075, %v7075
    %v7126 = vpack.c.bf16 %v7078, %v7078
    %v7127 = vpack.c.bf16 %v7083, %v7083
    %v7128 = vpack.c.bf16 %v7086, %v7086
    %v7129 = vpack.c.bf16 %v7091, %v7091
    %v7130 = vpack.c.bf16 %v7094, %v7094
    %v7131 = vpack.c.bf16 %v7099, %v7099
    %v7132 = vpack.c.bf16 %v7102, %v7102
    %v7133 = vpack.c.bf16 %v7107, %v7107
    %v7134 = vpack.c.bf16 %v7110, %v7110
    %v7135 = vpack.c.bf16 %v7115, %v7115
    %v7136 = vpack.c.bf16 %v7118, %v7118
    %7138 = vrot.lane.b32.xlu0 %v7121, 112
    %v7139 = vpop.permute.xlu0 %7138
    %v7141 = vsel %vm288, %v7121, 0
    %v7144 = vsel %vm288, %v7139, 0
    %7146 = vmatprep.subr.bf16.mxu0 0
    %7147 = vmatpush1.bf16.xpose.msra.mxu0 0
    %7148 = vmatprep.subr.bf16.mxu0 0
    %7149 = vmatpush1.bf16.xpose.msra.mxu0 0
    %7150 = vmatprep.subr.bf16.mxu0 0
    %7151 = vmatpush1.bf16.xpose.msra.mxu0 0
    %7152 = vmatprep.subr.bf16.mxu0 0
    %7153 = vmatpush1.bf16.xpose.msra.mxu0 0
    %7154 = vmatprep.subr.bf16.mxu0 0
    %7155 = vmatpush1.bf16.xpose.msra.mxu0 0
    %7156 = vmatprep.subr.bf16.mxu0 0
    %7157 = vmatpush1.bf16.xpose.msra.mxu0 0
    %7158 = vmatprep.subr.bf16.mxu0 0
    %7159 = vmatpush1.bf16.xpose.msra.mxu0 0
    %7160 = vmatprep.subr.bf16.mxu0 0
    %7161 = vmatpush1.bf16.xpose.msra.mxu0 %v7144
    %7162 = vmatprep.subr.bf16.mxu0 0
    %7163 = vmatpush2.bf16.xpose.msra.mxu0 0
    %7164 = vmatprep.subr.bf16.mxu0 0
    %7165 = vmatpush2.bf16.xpose.msra.mxu0 0
    %7166 = vmatprep.subr.bf16.mxu0 0
    %7167 = vmatpush2.bf16.xpose.msra.mxu0 0
    %7168 = vmatprep.subr.bf16.mxu0 0
    %7169 = vmatpush2.bf16.xpose.msra.mxu0 0
    %7170 = vmatprep.subr.bf16.mxu0 0
    %7171 = vmatpush2.bf16.xpose.msra.mxu0 0
    %7172 = vmatprep.subr.bf16.mxu0 0
    %7173 = vmatpush2.bf16.xpose.msra.mxu0 0
    %7174 = vmatprep.subr.bf16.mxu0 0
    %7175 = vmatpush2.bf16.xpose.msra.mxu0 0
    %7176 = vmatprep.subr.bf16.mxu0 0
    %7177 = vmatpush2.bf16.xpose.msra.mxu0 0
    %7178 = vmatprep.mubr.bf16.mxu0 0
    %7179 = vmatmul.mubr.bf16.gmra.mxu0 %v7141
    %v7180 = vpop.f32.mrf.mxu0
    %v7181 = vadd.f32 0.0, %v7180
    %v7182 = vpop.f32.mrf.mxu0
    %v7183 = vpop.f32.mrf.mxu0
    %v7184 = vpop.f32.mrf.mxu0
    %7185 = vdwg.mxu0
    %7187 = vrot.lane.b32.xlu0 %v7122, 112
    %v7188 = vpop.permute.xlu0 %7187
    %v7190 = vsel %vm288, %v7122, 0
    %v7193 = vsel %vm288, %v7188, 0
    %7195 = vmatprep.subr.bf16.mxu0 0
    %7196 = vmatpush1.bf16.xpose.msra.mxu0 0
    %7197 = vmatprep.subr.bf16.mxu0 0
    %7198 = vmatpush1.bf16.xpose.msra.mxu0 0
    %7199 = vmatprep.subr.bf16.mxu0 0
    %7200 = vmatpush1.bf16.xpose.msra.mxu0 0
    %7201 = vmatprep.subr.bf16.mxu0 0
    %7202 = vmatpush1.bf16.xpose.msra.mxu0 0
    %7203 = vmatprep.subr.bf16.mxu0 0
    %7204 = vmatpush1.bf16.xpose.msra.mxu0 0
    %7205 = vmatprep.subr.bf16.mxu0 0
    %7206 = vmatpush1.bf16.xpose.msra.mxu0 0
    %7207 = vmatprep.subr.bf16.mxu0 0
    %7208 = vmatpush1.bf16.xpose.msra.mxu0 0
    %7209 = vmatprep.subr.bf16.mxu0 0
    %7210 = vmatpush1.bf16.xpose.msra.mxu0 %v7193
    %7211 = vmatprep.subr.bf16.mxu0 0
    %7212 = vmatpush2.bf16.xpose.msra.mxu0 0
    %7213 = vmatprep.subr.bf16.mxu0 0
    %7214 = vmatpush2.bf16.xpose.msra.mxu0 0
    %7215 = vmatprep.subr.bf16.mxu0 0
    %7216 = vmatpush2.bf16.xpose.msra.mxu0 0
    %7217 = vmatprep.subr.bf16.mxu0 0
    %7218 = vmatpush2.bf16.xpose.msra.mxu0 0
    %7219 = vmatprep.subr.bf16.mxu0 0
    %7220 = vmatpush2.bf16.xpose.msra.mxu0 0
    %7221 = vmatprep.subr.bf16.mxu0 0
    %7222 = vmatpush2.bf16.xpose.msra.mxu0 0
    %7223 = vmatprep.subr.bf16.mxu0 0
    %7224 = vmatpush2.bf16.xpose.msra.mxu0 0
    %7225 = vmatprep.subr.bf16.mxu0 0
    %7226 = vmatpush2.bf16.xpose.msra.mxu0 0
    %7227 = vmatprep.mubr.bf16.mxu0 0
    %7228 = vmatmul.mubr.bf16.gmra.mxu0 %v7190
    %v7229 = vpop.f32.mrf.mxu0
    %v7230 = vadd.f32 0.0, %v7229
    %v7231 = vpop.f32.mrf.mxu0
    %v7232 = vpop.f32.mrf.mxu0
    %v7233 = vpop.f32.mrf.mxu0
    %7234 = vdwg.mxu0
    %7236 = vrot.lane.b32.xlu0 %v7123, 112
    %v7237 = vpop.permute.xlu0 %7236
    %v7239 = vsel %vm288, %v7123, 0
    %v7242 = vsel %vm288, %v7237, 0
    %7244 = vmatprep.subr.bf16.mxu0 0
    %7245 = vmatpush1.bf16.xpose.msra.mxu0 0
    %7246 = vmatprep.subr.bf16.mxu0 0
    %7247 = vmatpush1.bf16.xpose.msra.mxu0 0
    %7248 = vmatprep.subr.bf16.mxu0 0
    %7249 = vmatpush1.bf16.xpose.msra.mxu0 0
    %7250 = vmatprep.subr.bf16.mxu0 0
    %7251 = vmatpush1.bf16.xpose.msra.mxu0 0
    %7252 = vmatprep.subr.bf16.mxu0 0
    %7253 = vmatpush1.bf16.xpose.msra.mxu0 0
    %7254 = vmatprep.subr.bf16.mxu0 0
    %7255 = vmatpush1.bf16.xpose.msra.mxu0 0
    %7256 = vmatprep.subr.bf16.mxu0 0
    %7257 = vmatpush1.bf16.xpose.msra.mxu0 0
    %7258 = vmatprep.subr.bf16.mxu0 0
    %7259 = vmatpush1.bf16.xpose.msra.mxu0 %v7242
    %7260 = vmatprep.subr.bf16.mxu0 0
    %7261 = vmatpush2.bf16.xpose.msra.mxu0 0
    %7262 = vmatprep.subr.bf16.mxu0 0
    %7263 = vmatpush2.bf16.xpose.msra.mxu0 0
    %7264 = vmatprep.subr.bf16.mxu0 0
    %7265 = vmatpush2.bf16.xpose.msra.mxu0 0
    %7266 = vmatprep.subr.bf16.mxu0 0
    %7267 = vmatpush2.bf16.xpose.msra.mxu0 0
    %7268 = vmatprep.subr.bf16.mxu0 0
    %7269 = vmatpush2.bf16.xpose.msra.mxu0 0
    %7270 = vmatprep.subr.bf16.mxu0 0
    %7271 = vmatpush2.bf16.xpose.msra.mxu0 0
    %7272 = vmatprep.subr.bf16.mxu0 0
    %7273 = vmatpush2.bf16.xpose.msra.mxu0 0
    %7274 = vmatprep.subr.bf16.mxu0 0
    %7275 = vmatpush2.bf16.xpose.msra.mxu0 0
    %7276 = vmatprep.mubr.bf16.mxu0 0
    %7277 = vmatmul.mubr.bf16.gmra.mxu0 %v7239
    %v7278 = vpop.f32.mrf.mxu0
    %v7279 = vadd.f32 0.0, %v7278
    %v7280 = vpop.f32.mrf.mxu0
    %v7281 = vpop.f32.mrf.mxu0
    %v7282 = vpop.f32.mrf.mxu0
    %7283 = vdwg.mxu0
    %7285 = vrot.lane.b32.xlu0 %v7124, 112
    %v7286 = vpop.permute.xlu0 %7285
    %v7288 = vsel %vm288, %v7124, 0
    %v7291 = vsel %vm288, %v7286, 0
    %7293 = vmatprep.subr.bf16.mxu0 0
    %7294 = vmatpush1.bf16.xpose.msra.mxu0 0
    %7295 = vmatprep.subr.bf16.mxu0 0
    %7296 = vmatpush1.bf16.xpose.msra.mxu0 0
    %7297 = vmatprep.subr.bf16.mxu0 0
    %7298 = vmatpush1.bf16.xpose.msra.mxu0 0
    %7299 = vmatprep.subr.bf16.mxu0 0
    %7300 = vmatpush1.bf16.xpose.msra.mxu0 0
    %7301 = vmatprep.subr.bf16.mxu0 0
    %7302 = vmatpush1.bf16.xpose.msra.mxu0 0
    %7303 = vmatprep.subr.bf16.mxu0 0
    %7304 = vmatpush1.bf16.xpose.msra.mxu0 0
    %7305 = vmatprep.subr.bf16.mxu0 0
    %7306 = vmatpush1.bf16.xpose.msra.mxu0 0
    %7307 = vmatprep.subr.bf16.mxu0 0
    %7308 = vmatpush1.bf16.xpose.msra.mxu0 %v7291
    %7309 = vmatprep.subr.bf16.mxu0 0
    %7310 = vmatpush2.bf16.xpose.msra.mxu0 0
    %7311 = vmatprep.subr.bf16.mxu0 0
    %7312 = vmatpush2.bf16.xpose.msra.mxu0 0
    %7313 = vmatprep.subr.bf16.mxu0 0
    %7314 = vmatpush2.bf16.xpose.msra.mxu0 0
    %7315 = vmatprep.subr.bf16.mxu0 0
    %7316 = vmatpush2.bf16.xpose.msra.mxu0 0
    %7317 = vmatprep.subr.bf16.mxu0 0
    %7318 = vmatpush2.bf16.xpose.msra.mxu0 0
    %7319 = vmatprep.subr.bf16.mxu0 0
    %7320 = vmatpush2.bf16.xpose.msra.mxu0 0
    %7321 = vmatprep.subr.bf16.mxu0 0
    %7322 = vmatpush2.bf16.xpose.msra.mxu0 0
    %7323 = vmatprep.subr.bf16.mxu0 0
    %7324 = vmatpush2.bf16.xpose.msra.mxu0 0
    %7325 = vmatprep.mubr.bf16.mxu0 0
    %7326 = vmatmul.mubr.bf16.gmra.mxu0 %v7288
    %v7327 = vpop.f32.mrf.mxu0
    %v7328 = vadd.f32 0.0, %v7327
    %v7329 = vpop.f32.mrf.mxu0
    %v7330 = vpop.f32.mrf.mxu0
    %v7331 = vpop.f32.mrf.mxu0
    %7332 = vdwg.mxu0
    %7334 = vrot.lane.b32.xlu0 %v7125, 112
    %v7335 = vpop.permute.xlu0 %7334
    %v7337 = vsel %vm288, %v7125, 0
    %v7340 = vsel %vm288, %v7335, 0
    %7342 = vmatprep.subr.bf16.mxu0 0
    %7343 = vmatpush1.bf16.xpose.msra.mxu0 0
    %7344 = vmatprep.subr.bf16.mxu0 0
    %7345 = vmatpush1.bf16.xpose.msra.mxu0 0
    %7346 = vmatprep.subr.bf16.mxu0 0
    %7347 = vmatpush1.bf16.xpose.msra.mxu0 0
    %7348 = vmatprep.subr.bf16.mxu0 0
    %7349 = vmatpush1.bf16.xpose.msra.mxu0 0
    %7350 = vmatprep.subr.bf16.mxu0 0
    %7351 = vmatpush1.bf16.xpose.msra.mxu0 0
    %7352 = vmatprep.subr.bf16.mxu0 0
    %7353 = vmatpush1.bf16.xpose.msra.mxu0 0
    %7354 = vmatprep.subr.bf16.mxu0 0
    %7355 = vmatpush1.bf16.xpose.msra.mxu0 0
    %7356 = vmatprep.subr.bf16.mxu0 0
    %7357 = vmatpush1.bf16.xpose.msra.mxu0 %v7340
    %7358 = vmatprep.subr.bf16.mxu0 0
    %7359 = vmatpush2.bf16.xpose.msra.mxu0 0
    %7360 = vmatprep.subr.bf16.mxu0 0
    %7361 = vmatpush2.bf16.xpose.msra.mxu0 0
    %7362 = vmatprep.subr.bf16.mxu0 0
    %7363 = vmatpush2.bf16.xpose.msra.mxu0 0
    %7364 = vmatprep.subr.bf16.mxu0 0
    %7365 = vmatpush2.bf16.xpose.msra.mxu0 0
    %7366 = vmatprep.subr.bf16.mxu0 0
    %7367 = vmatpush2.bf16.xpose.msra.mxu0 0
    %7368 = vmatprep.subr.bf16.mxu0 0
    %7369 = vmatpush2.bf16.xpose.msra.mxu0 0
    %7370 = vmatprep.subr.bf16.mxu0 0
    %7371 = vmatpush2.bf16.xpose.msra.mxu0 0
    %7372 = vmatprep.subr.bf16.mxu0 0
    %7373 = vmatpush2.bf16.xpose.msra.mxu0 0
    %7374 = vmatprep.mubr.bf16.mxu0 0
    %7375 = vmatmul.mubr.bf16.gmra.mxu0 %v7337
    %v7376 = vpop.f32.mrf.mxu0
    %v7377 = vadd.f32 0.0, %v7376
    %v7378 = vpop.f32.mrf.mxu0
    %v7379 = vpop.f32.mrf.mxu0
    %v7380 = vpop.f32.mrf.mxu0
    %7381 = vdwg.mxu0
    %7383 = vrot.lane.b32.xlu0 %v7126, 112
    %v7384 = vpop.permute.xlu0 %7383
    %v7386 = vsel %vm288, %v7126, 0
    %v7389 = vsel %vm288, %v7384, 0
    %7391 = vmatprep.subr.bf16.mxu0 0
    %7392 = vmatpush1.bf16.xpose.msra.mxu0 0
    %7393 = vmatprep.subr.bf16.mxu0 0
    %7394 = vmatpush1.bf16.xpose.msra.mxu0 0
    %7395 = vmatprep.subr.bf16.mxu0 0
    %7396 = vmatpush1.bf16.xpose.msra.mxu0 0
    %7397 = vmatprep.subr.bf16.mxu0 0
    %7398 = vmatpush1.bf16.xpose.msra.mxu0 0
    %7399 = vmatprep.subr.bf16.mxu0 0
    %7400 = vmatpush1.bf16.xpose.msra.mxu0 0
    %7401 = vmatprep.subr.bf16.mxu0 0
    %7402 = vmatpush1.bf16.xpose.msra.mxu0 0
    %7403 = vmatprep.subr.bf16.mxu0 0
    %7404 = vmatpush1.bf16.xpose.msra.mxu0 0
    %7405 = vmatprep.subr.bf16.mxu0 0
    %7406 = vmatpush1.bf16.xpose.msra.mxu0 %v7389
    %7407 = vmatprep.subr.bf16.mxu0 0
    %7408 = vmatpush2.bf16.xpose.msra.mxu0 0
    %7409 = vmatprep.subr.bf16.mxu0 0
    %7410 = vmatpush2.bf16.xpose.msra.mxu0 0
    %7411 = vmatprep.subr.bf16.mxu0 0
    %7412 = vmatpush2.bf16.xpose.msra.mxu0 0
    %7413 = vmatprep.subr.bf16.mxu0 0
    %7414 = vmatpush2.bf16.xpose.msra.mxu0 0
    %7415 = vmatprep.subr.bf16.mxu0 0
    %7416 = vmatpush2.bf16.xpose.msra.mxu0 0
    %7417 = vmatprep.subr.bf16.mxu0 0
    %7418 = vmatpush2.bf16.xpose.msra.mxu0 0
    %7419 = vmatprep.subr.bf16.mxu0 0
    %7420 = vmatpush2.bf16.xpose.msra.mxu0 0
    %7421 = vmatprep.subr.bf16.mxu0 0
    %7422 = vmatpush2.bf16.xpose.msra.mxu0 0
    %7423 = vmatprep.mubr.bf16.mxu0 0
    %7424 = vmatmul.mubr.bf16.gmra.mxu0 %v7386
    %v7425 = vpop.f32.mrf.mxu0
    %v7426 = vadd.f32 0.0, %v7425
    %v7427 = vpop.f32.mrf.mxu0
    %v7428 = vpop.f32.mrf.mxu0
    %v7429 = vpop.f32.mrf.mxu0
    %7430 = vdwg.mxu0
    %7432 = vrot.lane.b32.xlu0 %v7127, 112
    %v7433 = vpop.permute.xlu0 %7432
    %v7435 = vsel %vm288, %v7127, 0
    %v7438 = vsel %vm288, %v7433, 0
    %7440 = vmatprep.subr.bf16.mxu0 0
    %7441 = vmatpush1.bf16.xpose.msra.mxu0 0
    %7442 = vmatprep.subr.bf16.mxu0 0
    %7443 = vmatpush1.bf16.xpose.msra.mxu0 0
    %7444 = vmatprep.subr.bf16.mxu0 0
    %7445 = vmatpush1.bf16.xpose.msra.mxu0 0
    %7446 = vmatprep.subr.bf16.mxu0 0
    %7447 = vmatpush1.bf16.xpose.msra.mxu0 0
    %7448 = vmatprep.subr.bf16.mxu0 0
    %7449 = vmatpush1.bf16.xpose.msra.mxu0 0
    %7450 = vmatprep.subr.bf16.mxu0 0
    %7451 = vmatpush1.bf16.xpose.msra.mxu0 0
    %7452 = vmatprep.subr.bf16.mxu0 0
    %7453 = vmatpush1.bf16.xpose.msra.mxu0 0
    %7454 = vmatprep.subr.bf16.mxu0 0
    %7455 = vmatpush1.bf16.xpose.msra.mxu0 %v7438
    %7456 = vmatprep.subr.bf16.mxu0 0
    %7457 = vmatpush2.bf16.xpose.msra.mxu0 0
    %7458 = vmatprep.subr.bf16.mxu0 0
    %7459 = vmatpush2.bf16.xpose.msra.mxu0 0
    %7460 = vmatprep.subr.bf16.mxu0 0
    %7461 = vmatpush2.bf16.xpose.msra.mxu0 0
    %7462 = vmatprep.subr.bf16.mxu0 0
    %7463 = vmatpush2.bf16.xpose.msra.mxu0 0
    %7464 = vmatprep.subr.bf16.mxu0 0
    %7465 = vmatpush2.bf16.xpose.msra.mxu0 0
    %7466 = vmatprep.subr.bf16.mxu0 0
    %7467 = vmatpush2.bf16.xpose.msra.mxu0 0
    %7468 = vmatprep.subr.bf16.mxu0 0
    %7469 = vmatpush2.bf16.xpose.msra.mxu0 0
    %7470 = vmatprep.subr.bf16.mxu0 0
    %7471 = vmatpush2.bf16.xpose.msra.mxu0 0
    %7472 = vmatprep.mubr.bf16.mxu0 0
    %7473 = vmatmul.mubr.bf16.gmra.mxu0 %v7435
    %v7474 = vpop.f32.mrf.mxu0
    %v7475 = vadd.f32 0.0, %v7474
    %v7476 = vpop.f32.mrf.mxu0
    %v7477 = vpop.f32.mrf.mxu0
    %v7478 = vpop.f32.mrf.mxu0
    %7479 = vdwg.mxu0
    %7481 = vrot.lane.b32.xlu0 %v7128, 112
    %v7482 = vpop.permute.xlu0 %7481
    %v7484 = vsel %vm288, %v7128, 0
    %v7487 = vsel %vm288, %v7482, 0
    %7489 = vmatprep.subr.bf16.mxu0 0
    %7490 = vmatpush1.bf16.xpose.msra.mxu0 0
    %7491 = vmatprep.subr.bf16.mxu0 0
    %7492 = vmatpush1.bf16.xpose.msra.mxu0 0
    %7493 = vmatprep.subr.bf16.mxu0 0
    %7494 = vmatpush1.bf16.xpose.msra.mxu0 0
    %7495 = vmatprep.subr.bf16.mxu0 0
    %7496 = vmatpush1.bf16.xpose.msra.mxu0 0
    %7497 = vmatprep.subr.bf16.mxu0 0
    %7498 = vmatpush1.bf16.xpose.msra.mxu0 0
    %7499 = vmatprep.subr.bf16.mxu0 0
    %7500 = vmatpush1.bf16.xpose.msra.mxu0 0
    %7501 = vmatprep.subr.bf16.mxu0 0
    %7502 = vmatpush1.bf16.xpose.msra.mxu0 0
    %7503 = vmatprep.subr.bf16.mxu0 0
    %7504 = vmatpush1.bf16.xpose.msra.mxu0 %v7487
    %7505 = vmatprep.subr.bf16.mxu0 0
    %7506 = vmatpush2.bf16.xpose.msra.mxu0 0
    %7507 = vmatprep.subr.bf16.mxu0 0
    %7508 = vmatpush2.bf16.xpose.msra.mxu0 0
    %7509 = vmatprep.subr.bf16.mxu0 0
    %7510 = vmatpush2.bf16.xpose.msra.mxu0 0
    %7511 = vmatprep.subr.bf16.mxu0 0
    %7512 = vmatpush2.bf16.xpose.msra.mxu0 0
    %7513 = vmatprep.subr.bf16.mxu0 0
    %7514 = vmatpush2.bf16.xpose.msra.mxu0 0
    %7515 = vmatprep.subr.bf16.mxu0 0
    %7516 = vmatpush2.bf16.xpose.msra.mxu0 0
    %7517 = vmatprep.subr.bf16.mxu0 0
    %7518 = vmatpush2.bf16.xpose.msra.mxu0 0
    %7519 = vmatprep.subr.bf16.mxu0 0
    %7520 = vmatpush2.bf16.xpose.msra.mxu0 0
    %7521 = vmatprep.mubr.bf16.mxu0 0
    %7522 = vmatmul.mubr.bf16.gmra.mxu0 %v7484
    %v7523 = vpop.f32.mrf.mxu0
    %v7524 = vadd.f32 0.0, %v7523
    %v7525 = vpop.f32.mrf.mxu0
    %v7526 = vpop.f32.mrf.mxu0
    %v7527 = vpop.f32.mrf.mxu0
    %7528 = vdwg.mxu0
    %7530 = vrot.lane.b32.xlu0 %v7129, 112
    %v7531 = vpop.permute.xlu0 %7530
    %v7533 = vsel %vm288, %v7129, 0
    %v7536 = vsel %vm288, %v7531, 0
    %7538 = vmatprep.subr.bf16.mxu0 0
    %7539 = vmatpush1.bf16.xpose.msra.mxu0 0
    %7540 = vmatprep.subr.bf16.mxu0 0
    %7541 = vmatpush1.bf16.xpose.msra.mxu0 0
    %7542 = vmatprep.subr.bf16.mxu0 0
    %7543 = vmatpush1.bf16.xpose.msra.mxu0 0
    %7544 = vmatprep.subr.bf16.mxu0 0
    %7545 = vmatpush1.bf16.xpose.msra.mxu0 0
    %7546 = vmatprep.subr.bf16.mxu0 0
    %7547 = vmatpush1.bf16.xpose.msra.mxu0 0
    %7548 = vmatprep.subr.bf16.mxu0 0
    %7549 = vmatpush1.bf16.xpose.msra.mxu0 0
    %7550 = vmatprep.subr.bf16.mxu0 0
    %7551 = vmatpush1.bf16.xpose.msra.mxu0 0
    %7552 = vmatprep.subr.bf16.mxu0 0
    %7553 = vmatpush1.bf16.xpose.msra.mxu0 %v7536
    %7554 = vmatprep.subr.bf16.mxu0 0
    %7555 = vmatpush2.bf16.xpose.msra.mxu0 0
    %7556 = vmatprep.subr.bf16.mxu0 0
    %7557 = vmatpush2.bf16.xpose.msra.mxu0 0
    %7558 = vmatprep.subr.bf16.mxu0 0
    %7559 = vmatpush2.bf16.xpose.msra.mxu0 0
    %7560 = vmatprep.subr.bf16.mxu0 0
    %7561 = vmatpush2.bf16.xpose.msra.mxu0 0
    %7562 = vmatprep.subr.bf16.mxu0 0
    %7563 = vmatpush2.bf16.xpose.msra.mxu0 0
    %7564 = vmatprep.subr.bf16.mxu0 0
    %7565 = vmatpush2.bf16.xpose.msra.mxu0 0
    %7566 = vmatprep.subr.bf16.mxu0 0
    %7567 = vmatpush2.bf16.xpose.msra.mxu0 0
    %7568 = vmatprep.subr.bf16.mxu0 0
    %7569 = vmatpush2.bf16.xpose.msra.mxu0 0
    %7570 = vmatprep.mubr.bf16.mxu0 0
    %7571 = vmatmul.mubr.bf16.gmra.mxu0 %v7533
    %v7572 = vpop.f32.mrf.mxu0
    %v7573 = vadd.f32 0.0, %v7572
    %v7574 = vpop.f32.mrf.mxu0
    %v7575 = vpop.f32.mrf.mxu0
    %v7576 = vpop.f32.mrf.mxu0
    %7577 = vdwg.mxu0
    %7579 = vrot.lane.b32.xlu0 %v7130, 112
    %v7580 = vpop.permute.xlu0 %7579
    %v7582 = vsel %vm288, %v7130, 0
    %v7585 = vsel %vm288, %v7580, 0
    %7587 = vmatprep.subr.bf16.mxu0 0
    %7588 = vmatpush1.bf16.xpose.msra.mxu0 0
    %7589 = vmatprep.subr.bf16.mxu0 0
    %7590 = vmatpush1.bf16.xpose.msra.mxu0 0
    %7591 = vmatprep.subr.bf16.mxu0 0
    %7592 = vmatpush1.bf16.xpose.msra.mxu0 0
    %7593 = vmatprep.subr.bf16.mxu0 0
    %7594 = vmatpush1.bf16.xpose.msra.mxu0 0
    %7595 = vmatprep.subr.bf16.mxu0 0
    %7596 = vmatpush1.bf16.xpose.msra.mxu0 0
    %7597 = vmatprep.subr.bf16.mxu0 0
    %7598 = vmatpush1.bf16.xpose.msra.mxu0 0
    %7599 = vmatprep.subr.bf16.mxu0 0
    %7600 = vmatpush1.bf16.xpose.msra.mxu0 0
    %7601 = vmatprep.subr.bf16.mxu0 0
    %7602 = vmatpush1.bf16.xpose.msra.mxu0 %v7585
    %7603 = vmatprep.subr.bf16.mxu0 0
    %7604 = vmatpush2.bf16.xpose.msra.mxu0 0
    %7605 = vmatprep.subr.bf16.mxu0 0
    %7606 = vmatpush2.bf16.xpose.msra.mxu0 0
    %7607 = vmatprep.subr.bf16.mxu0 0
    %7608 = vmatpush2.bf16.xpose.msra.mxu0 0
    %7609 = vmatprep.subr.bf16.mxu0 0
    %7610 = vmatpush2.bf16.xpose.msra.mxu0 0
    %7611 = vmatprep.subr.bf16.mxu0 0
    %7612 = vmatpush2.bf16.xpose.msra.mxu0 0
    %7613 = vmatprep.subr.bf16.mxu0 0
    %7614 = vmatpush2.bf16.xpose.msra.mxu0 0
    %7615 = vmatprep.subr.bf16.mxu0 0
    %7616 = vmatpush2.bf16.xpose.msra.mxu0 0
    %7617 = vmatprep.subr.bf16.mxu0 0
    %7618 = vmatpush2.bf16.xpose.msra.mxu0 0
    %7619 = vmatprep.mubr.bf16.mxu0 0
    %7620 = vmatmul.mubr.bf16.gmra.mxu0 %v7582
    %v7621 = vpop.f32.mrf.mxu0
    %v7622 = vadd.f32 0.0, %v7621
    %v7623 = vpop.f32.mrf.mxu0
    %v7624 = vpop.f32.mrf.mxu0
    %v7625 = vpop.f32.mrf.mxu0
    %7626 = vdwg.mxu0
    %7628 = vrot.lane.b32.xlu0 %v7131, 112
    %v7629 = vpop.permute.xlu0 %7628
    %v7631 = vsel %vm288, %v7131, 0
    %v7634 = vsel %vm288, %v7629, 0
    %7636 = vmatprep.subr.bf16.mxu0 0
    %7637 = vmatpush1.bf16.xpose.msra.mxu0 0
    %7638 = vmatprep.subr.bf16.mxu0 0
    %7639 = vmatpush1.bf16.xpose.msra.mxu0 0
    %7640 = vmatprep.subr.bf16.mxu0 0
    %7641 = vmatpush1.bf16.xpose.msra.mxu0 0
    %7642 = vmatprep.subr.bf16.mxu0 0
    %7643 = vmatpush1.bf16.xpose.msra.mxu0 0
    %7644 = vmatprep.subr.bf16.mxu0 0
    %7645 = vmatpush1.bf16.xpose.msra.mxu0 0
    %7646 = vmatprep.subr.bf16.mxu0 0
    %7647 = vmatpush1.bf16.xpose.msra.mxu0 0
    %7648 = vmatprep.subr.bf16.mxu0 0
    %7649 = vmatpush1.bf16.xpose.msra.mxu0 0
    %7650 = vmatprep.subr.bf16.mxu0 0
    %7651 = vmatpush1.bf16.xpose.msra.mxu0 %v7634
    %7652 = vmatprep.subr.bf16.mxu0 0
    %7653 = vmatpush2.bf16.xpose.msra.mxu0 0
    %7654 = vmatprep.subr.bf16.mxu0 0
    %7655 = vmatpush2.bf16.xpose.msra.mxu0 0
    %7656 = vmatprep.subr.bf16.mxu0 0
    %7657 = vmatpush2.bf16.xpose.msra.mxu0 0
    %7658 = vmatprep.subr.bf16.mxu0 0
    %7659 = vmatpush2.bf16.xpose.msra.mxu0 0
    %7660 = vmatprep.subr.bf16.mxu0 0
    %7661 = vmatpush2.bf16.xpose.msra.mxu0 0
    %7662 = vmatprep.subr.bf16.mxu0 0
    %7663 = vmatpush2.bf16.xpose.msra.mxu0 0
    %7664 = vmatprep.subr.bf16.mxu0 0
    %7665 = vmatpush2.bf16.xpose.msra.mxu0 0
    %7666 = vmatprep.subr.bf16.mxu0 0
    %7667 = vmatpush2.bf16.xpose.msra.mxu0 0
    %7668 = vmatprep.mubr.bf16.mxu0 0
    %7669 = vmatmul.mubr.bf16.gmra.mxu0 %v7631
    %v7670 = vpop.f32.mrf.mxu0
    %v7671 = vadd.f32 0.0, %v7670
    %v7672 = vpop.f32.mrf.mxu0
    %v7673 = vpop.f32.mrf.mxu0
    %v7674 = vpop.f32.mrf.mxu0
    %7675 = vdwg.mxu0
    %7677 = vrot.lane.b32.xlu0 %v7132, 112
    %v7678 = vpop.permute.xlu0 %7677
    %v7680 = vsel %vm288, %v7132, 0
    %v7683 = vsel %vm288, %v7678, 0
    %7685 = vmatprep.subr.bf16.mxu0 0
    %7686 = vmatpush1.bf16.xpose.msra.mxu0 0
    %7687 = vmatprep.subr.bf16.mxu0 0
    %7688 = vmatpush1.bf16.xpose.msra.mxu0 0
    %7689 = vmatprep.subr.bf16.mxu0 0
    %7690 = vmatpush1.bf16.xpose.msra.mxu0 0
    %7691 = vmatprep.subr.bf16.mxu0 0
    %7692 = vmatpush1.bf16.xpose.msra.mxu0 0
    %7693 = vmatprep.subr.bf16.mxu0 0
    %7694 = vmatpush1.bf16.xpose.msra.mxu0 0
    %7695 = vmatprep.subr.bf16.mxu0 0
    %7696 = vmatpush1.bf16.xpose.msra.mxu0 0
    %7697 = vmatprep.subr.bf16.mxu0 0
    %7698 = vmatpush1.bf16.xpose.msra.mxu0 0
    %7699 = vmatprep.subr.bf16.mxu0 0
    %7700 = vmatpush1.bf16.xpose.msra.mxu0 %v7683
    %7701 = vmatprep.subr.bf16.mxu0 0
    %7702 = vmatpush2.bf16.xpose.msra.mxu0 0
    %7703 = vmatprep.subr.bf16.mxu0 0
    %7704 = vmatpush2.bf16.xpose.msra.mxu0 0
    %7705 = vmatprep.subr.bf16.mxu0 0
    %7706 = vmatpush2.bf16.xpose.msra.mxu0 0
    %7707 = vmatprep.subr.bf16.mxu0 0
    %7708 = vmatpush2.bf16.xpose.msra.mxu0 0
    %7709 = vmatprep.subr.bf16.mxu0 0
    %7710 = vmatpush2.bf16.xpose.msra.mxu0 0
    %7711 = vmatprep.subr.bf16.mxu0 0
    %7712 = vmatpush2.bf16.xpose.msra.mxu0 0
    %7713 = vmatprep.subr.bf16.mxu0 0
    %7714 = vmatpush2.bf16.xpose.msra.mxu0 0
    %7715 = vmatprep.subr.bf16.mxu0 0
    %7716 = vmatpush2.bf16.xpose.msra.mxu0 0
    %7717 = vmatprep.mubr.bf16.mxu0 0
    %7718 = vmatmul.mubr.bf16.gmra.mxu0 %v7680
    %v7719 = vpop.f32.mrf.mxu0
    %v7720 = vadd.f32 0.0, %v7719
    %v7721 = vpop.f32.mrf.mxu0
    %v7722 = vpop.f32.mrf.mxu0
    %v7723 = vpop.f32.mrf.mxu0
    %7724 = vdwg.mxu0
    %7726 = vrot.lane.b32.xlu0 %v7133, 112
    %v7727 = vpop.permute.xlu0 %7726
    %v7729 = vsel %vm288, %v7133, 0
    %v7732 = vsel %vm288, %v7727, 0
    %7734 = vmatprep.subr.bf16.mxu0 0
    %7735 = vmatpush1.bf16.xpose.msra.mxu0 0
    %7736 = vmatprep.subr.bf16.mxu0 0
    %7737 = vmatpush1.bf16.xpose.msra.mxu0 0
    %7738 = vmatprep.subr.bf16.mxu0 0
    %7739 = vmatpush1.bf16.xpose.msra.mxu0 0
    %7740 = vmatprep.subr.bf16.mxu0 0
    %7741 = vmatpush1.bf16.xpose.msra.mxu0 0
    %7742 = vmatprep.subr.bf16.mxu0 0
    %7743 = vmatpush1.bf16.xpose.msra.mxu0 0
    %7744 = vmatprep.subr.bf16.mxu0 0
    %7745 = vmatpush1.bf16.xpose.msra.mxu0 0
    %7746 = vmatprep.subr.bf16.mxu0 0
    %7747 = vmatpush1.bf16.xpose.msra.mxu0 0
    %7748 = vmatprep.subr.bf16.mxu0 0
    %7749 = vmatpush1.bf16.xpose.msra.mxu0 %v7732
    %7750 = vmatprep.subr.bf16.mxu0 0
    %7751 = vmatpush2.bf16.xpose.msra.mxu0 0
    %7752 = vmatprep.subr.bf16.mxu0 0
    %7753 = vmatpush2.bf16.xpose.msra.mxu0 0
    %7754 = vmatprep.subr.bf16.mxu0 0
    %7755 = vmatpush2.bf16.xpose.msra.mxu0 0
    %7756 = vmatprep.subr.bf16.mxu0 0
    %7757 = vmatpush2.bf16.xpose.msra.mxu0 0
    %7758 = vmatprep.subr.bf16.mxu0 0
    %7759 = vmatpush2.bf16.xpose.msra.mxu0 0
    %7760 = vmatprep.subr.bf16.mxu0 0
    %7761 = vmatpush2.bf16.xpose.msra.mxu0 0
    %7762 = vmatprep.subr.bf16.mxu0 0
    %7763 = vmatpush2.bf16.xpose.msra.mxu0 0
    %7764 = vmatprep.subr.bf16.mxu0 0
    %7765 = vmatpush2.bf16.xpose.msra.mxu0 0
    %7766 = vmatprep.mubr.bf16.mxu0 0
    %7767 = vmatmul.mubr.bf16.gmra.mxu0 %v7729
    %v7768 = vpop.f32.mrf.mxu0
    %v7769 = vadd.f32 0.0, %v7768
    %v7770 = vpop.f32.mrf.mxu0
    %v7771 = vpop.f32.mrf.mxu0
    %v7772 = vpop.f32.mrf.mxu0
    %7773 = vdwg.mxu0
    %7775 = vrot.lane.b32.xlu0 %v7134, 112
    %v7776 = vpop.permute.xlu0 %7775
    %v7778 = vsel %vm288, %v7134, 0
    %v7781 = vsel %vm288, %v7776, 0
    %7783 = vmatprep.subr.bf16.mxu0 0
    %7784 = vmatpush1.bf16.xpose.msra.mxu0 0
    %7785 = vmatprep.subr.bf16.mxu0 0
    %7786 = vmatpush1.bf16.xpose.msra.mxu0 0
    %7787 = vmatprep.subr.bf16.mxu0 0
    %7788 = vmatpush1.bf16.xpose.msra.mxu0 0
    %7789 = vmatprep.subr.bf16.mxu0 0
    %7790 = vmatpush1.bf16.xpose.msra.mxu0 0
    %7791 = vmatprep.subr.bf16.mxu0 0
    %7792 = vmatpush1.bf16.xpose.msra.mxu0 0
    %7793 = vmatprep.subr.bf16.mxu0 0
    %7794 = vmatpush1.bf16.xpose.msra.mxu0 0
    %7795 = vmatprep.subr.bf16.mxu0 0
    %7796 = vmatpush1.bf16.xpose.msra.mxu0 0
    %7797 = vmatprep.subr.bf16.mxu0 0
    %7798 = vmatpush1.bf16.xpose.msra.mxu0 %v7781
    %7799 = vmatprep.subr.bf16.mxu0 0
    %7800 = vmatpush2.bf16.xpose.msra.mxu0 0
    %7801 = vmatprep.subr.bf16.mxu0 0
    %7802 = vmatpush2.bf16.xpose.msra.mxu0 0
    %7803 = vmatprep.subr.bf16.mxu0 0
    %7804 = vmatpush2.bf16.xpose.msra.mxu0 0
    %7805 = vmatprep.subr.bf16.mxu0 0
    %7806 = vmatpush2.bf16.xpose.msra.mxu0 0
    %7807 = vmatprep.subr.bf16.mxu0 0
    %7808 = vmatpush2.bf16.xpose.msra.mxu0 0
    %7809 = vmatprep.subr.bf16.mxu0 0
    %7810 = vmatpush2.bf16.xpose.msra.mxu0 0
    %7811 = vmatprep.subr.bf16.mxu0 0
    %7812 = vmatpush2.bf16.xpose.msra.mxu0 0
    %7813 = vmatprep.subr.bf16.mxu0 0
    %7814 = vmatpush2.bf16.xpose.msra.mxu0 0
    %7815 = vmatprep.mubr.bf16.mxu0 0
    %7816 = vmatmul.mubr.bf16.gmra.mxu0 %v7778
    %v7817 = vpop.f32.mrf.mxu0
    %v7818 = vadd.f32 0.0, %v7817
    %v7819 = vpop.f32.mrf.mxu0
    %v7820 = vpop.f32.mrf.mxu0
    %v7821 = vpop.f32.mrf.mxu0
    %7822 = vdwg.mxu0
    %7824 = vrot.lane.b32.xlu0 %v7135, 112
    %v7825 = vpop.permute.xlu0 %7824
    %v7827 = vsel %vm288, %v7135, 0
    %v7830 = vsel %vm288, %v7825, 0
    %7832 = vmatprep.subr.bf16.mxu0 0
    %7833 = vmatpush1.bf16.xpose.msra.mxu0 0
    %7834 = vmatprep.subr.bf16.mxu0 0
    %7835 = vmatpush1.bf16.xpose.msra.mxu0 0
    %7836 = vmatprep.subr.bf16.mxu0 0
    %7837 = vmatpush1.bf16.xpose.msra.mxu0 0
    %7838 = vmatprep.subr.bf16.mxu0 0
    %7839 = vmatpush1.bf16.xpose.msra.mxu0 0
    %7840 = vmatprep.subr.bf16.mxu0 0
    %7841 = vmatpush1.bf16.xpose.msra.mxu0 0
    %7842 = vmatprep.subr.bf16.mxu0 0
    %7843 = vmatpush1.bf16.xpose.msra.mxu0 0
    %7844 = vmatprep.subr.bf16.mxu0 0
    %7845 = vmatpush1.bf16.xpose.msra.mxu0 0
    %7846 = vmatprep.subr.bf16.mxu0 0
    %7847 = vmatpush1.bf16.xpose.msra.mxu0 %v7830
    %7848 = vmatprep.subr.bf16.mxu0 0
    %7849 = vmatpush2.bf16.xpose.msra.mxu0 0
    %7850 = vmatprep.subr.bf16.mxu0 0
    %7851 = vmatpush2.bf16.xpose.msra.mxu0 0
    %7852 = vmatprep.subr.bf16.mxu0 0
    %7853 = vmatpush2.bf16.xpose.msra.mxu0 0
    %7854 = vmatprep.subr.bf16.mxu0 0
    %7855 = vmatpush2.bf16.xpose.msra.mxu0 0
    %7856 = vmatprep.subr.bf16.mxu0 0
    %7857 = vmatpush2.bf16.xpose.msra.mxu0 0
    %7858 = vmatprep.subr.bf16.mxu0 0
    %7859 = vmatpush2.bf16.xpose.msra.mxu0 0
    %7860 = vmatprep.subr.bf16.mxu0 0
    %7861 = vmatpush2.bf16.xpose.msra.mxu0 0
    %7862 = vmatprep.subr.bf16.mxu0 0
    %7863 = vmatpush2.bf16.xpose.msra.mxu0 0
    %7864 = vmatprep.mubr.bf16.mxu0 0
    %7865 = vmatmul.mubr.bf16.gmra.mxu0 %v7827
    %v7866 = vpop.f32.mrf.mxu0
    %v7867 = vadd.f32 0.0, %v7866
    %v7868 = vpop.f32.mrf.mxu0
    %v7869 = vpop.f32.mrf.mxu0
    %v7870 = vpop.f32.mrf.mxu0
    %7871 = vdwg.mxu0
    %7873 = vrot.lane.b32.xlu0 %v7136, 112
    %v7874 = vpop.permute.xlu0 %7873
    %v7876 = vsel %vm288, %v7136, 0
    %v7879 = vsel %vm288, %v7874, 0
    %7881 = vmatprep.subr.bf16.mxu0 0
    %7882 = vmatpush1.bf16.xpose.msra.mxu0 0
    %7883 = vmatprep.subr.bf16.mxu0 0
    %7884 = vmatpush1.bf16.xpose.msra.mxu0 0
    %7885 = vmatprep.subr.bf16.mxu0 0
    %7886 = vmatpush1.bf16.xpose.msra.mxu0 0
    %7887 = vmatprep.subr.bf16.mxu0 0
    %7888 = vmatpush1.bf16.xpose.msra.mxu0 0
    %7889 = vmatprep.subr.bf16.mxu0 0
    %7890 = vmatpush1.bf16.xpose.msra.mxu0 0
    %7891 = vmatprep.subr.bf16.mxu0 0
    %7892 = vmatpush1.bf16.xpose.msra.mxu0 0
    %7893 = vmatprep.subr.bf16.mxu0 0
    %7894 = vmatpush1.bf16.xpose.msra.mxu0 0
    %7895 = vmatprep.subr.bf16.mxu0 0
    %7896 = vmatpush1.bf16.xpose.msra.mxu0 %v7879
    %7897 = vmatprep.subr.bf16.mxu0 0
    %7898 = vmatpush2.bf16.xpose.msra.mxu0 0
    %7899 = vmatprep.subr.bf16.mxu0 0
    %7900 = vmatpush2.bf16.xpose.msra.mxu0 0
    %7901 = vmatprep.subr.bf16.mxu0 0
    %7902 = vmatpush2.bf16.xpose.msra.mxu0 0
    %7903 = vmatprep.subr.bf16.mxu0 0
    %7904 = vmatpush2.bf16.xpose.msra.mxu0 0
    %7905 = vmatprep.subr.bf16.mxu0 0
    %7906 = vmatpush2.bf16.xpose.msra.mxu0 0
    %7907 = vmatprep.subr.bf16.mxu0 0
    %7908 = vmatpush2.bf16.xpose.msra.mxu0 0
    %7909 = vmatprep.subr.bf16.mxu0 0
    %7910 = vmatpush2.bf16.xpose.msra.mxu0 0
    %7911 = vmatprep.subr.bf16.mxu0 0
    %7912 = vmatpush2.bf16.xpose.msra.mxu0 0
    %7913 = vmatprep.mubr.bf16.mxu0 0
    %7914 = vmatmul.mubr.bf16.gmra.mxu0 %v7876
    %v7915 = vpop.f32.mrf.mxu0
    %v7916 = vadd.f32 0.0, %v7915
    %v7917 = vpop.f32.mrf.mxu0
    %v7918 = vpop.f32.mrf.mxu0
    %v7919 = vpop.f32.mrf.mxu0
    %7920 = vdwg.mxu0
    %v7921 = vsel %vm1070, %v7181, -inf
    %7922 = vmax.xlane.f32.xlu0 %v7921
    %v7923 = vpop.xlane.xlu0 %7922
    %v7924 = vsel %vm1070, %v7230, -inf
    %7925 = vmax.xlane.f32.xlu0 %v7924
    %v7926 = vpop.xlane.xlu0 %7925
    %v7927 = vsel %vm1070, %v7279, -inf
    %7928 = vmax.xlane.f32.xlu0 %v7927
    %v7929 = vpop.xlane.xlu0 %7928
    %v7930 = vsel %vm1070, %v7328, -inf
    %7931 = vmax.xlane.f32.xlu0 %v7930
    %v7932 = vpop.xlane.xlu0 %7931
    %v7933 = vsel %vm1070, %v7377, -inf
    %7934 = vmax.xlane.f32.xlu0 %v7933
    %v7935 = vpop.xlane.xlu0 %7934
    %v7936 = vsel %vm1070, %v7426, -inf
    %7937 = vmax.xlane.f32.xlu0 %v7936
    %v7938 = vpop.xlane.xlu0 %7937
    %v7939 = vsel %vm1070, %v7475, -inf
    %7940 = vmax.xlane.f32.xlu0 %v7939
    %v7941 = vpop.xlane.xlu0 %7940
    %v7942 = vsel %vm1070, %v7524, -inf
    %7943 = vmax.xlane.f32.xlu0 %v7942
    %v7944 = vpop.xlane.xlu0 %7943
    %v7945 = vsel %vm1070, %v7573, -inf
    %7946 = vmax.xlane.f32.xlu0 %v7945
    %v7947 = vpop.xlane.xlu0 %7946
    %v7948 = vsel %vm1070, %v7622, -inf
    %7949 = vmax.xlane.f32.xlu0 %v7948
    %v7950 = vpop.xlane.xlu0 %7949
    %v7951 = vsel %vm1070, %v7671, -inf
    %7952 = vmax.xlane.f32.xlu0 %v7951
    %v7953 = vpop.xlane.xlu0 %7952
    %v7954 = vsel %vm1070, %v7720, -inf
    %7955 = vmax.xlane.f32.xlu0 %v7954
    %v7956 = vpop.xlane.xlu0 %7955
    %v7957 = vsel %vm1070, %v7769, -inf
    %7958 = vmax.xlane.f32.xlu0 %v7957
    %v7959 = vpop.xlane.xlu0 %7958
    %v7960 = vsel %vm1070, %v7818, -inf
    %7961 = vmax.xlane.f32.xlu0 %v7960
    %v7962 = vpop.xlane.xlu0 %7961
    %v7963 = vsel %vm1070, %v7867, -inf
    %7964 = vmax.xlane.f32.xlu0 %v7963
    %v7965 = vpop.xlane.xlu0 %7964
    %v7966 = vsel %vm1070, %v7916, -inf
    %7967 = vmax.xlane.f32.xlu0 %v7966
    %v7968 = vpop.xlane.xlu0 %7967
    %v7969 = vsub.f32 %v7181, %v7923
    %v7970 = vsub.f32 %v7230, %v7926
    %v7971 = vsub.f32 %v7279, %v7929
    %v7972 = vsub.f32 %v7328, %v7932
    %v7973 = vsub.f32 %v7377, %v7935
    %v7974 = vsub.f32 %v7426, %v7938
    %v7975 = vsub.f32 %v7475, %v7941
    %v7976 = vsub.f32 %v7524, %v7944
    %v7977 = vsub.f32 %v7573, %v7947
    %v7978 = vsub.f32 %v7622, %v7950
    %v7979 = vsub.f32 %v7671, %v7953
    %v7980 = vsub.f32 %v7720, %v7956
    %v7981 = vsub.f32 %v7769, %v7959
    %v7982 = vsub.f32 %v7818, %v7962
    %v7983 = vsub.f32 %v7867, %v7965
    %v7984 = vsub.f32 %v7916, %v7968
    %v7985 = vmul.f32 %v7969, 1.442695
    %v7986 = vpow.pop %v7985
    %v7987 = vmul.f32 %v7970, 1.442695
    %v7988 = vpow.pop %v7987
    %v7989 = vmul.f32 %v7971, 1.442695
    %v7990 = vpow.pop %v7989
    %v7991 = vmul.f32 %v7972, 1.442695
    %v7992 = vpow.pop %v7991
    %v7993 = vmul.f32 %v7973, 1.442695
    %v7994 = vpow.pop %v7993
    %v7995 = vmul.f32 %v7974, 1.442695
    %v7996 = vpow.pop %v7995
    %v7997 = vmul.f32 %v7975, 1.442695
    %v7998 = vpow.pop %v7997
    %v7999 = vmul.f32 %v7976, 1.442695
    %v8000 = vpow.pop %v7999
    %v8001 = vmul.f32 %v7977, 1.442695
    %v8002 = vpow.pop %v8001
    %v8003 = vmul.f32 %v7978, 1.442695
    %v8004 = vpow.pop %v8003
    %v8005 = vmul.f32 %v7979, 1.442695
    %v8006 = vpow.pop %v8005
    %v8007 = vmul.f32 %v7980, 1.442695
    %v8008 = vpow.pop %v8007
    %v8009 = vmul.f32 %v7981, 1.442695
    %v8010 = vpow.pop %v8009
    %v8011 = vmul.f32 %v7982, 1.442695
    %v8012 = vpow.pop %v8011
    %v8013 = vmul.f32 %v7983, 1.442695
    %v8014 = vpow.pop %v8013
    %v8015 = vmul.f32 %v7984, 1.442695
    %v8016 = vpow.pop %v8015
    %v8017 = vsel %vm1070, %v7986, 0.0
    %8018 = vadd.xlane.f32.xlu0 %v8017
    %v8019 = vpop.xlane.xlu0 %8018
    %v8020 = vsel %vm1070, %v7988, 0.0
    %8021 = vadd.xlane.f32.xlu0 %v8020
    %v8022 = vpop.xlane.xlu0 %8021
    %v8023 = vsel %vm1070, %v7990, 0.0
    %8024 = vadd.xlane.f32.xlu0 %v8023
    %v8025 = vpop.xlane.xlu0 %8024
    %v8026 = vsel %vm1070, %v7992, 0.0
    %8027 = vadd.xlane.f32.xlu0 %v8026
    %v8028 = vpop.xlane.xlu0 %8027
    %v8029 = vsel %vm1070, %v7994, 0.0
    %8030 = vadd.xlane.f32.xlu0 %v8029
    %v8031 = vpop.xlane.xlu0 %8030
    %v8032 = vsel %vm1070, %v7996, 0.0
    %8033 = vadd.xlane.f32.xlu0 %v8032
    %v8034 = vpop.xlane.xlu0 %8033
    %v8035 = vsel %vm1070, %v7998, 0.0
    %8036 = vadd.xlane.f32.xlu0 %v8035
    %v8037 = vpop.xlane.xlu0 %8036
    %v8038 = vsel %vm1070, %v8000, 0.0
    %8039 = vadd.xlane.f32.xlu0 %v8038
    %v8040 = vpop.xlane.xlu0 %8039
    %v8041 = vsel %vm1070, %v8002, 0.0
    %8042 = vadd.xlane.f32.xlu0 %v8041
    %v8043 = vpop.xlane.xlu0 %8042
    %v8044 = vsel %vm1070, %v8004, 0.0
    %8045 = vadd.xlane.f32.xlu0 %v8044
    %v8046 = vpop.xlane.xlu0 %8045
    %v8047 = vsel %vm1070, %v8006, 0.0
    %8048 = vadd.xlane.f32.xlu0 %v8047
    %v8049 = vpop.xlane.xlu0 %8048
    %v8050 = vsel %vm1070, %v8008, 0.0
    %8051 = vadd.xlane.f32.xlu0 %v8050
    %v8052 = vpop.xlane.xlu0 %8051
    %v8053 = vsel %vm1070, %v8010, 0.0
    %8054 = vadd.xlane.f32.xlu0 %v8053
    %v8055 = vpop.xlane.xlu0 %8054
    %v8056 = vsel %vm1070, %v8012, 0.0
    %8057 = vadd.xlane.f32.xlu0 %v8056
    %v8058 = vpop.xlane.xlu0 %8057
    %v8059 = vsel %vm1070, %v8014, 0.0
    %8060 = vadd.xlane.f32.xlu0 %v8059
    %v8061 = vpop.xlane.xlu0 %8060
    %v8062 = vsel %vm1070, %v8016, 0.0
    %8063 = vadd.xlane.f32.xlu0 %v8062
    %v8064 = vpop.xlane.xlu0 %8063
    %v8065 = vrcp.pop %v8019
    %v8066 = vrcp.pop %v8022
    %v8067 = vrcp.pop %v8025
    %v8068 = vrcp.pop %v8028
    %v8069 = vrcp.pop %v8031
    %v8070 = vrcp.pop %v8034
    %v8071 = vrcp.pop %v8037
    %v8072 = vrcp.pop %v8040
    %v8073 = vrcp.pop %v8043
    %v8074 = vrcp.pop %v8046
    %v8075 = vrcp.pop %v8049
    %v8076 = vrcp.pop %v8052
    %v8077 = vrcp.pop %v8055
    %v8078 = vrcp.pop %v8058
    %v8079 = vrcp.pop %v8061
    %v8080 = vrcp.pop %v8064
    %v8081 = vmul.f32 %v7986, %v8065
    %v8082 = vmul.f32 %v7988, %v8066
    %v8083 = vmul.f32 %v7990, %v8067
    %v8084 = vmul.f32 %v7992, %v8068
    %v8085 = vmul.f32 %v7994, %v8069
    %v8086 = vmul.f32 %v7996, %v8070
    %v8087 = vmul.f32 %v7998, %v8071
    %v8088 = vmul.f32 %v8000, %v8072
    %v8089 = vmul.f32 %v8002, %v8073
    %v8090 = vmul.f32 %v8004, %v8074
    %v8091 = vmul.f32 %v8006, %v8075
    %v8092 = vmul.f32 %v8008, %v8076
    %v8093 = vmul.f32 %v8010, %v8077
    %v8094 = vmul.f32 %v8012, %v8078
    %v8095 = vmul.f32 %v8014, %v8079
    %v8096 = vmul.f32 %v8016, %v8080
    %v8097 = vpack.c.bf16 %v8081, %v8081
    %v8098 = vpack.c.bf16 %v8082, %v8082
    %v8099 = vpack.c.bf16 %v8083, %v8083
    %v8100 = vpack.c.bf16 %v8084, %v8084
    %v8101 = vpack.c.bf16 %v8085, %v8085
    %v8102 = vpack.c.bf16 %v8086, %v8086
    %v8103 = vpack.c.bf16 %v8087, %v8087
    %v8104 = vpack.c.bf16 %v8088, %v8088
    %v8105 = vpack.c.bf16 %v8089, %v8089
    %v8106 = vpack.c.bf16 %v8090, %v8090
    %v8107 = vpack.c.bf16 %v8091, %v8091
    %v8108 = vpack.c.bf16 %v8092, %v8092
    %v8109 = vpack.c.bf16 %v8093, %v8093
    %v8110 = vpack.c.bf16 %v8094, %v8094
    %v8111 = vpack.c.bf16 %v8095, %v8095
    %v8112 = vpack.c.bf16 %v8096, %v8096
    %8113 = vrot.lane.b32.xlu0 %v7121, 96
    %v8114 = vpop.permute.xlu0 %8113
    %v8116 = vsel %vm1070, %v8097, 0
    %v8119 = vsel %vm1268, %v8114, 0
    %8121 = vmatprep.subr.bf16.mxu0 0
    %8122 = vmatpush1.bf16.msra.mxu0 0
    %8123 = vmatprep.subr.bf16.mxu0 0
    %8124 = vmatpush1.bf16.msra.mxu0 0
    %8125 = vmatprep.subr.bf16.mxu0 0
    %8126 = vmatpush1.bf16.msra.mxu0 0
    %8127 = vmatprep.subr.bf16.mxu0 0
    %8128 = vmatpush1.bf16.msra.mxu0 0
    %8129 = vmatprep.subr.bf16.mxu0 0
    %8130 = vmatpush1.bf16.msra.mxu0 0
    %8131 = vmatprep.subr.bf16.mxu0 0
    %8132 = vmatpush1.bf16.msra.mxu0 0
    %8133 = vmatprep.subr.bf16.mxu0 0
    %8134 = vmatpush1.bf16.msra.mxu0 0
    %8135 = vmatprep.subr.bf16.mxu0 0
    %8136 = vmatpush1.bf16.msra.mxu0 %v8119
    %8137 = vmatprep.subr.bf16.mxu0 0
    %8138 = vmatpush2.bf16.msra.mxu0 0
    %8139 = vmatprep.subr.bf16.mxu0 0
    %8140 = vmatpush2.bf16.msra.mxu0 0
    %8141 = vmatprep.subr.bf16.mxu0 0
    %8142 = vmatpush2.bf16.msra.mxu0 0
    %8143 = vmatprep.subr.bf16.mxu0 0
    %8144 = vmatpush2.bf16.msra.mxu0 0
    %8145 = vmatprep.subr.bf16.mxu0 0
    %8146 = vmatpush2.bf16.msra.mxu0 0
    %8147 = vmatprep.subr.bf16.mxu0 0
    %8148 = vmatpush2.bf16.msra.mxu0 0
    %8149 = vmatprep.subr.bf16.mxu0 0
    %8150 = vmatpush2.bf16.msra.mxu0 0
    %8151 = vmatprep.subr.bf16.mxu0 0
    %8152 = vmatpush2.bf16.msra.mxu0 0
    %8153 = vmatprep.mubr.bf16.mxu0 0
    %8154 = vmatmul.mubr.bf16.gmra.mxu0 %v8116
    %v8155 = vpop.f32.mrf.mxu0
    %v8156 = vadd.f32 0.0, %v8155
    %v8157 = vpop.f32.mrf.mxu0
    %v8158 = vpop.f32.mrf.mxu0
    %v8159 = vpop.f32.mrf.mxu0
    %8160 = vdwg.mxu0
    %8161 = vrot.lane.b32.xlu0 %v7122, 96
    %v8162 = vpop.permute.xlu0 %8161
    %v8164 = vsel %vm1070, %v8098, 0
    %v8167 = vsel %vm1268, %v8162, 0
    %8169 = vmatprep.subr.bf16.mxu0 0
    %8170 = vmatpush1.bf16.msra.mxu0 0
    %8171 = vmatprep.subr.bf16.mxu0 0
    %8172 = vmatpush1.bf16.msra.mxu0 0
    %8173 = vmatprep.subr.bf16.mxu0 0
    %8174 = vmatpush1.bf16.msra.mxu0 0
    %8175 = vmatprep.subr.bf16.mxu0 0
    %8176 = vmatpush1.bf16.msra.mxu0 0
    %8177 = vmatprep.subr.bf16.mxu0 0
    %8178 = vmatpush1.bf16.msra.mxu0 0
    %8179 = vmatprep.subr.bf16.mxu0 0
    %8180 = vmatpush1.bf16.msra.mxu0 0
    %8181 = vmatprep.subr.bf16.mxu0 0
    %8182 = vmatpush1.bf16.msra.mxu0 0
    %8183 = vmatprep.subr.bf16.mxu0 0
    %8184 = vmatpush1.bf16.msra.mxu0 %v8167
    %8185 = vmatprep.subr.bf16.mxu0 0
    %8186 = vmatpush2.bf16.msra.mxu0 0
    %8187 = vmatprep.subr.bf16.mxu0 0
    %8188 = vmatpush2.bf16.msra.mxu0 0
    %8189 = vmatprep.subr.bf16.mxu0 0
    %8190 = vmatpush2.bf16.msra.mxu0 0
    %8191 = vmatprep.subr.bf16.mxu0 0
    %8192 = vmatpush2.bf16.msra.mxu0 0
    %8193 = vmatprep.subr.bf16.mxu0 0
    %8194 = vmatpush2.bf16.msra.mxu0 0
    %8195 = vmatprep.subr.bf16.mxu0 0
    %8196 = vmatpush2.bf16.msra.mxu0 0
    %8197 = vmatprep.subr.bf16.mxu0 0
    %8198 = vmatpush2.bf16.msra.mxu0 0
    %8199 = vmatprep.subr.bf16.mxu0 0
    %8200 = vmatpush2.bf16.msra.mxu0 0
    %8201 = vmatprep.mubr.bf16.mxu0 0
    %8202 = vmatmul.mubr.bf16.gmra.mxu0 %v8164
    %v8203 = vpop.f32.mrf.mxu0
    %v8204 = vadd.f32 0.0, %v8203
    %v8205 = vpop.f32.mrf.mxu0
    %v8206 = vpop.f32.mrf.mxu0
    %v8207 = vpop.f32.mrf.mxu0
    %8208 = vdwg.mxu0
    %8209 = vrot.lane.b32.xlu0 %v7123, 96
    %v8210 = vpop.permute.xlu0 %8209
    %v8212 = vsel %vm1070, %v8099, 0
    %v8215 = vsel %vm1268, %v8210, 0
    %8217 = vmatprep.subr.bf16.mxu0 0
    %8218 = vmatpush1.bf16.msra.mxu0 0
    %8219 = vmatprep.subr.bf16.mxu0 0
    %8220 = vmatpush1.bf16.msra.mxu0 0
    %8221 = vmatprep.subr.bf16.mxu0 0
    %8222 = vmatpush1.bf16.msra.mxu0 0
    %8223 = vmatprep.subr.bf16.mxu0 0
    %8224 = vmatpush1.bf16.msra.mxu0 0
    %8225 = vmatprep.subr.bf16.mxu0 0
    %8226 = vmatpush1.bf16.msra.mxu0 0
    %8227 = vmatprep.subr.bf16.mxu0 0
    %8228 = vmatpush1.bf16.msra.mxu0 0
    %8229 = vmatprep.subr.bf16.mxu0 0
    %8230 = vmatpush1.bf16.msra.mxu0 0
    %8231 = vmatprep.subr.bf16.mxu0 0
    %8232 = vmatpush1.bf16.msra.mxu0 %v8215
    %8233 = vmatprep.subr.bf16.mxu0 0
    %8234 = vmatpush2.bf16.msra.mxu0 0
    %8235 = vmatprep.subr.bf16.mxu0 0
    %8236 = vmatpush2.bf16.msra.mxu0 0
    %8237 = vmatprep.subr.bf16.mxu0 0
    %8238 = vmatpush2.bf16.msra.mxu0 0
    %8239 = vmatprep.subr.bf16.mxu0 0
    %8240 = vmatpush2.bf16.msra.mxu0 0
    %8241 = vmatprep.subr.bf16.mxu0 0
    %8242 = vmatpush2.bf16.msra.mxu0 0
    %8243 = vmatprep.subr.bf16.mxu0 0
    %8244 = vmatpush2.bf16.msra.mxu0 0
    %8245 = vmatprep.subr.bf16.mxu0 0
    %8246 = vmatpush2.bf16.msra.mxu0 0
    %8247 = vmatprep.subr.bf16.mxu0 0
    %8248 = vmatpush2.bf16.msra.mxu0 0
    %8249 = vmatprep.mubr.bf16.mxu0 0
    %8250 = vmatmul.mubr.bf16.gmra.mxu0 %v8212
    %v8251 = vpop.f32.mrf.mxu0
    %v8252 = vadd.f32 0.0, %v8251
    %v8253 = vpop.f32.mrf.mxu0
    %v8254 = vpop.f32.mrf.mxu0
    %v8255 = vpop.f32.mrf.mxu0
    %8256 = vdwg.mxu0
    %8257 = vrot.lane.b32.xlu0 %v7124, 96
    %v8258 = vpop.permute.xlu0 %8257
    %v8260 = vsel %vm1070, %v8100, 0
    %v8263 = vsel %vm1268, %v8258, 0
    %8265 = vmatprep.subr.bf16.mxu0 0
    %8266 = vmatpush1.bf16.msra.mxu0 0
    %8267 = vmatprep.subr.bf16.mxu0 0
    %8268 = vmatpush1.bf16.msra.mxu0 0
    %8269 = vmatprep.subr.bf16.mxu0 0
    %8270 = vmatpush1.bf16.msra.mxu0 0
    %8271 = vmatprep.subr.bf16.mxu0 0
    %8272 = vmatpush1.bf16.msra.mxu0 0
    %8273 = vmatprep.subr.bf16.mxu0 0
    %8274 = vmatpush1.bf16.msra.mxu0 0
    %8275 = vmatprep.subr.bf16.mxu0 0
    %8276 = vmatpush1.bf16.msra.mxu0 0
    %8277 = vmatprep.subr.bf16.mxu0 0
    %8278 = vmatpush1.bf16.msra.mxu0 0
    %8279 = vmatprep.subr.bf16.mxu0 0
    %8280 = vmatpush1.bf16.msra.mxu0 %v8263
    %8281 = vmatprep.subr.bf16.mxu0 0
    %8282 = vmatpush2.bf16.msra.mxu0 0
    %8283 = vmatprep.subr.bf16.mxu0 0
    %8284 = vmatpush2.bf16.msra.mxu0 0
    %8285 = vmatprep.subr.bf16.mxu0 0
    %8286 = vmatpush2.bf16.msra.mxu0 0
    %8287 = vmatprep.subr.bf16.mxu0 0
    %8288 = vmatpush2.bf16.msra.mxu0 0
    %8289 = vmatprep.subr.bf16.mxu0 0
    %8290 = vmatpush2.bf16.msra.mxu0 0
    %8291 = vmatprep.subr.bf16.mxu0 0
    %8292 = vmatpush2.bf16.msra.mxu0 0
    %8293 = vmatprep.subr.bf16.mxu0 0
    %8294 = vmatpush2.bf16.msra.mxu0 0
    %8295 = vmatprep.subr.bf16.mxu0 0
    %8296 = vmatpush2.bf16.msra.mxu0 0
    %8297 = vmatprep.mubr.bf16.mxu0 0
    %8298 = vmatmul.mubr.bf16.gmra.mxu0 %v8260
    %v8299 = vpop.f32.mrf.mxu0
    %v8300 = vadd.f32 0.0, %v8299
    %v8301 = vpop.f32.mrf.mxu0
    %v8302 = vpop.f32.mrf.mxu0
    %v8303 = vpop.f32.mrf.mxu0
    %8304 = vdwg.mxu0
    %8305 = vrot.lane.b32.xlu0 %v7125, 96
    %v8306 = vpop.permute.xlu0 %8305
    %v8308 = vsel %vm1070, %v8101, 0
    %v8311 = vsel %vm1268, %v8306, 0
    %8313 = vmatprep.subr.bf16.mxu0 0
    %8314 = vmatpush1.bf16.msra.mxu0 0
    %8315 = vmatprep.subr.bf16.mxu0 0
    %8316 = vmatpush1.bf16.msra.mxu0 0
    %8317 = vmatprep.subr.bf16.mxu0 0
    %8318 = vmatpush1.bf16.msra.mxu0 0
    %8319 = vmatprep.subr.bf16.mxu0 0
    %8320 = vmatpush1.bf16.msra.mxu0 0
    %8321 = vmatprep.subr.bf16.mxu0 0
    %8322 = vmatpush1.bf16.msra.mxu0 0
    %8323 = vmatprep.subr.bf16.mxu0 0
    %8324 = vmatpush1.bf16.msra.mxu0 0
    %8325 = vmatprep.subr.bf16.mxu0 0
    %8326 = vmatpush1.bf16.msra.mxu0 0
    %8327 = vmatprep.subr.bf16.mxu0 0
    %8328 = vmatpush1.bf16.msra.mxu0 %v8311
    %8329 = vmatprep.subr.bf16.mxu0 0
    %8330 = vmatpush2.bf16.msra.mxu0 0
    %8331 = vmatprep.subr.bf16.mxu0 0
    %8332 = vmatpush2.bf16.msra.mxu0 0
    %8333 = vmatprep.subr.bf16.mxu0 0
    %8334 = vmatpush2.bf16.msra.mxu0 0
    %8335 = vmatprep.subr.bf16.mxu0 0
    %8336 = vmatpush2.bf16.msra.mxu0 0
    %8337 = vmatprep.subr.bf16.mxu0 0
    %8338 = vmatpush2.bf16.msra.mxu0 0
    %8339 = vmatprep.subr.bf16.mxu0 0
    %8340 = vmatpush2.bf16.msra.mxu0 0
    %8341 = vmatprep.subr.bf16.mxu0 0
    %8342 = vmatpush2.bf16.msra.mxu0 0
    %8343 = vmatprep.subr.bf16.mxu0 0
    %8344 = vmatpush2.bf16.msra.mxu0 0
    %8345 = vmatprep.mubr.bf16.mxu0 0
    %8346 = vmatmul.mubr.bf16.gmra.mxu0 %v8308
    %v8347 = vpop.f32.mrf.mxu0
    %v8348 = vadd.f32 0.0, %v8347
    %v8349 = vpop.f32.mrf.mxu0
    %v8350 = vpop.f32.mrf.mxu0
    %v8351 = vpop.f32.mrf.mxu0
    %8352 = vdwg.mxu0
    %8353 = vrot.lane.b32.xlu0 %v7126, 96
    %v8354 = vpop.permute.xlu0 %8353
    %v8356 = vsel %vm1070, %v8102, 0
    %v8359 = vsel %vm1268, %v8354, 0
    %8361 = vmatprep.subr.bf16.mxu0 0
    %8362 = vmatpush1.bf16.msra.mxu0 0
    %8363 = vmatprep.subr.bf16.mxu0 0
    %8364 = vmatpush1.bf16.msra.mxu0 0
    %8365 = vmatprep.subr.bf16.mxu0 0
    %8366 = vmatpush1.bf16.msra.mxu0 0
    %8367 = vmatprep.subr.bf16.mxu0 0
    %8368 = vmatpush1.bf16.msra.mxu0 0
    %8369 = vmatprep.subr.bf16.mxu0 0
    %8370 = vmatpush1.bf16.msra.mxu0 0
    %8371 = vmatprep.subr.bf16.mxu0 0
    %8372 = vmatpush1.bf16.msra.mxu0 0
    %8373 = vmatprep.subr.bf16.mxu0 0
    %8374 = vmatpush1.bf16.msra.mxu0 0
    %8375 = vmatprep.subr.bf16.mxu0 0
    %8376 = vmatpush1.bf16.msra.mxu0 %v8359
    %8377 = vmatprep.subr.bf16.mxu0 0
    %8378 = vmatpush2.bf16.msra.mxu0 0
    %8379 = vmatprep.subr.bf16.mxu0 0
    %8380 = vmatpush2.bf16.msra.mxu0 0
    %8381 = vmatprep.subr.bf16.mxu0 0
    %8382 = vmatpush2.bf16.msra.mxu0 0
    %8383 = vmatprep.subr.bf16.mxu0 0
    %8384 = vmatpush2.bf16.msra.mxu0 0
    %8385 = vmatprep.subr.bf16.mxu0 0
    %8386 = vmatpush2.bf16.msra.mxu0 0
    %8387 = vmatprep.subr.bf16.mxu0 0
    %8388 = vmatpush2.bf16.msra.mxu0 0
    %8389 = vmatprep.subr.bf16.mxu0 0
    %8390 = vmatpush2.bf16.msra.mxu0 0
    %8391 = vmatprep.subr.bf16.mxu0 0
    %8392 = vmatpush2.bf16.msra.mxu0 0
    %8393 = vmatprep.mubr.bf16.mxu0 0
    %8394 = vmatmul.mubr.bf16.gmra.mxu0 %v8356
    %v8395 = vpop.f32.mrf.mxu0
    %v8396 = vadd.f32 0.0, %v8395
    %v8397 = vpop.f32.mrf.mxu0
    %v8398 = vpop.f32.mrf.mxu0
    %v8399 = vpop.f32.mrf.mxu0
    %8400 = vdwg.mxu0
    %8401 = vrot.lane.b32.xlu0 %v7127, 96
    %v8402 = vpop.permute.xlu0 %8401
    %v8404 = vsel %vm1070, %v8103, 0
    %v8407 = vsel %vm1268, %v8402, 0
    %8409 = vmatprep.subr.bf16.mxu0 0
    %8410 = vmatpush1.bf16.msra.mxu0 0
    %8411 = vmatprep.subr.bf16.mxu0 0
    %8412 = vmatpush1.bf16.msra.mxu0 0
    %8413 = vmatprep.subr.bf16.mxu0 0
    %8414 = vmatpush1.bf16.msra.mxu0 0
    %8415 = vmatprep.subr.bf16.mxu0 0
    %8416 = vmatpush1.bf16.msra.mxu0 0
    %8417 = vmatprep.subr.bf16.mxu0 0
    %8418 = vmatpush1.bf16.msra.mxu0 0
    %8419 = vmatprep.subr.bf16.mxu0 0
    %8420 = vmatpush1.bf16.msra.mxu0 0
    %8421 = vmatprep.subr.bf16.mxu0 0
    %8422 = vmatpush1.bf16.msra.mxu0 0
    %8423 = vmatprep.subr.bf16.mxu0 0
    %8424 = vmatpush1.bf16.msra.mxu0 %v8407
    %8425 = vmatprep.subr.bf16.mxu0 0
    %8426 = vmatpush2.bf16.msra.mxu0 0
    %8427 = vmatprep.subr.bf16.mxu0 0
    %8428 = vmatpush2.bf16.msra.mxu0 0
    %8429 = vmatprep.subr.bf16.mxu0 0
    %8430 = vmatpush2.bf16.msra.mxu0 0
    %8431 = vmatprep.subr.bf16.mxu0 0
    %8432 = vmatpush2.bf16.msra.mxu0 0
    %8433 = vmatprep.subr.bf16.mxu0 0
    %8434 = vmatpush2.bf16.msra.mxu0 0
    %8435 = vmatprep.subr.bf16.mxu0 0
    %8436 = vmatpush2.bf16.msra.mxu0 0
    %8437 = vmatprep.subr.bf16.mxu0 0
    %8438 = vmatpush2.bf16.msra.mxu0 0
    %8439 = vmatprep.subr.bf16.mxu0 0
    %8440 = vmatpush2.bf16.msra.mxu0 0
    %8441 = vmatprep.mubr.bf16.mxu0 0
    %8442 = vmatmul.mubr.bf16.gmra.mxu0 %v8404
    %v8443 = vpop.f32.mrf.mxu0
    %v8444 = vadd.f32 0.0, %v8443
    %v8445 = vpop.f32.mrf.mxu0
    %v8446 = vpop.f32.mrf.mxu0
    %v8447 = vpop.f32.mrf.mxu0
    %8448 = vdwg.mxu0
    %8449 = vrot.lane.b32.xlu0 %v7128, 96
    %v8450 = vpop.permute.xlu0 %8449
    %v8452 = vsel %vm1070, %v8104, 0
    %v8455 = vsel %vm1268, %v8450, 0
    %8457 = vmatprep.subr.bf16.mxu0 0
    %8458 = vmatpush1.bf16.msra.mxu0 0
    %8459 = vmatprep.subr.bf16.mxu0 0
    %8460 = vmatpush1.bf16.msra.mxu0 0
    %8461 = vmatprep.subr.bf16.mxu0 0
    %8462 = vmatpush1.bf16.msra.mxu0 0
    %8463 = vmatprep.subr.bf16.mxu0 0
    %8464 = vmatpush1.bf16.msra.mxu0 0
    %8465 = vmatprep.subr.bf16.mxu0 0
    %8466 = vmatpush1.bf16.msra.mxu0 0
    %8467 = vmatprep.subr.bf16.mxu0 0
    %8468 = vmatpush1.bf16.msra.mxu0 0
    %8469 = vmatprep.subr.bf16.mxu0 0
    %8470 = vmatpush1.bf16.msra.mxu0 0
    %8471 = vmatprep.subr.bf16.mxu0 0
    %8472 = vmatpush1.bf16.msra.mxu0 %v8455
    %8473 = vmatprep.subr.bf16.mxu0 0
    %8474 = vmatpush2.bf16.msra.mxu0 0
    %8475 = vmatprep.subr.bf16.mxu0 0
    %8476 = vmatpush2.bf16.msra.mxu0 0
    %8477 = vmatprep.subr.bf16.mxu0 0
    %8478 = vmatpush2.bf16.msra.mxu0 0
    %8479 = vmatprep.subr.bf16.mxu0 0
    %8480 = vmatpush2.bf16.msra.mxu0 0
    %8481 = vmatprep.subr.bf16.mxu0 0
    %8482 = vmatpush2.bf16.msra.mxu0 0
    %8483 = vmatprep.subr.bf16.mxu0 0
    %8484 = vmatpush2.bf16.msra.mxu0 0
    %8485 = vmatprep.subr.bf16.mxu0 0
    %8486 = vmatpush2.bf16.msra.mxu0 0
    %8487 = vmatprep.subr.bf16.mxu0 0
    %8488 = vmatpush2.bf16.msra.mxu0 0
    %8489 = vmatprep.mubr.bf16.mxu0 0
    %8490 = vmatmul.mubr.bf16.gmra.mxu0 %v8452
    %v8491 = vpop.f32.mrf.mxu0
    %v8492 = vadd.f32 0.0, %v8491
    %v8493 = vpop.f32.mrf.mxu0
    %v8494 = vpop.f32.mrf.mxu0
    %v8495 = vpop.f32.mrf.mxu0
    %8496 = vdwg.mxu0
    %8497 = vrot.lane.b32.xlu0 %v7129, 96
    %v8498 = vpop.permute.xlu0 %8497
    %v8500 = vsel %vm1070, %v8105, 0
    %v8503 = vsel %vm1268, %v8498, 0
    %8505 = vmatprep.subr.bf16.mxu0 0
    %8506 = vmatpush1.bf16.msra.mxu0 0
    %8507 = vmatprep.subr.bf16.mxu0 0
    %8508 = vmatpush1.bf16.msra.mxu0 0
    %8509 = vmatprep.subr.bf16.mxu0 0
    %8510 = vmatpush1.bf16.msra.mxu0 0
    %8511 = vmatprep.subr.bf16.mxu0 0
    %8512 = vmatpush1.bf16.msra.mxu0 0
    %8513 = vmatprep.subr.bf16.mxu0 0
    %8514 = vmatpush1.bf16.msra.mxu0 0
    %8515 = vmatprep.subr.bf16.mxu0 0
    %8516 = vmatpush1.bf16.msra.mxu0 0
    %8517 = vmatprep.subr.bf16.mxu0 0
    %8518 = vmatpush1.bf16.msra.mxu0 0
    %8519 = vmatprep.subr.bf16.mxu0 0
    %8520 = vmatpush1.bf16.msra.mxu0 %v8503
    %8521 = vmatprep.subr.bf16.mxu0 0
    %8522 = vmatpush2.bf16.msra.mxu0 0
    %8523 = vmatprep.subr.bf16.mxu0 0
    %8524 = vmatpush2.bf16.msra.mxu0 0
    %8525 = vmatprep.subr.bf16.mxu0 0
    %8526 = vmatpush2.bf16.msra.mxu0 0
    %8527 = vmatprep.subr.bf16.mxu0 0
    %8528 = vmatpush2.bf16.msra.mxu0 0
    %8529 = vmatprep.subr.bf16.mxu0 0
    %8530 = vmatpush2.bf16.msra.mxu0 0
    %8531 = vmatprep.subr.bf16.mxu0 0
    %8532 = vmatpush2.bf16.msra.mxu0 0
    %8533 = vmatprep.subr.bf16.mxu0 0
    %8534 = vmatpush2.bf16.msra.mxu0 0
    %8535 = vmatprep.subr.bf16.mxu0 0
    %8536 = vmatpush2.bf16.msra.mxu0 0
    %8537 = vmatprep.mubr.bf16.mxu0 0
    %8538 = vmatmul.mubr.bf16.gmra.mxu0 %v8500
    %v8539 = vpop.f32.mrf.mxu0
    %v8540 = vadd.f32 0.0, %v8539
    %v8541 = vpop.f32.mrf.mxu0
    %v8542 = vpop.f32.mrf.mxu0
    %v8543 = vpop.f32.mrf.mxu0
    %8544 = vdwg.mxu0
    %8545 = vrot.lane.b32.xlu0 %v7130, 96
    %v8546 = vpop.permute.xlu0 %8545
    %v8548 = vsel %vm1070, %v8106, 0
    %v8551 = vsel %vm1268, %v8546, 0
    %8553 = vmatprep.subr.bf16.mxu0 0
    %8554 = vmatpush1.bf16.msra.mxu0 0
    %8555 = vmatprep.subr.bf16.mxu0 0
    %8556 = vmatpush1.bf16.msra.mxu0 0
    %8557 = vmatprep.subr.bf16.mxu0 0
    %8558 = vmatpush1.bf16.msra.mxu0 0
    %8559 = vmatprep.subr.bf16.mxu0 0
    %8560 = vmatpush1.bf16.msra.mxu0 0
    %8561 = vmatprep.subr.bf16.mxu0 0
    %8562 = vmatpush1.bf16.msra.mxu0 0
    %8563 = vmatprep.subr.bf16.mxu0 0
    %8564 = vmatpush1.bf16.msra.mxu0 0
    %8565 = vmatprep.subr.bf16.mxu0 0
    %8566 = vmatpush1.bf16.msra.mxu0 0
    %8567 = vmatprep.subr.bf16.mxu0 0
    %8568 = vmatpush1.bf16.msra.mxu0 %v8551
    %8569 = vmatprep.subr.bf16.mxu0 0
    %8570 = vmatpush2.bf16.msra.mxu0 0
    %8571 = vmatprep.subr.bf16.mxu0 0
    %8572 = vmatpush2.bf16.msra.mxu0 0
    %8573 = vmatprep.subr.bf16.mxu0 0
    %8574 = vmatpush2.bf16.msra.mxu0 0
    %8575 = vmatprep.subr.bf16.mxu0 0
    %8576 = vmatpush2.bf16.msra.mxu0 0
    %8577 = vmatprep.subr.bf16.mxu0 0
    %8578 = vmatpush2.bf16.msra.mxu0 0
    %8579 = vmatprep.subr.bf16.mxu0 0
    %8580 = vmatpush2.bf16.msra.mxu0 0
    %8581 = vmatprep.subr.bf16.mxu0 0
    %8582 = vmatpush2.bf16.msra.mxu0 0
    %8583 = vmatprep.subr.bf16.mxu0 0
    %8584 = vmatpush2.bf16.msra.mxu0 0
    %8585 = vmatprep.mubr.bf16.mxu0 0
    %8586 = vmatmul.mubr.bf16.gmra.mxu0 %v8548
    %v8587 = vpop.f32.mrf.mxu0
    %v8588 = vadd.f32 0.0, %v8587
    %v8589 = vpop.f32.mrf.mxu0
    %v8590 = vpop.f32.mrf.mxu0
    %v8591 = vpop.f32.mrf.mxu0
    %8592 = vdwg.mxu0
    %8593 = vrot.lane.b32.xlu0 %v7131, 96
    %v8594 = vpop.permute.xlu0 %8593
    %v8596 = vsel %vm1070, %v8107, 0
    %v8599 = vsel %vm1268, %v8594, 0
    %8601 = vmatprep.subr.bf16.mxu0 0
    %8602 = vmatpush1.bf16.msra.mxu0 0
    %8603 = vmatprep.subr.bf16.mxu0 0
    %8604 = vmatpush1.bf16.msra.mxu0 0
    %8605 = vmatprep.subr.bf16.mxu0 0
    %8606 = vmatpush1.bf16.msra.mxu0 0
    %8607 = vmatprep.subr.bf16.mxu0 0
    %8608 = vmatpush1.bf16.msra.mxu0 0
    %8609 = vmatprep.subr.bf16.mxu0 0
    %8610 = vmatpush1.bf16.msra.mxu0 0
    %8611 = vmatprep.subr.bf16.mxu0 0
    %8612 = vmatpush1.bf16.msra.mxu0 0
    %8613 = vmatprep.subr.bf16.mxu0 0
    %8614 = vmatpush1.bf16.msra.mxu0 0
    %8615 = vmatprep.subr.bf16.mxu0 0
    %8616 = vmatpush1.bf16.msra.mxu0 %v8599
    %8617 = vmatprep.subr.bf16.mxu0 0
    %8618 = vmatpush2.bf16.msra.mxu0 0
    %8619 = vmatprep.subr.bf16.mxu0 0
    %8620 = vmatpush2.bf16.msra.mxu0 0
    %8621 = vmatprep.subr.bf16.mxu0 0
    %8622 = vmatpush2.bf16.msra.mxu0 0
    %8623 = vmatprep.subr.bf16.mxu0 0
    %8624 = vmatpush2.bf16.msra.mxu0 0
    %8625 = vmatprep.subr.bf16.mxu0 0
    %8626 = vmatpush2.bf16.msra.mxu0 0
    %8627 = vmatprep.subr.bf16.mxu0 0
    %8628 = vmatpush2.bf16.msra.mxu0 0
    %8629 = vmatprep.subr.bf16.mxu0 0
    %8630 = vmatpush2.bf16.msra.mxu0 0
    %8631 = vmatprep.subr.bf16.mxu0 0
    %8632 = vmatpush2.bf16.msra.mxu0 0
    %8633 = vmatprep.mubr.bf16.mxu0 0
    %8634 = vmatmul.mubr.bf16.gmra.mxu0 %v8596
    %v8635 = vpop.f32.mrf.mxu0
    %v8636 = vadd.f32 0.0, %v8635
    %v8637 = vpop.f32.mrf.mxu0
    %v8638 = vpop.f32.mrf.mxu0
    %v8639 = vpop.f32.mrf.mxu0
    %8640 = vdwg.mxu0
    %8641 = vrot.lane.b32.xlu0 %v7132, 96
    %v8642 = vpop.permute.xlu0 %8641
    %v8644 = vsel %vm1070, %v8108, 0
    %v8647 = vsel %vm1268, %v8642, 0
    %8649 = vmatprep.subr.bf16.mxu0 0
    %8650 = vmatpush1.bf16.msra.mxu0 0
    %8651 = vmatprep.subr.bf16.mxu0 0
    %8652 = vmatpush1.bf16.msra.mxu0 0
    %8653 = vmatprep.subr.bf16.mxu0 0
    %8654 = vmatpush1.bf16.msra.mxu0 0
    %8655 = vmatprep.subr.bf16.mxu0 0
    %8656 = vmatpush1.bf16.msra.mxu0 0
    %8657 = vmatprep.subr.bf16.mxu0 0
    %8658 = vmatpush1.bf16.msra.mxu0 0
    %8659 = vmatprep.subr.bf16.mxu0 0
    %8660 = vmatpush1.bf16.msra.mxu0 0
    %8661 = vmatprep.subr.bf16.mxu0 0
    %8662 = vmatpush1.bf16.msra.mxu0 0
    %8663 = vmatprep.subr.bf16.mxu0 0
    %8664 = vmatpush1.bf16.msra.mxu0 %v8647
    %8665 = vmatprep.subr.bf16.mxu0 0
    %8666 = vmatpush2.bf16.msra.mxu0 0
    %8667 = vmatprep.subr.bf16.mxu0 0
    %8668 = vmatpush2.bf16.msra.mxu0 0
    %8669 = vmatprep.subr.bf16.mxu0 0
    %8670 = vmatpush2.bf16.msra.mxu0 0
    %8671 = vmatprep.subr.bf16.mxu0 0
    %8672 = vmatpush2.bf16.msra.mxu0 0
    %8673 = vmatprep.subr.bf16.mxu0 0
    %8674 = vmatpush2.bf16.msra.mxu0 0
    %8675 = vmatprep.subr.bf16.mxu0 0
    %8676 = vmatpush2.bf16.msra.mxu0 0
    %8677 = vmatprep.subr.bf16.mxu0 0
    %8678 = vmatpush2.bf16.msra.mxu0 0
    %8679 = vmatprep.subr.bf16.mxu0 0
    %8680 = vmatpush2.bf16.msra.mxu0 0
    %8681 = vmatprep.mubr.bf16.mxu0 0
    %8682 = vmatmul.mubr.bf16.gmra.mxu0 %v8644
    %v8683 = vpop.f32.mrf.mxu0
    %v8684 = vadd.f32 0.0, %v8683
    %v8685 = vpop.f32.mrf.mxu0
    %v8686 = vpop.f32.mrf.mxu0
    %v8687 = vpop.f32.mrf.mxu0
    %8688 = vdwg.mxu0
    %8689 = vrot.lane.b32.xlu0 %v7133, 96
    %v8690 = vpop.permute.xlu0 %8689
    %v8692 = vsel %vm1070, %v8109, 0
    %v8695 = vsel %vm1268, %v8690, 0
    %8697 = vmatprep.subr.bf16.mxu0 0
    %8698 = vmatpush1.bf16.msra.mxu0 0
    %8699 = vmatprep.subr.bf16.mxu0 0
    %8700 = vmatpush1.bf16.msra.mxu0 0
    %8701 = vmatprep.subr.bf16.mxu0 0
    %8702 = vmatpush1.bf16.msra.mxu0 0
    %8703 = vmatprep.subr.bf16.mxu0 0
    %8704 = vmatpush1.bf16.msra.mxu0 0
    %8705 = vmatprep.subr.bf16.mxu0 0
    %8706 = vmatpush1.bf16.msra.mxu0 0
    %8707 = vmatprep.subr.bf16.mxu0 0
    %8708 = vmatpush1.bf16.msra.mxu0 0
    %8709 = vmatprep.subr.bf16.mxu0 0
    %8710 = vmatpush1.bf16.msra.mxu0 0
    %8711 = vmatprep.subr.bf16.mxu0 0
    %8712 = vmatpush1.bf16.msra.mxu0 %v8695
    %8713 = vmatprep.subr.bf16.mxu0 0
    %8714 = vmatpush2.bf16.msra.mxu0 0
    %8715 = vmatprep.subr.bf16.mxu0 0
    %8716 = vmatpush2.bf16.msra.mxu0 0
    %8717 = vmatprep.subr.bf16.mxu0 0
    %8718 = vmatpush2.bf16.msra.mxu0 0
    %8719 = vmatprep.subr.bf16.mxu0 0
    %8720 = vmatpush2.bf16.msra.mxu0 0
    %8721 = vmatprep.subr.bf16.mxu0 0
    %8722 = vmatpush2.bf16.msra.mxu0 0
    %8723 = vmatprep.subr.bf16.mxu0 0
    %8724 = vmatpush2.bf16.msra.mxu0 0
    %8725 = vmatprep.subr.bf16.mxu0 0
    %8726 = vmatpush2.bf16.msra.mxu0 0
    %8727 = vmatprep.subr.bf16.mxu0 0
    %8728 = vmatpush2.bf16.msra.mxu0 0
    %8729 = vmatprep.mubr.bf16.mxu0 0
    %8730 = vmatmul.mubr.bf16.gmra.mxu0 %v8692
    %v8731 = vpop.f32.mrf.mxu0
    %v8732 = vadd.f32 0.0, %v8731
    %v8733 = vpop.f32.mrf.mxu0
    %v8734 = vpop.f32.mrf.mxu0
    %v8735 = vpop.f32.mrf.mxu0
    %8736 = vdwg.mxu0
    %8737 = vrot.lane.b32.xlu0 %v7134, 96
    %v8738 = vpop.permute.xlu0 %8737
    %v8740 = vsel %vm1070, %v8110, 0
    %v8743 = vsel %vm1268, %v8738, 0
    %8745 = vmatprep.subr.bf16.mxu0 0
    %8746 = vmatpush1.bf16.msra.mxu0 0
    %8747 = vmatprep.subr.bf16.mxu0 0
    %8748 = vmatpush1.bf16.msra.mxu0 0
    %8749 = vmatprep.subr.bf16.mxu0 0
    %8750 = vmatpush1.bf16.msra.mxu0 0
    %8751 = vmatprep.subr.bf16.mxu0 0
    %8752 = vmatpush1.bf16.msra.mxu0 0
    %8753 = vmatprep.subr.bf16.mxu0 0
    %8754 = vmatpush1.bf16.msra.mxu0 0
    %8755 = vmatprep.subr.bf16.mxu0 0
    %8756 = vmatpush1.bf16.msra.mxu0 0
    %8757 = vmatprep.subr.bf16.mxu0 0
    %8758 = vmatpush1.bf16.msra.mxu0 0
    %8759 = vmatprep.subr.bf16.mxu0 0
    %8760 = vmatpush1.bf16.msra.mxu0 %v8743
    %8761 = vmatprep.subr.bf16.mxu0 0
    %8762 = vmatpush2.bf16.msra.mxu0 0
    %8763 = vmatprep.subr.bf16.mxu0 0
    %8764 = vmatpush2.bf16.msra.mxu0 0
    %8765 = vmatprep.subr.bf16.mxu0 0
    %8766 = vmatpush2.bf16.msra.mxu0 0
    %8767 = vmatprep.subr.bf16.mxu0 0
    %8768 = vmatpush2.bf16.msra.mxu0 0
    %8769 = vmatprep.subr.bf16.mxu0 0
    %8770 = vmatpush2.bf16.msra.mxu0 0
    %8771 = vmatprep.subr.bf16.mxu0 0
    %8772 = vmatpush2.bf16.msra.mxu0 0
    %8773 = vmatprep.subr.bf16.mxu0 0
    %8774 = vmatpush2.bf16.msra.mxu0 0
    %8775 = vmatprep.subr.bf16.mxu0 0
    %8776 = vmatpush2.bf16.msra.mxu0 0
    %8777 = vmatprep.mubr.bf16.mxu0 0
    %8778 = vmatmul.mubr.bf16.gmra.mxu0 %v8740
    %v8779 = vpop.f32.mrf.mxu0
    %v8780 = vadd.f32 0.0, %v8779
    %v8781 = vpop.f32.mrf.mxu0
    %v8782 = vpop.f32.mrf.mxu0
    %v8783 = vpop.f32.mrf.mxu0
    %8784 = vdwg.mxu0
    %8785 = vrot.lane.b32.xlu0 %v7135, 96
    %v8786 = vpop.permute.xlu0 %8785
    %v8788 = vsel %vm1070, %v8111, 0
    %v8791 = vsel %vm1268, %v8786, 0
    %8793 = vmatprep.subr.bf16.mxu0 0
    %8794 = vmatpush1.bf16.msra.mxu0 0
    %8795 = vmatprep.subr.bf16.mxu0 0
    %8796 = vmatpush1.bf16.msra.mxu0 0
    %8797 = vmatprep.subr.bf16.mxu0 0
    %8798 = vmatpush1.bf16.msra.mxu0 0
    %8799 = vmatprep.subr.bf16.mxu0 0
    %8800 = vmatpush1.bf16.msra.mxu0 0
    %8801 = vmatprep.subr.bf16.mxu0 0
    %8802 = vmatpush1.bf16.msra.mxu0 0
    %8803 = vmatprep.subr.bf16.mxu0 0
    %8804 = vmatpush1.bf16.msra.mxu0 0
    %8805 = vmatprep.subr.bf16.mxu0 0
    %8806 = vmatpush1.bf16.msra.mxu0 0
    %8807 = vmatprep.subr.bf16.mxu0 0
    %8808 = vmatpush1.bf16.msra.mxu0 %v8791
    %8809 = vmatprep.subr.bf16.mxu0 0
    %8810 = vmatpush2.bf16.msra.mxu0 0
    %8811 = vmatprep.subr.bf16.mxu0 0
    %8812 = vmatpush2.bf16.msra.mxu0 0
    %8813 = vmatprep.subr.bf16.mxu0 0
    %8814 = vmatpush2.bf16.msra.mxu0 0
    %8815 = vmatprep.subr.bf16.mxu0 0
    %8816 = vmatpush2.bf16.msra.mxu0 0
    %8817 = vmatprep.subr.bf16.mxu0 0
    %8818 = vmatpush2.bf16.msra.mxu0 0
    %8819 = vmatprep.subr.bf16.mxu0 0
    %8820 = vmatpush2.bf16.msra.mxu0 0
    %8821 = vmatprep.subr.bf16.mxu0 0
    %8822 = vmatpush2.bf16.msra.mxu0 0
    %8823 = vmatprep.subr.bf16.mxu0 0
    %8824 = vmatpush2.bf16.msra.mxu0 0
    %8825 = vmatprep.mubr.bf16.mxu0 0
    %8826 = vmatmul.mubr.bf16.gmra.mxu0 %v8788
    %v8827 = vpop.f32.mrf.mxu0
    %v8828 = vadd.f32 0.0, %v8827
    %v8829 = vpop.f32.mrf.mxu0
    %v8830 = vpop.f32.mrf.mxu0
    %v8831 = vpop.f32.mrf.mxu0
    %8832 = vdwg.mxu0
    %8833 = vrot.lane.b32.xlu0 %v7136, 96
    %v8834 = vpop.permute.xlu0 %8833
    %v8836 = vsel %vm1070, %v8112, 0
    %v8839 = vsel %vm1268, %v8834, 0
    %8841 = vmatprep.subr.bf16.mxu0 0
    %8842 = vmatpush1.bf16.msra.mxu0 0
    %8843 = vmatprep.subr.bf16.mxu0 0
    %8844 = vmatpush1.bf16.msra.mxu0 0
    %8845 = vmatprep.subr.bf16.mxu0 0
    %8846 = vmatpush1.bf16.msra.mxu0 0
    %8847 = vmatprep.subr.bf16.mxu0 0
    %8848 = vmatpush1.bf16.msra.mxu0 0
    %8849 = vmatprep.subr.bf16.mxu0 0
    %8850 = vmatpush1.bf16.msra.mxu0 0
    %8851 = vmatprep.subr.bf16.mxu0 0
    %8852 = vmatpush1.bf16.msra.mxu0 0
    %8853 = vmatprep.subr.bf16.mxu0 0
    %8854 = vmatpush1.bf16.msra.mxu0 0
    %8855 = vmatprep.subr.bf16.mxu0 0
    %8856 = vmatpush1.bf16.msra.mxu0 %v8839
    %8857 = vmatprep.subr.bf16.mxu0 0
    %8858 = vmatpush2.bf16.msra.mxu0 0
    %8859 = vmatprep.subr.bf16.mxu0 0
    %8860 = vmatpush2.bf16.msra.mxu0 0
    %8861 = vmatprep.subr.bf16.mxu0 0
    %8862 = vmatpush2.bf16.msra.mxu0 0
    %8863 = vmatprep.subr.bf16.mxu0 0
    %8864 = vmatpush2.bf16.msra.mxu0 0
    %8865 = vmatprep.subr.bf16.mxu0 0
    %8866 = vmatpush2.bf16.msra.mxu0 0
    %8867 = vmatprep.subr.bf16.mxu0 0
    %8868 = vmatpush2.bf16.msra.mxu0 0
    %8869 = vmatprep.subr.bf16.mxu0 0
    %8870 = vmatpush2.bf16.msra.mxu0 0
    %8871 = vmatprep.subr.bf16.mxu0 0
    %8872 = vmatpush2.bf16.msra.mxu0 0
    %8873 = vmatprep.mubr.bf16.mxu0 0
    %8874 = vmatmul.mubr.bf16.gmra.mxu0 %v8836
    %v8875 = vpop.f32.mrf.mxu0
    %v8876 = vadd.f32 0.0, %v8875
    %v8877 = vpop.f32.mrf.mxu0
    %v8878 = vpop.f32.mrf.mxu0
    %v8879 = vpop.f32.mrf.mxu0
    %8880 = vdwg.mxu0
    %v8881 = vcombine.low %v8156, %v8252
    %v8882 = vcombine.high %v8156, %v8252
    %v8884 = vunpack.c.l.s4 1983009808
    %v8885 = vunpack.c.0.s8 %v8884
    %v8886 = vlaneseq
    %v8887 = vshrl.u32 %v8886, 7
    %v8888 = vsub.s32 %v8885, %v8887
    %v8889 = vrot.slane %v8881, %v8888
    %v8891 = vunpack.c.l.s4 1983009808
    %v8892 = vunpack.c.0.s8 %v8891
    %v8893 = vlaneseq
    %v8894 = vshrl.u32 %v8893, 7
    %v8895 = vsub.s32 %v8892, %v8894
    %v8896 = vrot.slane %v8882, %v8895
    %v8897 = vcombine.low %v8204, %v8300
    %v8898 = vcombine.high %v8204, %v8300
    %v8900 = vunpack.c.l.s4 1983009808
    %v8901 = vunpack.c.0.s8 %v8900
    %v8902 = vlaneseq
    %v8903 = vshrl.u32 %v8902, 7
    %v8904 = vsub.s32 %v8901, %v8903
    %v8905 = vrot.slane %v8897, %v8904
    %v8907 = vunpack.c.l.s4 1983009808
    %v8908 = vunpack.c.0.s8 %v8907
    %v8909 = vlaneseq
    %v8910 = vshrl.u32 %v8909, 7
    %v8911 = vsub.s32 %v8908, %v8910
    %v8912 = vrot.slane %v8898, %v8911
    %v8913 = vcombine.low %v8348, %v8444
    %v8914 = vcombine.high %v8348, %v8444
    %v8916 = vunpack.c.l.s4 1983009808
    %v8917 = vunpack.c.0.s8 %v8916
    %v8918 = vlaneseq
    %v8919 = vshrl.u32 %v8918, 7
    %v8920 = vsub.s32 %v8917, %v8919
    %v8921 = vrot.slane %v8913, %v8920
    %v8923 = vunpack.c.l.s4 1983009808
    %v8924 = vunpack.c.0.s8 %v8923
    %v8925 = vlaneseq
    %v8926 = vshrl.u32 %v8925, 7
    %v8927 = vsub.s32 %v8924, %v8926
    %v8928 = vrot.slane %v8914, %v8927
    %v8929 = vcombine.low %v8396, %v8492
    %v8930 = vcombine.high %v8396, %v8492
    %v8932 = vunpack.c.l.s4 1983009808
    %v8933 = vunpack.c.0.s8 %v8932
    %v8934 = vlaneseq
    %v8935 = vshrl.u32 %v8934, 7
    %v8936 = vsub.s32 %v8933, %v8935
    %v8937 = vrot.slane %v8929, %v8936
    %v8939 = vunpack.c.l.s4 1983009808
    %v8940 = vunpack.c.0.s8 %v8939
    %v8941 = vlaneseq
    %v8942 = vshrl.u32 %v8941, 7
    %v8943 = vsub.s32 %v8940, %v8942
    %v8944 = vrot.slane %v8930, %v8943
    %v8945 = vcombine.low %v8889, %v8905
    %v8946 = vcombine.high %v8889, %v8905
    %v8948 = vunpack.c.l.s4 1934713408
    %v8949 = vunpack.c.0.s8 %v8948
    %v8950 = vlaneseq
    %v8951 = vshrl.u32 %v8950, 7
    %v8952 = vsub.s32 %v8949, %v8951
    %v8953 = vrot.slane %v8945, %v8952
    %v8955 = vunpack.c.l.s4 1934713408
    %v8956 = vunpack.c.0.s8 %v8955
    %v8957 = vlaneseq
    %v8958 = vshrl.u32 %v8957, 7
    %v8959 = vsub.s32 %v8956, %v8958
    %v8960 = vrot.slane %v8946, %v8959
    %v8961 = vcombine.low %v8896, %v8912
    %v8962 = vcombine.high %v8896, %v8912
    %v8964 = vunpack.c.l.s4 1934713408
    %v8965 = vunpack.c.0.s8 %v8964
    %v8966 = vlaneseq
    %v8967 = vshrl.u32 %v8966, 7
    %v8968 = vsub.s32 %v8965, %v8967
    %v8969 = vrot.slane %v8961, %v8968
    %v8971 = vunpack.c.l.s4 1934713408
    %v8972 = vunpack.c.0.s8 %v8971
    %v8973 = vlaneseq
    %v8974 = vshrl.u32 %v8973, 7
    %v8975 = vsub.s32 %v8972, %v8974
    %v8976 = vrot.slane %v8962, %v8975
    %v8977 = vcombine.low %v8921, %v8937
    %v8978 = vcombine.high %v8921, %v8937
    %v8980 = vunpack.c.l.s4 1934713408
    %v8981 = vunpack.c.0.s8 %v8980
    %v8982 = vlaneseq
    %v8983 = vshrl.u32 %v8982, 7
    %v8984 = vsub.s32 %v8981, %v8983
    %v8985 = vrot.slane %v8977, %v8984
    %v8987 = vunpack.c.l.s4 1934713408
    %v8988 = vunpack.c.0.s8 %v8987
    %v8989 = vlaneseq
    %v8990 = vshrl.u32 %v8989, 7
    %v8991 = vsub.s32 %v8988, %v8990
    %v8992 = vrot.slane %v8978, %v8991
    %v8993 = vcombine.low %v8928, %v8944
    %v8994 = vcombine.high %v8928, %v8944
    %v8996 = vunpack.c.l.s4 1934713408
    %v8997 = vunpack.c.0.s8 %v8996
    %v8998 = vlaneseq
    %v8999 = vshrl.u32 %v8998, 7
    %v9000 = vsub.s32 %v8997, %v8999
    %v9001 = vrot.slane %v8993, %v9000
    %v9003 = vunpack.c.l.s4 1934713408
    %v9004 = vunpack.c.0.s8 %v9003
    %v9005 = vlaneseq
    %v9006 = vshrl.u32 %v9005, 7
    %v9007 = vsub.s32 %v9004, %v9006
    %v9008 = vrot.slane %v8994, %v9007
    %v9009 = vcombine.low %v8953, %v8985
    %v9010 = vcombine.high %v8953, %v8985
    %v9011 = vcombine.low %v8960, %v8992
    %v9012 = vcombine.high %v8960, %v8992
    %v9013 = vcombine.low %v8969, %v9001
    %v9014 = vcombine.high %v8969, %v9001
    %v9015 = vcombine.low %v8976, %v9008
    %v9016 = vcombine.high %v8976, %v9008
    %v9017 = vcombine.low %v8540, %v8636
    %v9018 = vcombine.high %v8540, %v8636
    %v9020 = vunpack.c.l.s4 1983009808
    %v9021 = vunpack.c.0.s8 %v9020
    %v9022 = vlaneseq
    %v9023 = vshrl.u32 %v9022, 7
    %v9024 = vsub.s32 %v9021, %v9023
    %v9025 = vrot.slane %v9017, %v9024
    %v9027 = vunpack.c.l.s4 1983009808
    %v9028 = vunpack.c.0.s8 %v9027
    %v9029 = vlaneseq
    %v9030 = vshrl.u32 %v9029, 7
    %v9031 = vsub.s32 %v9028, %v9030
    %v9032 = vrot.slane %v9018, %v9031
    %v9033 = vcombine.low %v8588, %v8684
    %v9034 = vcombine.high %v8588, %v8684
    %v9036 = vunpack.c.l.s4 1983009808
    %v9037 = vunpack.c.0.s8 %v9036
    %v9038 = vlaneseq
    %v9039 = vshrl.u32 %v9038, 7
    %v9040 = vsub.s32 %v9037, %v9039
    %v9041 = vrot.slane %v9033, %v9040
    %v9043 = vunpack.c.l.s4 1983009808
    %v9044 = vunpack.c.0.s8 %v9043
    %v9045 = vlaneseq
    %v9046 = vshrl.u32 %v9045, 7
    %v9047 = vsub.s32 %v9044, %v9046
    %v9048 = vrot.slane %v9034, %v9047
    %v9049 = vcombine.low %v8732, %v8828
    %v9050 = vcombine.high %v8732, %v8828
    %v9052 = vunpack.c.l.s4 1983009808
    %v9053 = vunpack.c.0.s8 %v9052
    %v9054 = vlaneseq
    %v9055 = vshrl.u32 %v9054, 7
    %v9056 = vsub.s32 %v9053, %v9055
    %v9057 = vrot.slane %v9049, %v9056
    %v9059 = vunpack.c.l.s4 1983009808
    %v9060 = vunpack.c.0.s8 %v9059
    %v9061 = vlaneseq
    %v9062 = vshrl.u32 %v9061, 7
    %v9063 = vsub.s32 %v9060, %v9062
    %v9064 = vrot.slane %v9050, %v9063
    %v9065 = vcombine.low %v8780, %v8876
    %v9066 = vcombine.high %v8780, %v8876
    %v9068 = vunpack.c.l.s4 1983009808
    %v9069 = vunpack.c.0.s8 %v9068
    %v9070 = vlaneseq
    %v9071 = vshrl.u32 %v9070, 7
    %v9072 = vsub.s32 %v9069, %v9071
    %v9073 = vrot.slane %v9065, %v9072
    %v9075 = vunpack.c.l.s4 1983009808
    %v9076 = vunpack.c.0.s8 %v9075
    %v9077 = vlaneseq
    %v9078 = vshrl.u32 %v9077, 7
    %v9079 = vsub.s32 %v9076, %v9078
    %v9080 = vrot.slane %v9066, %v9079
    %v9081 = vcombine.low %v9025, %v9041
    %v9082 = vcombine.high %v9025, %v9041
    %v9084 = vunpack.c.l.s4 1934713408
    %v9085 = vunpack.c.0.s8 %v9084
    %v9086 = vlaneseq
    %v9087 = vshrl.u32 %v9086, 7
    %v9088 = vsub.s32 %v9085, %v9087
    %v9089 = vrot.slane %v9081, %v9088
    %v9091 = vunpack.c.l.s4 1934713408
    %v9092 = vunpack.c.0.s8 %v9091
    %v9093 = vlaneseq
    %v9094 = vshrl.u32 %v9093, 7
    %v9095 = vsub.s32 %v9092, %v9094
    %v9096 = vrot.slane %v9082, %v9095
    %v9097 = vcombine.low %v9032, %v9048
    %v9098 = vcombine.high %v9032, %v9048
    %v9100 = vunpack.c.l.s4 1934713408
    %v9101 = vunpack.c.0.s8 %v9100
    %v9102 = vlaneseq
    %v9103 = vshrl.u32 %v9102, 7
    %v9104 = vsub.s32 %v9101, %v9103
    %v9105 = vrot.slane %v9097, %v9104
    %v9107 = vunpack.c.l.s4 1934713408
    %v9108 = vunpack.c.0.s8 %v9107
    %v9109 = vlaneseq
    %v9110 = vshrl.u32 %v9109, 7
    %v9111 = vsub.s32 %v9108, %v9110
    %v9112 = vrot.slane %v9098, %v9111
    %v9113 = vcombine.low %v9057, %v9073
    %v9114 = vcombine.high %v9057, %v9073
    %v9116 = vunpack.c.l.s4 1934713408
    %v9117 = vunpack.c.0.s8 %v9116
    %v9118 = vlaneseq
    %v9119 = vshrl.u32 %v9118, 7
    %v9120 = vsub.s32 %v9117, %v9119
    %v9121 = vrot.slane %v9113, %v9120
    %v9123 = vunpack.c.l.s4 1934713408
    %v9124 = vunpack.c.0.s8 %v9123
    %v9125 = vlaneseq
    %v9126 = vshrl.u32 %v9125, 7
    %v9127 = vsub.s32 %v9124, %v9126
    %v9128 = vrot.slane %v9114, %v9127
    %v9129 = vcombine.low %v9064, %v9080
    %v9130 = vcombine.high %v9064, %v9080
    %v9132 = vunpack.c.l.s4 1934713408
    %v9133 = vunpack.c.0.s8 %v9132
    %v9134 = vlaneseq
    %v9135 = vshrl.u32 %v9134, 7
    %v9136 = vsub.s32 %v9133, %v9135
    %v9137 = vrot.slane %v9129, %v9136
    %v9139 = vunpack.c.l.s4 1934713408
    %v9140 = vunpack.c.0.s8 %v9139
    %v9141 = vlaneseq
    %v9142 = vshrl.u32 %v9141, 7
    %v9143 = vsub.s32 %v9140, %v9142
    %v9144 = vrot.slane %v9130, %v9143
    %v9145 = vcombine.low %v9089, %v9121
    %v9146 = vcombine.high %v9089, %v9121
    %v9147 = vcombine.low %v9096, %v9128
    %v9148 = vcombine.high %v9096, %v9128
    %v9149 = vcombine.low %v9105, %v9137
    %v9150 = vcombine.high %v9105, %v9137
    %v9151 = vcombine.low %v9112, %v9144
    %v9152 = vcombine.high %v9112, %v9144
    %v9153 = vadd.f32 %v9009, %v5947
    %v9154 = vadd.f32 %v9010, %v5995
    %v9155 = vadd.f32 %v9011, %v6043
    %v9156 = vadd.f32 %v9012, %v6091
    %v9157 = vadd.f32 %v9013, %v6139
    %v9158 = vadd.f32 %v9014, %v6187
    %v9159 = vadd.f32 %v9015, %v6235
    %v9160 = vadd.f32 %v9016, %v6283
    %v9161 = vadd.f32 %v9145, %v6331
    %v9162 = vadd.f32 %v9146, %v6379
    %v9163 = vadd.f32 %v9147, %v6427
    %v9164 = vadd.f32 %v9148, %v6475
    %v9165 = vadd.f32 %v9149, %v6523
    %v9166 = vadd.f32 %v9150, %v6571
    %v9167 = vadd.f32 %v9151, %v6619
    %v9168 = vadd.f32 %v9152, %v6667
    %v9169 = vmul.f32 %v9153, 0.5
    %v9170 = vmul.f32 %v9154, 0.5
    %v9171 = vmul.f32 %v9155, 0.5
    %v9172 = vmul.f32 %v9156, 0.5
    %v9173 = vmul.f32 %v9157, 0.5
    %v9174 = vmul.f32 %v9158, 0.5
    %v9175 = vmul.f32 %v9159, 0.5
    %v9176 = vmul.f32 %v9160, 0.5
    %v9177 = vmul.f32 %v9161, 0.5
    %v9178 = vmul.f32 %v9162, 0.5
    %v9179 = vmul.f32 %v9163, 0.5
    %v9180 = vmul.f32 %v9164, 0.5
    %v9181 = vmul.f32 %v9165, 0.5
    %v9182 = vmul.f32 %v9166, 0.5
    %v9183 = vmul.f32 %v9167, 0.5
    %v9184 = vmul.f32 %v9168, 0.5
    %v9185 = vadd.f32 %v9169, %v4545
    %v9186 = vadd.f32 %v9170, %v4546
    %v9187 = vadd.f32 %v9171, %v4547
    %v9188 = vadd.f32 %v9172, %v4548
    %v9189 = vadd.f32 %v9173, %v4549
    %v9190 = vadd.f32 %v9174, %v4550
    %v9191 = vadd.f32 %v9175, %v4551
    %v9192 = vadd.f32 %v9176, %v4552
    %v9193 = vadd.f32 %v9177, %v4553
    %v9194 = vadd.f32 %v9178, %v4554
    %v9195 = vadd.f32 %v9179, %v4555
    %v9196 = vadd.f32 %v9180, %v4556
    %v9197 = vadd.f32 %v9181, %v4557
    %v9198 = vadd.f32 %v9182, %v4558
    %v9199 = vadd.f32 %v9183, %v4559
    %v9200 = vadd.f32 %v9184, %v4560
    %v9201 = vsel %vm288, %v4850, 0.0
    %v9202 = vrot.slane %v9201, 4
    %v9203 = vadd.f32 %v9201, %v9202
    %v9204 = vrot.slane %v9203, 2
    %v9205 = vadd.f32 %v9203, %v9204
    %v9206 = vrot.slane %v9205, 1
    %v9207 = vadd.f32 %v9205, %v9206
    %v9208 = vsel %vm288, %v4853, 0.0
    %v9209 = vrot.slane %v9208, 4
    %v9210 = vadd.f32 %v9208, %v9209
    %v9211 = vrot.slane %v9210, 2
    %v9212 = vadd.f32 %v9210, %v9211
    %v9213 = vrot.slane %v9212, 1
    %v9214 = vadd.f32 %v9212, %v9213
    %v9215 = vsel %vm288, %v4858, 0.0
    %v9216 = vrot.slane %v9215, 4
    %v9217 = vadd.f32 %v9215, %v9216
    %v9218 = vrot.slane %v9217, 2
    %v9219 = vadd.f32 %v9217, %v9218
    %v9220 = vrot.slane %v9219, 1
    %v9221 = vadd.f32 %v9219, %v9220
    %v9222 = vsel %vm288, %v4861, 0.0
    %v9223 = vrot.slane %v9222, 4
    %v9224 = vadd.f32 %v9222, %v9223
    %v9225 = vrot.slane %v9224, 2
    %v9226 = vadd.f32 %v9224, %v9225
    %v9227 = vrot.slane %v9226, 1
    %v9228 = vadd.f32 %v9226, %v9227
    %v9229 = vsel %vm288, %v4866, 0.0
    %v9230 = vrot.slane %v9229, 4
    %v9231 = vadd.f32 %v9229, %v9230
    %v9232 = vrot.slane %v9231, 2
    %v9233 = vadd.f32 %v9231, %v9232
    %v9234 = vrot.slane %v9233, 1
    %v9235 = vadd.f32 %v9233, %v9234
    %v9236 = vsel %vm288, %v4869, 0.0
    %v9237 = vrot.slane %v9236, 4
    %v9238 = vadd.f32 %v9236, %v9237
    %v9239 = vrot.slane %v9238, 2
    %v9240 = vadd.f32 %v9238, %v9239
    %v9241 = vrot.slane %v9240, 1
    %v9242 = vadd.f32 %v9240, %v9241
    %v9243 = vsel %vm288, %v4874, 0.0
    %v9244 = vrot.slane %v9243, 4
    %v9245 = vadd.f32 %v9243, %v9244
    %v9246 = vrot.slane %v9245, 2
    %v9247 = vadd.f32 %v9245, %v9246
    %v9248 = vrot.slane %v9247, 1
    %v9249 = vadd.f32 %v9247, %v9248
    %v9250 = vsel %vm288, %v4877, 0.0
    %v9251 = vrot.slane %v9250, 4
    %v9252 = vadd.f32 %v9250, %v9251
    %v9253 = vrot.slane %v9252, 2
    %v9254 = vadd.f32 %v9252, %v9253
    %v9255 = vrot.slane %v9254, 1
    %v9256 = vadd.f32 %v9254, %v9255
    %v9257 = vsel %vm288, %v4882, 0.0
    %v9258 = vrot.slane %v9257, 4
    %v9259 = vadd.f32 %v9257, %v9258
    %v9260 = vrot.slane %v9259, 2
    %v9261 = vadd.f32 %v9259, %v9260
    %v9262 = vrot.slane %v9261, 1
    %v9263 = vadd.f32 %v9261, %v9262
    %v9264 = vsel %vm288, %v4885, 0.0
    %v9265 = vrot.slane %v9264, 4
    %v9266 = vadd.f32 %v9264, %v9265
    %v9267 = vrot.slane %v9266, 2
    %v9268 = vadd.f32 %v9266, %v9267
    %v9269 = vrot.slane %v9268, 1
    %v9270 = vadd.f32 %v9268, %v9269
    %v9271 = vsel %vm288, %v4890, 0.0
    %v9272 = vrot.slane %v9271, 4
    %v9273 = vadd.f32 %v9271, %v9272
    %v9274 = vrot.slane %v9273, 2
    %v9275 = vadd.f32 %v9273, %v9274
    %v9276 = vrot.slane %v9275, 1
    %v9277 = vadd.f32 %v9275, %v9276
    %v9278 = vsel %vm288, %v4893, 0.0
    %v9279 = vrot.slane %v9278, 4
    %v9280 = vadd.f32 %v9278, %v9279
    %v9281 = vrot.slane %v9280, 2
    %v9282 = vadd.f32 %v9280, %v9281
    %v9283 = vrot.slane %v9282, 1
    %v9284 = vadd.f32 %v9282, %v9283
    %v9285 = vsel %vm288, %v4898, 0.0
    %v9286 = vrot.slane %v9285, 4
    %v9287 = vadd.f32 %v9285, %v9286
    %v9288 = vrot.slane %v9287, 2
    %v9289 = vadd.f32 %v9287, %v9288
    %v9290 = vrot.slane %v9289, 1
    %v9291 = vadd.f32 %v9289, %v9290
    %v9292 = vsel %vm288, %v4901, 0.0
    %v9293 = vrot.slane %v9292, 4
    %v9294 = vadd.f32 %v9292, %v9293
    %v9295 = vrot.slane %v9294, 2
    %v9296 = vadd.f32 %v9294, %v9295
    %v9297 = vrot.slane %v9296, 1
    %v9298 = vadd.f32 %v9296, %v9297
    %v9299 = vsel %vm288, %v4906, 0.0
    %v9300 = vrot.slane %v9299, 4
    %v9301 = vadd.f32 %v9299, %v9300
    %v9302 = vrot.slane %v9301, 2
    %v9303 = vadd.f32 %v9301, %v9302
    %v9304 = vrot.slane %v9303, 1
    %v9305 = vadd.f32 %v9303, %v9304
    %v9306 = vsel %vm288, %v4909, 0.0
    %v9307 = vrot.slane %v9306, 4
    %v9308 = vadd.f32 %v9306, %v9307
    %v9309 = vrot.slane %v9308, 2
    %v9310 = vadd.f32 %v9308, %v9309
    %v9311 = vrot.slane %v9310, 1
    %v9312 = vadd.f32 %v9310, %v9311
    %v9313 = vmul.f32 %v9207, %v4673
    %v9314 = vmul.f32 %v9214, %v4673
    %v9315 = vmul.f32 %v9221, %v4673
    %v9316 = vmul.f32 %v9228, %v4673
    %v9317 = vmul.f32 %v9235, %v4673
    %v9318 = vmul.f32 %v9242, %v4673
    %v9319 = vmul.f32 %v9249, %v4673
    %v9320 = vmul.f32 %v9256, %v4673
    %v9321 = vmul.f32 %v9263, %v4673
    %v9322 = vmul.f32 %v9270, %v4673
    %v9323 = vmul.f32 %v9277, %v4673
    %v9324 = vmul.f32 %v9284, %v4673
    %v9325 = vmul.f32 %v9291, %v4673
    %v9326 = vmul.f32 %v9298, %v4673
    %v9327 = vmul.f32 %v9305, %v4673
    %v9328 = vmul.f32 %v9312, %v4673
    %v9329 = vsel %vm4690, %v4850, 0.0
    %v9330 = vsel %vm4690, %v4853, 0.0
    %v9331 = vadd.f32 %v9329, %v9330
    %v9332 = vsel %vm4690, %v4858, 0.0
    %v9333 = vadd.f32 %v9331, %v9332
    %v9334 = vsel %vm4690, %v4861, 0.0
    %v9335 = vadd.f32 %v9333, %v9334
    %v9336 = vsel %vm4690, %v4866, 0.0
    %v9337 = vadd.f32 %v9335, %v9336
    %v9338 = vsel %vm4690, %v4869, 0.0
    %v9339 = vadd.f32 %v9337, %v9338
    %v9340 = vsel %vm4690, %v4874, 0.0
    %v9341 = vadd.f32 %v9339, %v9340
    %v9342 = vsel %vm4690, %v4877, 0.0
    %v9343 = vadd.f32 %v9341, %v9342
    %v9344 = vsel %vm4690, %v4882, 0.0
    %v9345 = vsel %vm4690, %v4885, 0.0
    %v9346 = vadd.f32 %v9344, %v9345
    %v9347 = vsel %vm4690, %v4890, 0.0
    %v9348 = vadd.f32 %v9346, %v9347
    %v9349 = vsel %vm4690, %v4893, 0.0
    %v9350 = vadd.f32 %v9348, %v9349
    %v9351 = vsel %vm4690, %v4898, 0.0
    %v9352 = vadd.f32 %v9350, %v9351
    %v9353 = vsel %vm4690, %v4901, 0.0
    %v9354 = vadd.f32 %v9352, %v9353
    %v9355 = vsel %vm4690, %v4906, 0.0
    %v9356 = vadd.f32 %v9354, %v9355
    %v9357 = vsel %vm4690, %v4909, 0.0
    %v9358 = vadd.f32 %v9356, %v9357
    %v9359 = vmul.f32 %v9343, %v4673
    %v9360 = vmul.f32 %v9358, %v4673
    %9361 = vst.msk [vmem:[#allocation5] sm:$0xff] %vm147, %v9185
    %9362 = vst.msk [vmem:[#allocation5 + $0x8] sm:$0xff] %vm147, %v9186
    %9363 = vst.msk [vmem:[#allocation5 + $0x10] sm:$0xff] %vm147, %v9187
    %9364 = vst.msk [vmem:[#allocation5 + $0x18] sm:$0xff] %vm147, %v9188
    %9365 = vst.msk [vmem:[#allocation5 + $0x20] sm:$0xff] %vm147, %v9189
    %9366 = vst.msk [vmem:[#allocation5 + $0x28] sm:$0xff] %vm147, %v9190
    %9367 = vst.msk [vmem:[#allocation5 + $0x30] sm:$0xff] %vm147, %v9191
    %9368 = vst.msk [vmem:[#allocation5 + $0x38] sm:$0xff] %vm147, %v9192
    %9369 = vst.msk [vmem:[#allocation5 + $0x40] sm:$0xff] %vm147, %v9193
    %9370 = vst.msk [vmem:[#allocation5 + $0x48] sm:$0xff] %vm147, %v9194
    %9371 = vst.msk [vmem:[#allocation5 + $0x50] sm:$0xff] %vm147, %v9195
    %9372 = vst.msk [vmem:[#allocation5 + $0x58] sm:$0xff] %vm147, %v9196
    %9373 = vst.msk [vmem:[#allocation5 + $0x60] sm:$0xff] %vm147, %v9197
    %9374 = vst.msk [vmem:[#allocation5 + $0x68] sm:$0xff] %vm147, %v9198
    %9375 = vst.msk [vmem:[#allocation5 + $0x70] sm:$0xff] %vm147, %v9199
    %9376 = vst.msk [vmem:[#allocation5 + $0x78] sm:$0xff] %vm147, %v9200
    %v9377 = vpack.c.bf16 %v4721, %v4721
    %v9378 = vpack.c.bf16 %v4722, %v4722
    %v9380 = vlaneseq
    %v9381 = vshrl.u32 %v9380, 7
    %v9382 = vsub.s32 0, %v9381
    %v9383 = vrot.slane %v76, %v9382
    %v9385 = vadd.f32 %v9383, 0.0
    %v9389 = vunpack.c.l.s4 1966171168
    %v9390 = vunpack.c.0.s8 %v9389
    %v9391 = vlaneseq
    %v9392 = vshrl.u32 %v9391, 7
    %v9393 = vsub.s32 %v9390, %v9392
    %v9394 = vrot.slane %v9377, %v9393
    %v9395 = vcombine.high %v9394, %v9394
    %v9397 = vunpack.c.l.s4 1966171168
    %v9398 = vunpack.c.0.s8 %v9397
    %v9399 = vlaneseq
    %v9400 = vshrl.u32 %v9399, 7
    %v9401 = vsub.s32 %v9398, %v9400
    %v9402 = vrot.slane %v9394, %v9401
    %v9404 = vunpack.c.l.s4 1966171168
    %v9405 = vunpack.c.0.s8 %v9404
    %v9406 = vlaneseq
    %v9407 = vshrl.u32 %v9406, 7
    %v9408 = vsub.s32 %v9405, %v9407
    %v9409 = vrot.slane %v9395, %v9408
    %v9410 = vcombine.high %v9402, %v9402
    %v9412 = vunpack.c.l.s4 1966171168
    %v9413 = vunpack.c.0.s8 %v9412
    %v9414 = vlaneseq
    %v9415 = vshrl.u32 %v9414, 7
    %v9416 = vsub.s32 %v9413, %v9415
    %v9417 = vrot.slane %v9378, %v9416
    %v9418 = vcombine.high %v9417, %v9417
    %v9420 = vunpack.c.l.s4 1966171168
    %v9421 = vunpack.c.0.s8 %v9420
    %v9422 = vlaneseq
    %v9423 = vshrl.u32 %v9422, 7
    %v9424 = vsub.s32 %v9421, %v9423
    %v9425 = vrot.slane %v9417, %v9424
    %v9427 = vunpack.c.l.s4 1966171168
    %v9428 = vunpack.c.0.s8 %v9427
    %v9429 = vlaneseq
    %v9430 = vshrl.u32 %v9429, 7
    %v9431 = vsub.s32 %v9428, %v9430
    %v9432 = vrot.slane %v9418, %v9431
    %v9433 = vcombine.high %v9425, %v9425
    %v9434 = vcombine.low %v9402, %v9409
    %v9435 = vcombine.low %v9410, %v9425
    %v9436 = vcombine.low %v9432, %v9433
    %v9438 = vunpack.c.l.s4 1966171168
    %v9439 = vunpack.c.0.s8 %v9438
    %v9440 = vlaneseq
    %v9441 = vshrl.u32 %v9440, 7
    %v9442 = vsub.s32 %v9439, %v9441
    %v9443 = vrot.slane %v9434, %v9442
    %v9445 = vunpack.c.l.s4 1966171168
    %v9446 = vunpack.c.0.s8 %v9445
    %v9447 = vlaneseq
    %v9448 = vshrl.u32 %v9447, 7
    %v9449 = vsub.s32 %v9446, %v9448
    %v9450 = vrot.slane %v9435, %v9449
    %v9452 = vunpack.c.l.s4 1966171168
    %v9453 = vunpack.c.0.s8 %v9452
    %v9454 = vlaneseq
    %v9455 = vshrl.u32 %v9454, 7
    %v9456 = vsub.s32 %v9453, %v9455
    %v9457 = vrot.slane %v9436, %v9456
    %v9458 = vcombine.low %v9443, %v9450
    %v9460 = vunpack.c.l.s4 1966171168
    %v9461 = vunpack.c.0.s8 %v9460
    %v9462 = vlaneseq
    %v9463 = vshrl.u32 %v9462, 7
    %v9464 = vsub.s32 %v9461, %v9463
    %v9465 = vrot.slane %v9458, %v9464
    %v9467 = vunpack.c.l.s4 1966171168
    %v9468 = vunpack.c.0.s8 %v9467
    %v9469 = vlaneseq
    %v9470 = vshrl.u32 %v9469, 7
    %v9471 = vsub.s32 %v9468, %v9470
    %v9472 = vrot.slane %v9457, %v9471
    %v9473 = vcombine.low %v9465, %v9472
    %9474 = vrot.lane.b32.xlu0 %v9473, 112
    %v9475 = vpop.permute.xlu0 %9474
    %v9478 = vunpack.c.l.b16 %v63
    %v9479 = vunpack.c.l.b16 %v64
    %v9480 = vpack.c.b16 %v9479, %v9478
    %v9483 = vsel %vm288, %v9475, 0
    %9485 = vmatprep.subr.bf16.mxu0 0
    %9486 = vmatpush1.bf16.msra.mxu0 0
    %9487 = vmatprep.subr.bf16.mxu0 0
    %9488 = vmatpush1.bf16.msra.mxu0 0
    %9489 = vmatprep.subr.bf16.mxu0 0
    %9490 = vmatpush1.bf16.msra.mxu0 0
    %9491 = vmatprep.subr.bf16.mxu0 0
    %9492 = vmatpush1.bf16.msra.mxu0 0
    %9493 = vmatprep.subr.bf16.mxu0 0
    %9494 = vmatpush1.bf16.msra.mxu0 0
    %9495 = vmatprep.subr.bf16.mxu0 0
    %9496 = vmatpush1.bf16.msra.mxu0 0
    %9497 = vmatprep.subr.bf16.mxu0 0
    %9498 = vmatpush1.bf16.msra.mxu0 0
    %9499 = vmatprep.subr.bf16.mxu0 0
    %9500 = vmatpush1.bf16.msra.mxu0 %v9480
    %9501 = vmatprep.subr.bf16.mxu0 0
    %9502 = vmatpush2.bf16.msra.mxu0 0
    %9503 = vmatprep.subr.bf16.mxu0 0
    %9504 = vmatpush2.bf16.msra.mxu0 0
    %9505 = vmatprep.subr.bf16.mxu0 0
    %9506 = vmatpush2.bf16.msra.mxu0 0
    %9507 = vmatprep.subr.bf16.mxu0 0
    %9508 = vmatpush2.bf16.msra.mxu0 0
    %9509 = vmatprep.subr.bf16.mxu0 0
    %9510 = vmatpush2.bf16.msra.mxu0 0
    %9511 = vmatprep.subr.bf16.mxu0 0
    %9512 = vmatpush2.bf16.msra.mxu0 0
    %9513 = vmatprep.subr.bf16.mxu0 0
    %9514 = vmatpush2.bf16.msra.mxu0 0
    %9515 = vmatprep.subr.bf16.mxu0 0
    %9516 = vmatpush2.bf16.msra.mxu0 0
    %9517 = vmatprep.mubr.bf16.mxu0 0
    %9518 = vmatmul.mubr.bf16.gmra.mxu0 %v9483
    %v9519 = vpop.f32.mrf.mxu0
    %v9520 = vadd.f32 0.0, %v9519
    %v9521 = vpop.f32.mrf.mxu0
    %v9522 = vpop.f32.mrf.mxu0
    %v9523 = vadd.f32 0.0, %v9522
    %v9524 = vpop.f32.mrf.mxu0
    %9525 = vdwg.mxu0
    %v9528 = vcombine.high %v9520, %v9520
    %v9530 = vunpack.c.l.s4 1983009808
    %v9531 = vunpack.c.0.s8 %v9530
    %v9532 = vlaneseq
    %v9533 = vshrl.u32 %v9532, 7
    %v9534 = vsub.s32 %v9531, %v9533
    %v9535 = vrot.slane %v9520, %v9534
    %v9537 = vunpack.c.l.s4 1983009808
    %v9538 = vunpack.c.0.s8 %v9537
    %v9539 = vlaneseq
    %v9540 = vshrl.u32 %v9539, 7
    %v9541 = vsub.s32 %v9538, %v9540
    %v9542 = vrot.slane %v9528, %v9541
    %v9543 = vcombine.high %v9535, %v9535
    %v9544 = vcombine.high %v9542, %v9542
    %v9546 = vunpack.c.l.s4 1983009808
    %v9547 = vunpack.c.0.s8 %v9546
    %v9548 = vlaneseq
    %v9549 = vshrl.u32 %v9548, 7
    %v9550 = vsub.s32 %v9547, %v9549
    %v9551 = vrot.slane %v9523, %v9550
    %v9552 = vcombine.high %v9551, %v9551
    %v9553 = vcombine.low %v9535, %v9543
    %v9555 = vunpack.c.l.s4 1983009808
    %v9556 = vunpack.c.0.s8 %v9555
    %v9557 = vlaneseq
    %v9558 = vshrl.u32 %v9557, 7
    %v9559 = vsub.s32 %v9556, %v9558
    %v9560 = vrot.slane %v9553, %v9559
    %v9562 = vunpack.c.l.s4 1983009808
    %v9563 = vunpack.c.0.s8 %v9562
    %v9564 = vlaneseq
    %v9565 = vshrl.u32 %v9564, 7
    %v9566 = vsub.s32 %v9563, %v9565
    %v9567 = vrot.slane %v9542, %v9566
    %v9568 = vcombine.low %v9560, %v9567
    %v9569 = vcombine.low %v9544, %v9551
    %v9571 = vunpack.c.l.s4 1983009808
    %v9572 = vunpack.c.0.s8 %v9571
    %v9573 = vlaneseq
    %v9574 = vshrl.u32 %v9573, 7
    %v9575 = vsub.s32 %v9572, %v9574
    %v9576 = vrot.slane %v9569, %v9575
    %v9578 = vunpack.c.l.s4 1983009808
    %v9579 = vunpack.c.0.s8 %v9578
    %v9580 = vlaneseq
    %v9581 = vshrl.u32 %v9580, 7
    %v9582 = vsub.s32 %v9579, %v9581
    %v9583 = vrot.slane %v9552, %v9582
    %v9584 = vcombine.low %v9576, %v9583
    %v9587 = vadd.f32 %v9385, %v9568
    %v9588 = vadd.f32 %v9385, %v9584
    %v9589 = vcombine.high %v9409, %v9409
    %v9590 = vcombine.high %v9432, %v9432
    %vm9591 = vsmask.f32 256
    %vm9592 = vsmask.f32 1284
    %vm9593 = vmor %vm9591, %vm9592
    %vm9594 = vsmask.f32 2312
    %vm9595 = vmor %vm9593, %vm9594
    %vm9596 = vsmask.f32 3340
    %vm9597 = vmor %vm9595, %vm9596
    %vm9598 = vsmask.f32 4368
    %vm9599 = vmor %vm9597, %vm9598
    %vm9600 = vsmask.f32 5396
    %vm9601 = vmor %vm9599, %vm9600
    %vm9602 = vsmask.f32 6424
    %vm9603 = vmor %vm9601, %vm9602
    %vm9604 = vsmask.f32 7452
    %vm9605 = vmor %vm9603, %vm9604
    %v9607 = vshrl.u32 %v9402, 16
    %v9609 = vrot.slane %v9607, 7
    %v9610 = vrot.slane %v9609, 1
    %v9612 = vshll.u32 %v9409, 16
    %v9614 = vsel %vm9605, %v9610, %v9612
    %v9615 = vshrl.u32 %v9409, 16
    %v9617 = vrot.slane %v9615, 7
    %v9618 = vrot.slane %v9617, 1
    %v9620 = vshll.u32 %v9410, 16
    %v9622 = vsel %vm9605, %v9618, %v9620
    %v9623 = vshrl.u32 %v9410, 16
    %v9625 = vrot.slane %v9623, 7
    %v9626 = vrot.slane %v9625, 1
    %v9628 = vshll.u32 %v9589, 16
    %v9630 = vsel %vm9605, %v9626, %v9628
    %v9632 = vshrl.u32 %v9425, 16
    %v9634 = vrot.slane %v9632, 7
    %v9635 = vrot.slane %v9634, 1
    %v9637 = vshll.u32 %v9432, 16
    %v9639 = vsel %vm9605, %v9635, %v9637
    %v9640 = vshrl.u32 %v9432, 16
    %v9642 = vrot.slane %v9640, 7
    %v9643 = vrot.slane %v9642, 1
    %v9645 = vshll.u32 %v9433, 16
    %v9647 = vsel %vm9605, %v9643, %v9645
    %v9648 = vshrl.u32 %v9433, 16
    %v9650 = vrot.slane %v9648, 7
    %v9651 = vrot.slane %v9650, 1
    %v9653 = vshll.u32 %v9590, 16
    %v9655 = vsel %vm9605, %v9651, %v9653
    %v9656 = vcombine.low %v9614, %v9622
    %v9657 = vcombine.low %v9630, %v9639
    %v9658 = vcombine.low %v9647, %v9655
    %v9660 = vunpack.c.l.s4 1966171168
    %v9661 = vunpack.c.0.s8 %v9660
    %v9662 = vlaneseq
    %v9663 = vshrl.u32 %v9662, 7
    %v9664 = vsub.s32 %v9661, %v9663
    %v9665 = vrot.slane %v9656, %v9664
    %v9667 = vunpack.c.l.s4 1966171168
    %v9668 = vunpack.c.0.s8 %v9667
    %v9669 = vlaneseq
    %v9670 = vshrl.u32 %v9669, 7
    %v9671 = vsub.s32 %v9668, %v9670
    %v9672 = vrot.slane %v9657, %v9671
    %v9674 = vunpack.c.l.s4 1966171168
    %v9675 = vunpack.c.0.s8 %v9674
    %v9676 = vlaneseq
    %v9677 = vshrl.u32 %v9676, 7
    %v9678 = vsub.s32 %v9675, %v9677
    %v9679 = vrot.slane %v9658, %v9678
    %v9680 = vcombine.low %v9665, %v9672
    %v9682 = vunpack.c.l.s4 1966171168
    %v9683 = vunpack.c.0.s8 %v9682
    %v9684 = vlaneseq
    %v9685 = vshrl.u32 %v9684, 7
    %v9686 = vsub.s32 %v9683, %v9685
    %v9687 = vrot.slane %v9680, %v9686
    %v9689 = vunpack.c.l.s4 1966171168
    %v9690 = vunpack.c.0.s8 %v9689
    %v9691 = vlaneseq
    %v9692 = vshrl.u32 %v9691, 7
    %v9693 = vsub.s32 %v9690, %v9692
    %v9694 = vrot.slane %v9679, %v9693
    %v9695 = vcombine.low %v9687, %v9694
    %9696 = vrot.lane.b32.xlu0 %v9695, 112
    %v9697 = vpop.permute.xlu0 %9696
    %v9700 = vunpack.c.l.b16 %v65
    %v9701 = vunpack.c.l.b16 %v66
    %v9702 = vpack.c.b16 %v9701, %v9700
    %v9705 = vsel %vm288, %v9697, 0
    %9707 = vmatprep.subr.bf16.mxu0 0
    %9708 = vmatpush1.bf16.msra.mxu0 0
    %9709 = vmatprep.subr.bf16.mxu0 0
    %9710 = vmatpush1.bf16.msra.mxu0 0
    %9711 = vmatprep.subr.bf16.mxu0 0
    %9712 = vmatpush1.bf16.msra.mxu0 0
    %9713 = vmatprep.subr.bf16.mxu0 0
    %9714 = vmatpush1.bf16.msra.mxu0 0
    %9715 = vmatprep.subr.bf16.mxu0 0
    %9716 = vmatpush1.bf16.msra.mxu0 0
    %9717 = vmatprep.subr.bf16.mxu0 0
    %9718 = vmatpush1.bf16.msra.mxu0 0
    %9719 = vmatprep.subr.bf16.mxu0 0
    %9720 = vmatpush1.bf16.msra.mxu0 0
    %9721 = vmatprep.subr.bf16.mxu0 0
    %9722 = vmatpush1.bf16.msra.mxu0 %v9702
    %9723 = vmatprep.subr.bf16.mxu0 0
    %9724 = vmatpush2.bf16.msra.mxu0 0
    %9725 = vmatprep.subr.bf16.mxu0 0
    %9726 = vmatpush2.bf16.msra.mxu0 0
    %9727 = vmatprep.subr.bf16.mxu0 0
    %9728 = vmatpush2.bf16.msra.mxu0 0
    %9729 = vmatprep.subr.bf16.mxu0 0
    %9730 = vmatpush2.bf16.msra.mxu0 0
    %9731 = vmatprep.subr.bf16.mxu0 0
    %9732 = vmatpush2.bf16.msra.mxu0 0
    %9733 = vmatprep.subr.bf16.mxu0 0
    %9734 = vmatpush2.bf16.msra.mxu0 0
    %9735 = vmatprep.subr.bf16.mxu0 0
    %9736 = vmatpush2.bf16.msra.mxu0 0
    %9737 = vmatprep.subr.bf16.mxu0 0
    %9738 = vmatpush2.bf16.msra.mxu0 0
    %9739 = vmatprep.mubr.bf16.mxu0 0
    %9740 = vmatmul.mubr.bf16.gmra.mxu0 %v9705
    %v9741 = vpop.f32.mrf.mxu0
    %v9742 = vadd.f32 0.0, %v9741
    %v9743 = vpop.f32.mrf.mxu0
    %v9744 = vpop.f32.mrf.mxu0
    %v9745 = vadd.f32 0.0, %v9744
    %v9746 = vpop.f32.mrf.mxu0
    %9747 = vdwg.mxu0
    %v9750 = vcombine.high %v9742, %v9742
    %v9752 = vunpack.c.l.s4 1983009808
    %v9753 = vunpack.c.0.s8 %v9752
    %v9754 = vlaneseq
    %v9755 = vshrl.u32 %v9754, 7
    %v9756 = vsub.s32 %v9753, %v9755
    %v9757 = vrot.slane %v9742, %v9756
    %v9759 = vunpack.c.l.s4 1983009808
    %v9760 = vunpack.c.0.s8 %v9759
    %v9761 = vlaneseq
    %v9762 = vshrl.u32 %v9761, 7
    %v9763 = vsub.s32 %v9760, %v9762
    %v9764 = vrot.slane %v9750, %v9763
    %v9765 = vcombine.high %v9757, %v9757
    %v9766 = vcombine.high %v9764, %v9764
    %v9768 = vunpack.c.l.s4 1983009808
    %v9769 = vunpack.c.0.s8 %v9768
    %v9770 = vlaneseq
    %v9771 = vshrl.u32 %v9770, 7
    %v9772 = vsub.s32 %v9769, %v9771
    %v9773 = vrot.slane %v9745, %v9772
    %v9774 = vcombine.high %v9773, %v9773
    %v9775 = vcombine.low %v9757, %v9765
    %v9777 = vunpack.c.l.s4 1983009808
    %v9778 = vunpack.c.0.s8 %v9777
    %v9779 = vlaneseq
    %v9780 = vshrl.u32 %v9779, 7
    %v9781 = vsub.s32 %v9778, %v9780
    %v9782 = vrot.slane %v9775, %v9781
    %v9784 = vunpack.c.l.s4 1983009808
    %v9785 = vunpack.c.0.s8 %v9784
    %v9786 = vlaneseq
    %v9787 = vshrl.u32 %v9786, 7
    %v9788 = vsub.s32 %v9785, %v9787
    %v9789 = vrot.slane %v9764, %v9788
    %v9790 = vcombine.low %v9782, %v9789
    %v9791 = vcombine.low %v9766, %v9773
    %v9793 = vunpack.c.l.s4 1983009808
    %v9794 = vunpack.c.0.s8 %v9793
    %v9795 = vlaneseq
    %v9796 = vshrl.u32 %v9795, 7
    %v9797 = vsub.s32 %v9794, %v9796
    %v9798 = vrot.slane %v9791, %v9797
    %v9800 = vunpack.c.l.s4 1983009808
    %v9801 = vunpack.c.0.s8 %v9800
    %v9802 = vlaneseq
    %v9803 = vshrl.u32 %v9802, 7
    %v9804 = vsub.s32 %v9801, %v9803
    %v9805 = vrot.slane %v9774, %v9804
    %v9806 = vcombine.low %v9798, %v9805
    %v9809 = vadd.f32 %v9587, %v9790
    %v9810 = vadd.f32 %v9588, %v9806
    %v9811 = vcombine.low %v9409, %v9410
    %v9812 = vcombine.low %v9589, %v9432
    %v9813 = vcombine.low %v9433, %v9590
    %v9815 = vunpack.c.l.s4 1966171168
    %v9816 = vunpack.c.0.s8 %v9815
    %v9817 = vlaneseq
    %v9818 = vshrl.u32 %v9817, 7
    %v9819 = vsub.s32 %v9816, %v9818
    %v9820 = vrot.slane %v9811, %v9819
    %v9822 = vunpack.c.l.s4 1966171168
    %v9823 = vunpack.c.0.s8 %v9822
    %v9824 = vlaneseq
    %v9825 = vshrl.u32 %v9824, 7
    %v9826 = vsub.s32 %v9823, %v9825
    %v9827 = vrot.slane %v9812, %v9826
    %v9829 = vunpack.c.l.s4 1966171168
    %v9830 = vunpack.c.0.s8 %v9829
    %v9831 = vlaneseq
    %v9832 = vshrl.u32 %v9831, 7
    %v9833 = vsub.s32 %v9830, %v9832
    %v9834 = vrot.slane %v9813, %v9833
    %v9835 = vcombine.low %v9820, %v9827
    %v9837 = vunpack.c.l.s4 1966171168
    %v9838 = vunpack.c.0.s8 %v9837
    %v9839 = vlaneseq
    %v9840 = vshrl.u32 %v9839, 7
    %v9841 = vsub.s32 %v9838, %v9840
    %v9842 = vrot.slane %v9835, %v9841
    %v9844 = vunpack.c.l.s4 1966171168
    %v9845 = vunpack.c.0.s8 %v9844
    %v9846 = vlaneseq
    %v9847 = vshrl.u32 %v9846, 7
    %v9848 = vsub.s32 %v9845, %v9847
    %v9849 = vrot.slane %v9834, %v9848
    %v9850 = vcombine.low %v9842, %v9849
    %9851 = vrot.lane.b32.xlu0 %v9850, 112
    %v9852 = vpop.permute.xlu0 %9851
    %v9855 = vunpack.c.l.b16 %v67
    %v9856 = vunpack.c.l.b16 %v68
    %v9857 = vpack.c.b16 %v9856, %v9855
    %v9860 = vsel %vm288, %v9852, 0
    %9862 = vmatprep.subr.bf16.mxu0 0
    %9863 = vmatpush1.bf16.msra.mxu0 0
    %9864 = vmatprep.subr.bf16.mxu0 0
    %9865 = vmatpush1.bf16.msra.mxu0 0
    %9866 = vmatprep.subr.bf16.mxu0 0
    %9867 = vmatpush1.bf16.msra.mxu0 0
    %9868 = vmatprep.subr.bf16.mxu0 0
    %9869 = vmatpush1.bf16.msra.mxu0 0
    %9870 = vmatprep.subr.bf16.mxu0 0
    %9871 = vmatpush1.bf16.msra.mxu0 0
    %9872 = vmatprep.subr.bf16.mxu0 0
    %9873 = vmatpush1.bf16.msra.mxu0 0
    %9874 = vmatprep.subr.bf16.mxu0 0
    %9875 = vmatpush1.bf16.msra.mxu0 0
    %9876 = vmatprep.subr.bf16.mxu0 0
    %9877 = vmatpush1.bf16.msra.mxu0 %v9857
    %9878 = vmatprep.subr.bf16.mxu0 0
    %9879 = vmatpush2.bf16.msra.mxu0 0
    %9880 = vmatprep.subr.bf16.mxu0 0
    %9881 = vmatpush2.bf16.msra.mxu0 0
    %9882 = vmatprep.subr.bf16.mxu0 0
    %9883 = vmatpush2.bf16.msra.mxu0 0
    %9884 = vmatprep.subr.bf16.mxu0 0
    %9885 = vmatpush2.bf16.msra.mxu0 0
    %9886 = vmatprep.subr.bf16.mxu0 0
    %9887 = vmatpush2.bf16.msra.mxu0 0
    %9888 = vmatprep.subr.bf16.mxu0 0
    %9889 = vmatpush2.bf16.msra.mxu0 0
    %9890 = vmatprep.subr.bf16.mxu0 0
    %9891 = vmatpush2.bf16.msra.mxu0 0
    %9892 = vmatprep.subr.bf16.mxu0 0
    %9893 = vmatpush2.bf16.msra.mxu0 0
    %9894 = vmatprep.mubr.bf16.mxu0 0
    %9895 = vmatmul.mubr.bf16.gmra.mxu0 %v9860
    %v9896 = vpop.f32.mrf.mxu0
    %v9897 = vadd.f32 0.0, %v9896
    %v9898 = vpop.f32.mrf.mxu0
    %v9899 = vpop.f32.mrf.mxu0
    %v9900 = vadd.f32 0.0, %v9899
    %v9901 = vpop.f32.mrf.mxu0
    %9902 = vdwg.mxu0
    %v9905 = vcombine.high %v9897, %v9897
    %v9907 = vunpack.c.l.s4 1983009808
    %v9908 = vunpack.c.0.s8 %v9907
    %v9909 = vlaneseq
    %v9910 = vshrl.u32 %v9909, 7
    %v9911 = vsub.s32 %v9908, %v9910
    %v9912 = vrot.slane %v9897, %v9911
    %v9914 = vunpack.c.l.s4 1983009808
    %v9915 = vunpack.c.0.s8 %v9914
    %v9916 = vlaneseq
    %v9917 = vshrl.u32 %v9916, 7
    %v9918 = vsub.s32 %v9915, %v9917
    %v9919 = vrot.slane %v9905, %v9918
    %v9920 = vcombine.high %v9912, %v9912
    %v9921 = vcombine.high %v9919, %v9919
    %v9923 = vunpack.c.l.s4 1983009808
    %v9924 = vunpack.c.0.s8 %v9923
    %v9925 = vlaneseq
    %v9926 = vshrl.u32 %v9925, 7
    %v9927 = vsub.s32 %v9924, %v9926
    %v9928 = vrot.slane %v9900, %v9927
    %v9929 = vcombine.high %v9928, %v9928
    %v9930 = vcombine.low %v9912, %v9920
    %v9932 = vunpack.c.l.s4 1983009808
    %v9933 = vunpack.c.0.s8 %v9932
    %v9934 = vlaneseq
    %v9935 = vshrl.u32 %v9934, 7
    %v9936 = vsub.s32 %v9933, %v9935
    %v9937 = vrot.slane %v9930, %v9936
    %v9939 = vunpack.c.l.s4 1983009808
    %v9940 = vunpack.c.0.s8 %v9939
    %v9941 = vlaneseq
    %v9942 = vshrl.u32 %v9941, 7
    %v9943 = vsub.s32 %v9940, %v9942
    %v9944 = vrot.slane %v9919, %v9943
    %v9945 = vcombine.low %v9937, %v9944
    %v9946 = vcombine.low %v9921, %v9928
    %v9948 = vunpack.c.l.s4 1983009808
    %v9949 = vunpack.c.0.s8 %v9948
    %v9950 = vlaneseq
    %v9951 = vshrl.u32 %v9950, 7
    %v9952 = vsub.s32 %v9949, %v9951
    %v9953 = vrot.slane %v9946, %v9952
    %v9955 = vunpack.c.l.s4 1983009808
    %v9956 = vunpack.c.0.s8 %v9955
    %v9957 = vlaneseq
    %v9958 = vshrl.u32 %v9957, 7
    %v9959 = vsub.s32 %v9956, %v9958
    %v9960 = vrot.slane %v9929, %v9959
    %v9961 = vcombine.low %v9953, %v9960
    %v9964 = vadd.f32 %v9809, %v9945
    %v9965 = vadd.f32 %v9810, %v9961
    %v9966 = vsub.f32 0.0, %v9964
    %v9967 = vsub.f32 0.0, %v9965
    %v9968 = vmul.f32 %v9966, 1.442695
    %v9969 = vpow.pop %v9968
    %v9970 = vmul.f32 %v9967, 1.442695
    %v9971 = vpow.pop %v9970
    %v9972 = vadd.f32 %v9969, 1.0
    %v9973 = vadd.f32 %v9971, 1.0
    %v9974 = vrcp.pop %v9972
    %v9975 = vmul.f32 1.0, %v9974
    %v9976 = vrcp.pop %v9973
    %v9977 = vmul.f32 1.0, %v9976
    %vm9978 = vcmask 37888
    %9979 = vst.msk [vmem:[%s5] sm:$0x3f] %vm9978, %v9975
    %9980 = vst.msk [vmem:[%s5 + $0x8] sm:$0x3f] %vm9978, %v9977
    %v9981 = vpack.c.bf16 %v4674, %v4674
    %v9982 = vpack.c.bf16 %v4675, %v4675
    %v9983 = vpack.c.bf16 %v4676, %v4676
    %v9984 = vpack.c.bf16 %v4677, %v4677
    %v9985 = vpack.c.bf16 %v4678, %v4678
    %v9986 = vpack.c.bf16 %v4679, %v4679
    %v9987 = vpack.c.bf16 %v4680, %v4680
    %v9988 = vpack.c.bf16 %v4681, %v4681
    %v9989 = vpack.c.bf16 %v4682, %v4682
    %v9990 = vpack.c.bf16 %v4683, %v4683
    %v9991 = vpack.c.bf16 %v4684, %v4684
    %v9992 = vpack.c.bf16 %v4685, %v4685
    %v9993 = vpack.c.bf16 %v4686, %v4686
    %v9994 = vpack.c.bf16 %v4687, %v4687
    %v9995 = vpack.c.bf16 %v4688, %v4688
    %v9996 = vpack.c.bf16 %v4689, %v4689
    %v9998 = vlaneseq
    %v9999 = vshrl.u32 %v9998, 7
    %v10000 = vsub.s32 0, %v9999
    %v10001 = vrot.slane %v78, %v10000
    %v10003 = vadd.f32 %v10001, 0.0
    %v10016 = vunpack.c.l.b16 %v9981
    %v10017 = vunpack.c.l.b16 %v9982
    %v10018 = vunpack.c.l.b16 %v9983
    %v10019 = vunpack.c.l.b16 %v9984
    %v10020 = vunpack.c.l.b16 %v9985
    %v10021 = vunpack.c.l.b16 %v9986
    %v10022 = vunpack.c.l.b16 %v9989
    %v10023 = vunpack.c.l.b16 %v9990
    %v10024 = vunpack.c.l.b16 %v9991
    %v10025 = vunpack.c.l.b16 %v9992
    %v10026 = vunpack.c.l.b16 %v9993
    %v10027 = vunpack.c.l.b16 %v9994
    %vm10028 = vcmask 1041409
    %v10029 = vsel %vm10028, %v10017, %v10016
    %vm10030 = vcmask 1042434
    %v10031 = vsel %vm10030, %v10018, %v10029
    %vm10032 = vcmask 1043459
    %v10033 = vsel %vm10032, %v10019, %v10031
    %vm10034 = vcmask 1044484
    %v10035 = vsel %vm10034, %v10020, %v10033
    %vm10036 = vcmask 1045509
    %v10037 = vsel %vm10036, %v10021, %v10035
    %vm10038 = vcmask 1046534
    %v10039 = vsel %vm10038, %v10022, %v10037
    %vm10040 = vcmask 1047559
    %v10041 = vsel %vm10040, %v10023, %v10039
    %v10042 = vsel %vm10028, %v10025, %v10024
    %v10043 = vsel %vm10030, %v10026, %v10042
    %v10044 = vsel %vm10032, %v10027, %v10043
    %v10045 = vpack.c.b16 %v10044, %v10041
    %v10048 = vunpack.c.l.b16 %v70
    %v10049 = vunpack.c.l.b16 %v71
    %v10050 = vpack.c.b16 %v10049, %v10048
    %v10053 = vsel %vm288, %v10045, 0
    %10055 = vmatprep.subr.bf16.mxu0 0
    %10056 = vmatpush1.bf16.msra.mxu0 0
    %10057 = vmatprep.subr.bf16.mxu0 0
    %10058 = vmatpush1.bf16.msra.mxu0 0
    %10059 = vmatprep.subr.bf16.mxu0 0
    %10060 = vmatpush1.bf16.msra.mxu0 0
    %10061 = vmatprep.subr.bf16.mxu0 0
    %10062 = vmatpush1.bf16.msra.mxu0 0
    %10063 = vmatprep.subr.bf16.mxu0 0
    %10064 = vmatpush1.bf16.msra.mxu0 0
    %10065 = vmatprep.subr.bf16.mxu0 0
    %10066 = vmatpush1.bf16.msra.mxu0 0
    %10067 = vmatprep.subr.bf16.mxu0 0
    %10068 = vmatpush1.bf16.msra.mxu0 0
    %10069 = vmatprep.subr.bf16.mxu0 0
    %10070 = vmatpush1.bf16.msra.mxu0 %v10050
    %10071 = vmatprep.subr.bf16.mxu0 0
    %10072 = vmatpush2.bf16.msra.mxu0 0
    %10073 = vmatprep.subr.bf16.mxu0 0
    %10074 = vmatpush2.bf16.msra.mxu0 0
    %10075 = vmatprep.subr.bf16.mxu0 0
    %10076 = vmatpush2.bf16.msra.mxu0 0
    %10077 = vmatprep.subr.bf16.mxu0 0
    %10078 = vmatpush2.bf16.msra.mxu0 0
    %10079 = vmatprep.subr.bf16.mxu0 0
    %10080 = vmatpush2.bf16.msra.mxu0 0
    %10081 = vmatprep.subr.bf16.mxu0 0
    %10082 = vmatpush2.bf16.msra.mxu0 0
    %10083 = vmatprep.subr.bf16.mxu0 0
    %10084 = vmatpush2.bf16.msra.mxu0 0
    %10085 = vmatprep.subr.bf16.mxu0 0
    %10086 = vmatpush2.bf16.msra.mxu0 0
    %10087 = vmatprep.mubr.bf16.mxu0 0
    %10088 = vmatmul.mubr.bf16.gmra.mxu0 %v10053
    %v10089 = vpop.f32.mrf.mxu0
    %v10090 = vadd.f32 0.0, %v10089
    %v10091 = vpop.f32.mrf.mxu0
    %v10092 = vpop.f32.mrf.mxu0
    %v10093 = vadd.f32 0.0, %v10092
    %v10094 = vpop.f32.mrf.mxu0
    %10095 = vdwg.mxu0
    %v10098 = vcombine.high %v10090, %v10090
    %v10100 = vunpack.c.l.s4 1983009808
    %v10101 = vunpack.c.0.s8 %v10100
    %v10102 = vlaneseq
    %v10103 = vshrl.u32 %v10102, 7
    %v10104 = vsub.s32 %v10101, %v10103
    %v10105 = vrot.slane %v10090, %v10104
    %v10107 = vunpack.c.l.s4 1983009808
    %v10108 = vunpack.c.0.s8 %v10107
    %v10109 = vlaneseq
    %v10110 = vshrl.u32 %v10109, 7
    %v10111 = vsub.s32 %v10108, %v10110
    %v10112 = vrot.slane %v10098, %v10111
    %v10113 = vcombine.high %v10105, %v10105
    %v10114 = vcombine.high %v10112, %v10112
    %v10116 = vunpack.c.l.s4 1983009808
    %v10117 = vunpack.c.0.s8 %v10116
    %v10118 = vlaneseq
    %v10119 = vshrl.u32 %v10118, 7
    %v10120 = vsub.s32 %v10117, %v10119
    %v10121 = vrot.slane %v10093, %v10120
    %v10122 = vcombine.high %v10121, %v10121
    %v10123 = vcombine.low %v10105, %v10113
    %v10125 = vunpack.c.l.s4 1983009808
    %v10126 = vunpack.c.0.s8 %v10125
    %v10127 = vlaneseq
    %v10128 = vshrl.u32 %v10127, 7
    %v10129 = vsub.s32 %v10126, %v10128
    %v10130 = vrot.slane %v10123, %v10129
    %v10132 = vunpack.c.l.s4 1983009808
    %v10133 = vunpack.c.0.s8 %v10132
    %v10134 = vlaneseq
    %v10135 = vshrl.u32 %v10134, 7
    %v10136 = vsub.s32 %v10133, %v10135
    %v10137 = vrot.slane %v10112, %v10136
    %v10138 = vcombine.low %v10130, %v10137
    %v10139 = vcombine.low %v10114, %v10121
    %v10141 = vunpack.c.l.s4 1983009808
    %v10142 = vunpack.c.0.s8 %v10141
    %v10143 = vlaneseq
    %v10144 = vshrl.u32 %v10143, 7
    %v10145 = vsub.s32 %v10142, %v10144
    %v10146 = vrot.slane %v10139, %v10145
    %v10148 = vunpack.c.l.s4 1983009808
    %v10149 = vunpack.c.0.s8 %v10148
    %v10150 = vlaneseq
    %v10151 = vshrl.u32 %v10150, 7
    %v10152 = vsub.s32 %v10149, %v10151
    %v10153 = vrot.slane %v10122, %v10152
    %v10154 = vcombine.low %v10146, %v10153
    %v10157 = vadd.f32 %v10003, %v10138
    %v10158 = vadd.f32 %v10003, %v10154
    %v10161 = vunpack.c.l.b16 %v9987
    %v10162 = vunpack.c.l.b16 %v9995
    %v10163 = vsel %vm10028, %v10018, %v10017
    %v10164 = vsel %vm10030, %v10019, %v10163
    %v10165 = vsel %vm10032, %v10020, %v10164
    %v10166 = vsel %vm10034, %v10021, %v10165
    %v10167 = vsel %vm10036, %v10161, %v10166
    %v10168 = vsel %vm10038, %v10023, %v10167
    %v10169 = vsel %vm10040, %v10024, %v10168
    %v10170 = vsel %vm10028, %v10026, %v10025
    %v10171 = vsel %vm10030, %v10027, %v10170
    %v10172 = vsel %vm10032, %v10162, %v10171
    %v10173 = vpack.c.b16 %v10172, %v10169
    %v10176 = vunpack.c.l.b16 %v72
    %v10177 = vunpack.c.l.b16 %v73
    %v10178 = vpack.c.b16 %v10177, %v10176
    %v10181 = vsel %vm288, %v10173, 0
    %10183 = vmatprep.subr.bf16.mxu0 0
    %10184 = vmatpush1.bf16.msra.mxu0 0
    %10185 = vmatprep.subr.bf16.mxu0 0
    %10186 = vmatpush1.bf16.msra.mxu0 0
    %10187 = vmatprep.subr.bf16.mxu0 0
    %10188 = vmatpush1.bf16.msra.mxu0 0
    %10189 = vmatprep.subr.bf16.mxu0 0
    %10190 = vmatpush1.bf16.msra.mxu0 0
    %10191 = vmatprep.subr.bf16.mxu0 0
    %10192 = vmatpush1.bf16.msra.mxu0 0
    %10193 = vmatprep.subr.bf16.mxu0 0
    %10194 = vmatpush1.bf16.msra.mxu0 0
    %10195 = vmatprep.subr.bf16.mxu0 0
    %10196 = vmatpush1.bf16.msra.mxu0 0
    %10197 = vmatprep.subr.bf16.mxu0 0
    %10198 = vmatpush1.bf16.msra.mxu0 %v10178
    %10199 = vmatprep.subr.bf16.mxu0 0
    %10200 = vmatpush2.bf16.msra.mxu0 0
    %10201 = vmatprep.subr.bf16.mxu0 0
    %10202 = vmatpush2.bf16.msra.mxu0 0
    %10203 = vmatprep.subr.bf16.mxu0 0
    %10204 = vmatpush2.bf16.msra.mxu0 0
    %10205 = vmatprep.subr.bf16.mxu0 0
    %10206 = vmatpush2.bf16.msra.mxu0 0
    %10207 = vmatprep.subr.bf16.mxu0 0
    %10208 = vmatpush2.bf16.msra.mxu0 0
    %10209 = vmatprep.subr.bf16.mxu0 0
    %10210 = vmatpush2.bf16.msra.mxu0 0
    %10211 = vmatprep.subr.bf16.mxu0 0
    %10212 = vmatpush2.bf16.msra.mxu0 0
    %10213 = vmatprep.subr.bf16.mxu0 0
    %10214 = vmatpush2.bf16.msra.mxu0 0
    %10215 = vmatprep.mubr.bf16.mxu0 0
    %10216 = vmatmul.mubr.bf16.gmra.mxu0 %v10181
    %v10217 = vpop.f32.mrf.mxu0
    %v10218 = vadd.f32 0.0, %v10217
    %v10219 = vpop.f32.mrf.mxu0
    %v10220 = vpop.f32.mrf.mxu0
    %v10221 = vadd.f32 0.0, %v10220
    %v10222 = vpop.f32.mrf.mxu0
    %10223 = vdwg.mxu0
    %v10226 = vcombine.high %v10218, %v10218
    %v10228 = vunpack.c.l.s4 1983009808
    %v10229 = vunpack.c.0.s8 %v10228
    %v10230 = vlaneseq
    %v10231 = vshrl.u32 %v10230, 7
    %v10232 = vsub.s32 %v10229, %v10231
    %v10233 = vrot.slane %v10218, %v10232
    %v10235 = vunpack.c.l.s4 1983009808
    %v10236 = vunpack.c.0.s8 %v10235
    %v10237 = vlaneseq
    %v10238 = vshrl.u32 %v10237, 7
    %v10239 = vsub.s32 %v10236, %v10238
    %v10240 = vrot.slane %v10226, %v10239
    %v10241 = vcombine.high %v10233, %v10233
    %v10242 = vcombine.high %v10240, %v10240
    %v10244 = vunpack.c.l.s4 1983009808
    %v10245 = vunpack.c.0.s8 %v10244
    %v10246 = vlaneseq
    %v10247 = vshrl.u32 %v10246, 7
    %v10248 = vsub.s32 %v10245, %v10247
    %v10249 = vrot.slane %v10221, %v10248
    %v10250 = vcombine.high %v10249, %v10249
    %v10251 = vcombine.low %v10233, %v10241
    %v10253 = vunpack.c.l.s4 1983009808
    %v10254 = vunpack.c.0.s8 %v10253
    %v10255 = vlaneseq
    %v10256 = vshrl.u32 %v10255, 7
    %v10257 = vsub.s32 %v10254, %v10256
    %v10258 = vrot.slane %v10251, %v10257
    %v10260 = vunpack.c.l.s4 1983009808
    %v10261 = vunpack.c.0.s8 %v10260
    %v10262 = vlaneseq
    %v10263 = vshrl.u32 %v10262, 7
    %v10264 = vsub.s32 %v10261, %v10263
    %v10265 = vrot.slane %v10240, %v10264
    %v10266 = vcombine.low %v10258, %v10265
    %v10267 = vcombine.low %v10242, %v10249
    %v10269 = vunpack.c.l.s4 1983009808
    %v10270 = vunpack.c.0.s8 %v10269
    %v10271 = vlaneseq
    %v10272 = vshrl.u32 %v10271, 7
    %v10273 = vsub.s32 %v10270, %v10272
    %v10274 = vrot.slane %v10267, %v10273
    %v10276 = vunpack.c.l.s4 1983009808
    %v10277 = vunpack.c.0.s8 %v10276
    %v10278 = vlaneseq
    %v10279 = vshrl.u32 %v10278, 7
    %v10280 = vsub.s32 %v10277, %v10279
    %v10281 = vrot.slane %v10250, %v10280
    %v10282 = vcombine.low %v10274, %v10281
    %v10285 = vadd.f32 %v10157, %v10266
    %v10286 = vadd.f32 %v10158, %v10282
    %v10289 = vunpack.c.l.b16 %v9988
    %v10290 = vunpack.c.l.b16 %v9996
    %v10291 = vsel %vm10028, %v10019, %v10018
    %v10292 = vsel %vm10030, %v10020, %v10291
    %v10293 = vsel %vm10032, %v10021, %v10292
    %v10294 = vsel %vm10034, %v10161, %v10293
    %v10295 = vsel %vm10036, %v10289, %v10294
    %v10296 = vsel %vm10038, %v10024, %v10295
    %v10297 = vsel %vm10040, %v10025, %v10296
    %v10298 = vsel %vm10028, %v10027, %v10026
    %v10299 = vsel %vm10030, %v10162, %v10298
    %v10300 = vsel %vm10032, %v10290, %v10299
    %v10301 = vpack.c.b16 %v10300, %v10297
    %v10304 = vunpack.c.l.b16 %v74
    %v10305 = vunpack.c.l.b16 %v75
    %v10306 = vpack.c.b16 %v10305, %v10304
    %v10309 = vsel %vm288, %v10301, 0
    %10311 = vmatprep.subr.bf16.mxu0 0
    %10312 = vmatpush1.bf16.msra.mxu0 0
    %10313 = vmatprep.subr.bf16.mxu0 0
    %10314 = vmatpush1.bf16.msra.mxu0 0
    %10315 = vmatprep.subr.bf16.mxu0 0
    %10316 = vmatpush1.bf16.msra.mxu0 0
    %10317 = vmatprep.subr.bf16.mxu0 0
    %10318 = vmatpush1.bf16.msra.mxu0 0
    %10319 = vmatprep.subr.bf16.mxu0 0
    %10320 = vmatpush1.bf16.msra.mxu0 0
    %10321 = vmatprep.subr.bf16.mxu0 0
    %10322 = vmatpush1.bf16.msra.mxu0 0
    %10323 = vmatprep.subr.bf16.mxu0 0
    %10324 = vmatpush1.bf16.msra.mxu0 0
    %10325 = vmatprep.subr.bf16.mxu0 0
    %10326 = vmatpush1.bf16.msra.mxu0 %v10306
    %10327 = vmatprep.subr.bf16.mxu0 0
    %10328 = vmatpush2.bf16.msra.mxu0 0
    %10329 = vmatprep.subr.bf16.mxu0 0
    %10330 = vmatpush2.bf16.msra.mxu0 0
    %10331 = vmatprep.subr.bf16.mxu0 0
    %10332 = vmatpush2.bf16.msra.mxu0 0
    %10333 = vmatprep.subr.bf16.mxu0 0
    %10334 = vmatpush2.bf16.msra.mxu0 0
    %10335 = vmatprep.subr.bf16.mxu0 0
    %10336 = vmatpush2.bf16.msra.mxu0 0
    %10337 = vmatprep.subr.bf16.mxu0 0
    %10338 = vmatpush2.bf16.msra.mxu0 0
    %10339 = vmatprep.subr.bf16.mxu0 0
    %10340 = vmatpush2.bf16.msra.mxu0 0
    %10341 = vmatprep.subr.bf16.mxu0 0
    %10342 = vmatpush2.bf16.msra.mxu0 0
    %10343 = vmatprep.mubr.bf16.mxu0 0
    %10344 = vmatmul.mubr.bf16.gmra.mxu0 %v10309
    %v10345 = vpop.f32.mrf.mxu0
    %v10346 = vadd.f32 0.0, %v10345
    %v10347 = vpop.f32.mrf.mxu0
    %v10348 = vpop.f32.mrf.mxu0
    %v10349 = vadd.f32 0.0, %v10348
    %v10350 = vpop.f32.mrf.mxu0
    %10351 = vdwg.mxu0
    %v10354 = vcombine.high %v10346, %v10346
    %v10356 = vunpack.c.l.s4 1983009808
    %v10357 = vunpack.c.0.s8 %v10356
    %v10358 = vlaneseq
    %v10359 = vshrl.u32 %v10358, 7
    %v10360 = vsub.s32 %v10357, %v10359
    %v10361 = vrot.slane %v10346, %v10360
    %v10363 = vunpack.c.l.s4 1983009808
    %v10364 = vunpack.c.0.s8 %v10363
    %v10365 = vlaneseq
    %v10366 = vshrl.u32 %v10365, 7
    %v10367 = vsub.s32 %v10364, %v10366
    %v10368 = vrot.slane %v10354, %v10367
    %v10369 = vcombine.high %v10361, %v10361
    %v10370 = vcombine.high %v10368, %v10368
    %v10372 = vunpack.c.l.s4 1983009808
    %v10373 = vunpack.c.0.s8 %v10372
    %v10374 = vlaneseq
    %v10375 = vshrl.u32 %v10374, 7
    %v10376 = vsub.s32 %v10373, %v10375
    %v10377 = vrot.slane %v10349, %v10376
    %v10378 = vcombine.high %v10377, %v10377
    %v10379 = vcombine.low %v10361, %v10369
    %v10381 = vunpack.c.l.s4 1983009808
    %v10382 = vunpack.c.0.s8 %v10381
    %v10383 = vlaneseq
    %v10384 = vshrl.u32 %v10383, 7
    %v10385 = vsub.s32 %v10382, %v10384
    %v10386 = vrot.slane %v10379, %v10385
    %v10388 = vunpack.c.l.s4 1983009808
    %v10389 = vunpack.c.0.s8 %v10388
    %v10390 = vlaneseq
    %v10391 = vshrl.u32 %v10390, 7
    %v10392 = vsub.s32 %v10389, %v10391
    %v10393 = vrot.slane %v10368, %v10392
    %v10394 = vcombine.low %v10386, %v10393
    %v10395 = vcombine.low %v10370, %v10377
    %v10397 = vunpack.c.l.s4 1983009808
    %v10398 = vunpack.c.0.s8 %v10397
    %v10399 = vlaneseq
    %v10400 = vshrl.u32 %v10399, 7
    %v10401 = vsub.s32 %v10398, %v10400
    %v10402 = vrot.slane %v10395, %v10401
    %v10404 = vunpack.c.l.s4 1983009808
    %v10405 = vunpack.c.0.s8 %v10404
    %v10406 = vlaneseq
    %v10407 = vshrl.u32 %v10406, 7
    %v10408 = vsub.s32 %v10405, %v10407
    %v10409 = vrot.slane %v10378, %v10408
    %v10410 = vcombine.low %v10402, %v10409
    %v10413 = vadd.f32 %v10285, %v10394
    %v10414 = vadd.f32 %v10286, %v10410
    %v10415 = vsub.f32 0.0, %v10413
    %v10416 = vsub.f32 0.0, %v10414
    %v10417 = vmul.f32 %v10415, 1.442695
    %v10418 = vpow.pop %v10417
    %v10419 = vmul.f32 %v10416, 1.442695
    %v10420 = vpow.pop %v10419
    %v10421 = vadd.f32 %v10418, 1.0
    %v10422 = vadd.f32 %v10420, 1.0
    %v10423 = vrcp.pop %v10421
    %v10424 = vmul.f32 1.0, %v10423
    %v10425 = vrcp.pop %v10422
    %v10426 = vmul.f32 1.0, %v10425
    %10427 = vst.msk [vmem:[%s6] sm:$0x3f] %vm9978, %v10424
    %10428 = vst.msk [vmem:[%s6 + $0x8] sm:$0x3f] %vm9978, %v10426
    %v10429 = vpack.c.bf16 %v9359, %v9359
    %v10430 = vpack.c.bf16 %v9360, %v9360
    %v10434 = vunpack.c.l.s4 1966171168
    %v10435 = vunpack.c.0.s8 %v10434
    %v10436 = vlaneseq
    %v10437 = vshrl.u32 %v10436, 7
    %v10438 = vsub.s32 %v10435, %v10437
    %v10439 = vrot.slane %v10429, %v10438
    %v10440 = vcombine.high %v10439, %v10439
    %v10442 = vunpack.c.l.s4 1966171168
    %v10443 = vunpack.c.0.s8 %v10442
    %v10444 = vlaneseq
    %v10445 = vshrl.u32 %v10444, 7
    %v10446 = vsub.s32 %v10443, %v10445
    %v10447 = vrot.slane %v10439, %v10446
    %v10449 = vunpack.c.l.s4 1966171168
    %v10450 = vunpack.c.0.s8 %v10449
    %v10451 = vlaneseq
    %v10452 = vshrl.u32 %v10451, 7
    %v10453 = vsub.s32 %v10450, %v10452
    %v10454 = vrot.slane %v10440, %v10453
    %v10455 = vcombine.high %v10447, %v10447
    %v10457 = vunpack.c.l.s4 1966171168
    %v10458 = vunpack.c.0.s8 %v10457
    %v10459 = vlaneseq
    %v10460 = vshrl.u32 %v10459, 7
    %v10461 = vsub.s32 %v10458, %v10460
    %v10462 = vrot.slane %v10430, %v10461
    %v10463 = vcombine.high %v10462, %v10462
    %v10465 = vunpack.c.l.s4 1966171168
    %v10466 = vunpack.c.0.s8 %v10465
    %v10467 = vlaneseq
    %v10468 = vshrl.u32 %v10467, 7
    %v10469 = vsub.s32 %v10466, %v10468
    %v10470 = vrot.slane %v10462, %v10469
    %v10472 = vunpack.c.l.s4 1966171168
    %v10473 = vunpack.c.0.s8 %v10472
    %v10474 = vlaneseq
    %v10475 = vshrl.u32 %v10474, 7
    %v10476 = vsub.s32 %v10473, %v10475
    %v10477 = vrot.slane %v10463, %v10476
    %v10478 = vcombine.high %v10470, %v10470
    %v10479 = vcombine.low %v10447, %v10454
    %v10480 = vcombine.low %v10455, %v10470
    %v10481 = vcombine.low %v10477, %v10478
    %v10483 = vunpack.c.l.s4 1966171168
    %v10484 = vunpack.c.0.s8 %v10483
    %v10485 = vlaneseq
    %v10486 = vshrl.u32 %v10485, 7
    %v10487 = vsub.s32 %v10484, %v10486
    %v10488 = vrot.slane %v10479, %v10487
    %v10490 = vunpack.c.l.s4 1966171168
    %v10491 = vunpack.c.0.s8 %v10490
    %v10492 = vlaneseq
    %v10493 = vshrl.u32 %v10492, 7
    %v10494 = vsub.s32 %v10491, %v10493
    %v10495 = vrot.slane %v10480, %v10494
    %v10497 = vunpack.c.l.s4 1966171168
    %v10498 = vunpack.c.0.s8 %v10497
    %v10499 = vlaneseq
    %v10500 = vshrl.u32 %v10499, 7
    %v10501 = vsub.s32 %v10498, %v10500
    %v10502 = vrot.slane %v10481, %v10501
    %v10503 = vcombine.low %v10488, %v10495
    %v10505 = vunpack.c.l.s4 1966171168
    %v10506 = vunpack.c.0.s8 %v10505
    %v10507 = vlaneseq
    %v10508 = vshrl.u32 %v10507, 7
    %v10509 = vsub.s32 %v10506, %v10508
    %v10510 = vrot.slane %v10503, %v10509
    %v10512 = vunpack.c.l.s4 1966171168
    %v10513 = vunpack.c.0.s8 %v10512
    %v10514 = vlaneseq
    %v10515 = vshrl.u32 %v10514, 7
    %v10516 = vsub.s32 %v10513, %v10515
    %v10517 = vrot.slane %v10502, %v10516
    %v10518 = vcombine.low %v10510, %v10517
    %10519 = vrot.lane.b32.xlu0 %v10518, 112
    %v10520 = vpop.permute.xlu0 %10519
    %v10522 = vsel %vm288, %v10520, 0
    %10524 = vmatprep.subr.bf16.mxu0 0
    %10525 = vmatpush1.bf16.msra.mxu0 0
    %10526 = vmatprep.subr.bf16.mxu0 0
    %10527 = vmatpush1.bf16.msra.mxu0 0
    %10528 = vmatprep.subr.bf16.mxu0 0
    %10529 = vmatpush1.bf16.msra.mxu0 0
    %10530 = vmatprep.subr.bf16.mxu0 0
    %10531 = vmatpush1.bf16.msra.mxu0 0
    %10532 = vmatprep.subr.bf16.mxu0 0
    %10533 = vmatpush1.bf16.msra.mxu0 0
    %10534 = vmatprep.subr.bf16.mxu0 0
    %10535 = vmatpush1.bf16.msra.mxu0 0
    %10536 = vmatprep.subr.bf16.mxu0 0
    %10537 = vmatpush1.bf16.msra.mxu0 0
    %10538 = vmatprep.subr.bf16.mxu0 0
    %10539 = vmatpush1.bf16.msra.mxu0 %v9480
    %10540 = vmatprep.subr.bf16.mxu0 0
    %10541 = vmatpush2.bf16.msra.mxu0 0
    %10542 = vmatprep.subr.bf16.mxu0 0
    %10543 = vmatpush2.bf16.msra.mxu0 0
    %10544 = vmatprep.subr.bf16.mxu0 0
    %10545 = vmatpush2.bf16.msra.mxu0 0
    %10546 = vmatprep.subr.bf16.mxu0 0
    %10547 = vmatpush2.bf16.msra.mxu0 0
    %10548 = vmatprep.subr.bf16.mxu0 0
    %10549 = vmatpush2.bf16.msra.mxu0 0
    %10550 = vmatprep.subr.bf16.mxu0 0
    %10551 = vmatpush2.bf16.msra.mxu0 0
    %10552 = vmatprep.subr.bf16.mxu0 0
    %10553 = vmatpush2.bf16.msra.mxu0 0
    %10554 = vmatprep.subr.bf16.mxu0 0
    %10555 = vmatpush2.bf16.msra.mxu0 0
    %10556 = vmatprep.mubr.bf16.mxu0 0
    %10557 = vmatmul.mubr.bf16.gmra.mxu0 %v10522
    %v10558 = vpop.f32.mrf.mxu0
    %v10559 = vadd.f32 0.0, %v10558
    %v10560 = vpop.f32.mrf.mxu0
    %v10561 = vpop.f32.mrf.mxu0
    %v10562 = vadd.f32 0.0, %v10561
    %v10563 = vpop.f32.mrf.mxu0
    %10564 = vdwg.mxu0
    %v10567 = vcombine.high %v10559, %v10559
    %v10569 = vunpack.c.l.s4 1983009808
    %v10570 = vunpack.c.0.s8 %v10569
    %v10571 = vlaneseq
    %v10572 = vshrl.u32 %v10571, 7
    %v10573 = vsub.s32 %v10570, %v10572
    %v10574 = vrot.slane %v10559, %v10573
    %v10576 = vunpack.c.l.s4 1983009808
    %v10577 = vunpack.c.0.s8 %v10576
    %v10578 = vlaneseq
    %v10579 = vshrl.u32 %v10578, 7
    %v10580 = vsub.s32 %v10577, %v10579
    %v10581 = vrot.slane %v10567, %v10580
    %v10582 = vcombine.high %v10574, %v10574
    %v10583 = vcombine.high %v10581, %v10581
    %v10585 = vunpack.c.l.s4 1983009808
    %v10586 = vunpack.c.0.s8 %v10585
    %v10587 = vlaneseq
    %v10588 = vshrl.u32 %v10587, 7
    %v10589 = vsub.s32 %v10586, %v10588
    %v10590 = vrot.slane %v10562, %v10589
    %v10591 = vcombine.high %v10590, %v10590
    %v10592 = vcombine.low %v10574, %v10582
    %v10594 = vunpack.c.l.s4 1983009808
    %v10595 = vunpack.c.0.s8 %v10594
    %v10596 = vlaneseq
    %v10597 = vshrl.u32 %v10596, 7
    %v10598 = vsub.s32 %v10595, %v10597
    %v10599 = vrot.slane %v10592, %v10598
    %v10601 = vunpack.c.l.s4 1983009808
    %v10602 = vunpack.c.0.s8 %v10601
    %v10603 = vlaneseq
    %v10604 = vshrl.u32 %v10603, 7
    %v10605 = vsub.s32 %v10602, %v10604
    %v10606 = vrot.slane %v10581, %v10605
    %v10607 = vcombine.low %v10599, %v10606
    %v10608 = vcombine.low %v10583, %v10590
    %v10610 = vunpack.c.l.s4 1983009808
    %v10611 = vunpack.c.0.s8 %v10610
    %v10612 = vlaneseq
    %v10613 = vshrl.u32 %v10612, 7
    %v10614 = vsub.s32 %v10611, %v10613
    %v10615 = vrot.slane %v10608, %v10614
    %v10617 = vunpack.c.l.s4 1983009808
    %v10618 = vunpack.c.0.s8 %v10617
    %v10619 = vlaneseq
    %v10620 = vshrl.u32 %v10619, 7
    %v10621 = vsub.s32 %v10618, %v10620
    %v10622 = vrot.slane %v10591, %v10621
    %v10623 = vcombine.low %v10615, %v10622
    %v10626 = vadd.f32 %v9385, %v10607
    %v10627 = vadd.f32 %v9385, %v10623
    %v10628 = vcombine.high %v10454, %v10454
    %v10629 = vcombine.high %v10477, %v10477
    %v10631 = vshrl.u32 %v10447, 16
    %v10633 = vrot.slane %v10631, 7
    %v10634 = vrot.slane %v10633, 1
    %v10636 = vshll.u32 %v10454, 16
    %v10638 = vsel %vm9605, %v10634, %v10636
    %v10639 = vshrl.u32 %v10454, 16
    %v10641 = vrot.slane %v10639, 7
    %v10642 = vrot.slane %v10641, 1
    %v10644 = vshll.u32 %v10455, 16
    %v10646 = vsel %vm9605, %v10642, %v10644
    %v10647 = vshrl.u32 %v10455, 16
    %v10649 = vrot.slane %v10647, 7
    %v10650 = vrot.slane %v10649, 1
    %v10652 = vshll.u32 %v10628, 16
    %v10654 = vsel %vm9605, %v10650, %v10652
    %v10656 = vshrl.u32 %v10470, 16
    %v10658 = vrot.slane %v10656, 7
    %v10659 = vrot.slane %v10658, 1
    %v10661 = vshll.u32 %v10477, 16
    %v10663 = vsel %vm9605, %v10659, %v10661
    %v10664 = vshrl.u32 %v10477, 16
    %v10666 = vrot.slane %v10664, 7
    %v10667 = vrot.slane %v10666, 1
    %v10669 = vshll.u32 %v10478, 16
    %v10671 = vsel %vm9605, %v10667, %v10669
    %v10672 = vshrl.u32 %v10478, 16
    %v10674 = vrot.slane %v10672, 7
    %v10675 = vrot.slane %v10674, 1
    %v10677 = vshll.u32 %v10629, 16
    %v10679 = vsel %vm9605, %v10675, %v10677
    %v10680 = vcombine.low %v10638, %v10646
    %v10681 = vcombine.low %v10654, %v10663
    %v10682 = vcombine.low %v10671, %v10679
    %v10684 = vunpack.c.l.s4 1966171168
    %v10685 = vunpack.c.0.s8 %v10684
    %v10686 = vlaneseq
    %v10687 = vshrl.u32 %v10686, 7
    %v10688 = vsub.s32 %v10685, %v10687
    %v10689 = vrot.slane %v10680, %v10688
    %v10691 = vunpack.c.l.s4 1966171168
    %v10692 = vunpack.c.0.s8 %v10691
    %v10693 = vlaneseq
    %v10694 = vshrl.u32 %v10693, 7
    %v10695 = vsub.s32 %v10692, %v10694
    %v10696 = vrot.slane %v10681, %v10695
    %v10698 = vunpack.c.l.s4 1966171168
    %v10699 = vunpack.c.0.s8 %v10698
    %v10700 = vlaneseq
    %v10701 = vshrl.u32 %v10700, 7
    %v10702 = vsub.s32 %v10699, %v10701
    %v10703 = vrot.slane %v10682, %v10702
    %v10704 = vcombine.low %v10689, %v10696
    %v10706 = vunpack.c.l.s4 1966171168
    %v10707 = vunpack.c.0.s8 %v10706
    %v10708 = vlaneseq
    %v10709 = vshrl.u32 %v10708, 7
    %v10710 = vsub.s32 %v10707, %v10709
    %v10711 = vrot.slane %v10704, %v10710
    %v10713 = vunpack.c.l.s4 1966171168
    %v10714 = vunpack.c.0.s8 %v10713
    %v10715 = vlaneseq
    %v10716 = vshrl.u32 %v10715, 7
    %v10717 = vsub.s32 %v10714, %v10716
    %v10718 = vrot.slane %v10703, %v10717
    %v10719 = vcombine.low %v10711, %v10718
    %10720 = vrot.lane.b32.xlu0 %v10719, 112
    %v10721 = vpop.permute.xlu0 %10720
    %v10723 = vsel %vm288, %v10721, 0
    %10725 = vmatprep.subr.bf16.mxu0 0
    %10726 = vmatpush1.bf16.msra.mxu0 0
    %10727 = vmatprep.subr.bf16.mxu0 0
    %10728 = vmatpush1.bf16.msra.mxu0 0
    %10729 = vmatprep.subr.bf16.mxu0 0
    %10730 = vmatpush1.bf16.msra.mxu0 0
    %10731 = vmatprep.subr.bf16.mxu0 0
    %10732 = vmatpush1.bf16.msra.mxu0 0
    %10733 = vmatprep.subr.bf16.mxu0 0
    %10734 = vmatpush1.bf16.msra.mxu0 0
    %10735 = vmatprep.subr.bf16.mxu0 0
    %10736 = vmatpush1.bf16.msra.mxu0 0
    %10737 = vmatprep.subr.bf16.mxu0 0
    %10738 = vmatpush1.bf16.msra.mxu0 0
    %10739 = vmatprep.subr.bf16.mxu0 0
    %10740 = vmatpush1.bf16.msra.mxu0 %v9702
    %10741 = vmatprep.subr.bf16.mxu0 0
    %10742 = vmatpush2.bf16.msra.mxu0 0
    %10743 = vmatprep.subr.bf16.mxu0 0
    %10744 = vmatpush2.bf16.msra.mxu0 0
    %10745 = vmatprep.subr.bf16.mxu0 0
    %10746 = vmatpush2.bf16.msra.mxu0 0
    %10747 = vmatprep.subr.bf16.mxu0 0
    %10748 = vmatpush2.bf16.msra.mxu0 0
    %10749 = vmatprep.subr.bf16.mxu0 0
    %10750 = vmatpush2.bf16.msra.mxu0 0
    %10751 = vmatprep.subr.bf16.mxu0 0
    %10752 = vmatpush2.bf16.msra.mxu0 0
    %10753 = vmatprep.subr.bf16.mxu0 0
    %10754 = vmatpush2.bf16.msra.mxu0 0
    %10755 = vmatprep.subr.bf16.mxu0 0
    %10756 = vmatpush2.bf16.msra.mxu0 0
    %10757 = vmatprep.mubr.bf16.mxu0 0
    %10758 = vmatmul.mubr.bf16.gmra.mxu0 %v10723
    %v10759 = vpop.f32.mrf.mxu0
    %v10760 = vadd.f32 0.0, %v10759
    %v10761 = vpop.f32.mrf.mxu0
    %v10762 = vpop.f32.mrf.mxu0
    %v10763 = vadd.f32 0.0, %v10762
    %v10764 = vpop.f32.mrf.mxu0
    %10765 = vdwg.mxu0
    %v10768 = vcombine.high %v10760, %v10760
    %v10770 = vunpack.c.l.s4 1983009808
    %v10771 = vunpack.c.0.s8 %v10770
    %v10772 = vlaneseq
    %v10773 = vshrl.u32 %v10772, 7
    %v10774 = vsub.s32 %v10771, %v10773
    %v10775 = vrot.slane %v10760, %v10774
    %v10777 = vunpack.c.l.s4 1983009808
    %v10778 = vunpack.c.0.s8 %v10777
    %v10779 = vlaneseq
    %v10780 = vshrl.u32 %v10779, 7
    %v10781 = vsub.s32 %v10778, %v10780
    %v10782 = vrot.slane %v10768, %v10781
    %v10783 = vcombine.high %v10775, %v10775
    %v10784 = vcombine.high %v10782, %v10782
    %v10786 = vunpack.c.l.s4 1983009808
    %v10787 = vunpack.c.0.s8 %v10786
    %v10788 = vlaneseq
    %v10789 = vshrl.u32 %v10788, 7
    %v10790 = vsub.s32 %v10787, %v10789
    %v10791 = vrot.slane %v10763, %v10790
    %v10792 = vcombine.high %v10791, %v10791
    %v10793 = vcombine.low %v10775, %v10783
    %v10795 = vunpack.c.l.s4 1983009808
    %v10796 = vunpack.c.0.s8 %v10795
    %v10797 = vlaneseq
    %v10798 = vshrl.u32 %v10797, 7
    %v10799 = vsub.s32 %v10796, %v10798
    %v10800 = vrot.slane %v10793, %v10799
    %v10802 = vunpack.c.l.s4 1983009808
    %v10803 = vunpack.c.0.s8 %v10802
    %v10804 = vlaneseq
    %v10805 = vshrl.u32 %v10804, 7
    %v10806 = vsub.s32 %v10803, %v10805
    %v10807 = vrot.slane %v10782, %v10806
    %v10808 = vcombine.low %v10800, %v10807
    %v10809 = vcombine.low %v10784, %v10791
    %v10811 = vunpack.c.l.s4 1983009808
    %v10812 = vunpack.c.0.s8 %v10811
    %v10813 = vlaneseq
    %v10814 = vshrl.u32 %v10813, 7
    %v10815 = vsub.s32 %v10812, %v10814
    %v10816 = vrot.slane %v10809, %v10815
    %v10818 = vunpack.c.l.s4 1983009808
    %v10819 = vunpack.c.0.s8 %v10818
    %v10820 = vlaneseq
    %v10821 = vshrl.u32 %v10820, 7
    %v10822 = vsub.s32 %v10819, %v10821
    %v10823 = vrot.slane %v10792, %v10822
    %v10824 = vcombine.low %v10816, %v10823
    %v10827 = vadd.f32 %v10626, %v10808
    %v10828 = vadd.f32 %v10627, %v10824
    %v10829 = vcombine.low %v10454, %v10455
    %v10830 = vcombine.low %v10628, %v10477
    %v10831 = vcombine.low %v10478, %v10629
    %v10833 = vunpack.c.l.s4 1966171168
    %v10834 = vunpack.c.0.s8 %v10833
    %v10835 = vlaneseq
    %v10836 = vshrl.u32 %v10835, 7
    %v10837 = vsub.s32 %v10834, %v10836
    %v10838 = vrot.slane %v10829, %v10837
    %v10840 = vunpack.c.l.s4 1966171168
    %v10841 = vunpack.c.0.s8 %v10840
    %v10842 = vlaneseq
    %v10843 = vshrl.u32 %v10842, 7
    %v10844 = vsub.s32 %v10841, %v10843
    %v10845 = vrot.slane %v10830, %v10844
    %v10847 = vunpack.c.l.s4 1966171168
    %v10848 = vunpack.c.0.s8 %v10847
    %v10849 = vlaneseq
    %v10850 = vshrl.u32 %v10849, 7
    %v10851 = vsub.s32 %v10848, %v10850
    %v10852 = vrot.slane %v10831, %v10851
    %v10853 = vcombine.low %v10838, %v10845
    %v10855 = vunpack.c.l.s4 1966171168
    %v10856 = vunpack.c.0.s8 %v10855
    %v10857 = vlaneseq
    %v10858 = vshrl.u32 %v10857, 7
    %v10859 = vsub.s32 %v10856, %v10858
    %v10860 = vrot.slane %v10853, %v10859
    %v10862 = vunpack.c.l.s4 1966171168
    %v10863 = vunpack.c.0.s8 %v10862
    %v10864 = vlaneseq
    %v10865 = vshrl.u32 %v10864, 7
    %v10866 = vsub.s32 %v10863, %v10865
    %v10867 = vrot.slane %v10852, %v10866
    %v10868 = vcombine.low %v10860, %v10867
    %10869 = vrot.lane.b32.xlu0 %v10868, 112
    %v10870 = vpop.permute.xlu0 %10869
    %v10872 = vsel %vm288, %v10870, 0
    %10874 = vmatprep.subr.bf16.mxu0 0
    %10875 = vmatpush1.bf16.msra.mxu0 0
    %10876 = vmatprep.subr.bf16.mxu0 0
    %10877 = vmatpush1.bf16.msra.mxu0 0
    %10878 = vmatprep.subr.bf16.mxu0 0
    %10879 = vmatpush1.bf16.msra.mxu0 0
    %10880 = vmatprep.subr.bf16.mxu0 0
    %10881 = vmatpush1.bf16.msra.mxu0 0
    %10882 = vmatprep.subr.bf16.mxu0 0
    %10883 = vmatpush1.bf16.msra.mxu0 0
    %10884 = vmatprep.subr.bf16.mxu0 0
    %10885 = vmatpush1.bf16.msra.mxu0 0
    %10886 = vmatprep.subr.bf16.mxu0 0
    %10887 = vmatpush1.bf16.msra.mxu0 0
    %10888 = vmatprep.subr.bf16.mxu0 0
    %10889 = vmatpush1.bf16.msra.mxu0 %v9857
    %10890 = vmatprep.subr.bf16.mxu0 0
    %10891 = vmatpush2.bf16.msra.mxu0 0
    %10892 = vmatprep.subr.bf16.mxu0 0
    %10893 = vmatpush2.bf16.msra.mxu0 0
    %10894 = vmatprep.subr.bf16.mxu0 0
    %10895 = vmatpush2.bf16.msra.mxu0 0
    %10896 = vmatprep.subr.bf16.mxu0 0
    %10897 = vmatpush2.bf16.msra.mxu0 0
    %10898 = vmatprep.subr.bf16.mxu0 0
    %10899 = vmatpush2.bf16.msra.mxu0 0
    %10900 = vmatprep.subr.bf16.mxu0 0
    %10901 = vmatpush2.bf16.msra.mxu0 0
    %10902 = vmatprep.subr.bf16.mxu0 0
    %10903 = vmatpush2.bf16.msra.mxu0 0
    %10904 = vmatprep.subr.bf16.mxu0 0
    %10905 = vmatpush2.bf16.msra.mxu0 0
    %10906 = vmatprep.mubr.bf16.mxu0 0
    %10907 = vmatmul.mubr.bf16.gmra.mxu0 %v10872
    %v10908 = vpop.f32.mrf.mxu0
    %v10909 = vadd.f32 0.0, %v10908
    %v10910 = vpop.f32.mrf.mxu0
    %v10911 = vpop.f32.mrf.mxu0
    %v10912 = vadd.f32 0.0, %v10911
    %v10913 = vpop.f32.mrf.mxu0
    %10914 = vdwg.mxu0
    %v10917 = vcombine.high %v10909, %v10909
    %v10919 = vunpack.c.l.s4 1983009808
    %v10920 = vunpack.c.0.s8 %v10919
    %v10921 = vlaneseq
    %v10922 = vshrl.u32 %v10921, 7
    %v10923 = vsub.s32 %v10920, %v10922
    %v10924 = vrot.slane %v10909, %v10923
    %v10926 = vunpack.c.l.s4 1983009808
    %v10927 = vunpack.c.0.s8 %v10926
    %v10928 = vlaneseq
    %v10929 = vshrl.u32 %v10928, 7
    %v10930 = vsub.s32 %v10927, %v10929
    %v10931 = vrot.slane %v10917, %v10930
    %v10932 = vcombine.high %v10924, %v10924
    %v10933 = vcombine.high %v10931, %v10931
    %v10935 = vunpack.c.l.s4 1983009808
    %v10936 = vunpack.c.0.s8 %v10935
    %v10937 = vlaneseq
    %v10938 = vshrl.u32 %v10937, 7
    %v10939 = vsub.s32 %v10936, %v10938
    %v10940 = vrot.slane %v10912, %v10939
    %v10941 = vcombine.high %v10940, %v10940
    %v10942 = vcombine.low %v10924, %v10932
    %v10944 = vunpack.c.l.s4 1983009808
    %v10945 = vunpack.c.0.s8 %v10944
    %v10946 = vlaneseq
    %v10947 = vshrl.u32 %v10946, 7
    %v10948 = vsub.s32 %v10945, %v10947
    %v10949 = vrot.slane %v10942, %v10948
    %v10951 = vunpack.c.l.s4 1983009808
    %v10952 = vunpack.c.0.s8 %v10951
    %v10953 = vlaneseq
    %v10954 = vshrl.u32 %v10953, 7
    %v10955 = vsub.s32 %v10952, %v10954
    %v10956 = vrot.slane %v10931, %v10955
    %v10957 = vcombine.low %v10949, %v10956
    %v10958 = vcombine.low %v10933, %v10940
    %v10960 = vunpack.c.l.s4 1983009808
    %v10961 = vunpack.c.0.s8 %v10960
    %v10962 = vlaneseq
    %v10963 = vshrl.u32 %v10962, 7
    %v10964 = vsub.s32 %v10961, %v10963
    %v10965 = vrot.slane %v10958, %v10964
    %v10967 = vunpack.c.l.s4 1983009808
    %v10968 = vunpack.c.0.s8 %v10967
    %v10969 = vlaneseq
    %v10970 = vshrl.u32 %v10969, 7
    %v10971 = vsub.s32 %v10968, %v10970
    %v10972 = vrot.slane %v10941, %v10971
    %v10973 = vcombine.low %v10965, %v10972
    %v10976 = vadd.f32 %v10827, %v10957
    %v10977 = vadd.f32 %v10828, %v10973
    %v10978 = vsub.f32 0.0, %v10976
    %v10979 = vsub.f32 0.0, %v10977
    %v10980 = vmul.f32 %v10978, 1.442695
    %v10981 = vpow.pop %v10980
    %v10982 = vmul.f32 %v10979, 1.442695
    %v10983 = vpow.pop %v10982
    %v10984 = vadd.f32 %v10981, 1.0
    %v10985 = vadd.f32 %v10983, 1.0
    %v10986 = vrcp.pop %v10984
    %v10987 = vmul.f32 1.0, %v10986
    %v10988 = vrcp.pop %v10985
    %v10989 = vmul.f32 1.0, %v10988
    %10990 = vst.msk [vmem:[%s7] sm:$0x3f] %vm9978, %v10987
    %10991 = vst.msk [vmem:[%s7 + $0x8] sm:$0x3f] %vm9978, %v10989
    %v10992 = vpack.c.bf16 %v9313, %v9313
    %v10993 = vpack.c.bf16 %v9314, %v9314
    %v10994 = vpack.c.bf16 %v9315, %v9315
    %v10995 = vpack.c.bf16 %v9316, %v9316
    %v10996 = vpack.c.bf16 %v9317, %v9317
    %v10997 = vpack.c.bf16 %v9318, %v9318
    %v10998 = vpack.c.bf16 %v9319, %v9319
    %v10999 = vpack.c.bf16 %v9320, %v9320
    %v11000 = vpack.c.bf16 %v9321, %v9321
    %v11001 = vpack.c.bf16 %v9322, %v9322
    %v11002 = vpack.c.bf16 %v9323, %v9323
    %v11003 = vpack.c.bf16 %v9324, %v9324
    %v11004 = vpack.c.bf16 %v9325, %v9325
    %v11005 = vpack.c.bf16 %v9326, %v9326
    %v11006 = vpack.c.bf16 %v9327, %v9327
    %v11007 = vpack.c.bf16 %v9328, %v9328
    %v11020 = vunpack.c.l.b16 %v10992
    %v11021 = vunpack.c.l.b16 %v10993
    %v11022 = vunpack.c.l.b16 %v10994
    %v11023 = vunpack.c.l.b16 %v10995
    %v11024 = vunpack.c.l.b16 %v10996
    %v11025 = vunpack.c.l.b16 %v10997
    %v11026 = vunpack.c.l.b16 %v11000
    %v11027 = vunpack.c.l.b16 %v11001
    %v11028 = vunpack.c.l.b16 %v11002
    %v11029 = vunpack.c.l.b16 %v11003
    %v11030 = vunpack.c.l.b16 %v11004
    %v11031 = vunpack.c.l.b16 %v11005
    %v11032 = vsel %vm10028, %v11021, %v11020
    %v11033 = vsel %vm10030, %v11022, %v11032
    %v11034 = vsel %vm10032, %v11023, %v11033
    %v11035 = vsel %vm10034, %v11024, %v11034
    %v11036 = vsel %vm10036, %v11025, %v11035
    %v11037 = vsel %vm10038, %v11026, %v11036
    %v11038 = vsel %vm10040, %v11027, %v11037
    %v11039 = vsel %vm10028, %v11029, %v11028
    %v11040 = vsel %vm10030, %v11030, %v11039
    %v11041 = vsel %vm10032, %v11031, %v11040
    %v11042 = vpack.c.b16 %v11041, %v11038
    %v11044 = vsel %vm288, %v11042, 0
    %11046 = vmatprep.subr.bf16.mxu0 0
    %11047 = vmatpush1.bf16.msra.mxu0 0
    %11048 = vmatprep.subr.bf16.mxu0 0
    %11049 = vmatpush1.bf16.msra.mxu0 0
    %11050 = vmatprep.subr.bf16.mxu0 0
    %11051 = vmatpush1.bf16.msra.mxu0 0
    %11052 = vmatprep.subr.bf16.mxu0 0
    %11053 = vmatpush1.bf16.msra.mxu0 0
    %11054 = vmatprep.subr.bf16.mxu0 0
    %11055 = vmatpush1.bf16.msra.mxu0 0
    %11056 = vmatprep.subr.bf16.mxu0 0
    %11057 = vmatpush1.bf16.msra.mxu0 0
    %11058 = vmatprep.subr.bf16.mxu0 0
    %11059 = vmatpush1.bf16.msra.mxu0 0
    %11060 = vmatprep.subr.bf16.mxu0 0
    %11061 = vmatpush1.bf16.msra.mxu0 %v10050
    %11062 = vmatprep.subr.bf16.mxu0 0
    %11063 = vmatpush2.bf16.msra.mxu0 0
    %11064 = vmatprep.subr.bf16.mxu0 0
    %11065 = vmatpush2.bf16.msra.mxu0 0
    %11066 = vmatprep.subr.bf16.mxu0 0
    %11067 = vmatpush2.bf16.msra.mxu0 0
    %11068 = vmatprep.subr.bf16.mxu0 0
    %11069 = vmatpush2.bf16.msra.mxu0 0
    %11070 = vmatprep.subr.bf16.mxu0 0
    %11071 = vmatpush2.bf16.msra.mxu0 0
    %11072 = vmatprep.subr.bf16.mxu0 0
    %11073 = vmatpush2.bf16.msra.mxu0 0
    %11074 = vmatprep.subr.bf16.mxu0 0
    %11075 = vmatpush2.bf16.msra.mxu0 0
    %11076 = vmatprep.subr.bf16.mxu0 0
    %11077 = vmatpush2.bf16.msra.mxu0 0
    %11078 = vmatprep.mubr.bf16.mxu0 0
    %11079 = vmatmul.mubr.bf16.gmra.mxu0 %v11044
    %v11080 = vpop.f32.mrf.mxu0
    %v11081 = vadd.f32 0.0, %v11080
    %v11082 = vpop.f32.mrf.mxu0
    %v11083 = vpop.f32.mrf.mxu0
    %v11084 = vadd.f32 0.0, %v11083
    %v11085 = vpop.f32.mrf.mxu0
    %11086 = vdwg.mxu0
    %v11089 = vcombine.high %v11081, %v11081
    %v11091 = vunpack.c.l.s4 1983009808
    %v11092 = vunpack.c.0.s8 %v11091
    %v11093 = vlaneseq
    %v11094 = vshrl.u32 %v11093, 7
    %v11095 = vsub.s32 %v11092, %v11094
    %v11096 = vrot.slane %v11081, %v11095
    %v11098 = vunpack.c.l.s4 1983009808
    %v11099 = vunpack.c.0.s8 %v11098
    %v11100 = vlaneseq
    %v11101 = vshrl.u32 %v11100, 7
    %v11102 = vsub.s32 %v11099, %v11101
    %v11103 = vrot.slane %v11089, %v11102
    %v11104 = vcombine.high %v11096, %v11096
    %v11105 = vcombine.high %v11103, %v11103
    %v11107 = vunpack.c.l.s4 1983009808
    %v11108 = vunpack.c.0.s8 %v11107
    %v11109 = vlaneseq
    %v11110 = vshrl.u32 %v11109, 7
    %v11111 = vsub.s32 %v11108, %v11110
    %v11112 = vrot.slane %v11084, %v11111
    %v11113 = vcombine.high %v11112, %v11112
    %v11114 = vcombine.low %v11096, %v11104
    %v11116 = vunpack.c.l.s4 1983009808
    %v11117 = vunpack.c.0.s8 %v11116
    %v11118 = vlaneseq
    %v11119 = vshrl.u32 %v11118, 7
    %v11120 = vsub.s32 %v11117, %v11119
    %v11121 = vrot.slane %v11114, %v11120
    %v11123 = vunpack.c.l.s4 1983009808
    %v11124 = vunpack.c.0.s8 %v11123
    %v11125 = vlaneseq
    %v11126 = vshrl.u32 %v11125, 7
    %v11127 = vsub.s32 %v11124, %v11126
    %v11128 = vrot.slane %v11103, %v11127
    %v11129 = vcombine.low %v11121, %v11128
    %v11130 = vcombine.low %v11105, %v11112
    %v11132 = vunpack.c.l.s4 1983009808
    %v11133 = vunpack.c.0.s8 %v11132
    %v11134 = vlaneseq
    %v11135 = vshrl.u32 %v11134, 7
    %v11136 = vsub.s32 %v11133, %v11135
    %v11137 = vrot.slane %v11130, %v11136
    %v11139 = vunpack.c.l.s4 1983009808
    %v11140 = vunpack.c.0.s8 %v11139
    %v11141 = vlaneseq
    %v11142 = vshrl.u32 %v11141, 7
    %v11143 = vsub.s32 %v11140, %v11142
    %v11144 = vrot.slane %v11113, %v11143
    %v11145 = vcombine.low %v11137, %v11144
    %v11148 = vadd.f32 %v10003, %v11129
    %v11149 = vadd.f32 %v10003, %v11145
    %v11152 = vunpack.c.l.b16 %v10998
    %v11153 = vunpack.c.l.b16 %v11006
    %v11154 = vsel %vm10028, %v11022, %v11021
    %v11155 = vsel %vm10030, %v11023, %v11154
    %v11156 = vsel %vm10032, %v11024, %v11155
    %v11157 = vsel %vm10034, %v11025, %v11156
    %v11158 = vsel %vm10036, %v11152, %v11157
    %v11159 = vsel %vm10038, %v11027, %v11158
    %v11160 = vsel %vm10040, %v11028, %v11159
    %v11161 = vsel %vm10028, %v11030, %v11029
    %v11162 = vsel %vm10030, %v11031, %v11161
    %v11163 = vsel %vm10032, %v11153, %v11162
    %v11164 = vpack.c.b16 %v11163, %v11160
    %v11166 = vsel %vm288, %v11164, 0
    %11168 = vmatprep.subr.bf16.mxu0 0
    %11169 = vmatpush1.bf16.msra.mxu0 0
    %11170 = vmatprep.subr.bf16.mxu0 0
    %11171 = vmatpush1.bf16.msra.mxu0 0
    %11172 = vmatprep.subr.bf16.mxu0 0
    %11173 = vmatpush1.bf16.msra.mxu0 0
    %11174 = vmatprep.subr.bf16.mxu0 0
    %11175 = vmatpush1.bf16.msra.mxu0 0
    %11176 = vmatprep.subr.bf16.mxu0 0
    %11177 = vmatpush1.bf16.msra.mxu0 0
    %11178 = vmatprep.subr.bf16.mxu0 0
    %11179 = vmatpush1.bf16.msra.mxu0 0
    %11180 = vmatprep.subr.bf16.mxu0 0
    %11181 = vmatpush1.bf16.msra.mxu0 0
    %11182 = vmatprep.subr.bf16.mxu0 0
    %11183 = vmatpush1.bf16.msra.mxu0 %v10178
    %11184 = vmatprep.subr.bf16.mxu0 0
    %11185 = vmatpush2.bf16.msra.mxu0 0
    %11186 = vmatprep.subr.bf16.mxu0 0
    %11187 = vmatpush2.bf16.msra.mxu0 0
    %11188 = vmatprep.subr.bf16.mxu0 0
    %11189 = vmatpush2.bf16.msra.mxu0 0
    %11190 = vmatprep.subr.bf16.mxu0 0
    %11191 = vmatpush2.bf16.msra.mxu0 0
    %11192 = vmatprep.subr.bf16.mxu0 0
    %11193 = vmatpush2.bf16.msra.mxu0 0
    %11194 = vmatprep.subr.bf16.mxu0 0
    %11195 = vmatpush2.bf16.msra.mxu0 0
    %11196 = vmatprep.subr.bf16.mxu0 0
    %11197 = vmatpush2.bf16.msra.mxu0 0
    %11198 = vmatprep.subr.bf16.mxu0 0
    %11199 = vmatpush2.bf16.msra.mxu0 0
    %11200 = vmatprep.mubr.bf16.mxu0 0
    %11201 = vmatmul.mubr.bf16.gmra.mxu0 %v11166
    %v11202 = vpop.f32.mrf.mxu0
    %v11203 = vadd.f32 0.0, %v11202
    %v11204 = vpop.f32.mrf.mxu0
    %v11205 = vpop.f32.mrf.mxu0
    %v11206 = vadd.f32 0.0, %v11205
    %v11207 = vpop.f32.mrf.mxu0
    %11208 = vdwg.mxu0
    %v11211 = vcombine.high %v11203, %v11203
    %v11213 = vunpack.c.l.s4 1983009808
    %v11214 = vunpack.c.0.s8 %v11213
    %v11215 = vlaneseq
    %v11216 = vshrl.u32 %v11215, 7
    %v11217 = vsub.s32 %v11214, %v11216
    %v11218 = vrot.slane %v11203, %v11217
    %v11220 = vunpack.c.l.s4 1983009808
    %v11221 = vunpack.c.0.s8 %v11220
    %v11222 = vlaneseq
    %v11223 = vshrl.u32 %v11222, 7
    %v11224 = vsub.s32 %v11221, %v11223
    %v11225 = vrot.slane %v11211, %v11224
    %v11226 = vcombine.high %v11218, %v11218
    %v11227 = vcombine.high %v11225, %v11225
    %v11229 = vunpack.c.l.s4 1983009808
    %v11230 = vunpack.c.0.s8 %v11229
    %v11231 = vlaneseq
    %v11232 = vshrl.u32 %v11231, 7
    %v11233 = vsub.s32 %v11230, %v11232
    %v11234 = vrot.slane %v11206, %v11233
    %v11235 = vcombine.high %v11234, %v11234
    %v11236 = vcombine.low %v11218, %v11226
    %v11238 = vunpack.c.l.s4 1983009808
    %v11239 = vunpack.c.0.s8 %v11238
    %v11240 = vlaneseq
    %v11241 = vshrl.u32 %v11240, 7
    %v11242 = vsub.s32 %v11239, %v11241
    %v11243 = vrot.slane %v11236, %v11242
    %v11245 = vunpack.c.l.s4 1983009808
    %v11246 = vunpack.c.0.s8 %v11245
    %v11247 = vlaneseq
    %v11248 = vshrl.u32 %v11247, 7
    %v11249 = vsub.s32 %v11246, %v11248
    %v11250 = vrot.slane %v11225, %v11249
    %v11251 = vcombine.low %v11243, %v11250
    %v11252 = vcombine.low %v11227, %v11234
    %v11254 = vunpack.c.l.s4 1983009808
    %v11255 = vunpack.c.0.s8 %v11254
    %v11256 = vlaneseq
    %v11257 = vshrl.u32 %v11256, 7
    %v11258 = vsub.s32 %v11255, %v11257
    %v11259 = vrot.slane %v11252, %v11258
    %v11261 = vunpack.c.l.s4 1983009808
    %v11262 = vunpack.c.0.s8 %v11261
    %v11263 = vlaneseq
    %v11264 = vshrl.u32 %v11263, 7
    %v11265 = vsub.s32 %v11262, %v11264
    %v11266 = vrot.slane %v11235, %v11265
    %v11267 = vcombine.low %v11259, %v11266
    %v11270 = vadd.f32 %v11148, %v11251
    %v11271 = vadd.f32 %v11149, %v11267
    %v11274 = vunpack.c.l.b16 %v10999
    %v11275 = vunpack.c.l.b16 %v11007
    %v11276 = vsel %vm10028, %v11023, %v11022
    %v11277 = vsel %vm10030, %v11024, %v11276
    %v11278 = vsel %vm10032, %v11025, %v11277
    %v11279 = vsel %vm10034, %v11152, %v11278
    %v11280 = vsel %vm10036, %v11274, %v11279
    %v11281 = vsel %vm10038, %v11028, %v11280
    %v11282 = vsel %vm10040, %v11029, %v11281
    %v11283 = vsel %vm10028, %v11031, %v11030
    %v11284 = vsel %vm10030, %v11153, %v11283
    %v11285 = vsel %vm10032, %v11275, %v11284
    %v11286 = vpack.c.b16 %v11285, %v11282
    %v11288 = vsel %vm288, %v11286, 0
    %11290 = vmatprep.subr.bf16.mxu0 0
    %11291 = vmatpush1.bf16.msra.mxu0 0
    %11292 = vmatprep.subr.bf16.mxu0 0
    %11293 = vmatpush1.bf16.msra.mxu0 0
    %11294 = vmatprep.subr.bf16.mxu0 0
    %11295 = vmatpush1.bf16.msra.mxu0 0
    %11296 = vmatprep.subr.bf16.mxu0 0
    %11297 = vmatpush1.bf16.msra.mxu0 0
    %11298 = vmatprep.subr.bf16.mxu0 0
    %11299 = vmatpush1.bf16.msra.mxu0 0
    %11300 = vmatprep.subr.bf16.mxu0 0
    %11301 = vmatpush1.bf16.msra.mxu0 0
    %11302 = vmatprep.subr.bf16.mxu0 0
    %11303 = vmatpush1.bf16.msra.mxu0 0
    %11304 = vmatprep.subr.bf16.mxu0 0
    %11305 = vmatpush1.bf16.msra.mxu0 %v10306
    %11306 = vmatprep.subr.bf16.mxu0 0
    %11307 = vmatpush2.bf16.msra.mxu0 0
    %11308 = vmatprep.subr.bf16.mxu0 0
    %11309 = vmatpush2.bf16.msra.mxu0 0
    %11310 = vmatprep.subr.bf16.mxu0 0
    %11311 = vmatpush2.bf16.msra.mxu0 0
    %11312 = vmatprep.subr.bf16.mxu0 0
    %11313 = vmatpush2.bf16.msra.mxu0 0
    %11314 = vmatprep.subr.bf16.mxu0 0
    %11315 = vmatpush2.bf16.msra.mxu0 0
    %11316 = vmatprep.subr.bf16.mxu0 0
    %11317 = vmatpush2.bf16.msra.mxu0 0
    %11318 = vmatprep.subr.bf16.mxu0 0
    %11319 = vmatpush2.bf16.msra.mxu0 0
    %11320 = vmatprep.subr.bf16.mxu0 0
    %11321 = vmatpush2.bf16.msra.mxu0 0
    %11322 = vmatprep.mubr.bf16.mxu0 0
    %11323 = vmatmul.mubr.bf16.gmra.mxu0 %v11288
    %v11324 = vpop.f32.mrf.mxu0
    %v11325 = vadd.f32 0.0, %v11324
    %v11326 = vpop.f32.mrf.mxu0
    %v11327 = vpop.f32.mrf.mxu0
    %v11328 = vadd.f32 0.0, %v11327
    %v11329 = vpop.f32.mrf.mxu0
    %11330 = vdwg.mxu0
    %v11333 = vcombine.high %v11325, %v11325
    %v11335 = vunpack.c.l.s4 1983009808
    %v11336 = vunpack.c.0.s8 %v11335
    %v11337 = vlaneseq
    %v11338 = vshrl.u32 %v11337, 7
    %v11339 = vsub.s32 %v11336, %v11338
    %v11340 = vrot.slane %v11325, %v11339
    %v11342 = vunpack.c.l.s4 1983009808
    %v11343 = vunpack.c.0.s8 %v11342
    %v11344 = vlaneseq
    %v11345 = vshrl.u32 %v11344, 7
    %v11346 = vsub.s32 %v11343, %v11345
    %v11347 = vrot.slane %v11333, %v11346
    %v11348 = vcombine.high %v11340, %v11340
    %v11349 = vcombine.high %v11347, %v11347
    %v11351 = vunpack.c.l.s4 1983009808
    %v11352 = vunpack.c.0.s8 %v11351
    %v11353 = vlaneseq
    %v11354 = vshrl.u32 %v11353, 7
    %v11355 = vsub.s32 %v11352, %v11354
    %v11356 = vrot.slane %v11328, %v11355
    %v11357 = vcombine.high %v11356, %v11356
    %v11358 = vcombine.low %v11340, %v11348
    %v11360 = vunpack.c.l.s4 1983009808
    %v11361 = vunpack.c.0.s8 %v11360
    %v11362 = vlaneseq
    %v11363 = vshrl.u32 %v11362, 7
    %v11364 = vsub.s32 %v11361, %v11363
    %v11365 = vrot.slane %v11358, %v11364
    %v11367 = vunpack.c.l.s4 1983009808
    %v11368 = vunpack.c.0.s8 %v11367
    %v11369 = vlaneseq
    %v11370 = vshrl.u32 %v11369, 7
    %v11371 = vsub.s32 %v11368, %v11370
    %v11372 = vrot.slane %v11347, %v11371
    %v11373 = vcombine.low %v11365, %v11372
    %v11374 = vcombine.low %v11349, %v11356
    %v11376 = vunpack.c.l.s4 1983009808
    %v11377 = vunpack.c.0.s8 %v11376
    %v11378 = vlaneseq
    %v11379 = vshrl.u32 %v11378, 7
    %v11380 = vsub.s32 %v11377, %v11379
    %v11381 = vrot.slane %v11374, %v11380
    %v11383 = vunpack.c.l.s4 1983009808
    %v11384 = vunpack.c.0.s8 %v11383
    %v11385 = vlaneseq
    %v11386 = vshrl.u32 %v11385, 7
    %v11387 = vsub.s32 %v11384, %v11386
    %v11388 = vrot.slane %v11357, %v11387
    %v11389 = vcombine.low %v11381, %v11388
    %v11392 = vadd.f32 %v11270, %v11373
    %v11393 = vadd.f32 %v11271, %v11389
    %v11394 = vsub.f32 0.0, %v11392
    %v11395 = vsub.f32 0.0, %v11393
    %v11396 = vmul.f32 %v11394, 1.442695
    %v11397 = vpow.pop %v11396
    %v11398 = vmul.f32 %v11395, 1.442695
    %v11399 = vpow.pop %v11398
    %v11400 = vadd.f32 %v11397, 1.0
    %v11401 = vadd.f32 %v11399, 1.0
    %v11402 = vrcp.pop %v11400
    %v11403 = vmul.f32 1.0, %v11402
    %v11404 = vrcp.pop %v11401
    %v11405 = vmul.f32 1.0, %v11404
    %11406 = vst.msk [vmem:[%s8] sm:$0x3f] %vm9978, %v11403
    %11407 = vst.msk [vmem:[%s8 + $0x8] sm:$0x3f] %vm9978, %v11405
    // Predicated region
    $region22: #{tpu_custom_call.1} parent=1 // pred_check
      _
    $region23: #{tpu_custom_call.1} parent=1 // pred_check_branch
      %11409 = sbr.rel (0) target = $region25
    $region24: #{tpu_custom_call.1} parent=1 // pred_region
      %s11411 = ssub.s32 2048, 2048
      %11412 = vsyncadd [#allocation4], %s11411
      %s11413 = sshll.u32 [#allocation5], 4
      %s11414 = int_to_ptr.vmem [resolvable:$true] %s11413
      %11419 = dma.vmem_to_hbm [thread:$0]  %s11414, 2048, %s4, [#allocation4], 128, 128, 8
    $region25: #{tpu_custom_call.1} parent=1 // pred_fallthru
      _
    // Predicated region
    $region26: #{tpu_custom_call.1} parent=1 // pred_check
      _
    $region27: #{tpu_custom_call.1} parent=1 // pred_check_branch
      %11421 = sbr.rel (0) target = $region29
    $region28: #{tpu_custom_call.1} parent=1 // pred_region
      _
    $region29: #{tpu_custom_call.1} parent=1 // pred_fallthru
      _
    // Predicated region
    $region30: #{tpu_custom_call.1} parent=1 // pred_check
      _
    $region31: #{tpu_custom_call.1} parent=1 // pred_check_branch
      %11423 = sbr.rel (0) target = $region33
    $region32: #{tpu_custom_call.1} parent=1 // pred_region
      _
    $region33: #{tpu_custom_call.1} parent=1 // pred_fallthru
      _
    // Predicated region
    $region34: #{tpu_custom_call.1} parent=1 // pred_check
      _
    $region35: #{tpu_custom_call.1} parent=1 // pred_check_branch
      %11425 = sbr.rel (0) target = $region37
    $region36: #{tpu_custom_call.1} parent=1 // pred_region
      _
    $region37: #{tpu_custom_call.1} parent=1 // pred_fallthru
      _
    // Predicated region
    $region38: #{tpu_custom_call.1} parent=1 // pred_check
      _
    $region39: #{tpu_custom_call.1} parent=1 // pred_check_branch
      %11427 = sbr.rel (0) target = $region41
    $region40: #{tpu_custom_call.1} parent=1 // pred_region
      _
    $region41: #{tpu_custom_call.1} parent=1 // pred_fallthru
      _
    // Predicated region
    $region42: #{tpu_custom_call.1} parent=1 // pred_check
      _
    $region43: #{tpu_custom_call.1} parent=1 // pred_check_branch
      %11429 = sbr.rel (0) target = $region45
    $region44: #{tpu_custom_call.1} parent=1 // pred_region
      %11430 = dma.done [#allocation4], 2048
    $region45: #{tpu_custom_call.1} parent=1 // pred_fallthru
      _
    // Predicated region
    $region46: #{tpu_custom_call.1} parent=1 // pred_check
      _
    $region47: #{tpu_custom_call.1} parent=1 // pred_check_branch
      %11432 = sbr.rel (0) target = $region49
    $region48: #{tpu_custom_call.1} parent=1 // pred_region
      _
    $region49: #{tpu_custom_call.1} parent=1 // pred_fallthru
      _
    // Predicated region
    $region50: #{tpu_custom_call.1} parent=1 // pred_check
      _
    $region51: #{tpu_custom_call.1} parent=1 // pred_check_branch
      %11434 = sbr.rel (0) target = $region53
    $region52: #{tpu_custom_call.1} parent=1 // pred_region
      _
    $region53: #{tpu_custom_call.1} parent=1 // pred_fallthru
      _
    // Predicated region
    $region54: #{tpu_custom_call.1} parent=1 // pred_check
      _
    $region55: #{tpu_custom_call.1} parent=1 // pred_check_branch
      %11436 = sbr.rel (0) target = $region57
    $region56: #{tpu_custom_call.1} parent=1 // pred_region
      _
    $region57: #{tpu_custom_call.1} parent=1 // pred_fallthru
      _
    // Predicated region
    $region58: #{tpu_custom_call.1} parent=1 // pred_check
      _
    $region59: #{tpu_custom_call.1} parent=1 // pred_check_branch
      %11438 = sbr.rel (0) target = $region61
    $region60: #{tpu_custom_call.1} parent=1 // pred_region
      _
    $region61: #{tpu_custom_call.1} parent=1 // pred_fallthru
      _
    %11439 = vsyncpa [#allocation3], 1
    %11440 = vsyncpa [#allocation4], 1

</llo_original>
